<compile_context>
chip_gen: v6e
topology: v6e:2x2x1
jax: 0.10.0
libtpu: 0.0.40
codegen_flags: <defaults>
</compile_context>

<pallas_src>
import jax
import jax.numpy as jnp
from jax.experimental import pallas as pl
from jax.experimental.pallas import tpu as pltpu

# PyTorch defaults for nn.LocalResponseNorm(5)
LRN_SIZE = 5
LRN_ALPHA = 1e-4
LRN_BETA = 0.75
LRN_K = 1.0

_A_TILE_BYTES = 6 * 1024 * 1024   # bf16 A-tile budget (Pallas double-buffers it)
_B_TILE_BYTES = 8 * 1024 * 1024   # bf16 B-tile budget
_VMEM_LIMIT = 40 * 1024 * 1024    # fits v5e/v6e (128 MiB) and v7x (64 MiB) comfortably


def _round_up(x, m):
    return (x + m - 1) // m * m


def _largest_divisor(n, cap, multiple=1):
    """Largest d <= cap with d % multiple == 0 and n % d == 0, else None."""
    d = min(cap, n)
    d -= d % multiple
    while d >= multiple:
        if n % d == 0:
            return d
        d -= multiple
    return None


# ----------------------------------------------------------------------------
# Pallas kernel 1: tiled matmul + bias + ReLU (all convs via im2col, all FCs)
# bf16 operands on the MXU, f32 accumulation in VMEM scratch.
# ----------------------------------------------------------------------------
def _matmul_bias_relu_kernel(a_ref, b_ref, bias_ref, o_ref, acc_ref):
    k = pl.program_id(2)

    @pl.when(k == 0)
    def _():
        acc_ref[...] = jnp.zeros_like(acc_ref)

    acc_ref[...] += jnp.dot(a_ref[...], b_ref[...],
                            preferred_element_type=jnp.float32)

    @pl.when(k == pl.num_programs(2) - 1)
    def _():
        out = acc_ref[...] + bias_ref[...]          # bias block (1, tn) broadcasts
        o_ref[...] = jnp.maximum(out, 0.0).astype(o_ref.dtype)


def matmul_bias_relu(a, b, bias, *, tm, tn, tk, out_dtype=jnp.bfloat16):
    """relu(a @ b + bias). a:(M,K), b:(K,N) run on the MXU in bf16, f32 accum."""
    M, K = a.shape
    K2, N = b.shape
    assert K == K2 and bias.shape == (N,)
    Mp, Kp, Np = _round_up(M, tm), _round_up(K, tk), _round_up(N, tn)

    a = a.astype(jnp.bfloat16)          # no-op when activations are already bf16
    b = b.astype(jnp.bfloat16)          # no-op: weights pre-cast once at init
    if (Mp, Kp) != (M, K):
        a = jnp.pad(a, ((0, Mp - M), (0, Kp - K)))
    if (Kp, Np) != (K, N):
        b = jnp.pad(b, ((0, Kp - K), (0, Np - N)))
    bias2 = bias.astype(jnp.float32).reshape(1, N)
    if Np != N:
        bias2 = jnp.pad(bias2, ((0, 0), (0, Np - N)))

    out = pl.pallas_call(
        _matmul_bias_relu_kernel,
        out_shape=jax.ShapeDtypeStruct((Mp, Np), out_dtype),
        grid=(Mp // tm, Np // tn, Kp // tk),
        in_specs=[
            pl.BlockSpec((tm, tk), lambda i, j, k: (i, k)),
            pl.BlockSpec((tk, tn), lambda i, j, k: (k, j)),
            pl.BlockSpec((1, tn), lambda i, j, k: (0, j)),
        ],
        out_specs=pl.BlockSpec((tm, tn), lambda i, j, k: (i, j)),
        scratch_shapes=[pltpu.VMEM((tm, tn), jnp.float32)],
        compiler_params=pltpu.CompilerParams(
            dimension_semantics=("parallel", "parallel", "arbitrary"),
            vmem_limit_bytes=_VMEM_LIMIT),
    )(a, b, bias2)
    if (Mp, Np) != (M, N):
        out = out[:M, :N]
    return out


def _pick_tm(M, K, cap=4096):
    """Fat M tile (multiple of 8), preferring an exact divisor of M (no padding)."""
    cap = max(8, min(cap, _A_TILE_BYTES // (2 * K)))
    tm = _largest_divisor(M, cap, multiple=8)
    if tm is None:
        tm = max(8, cap - cap % 8)      # fall back to padding M
    return tm


def _pick_tk(K, tn):
    """Single K block when it fits the B-tile budget, else a fat divisor of K."""
    cap = max(128, _B_TILE_BYTES // (2 * tn))
    if K <= cap:
        return K
    tk = _largest_divisor(K, cap, multiple=128)
    return tk if tk is not None else min(cap - cap % 128, 2048)


# ----------------------------------------------------------------------------
# Pallas kernel 2: LocalResponseNorm(size=5) across channels (channels-last)
# ----------------------------------------------------------------------------
def _lrn_kernel(x_ref, band_ref, o_ref):
    x = x_ref[...].astype(jnp.float32)               # (tm, C)
    # Cross-channel windowed sum (|i-j| <= 2, zeros outside) via banded matmul.
    s = jnp.dot(x * x, band_ref[...], preferred_element_type=jnp.float32)
    base = s * (LRN_ALPHA / LRN_SIZE) + LRN_K        # always >= 1
    div = jnp.exp(LRN_BETA * jnp.log(base))          # base ** 0.75
    o_ref[...] = (x / div).astype(o_ref.dtype)


def lrn_channels_last(x2d):
    """x2d: (M, C) -> LRN across the C (last) axis, matching PyTorch semantics."""
    M, C = x2d.shape
    tm = _largest_divisor(M, 4096, multiple=8) or 2048
    Mp = _round_up(M, tm)
    if Mp != M:
        x2d = jnp.pad(x2d, ((0, Mp - M), (0, 0)))
    idx = jnp.arange(C)
    band = (jnp.abs(idx[:, None] - idx[None, :]) <= (LRN_SIZE // 2)).astype(jnp.float32)

    out = pl.pallas_call(
        _lrn_kernel,
        out_shape=jax.ShapeDtypeStruct((Mp, C), x2d.dtype),
        grid=(Mp // tm,),
        in_specs=[pl.BlockSpec((tm, C), lambda i: (i, 0)),
                  pl.BlockSpec((C, C), lambda i: (0, 0))],
        out_specs=pl.BlockSpec((tm, C), lambda i: (i, 0)),
        compiler_params=pltpu.CompilerParams(dimension_semantics=("parallel",)),
    )(x2d, band)
    return out[:M] if Mp != M else out


# ----------------------------------------------------------------------------
# Pallas kernel 3: MaxPool2d(2, 2) — single mem-bound pass, no host transpose.
# Input viewed (pure reshape) as (N*Ho, 2, Wo, 2*C); vertical max via a
# leading-dim select, horizontal max via a static lane slice.
# ----------------------------------------------------------------------------
def _maxpool_kernel(x_ref, o_ref):
    x = x_ref[...]                                   # (R, 2, Wo, 2*C)
    C = o_ref.shape[-1]
    v = jnp.maximum(x[:, 0], x[:, 1])                # vertical 2-max -> (R, Wo, 2*C)
    o_ref[...] = jnp.maximum(v[..., :C], v[..., C:]) # horizontal 2-max -> (R, Wo, C)


def maxpool2x2(x):
    """x: (N, H, W, C) with H, W even -> (N, H//2, W//2, C)."""
    N, H, W, C = x.shape
    Ho, Wo = H // 2, W // 2
    rows = N * Ho
    xr = x.reshape(rows, 2, Wo, 2 * C)               # pure reshape, no data movement
    row_bytes = 2 * Wo * 2 * C * x.dtype.itemsize
    R = _largest_divisor(rows, max(1, (2 * 1024 * 1024) // row_bytes)) or 1

    out = pl.pallas_call(
        _maxpool_kernel,
        out_shape=jax.ShapeDtypeStruct((rows, Wo, C), x.dtype),
        grid=(rows // R,),
        in_specs=[pl.BlockSpec((R, 2, Wo, 2 * C), lambda i: (i, 0, 0, 0))],
        out_specs=pl.BlockSpec((R, Wo, C), lambda i: (i, 0, 0)),
        compiler_params=pltpu.CompilerParams(dimension_semantics=("parallel",)),
    )(xr)
    return out.reshape(N, Ho, Wo, C)


# ----------------------------------------------------------------------------
# Conv2d(3x3, stride=1, pad=1) + ReLU via im2col + Pallas matmul (bf16)
# ----------------------------------------------------------------------------
def conv3x3_relu(x, wmat, b):
    """x: (N,H,W,Cin) bf16; wmat: (9*Cin, Cout) bf16 (pre-reshaped HWIO); b: (Cout,)."""
    N, H, W, Cin = x.shape
    Cout = wmat.shape[1]
    xp = jnp.pad(x, ((0, 0), (1, 1), (1, 1), (0, 0)))
    # TODO(synk): fuse the im2col gather into the matmul BlockSpec (per-tap
    # offset index_map over the zero-padded input) to avoid materializing the
    # 9x patch tensor in HBM.
    cols = [xp[:, kh:kh + H, kw:kw + W, :] for kh in range(3) for kw in range(3)]
    patches = jnp.concatenate(cols, axis=-1).reshape(N * H * W, 9 * Cin)
    K = 9 * Cin
    tn = min(Cout, 512)
    y = matmul_bias_relu(patches, wmat, b,
                         tm=_pick_tm(N * H * W, K), tn=tn, tk=_pick_tk(K, tn))
    return y.reshape(N, H, W, Cout)


def linear_relu(x, w, b, out_dtype=jnp.bfloat16):
    """relu(x @ w + b) for small-batch FC layers: tm = padded batch, fat K tiles."""
    M, K = x.shape
    N = w.shape[1]
    tn = min(N, 512)
    return matmul_bias_relu(x, w, b, tm=_round_up(M, 8), tn=tn,
                            tk=_pick_tk(K, tn), out_dtype=out_dtype)


# ----------------------------------------------------------------------------
# Parameter construction (deterministic, synthetic) and full forward
# ----------------------------------------------------------------------------
def make_params(key, num_classes=10):
    conv_cfg = [  # (Cin, Cout)
        (3, 64), (64, 128), (128, 256), (256, 256),
        (256, 512), (512, 512), (512, 512), (512, 512),
    ]
    fc_cfg = [(7 * 7 * 512, 4096), (4096, 4096), (4096, num_classes)]
    params = {}
    keys = jax.random.split(key, len(conv_cfg) + len(fc_cfg))
    for i, (cin, cout) in enumerate(conv_cfg):
        std = (2.0 / (9 * cin)) ** 0.5
        w = std * jax.random.normal(keys[i], (3, 3, cin, cout), jnp.float32)
        # Pre-cast + pre-reshape once: HWIO (kh,kw,cin,cout) -> (9*cin, cout), bf16.
        params[f"conv{i+1}_w"] = w.reshape(9 * cin, cout).astype(jnp.bfloat16)
        params[f"conv{i+1}_b"] = jnp.zeros((cout,), jnp.float32)
    for i, (fin, fout) in enumerate(fc_cfg):
        params[f"fc{i+1}_w"] = 0.01 * jax.random.normal(
            keys[len(conv_cfg) + i], (fin, fout), jnp.bfloat16)
        params[f"fc{i+1}_b"] = jnp.zeros((fout,), jnp.float32)
    return params


def vgg11_lrn_forward(x_nchw, params):
    # layout: input NCHW (PyTorch) -> NHWC internally, bf16 activations
    x = jnp.transpose(x_nchw, (0, 2, 3, 1)).astype(jnp.bfloat16)

    x = conv3x3_relu(x, params["conv1_w"], params["conv1_b"])
    N, H, W, C = x.shape
    x = lrn_channels_last(x.reshape(N * H * W, C)).reshape(N, H, W, C)
    x = maxpool2x2(x)

    x = conv3x3_relu(x, params["conv2_w"], params["conv2_b"])
    x = maxpool2x2(x)

    x = conv3x3_relu(x, params["conv3_w"], params["conv3_b"])
    x = conv3x3_relu(x, params["conv4_w"], params["conv4_b"])
    x = maxpool2x2(x)

    x = conv3x3_relu(x, params["conv5_w"], params["conv5_b"])
    x = conv3x3_relu(x, params["conv6_w"], params["conv6_b"])
    x = maxpool2x2(x)

    x = conv3x3_relu(x, params["conv7_w"], params["conv7_b"])
    x = conv3x3_relu(x, params["conv8_w"], params["conv8_b"])
    x = maxpool2x2(x)                                  # -> (N, 7, 7, 512)

    # flatten matching PyTorch's NCHW x.view(N, -1): (C, H, W) ordering
    N = x.shape[0]
    x = jnp.transpose(x, (0, 3, 1, 2)).reshape(N, -1)  # (N, 512*7*7)

    x = linear_relu(x, params["fc1_w"], params["fc1_b"])
    x = linear_relu(x, params["fc2_w"], params["fc2_b"])
    x = linear_relu(x, params["fc3_w"], params["fc3_b"], out_dtype=jnp.float32)
    return x


if __name__ == "__main__":
    key = jax.random.PRNGKey(0)
    k_x, k_p = jax.random.split(key)

    num_classes = 10
    batch = 2
    # Spatial size must be 224: the module's Linear1 expects 7*7*512 features
    # after five 2x2 max-pools.
    x = jax.random.normal(k_x, (batch, 3, 224, 224), jnp.float32)
    params = make_params(k_p, num_classes=num_classes)

    out = jax.block_until_ready(vgg11_lrn_forward(x, params))

    assert out.shape == (batch, num_classes), out.shape
    assert bool(jnp.all(jnp.isfinite(out)))
    print("KERNEL_OK")
</pallas_src>

<mosaic_0001>
module attributes {stable_mosaic.version = 11 : i64} {
  func.func @_matmul_bias_relu_kernel(%arg0: i32, %arg1: i32, %arg2: i32, %arg3: memref<3584x27xbf16, #tpu.memory_space<vmem>>, %arg4: memref<27x64xbf16, #tpu.memory_space<vmem>>, %arg5: memref<1x64xf32, #tpu.memory_space<vmem>>, %arg6: memref<3584x64xbf16, #tpu.memory_space<vmem>>, %arg7: memref<3584x64xf32, #tpu.memory_space<vmem>>) attributes {dimension_semantics = [#tpu.dimension_semantics<parallel>, #tpu.dimension_semantics<parallel>, #tpu.dimension_semantics<arbitrary>], iteration_bounds = array<i64: 28, 1, 1>, scalar_prefetch = 0 : i64, scratch_operands = 1 : i64, tpu.core_type = #tpu.core_type<tc>, window_params = [{transform_indices = @transform_0, window_bounds = array<i64: 3584, 27>}, {transform_indices = @transform_1, window_bounds = array<i64: 27, 64>}, {transform_indices = @transform_2, window_bounds = array<i64: 1, 64>}, {transform_indices = @transform_3, window_bounds = array<i64: 3584, 64>}]} {
    %c0_i32 = arith.constant 0 : i32
    %0 = arith.cmpi eq, %arg2, %c0_i32 : i32
    %1 = arith.extui %0 : i1 to i32
    %c0_i32_0 = arith.constant 0 : i32
    %2 = arith.cmpi ne, %1, %c0_i32_0 : i32
    scf.if %2 {
      %cst_10 = arith.constant 0.000000e+00 : f32
      %12 = vector.broadcast %cst_10 : f32 to vector<3584x64xf32>
      %c0_11 = arith.constant 0 : index
      %c0_12 = arith.constant 0 : index
      %13 = vector.load %arg7[%c0_11, %c0_12] : memref<3584x64xf32, #tpu.memory_space<vmem>>, vector<3584x64xf32>
      tpu.vector_store %arg7[%c0_11, %c0_12], %12 {strides = array<i32>} : memref<3584x64xf32, #tpu.memory_space<vmem>>, vector<3584x64xf32>,
    } else {
    }
    %c0 = arith.constant 0 : index
    %c0_1 = arith.constant 0 : index
    %3 = vector.load %arg7[%c0, %c0_1] : memref<3584x64xf32, #tpu.memory_space<vmem>>, vector<3584x64xf32>
    %c0_2 = arith.constant 0 : index
    %c0_3 = arith.constant 0 : index
    %4 = vector.load %arg3[%c0_2, %c0_3] : memref<3584x27xbf16, #tpu.memory_space<vmem>>, vector<3584x27xbf16>
    %c0_4 = arith.constant 0 : index
    %c0_5 = arith.constant 0 : index
    %5 = vector.load %arg4[%c0_4, %c0_5] : memref<27x64xbf16, #tpu.memory_space<vmem>>, vector<27x64xbf16>
    %cst = arith.constant dense<0.000000e+00> : vector<3584x64xf32>
    %6 = tpu.matmul %4, %5, %cst {dimension_numbers = #tpu.dot_dimension_numbers<[1], [0], [0], [1], [0, 0, 1, 1], [], []>} : vector<3584x27xbf16>, vector<27x64xbf16>, vector<3584x64xf32> -> vector<3584x64xf32>
    %7 = arith.addf %3, %6 : vector<3584x64xf32>
    %c0_6 = arith.constant 0 : index
    %c0_7 = arith.constant 0 : index
    %8 = vector.load %arg7[%c0_6, %c0_7] : memref<3584x64xf32, #tpu.memory_space<vmem>>, vector<3584x64xf32>
    tpu.vector_store %arg7[%c0_6, %c0_7], %7 {strides = array<i32>} : memref<3584x64xf32, #tpu.memory_space<vmem>>, vector<3584x64xf32>,
    %c0_i32_8 = arith.constant 0 : i32
    %9 = arith.cmpi eq, %arg2, %c0_i32_8 : i32
    %10 = arith.extui %9 : i1 to i32
    %c0_i32_9 = arith.constant 0 : i32
    %11 = arith.cmpi ne, %10, %c0_i32_9 : i32
    scf.if %11 {
      %c0_10 = arith.constant 0 : index
      %c0_11 = arith.constant 0 : index
      %12 = vector.load %arg7[%c0_10, %c0_11] : memref<3584x64xf32, #tpu.memory_space<vmem>>, vector<3584x64xf32>
      %c0_12 = arith.constant 0 : index
      %c0_13 = arith.constant 0 : index
      %13 = vector.load %arg5[%c0_12, %c0_13] : memref<1x64xf32, #tpu.memory_space<vmem>>, vector<1x64xf32>
      %14 = vector.broadcast %13 : vector<1x64xf32> to vector<3584x64xf32>
      %15 = arith.addf %12, %14 : vector<3584x64xf32>
      %cst_14 = arith.constant 0.000000e+00 : f32
      %16 = vector.broadcast %cst_14 : f32 to vector<3584x64xf32>
      %17 = arith.maximumf %15, %16 : vector<3584x64xf32>
      %18 = arith.truncf %17 : vector<3584x64xf32> to vector<3584x64xbf16>
      %c0_15 = arith.constant 0 : index
      %c0_16 = arith.constant 0 : index
      %19 = vector.load %arg6[%c0_15, %c0_16] : memref<3584x64xbf16, #tpu.memory_space<vmem>>, vector<3584x64xbf16>
      tpu.vector_store %arg6[%c0_15, %c0_16], %18 {strides = array<i32>} : memref<3584x64xbf16, #tpu.memory_space<vmem>>, vector<3584x64xbf16>,
    } else {
    }
    return
  }
  func.func @transform_0(%arg0: i32, %arg1: i32, %arg2: i32) -> (i32, i32) {
    %c0_i32 = arith.constant 0 : i32
    return %arg0, %arg2 : i32, i32
  }
  func.func @transform_1(%arg0: i32, %arg1: i32, %arg2: i32) -> (i32, i32) {
    %c0_i32 = arith.constant 0 : i32
    return %arg2, %arg1 : i32, i32
  }
  func.func @transform_2(%arg0: i32, %arg1: i32, %arg2: i32) -> (i32, i32) {
    %c0_i32 = arith.constant 0 : i32
    %c0_i32_0 = arith.constant 0 : i32
    return %c0_i32, %arg1 : i32, i32
  }
  func.func @transform_3(%arg0: i32, %arg1: i32, %arg2: i32) -> (i32, i32) {
    %c0_i32 = arith.constant 0 : i32
    return %arg0, %arg1 : i32, i32
  }
}

</mosaic_0001>

<llo_original>
// kernel: tpu_custom_call.1
$region0: #{tpu_custom_call.1}
  #allocation0 [shape = 'u32[]', space=smem, size = 0x4, offset = 0x4, fixed_abs, tag = 'smem constant byte address 0x4 - core index']
  #allocation1 [shape = 'u32[144,128]{1,0:T(1,128)}', space=vmem, size = 0x12000, scoped, tag = 'internal scratch']
  #allocation2 [shape = 'f32[3584,64]{1,0:T(8,128)}', space=vmem, size = 0x1c0000, scoped, tag = 'scratch operand']
  %s0 = inlined_call_operand.vmem [shape: bf16[100352,27], index: 0, kind: input, shape index: {}]
  %s1 = inlined_call_operand.vmem [shape: bf16[27,64], index: 1, kind: input, shape index: {}]
  %s2 = inlined_call_operand.vmem [shape: f32[1,64], index: 2, kind: input, shape index: {}]
  %s3 = inlined_call_operand.vmem [shape: bf16[100352,64], index: 3, kind: output, shape index: {}]
  %s4 = sld [smem:[#allocation0]]
  $region53: #{tpu_custom_call.1} parent=0
    _
  %s6 = ssub.s32 1, %s4
  %s7 = scalar_select 0, %s6, %s4
  loop: start=0, step=1, limit=30
  $region2: #{tpu_custom_call.1} parent=0 // loop_pre_header
    _
  $region3: #{tpu_custom_call.1} parent=0 // loop_header
    %s9 = sphi 0, %s13
    %p10 = scmp.ge.s32.totalorder %s9, 30
    %s16 = sphi 0, %s35
    %s17 = sphi 0, %s31
    %s18 = sphi 0, %s27
    %s19 = sphi 0, %s16
    %s20 = sphi 0, %s17
    %s21 = sphi 0, %s18
    %s22 = sphi 0, %s19
    %s23 = sphi 0, %s20
    %s24 = sphi 0, %s21
    %s40 = sphi 0, %s42
    %s43 = sphi 0, %s40
    %s44 = sphi 0, %s43
    %s60 = sphi 0, %s44
    %s68 = sphi 0, %s70
    %s71 = sphi 0, %s68
    %s72 = sphi 0, %s71
    %s88 = sphi 0, %s72
    %s94 = sphi 0, %s96
    %s97 = sphi 0, %s94
    %s98 = sphi 0, %s97
    %s114 = sphi 0, %s98
    %s122 = sphi 0, %s124
    %s125 = sphi 0, %s122
    %s126 = sphi 0, %s125
    %s142 = sphi 0, %s126
  $region4: #{tpu_custom_call.1} parent=0 // loop_header_branch
    %12 = sbr.rel (%p10) target = $region8
  $region5: #{tpu_custom_call.1} parent=0 // loop_body
    %s14 = ssub.s32 %s9, 1
    %s15 = ssub.s32 %s9, 2
    %s25 = sadd.s32 1, %s18
    %p26 = scmp.ge.s32.totalorder %s25, 1
    %s27 = scalar_select %p26, 0, %s25
    %s28 = sadd.s32 1, %s17
    %s29 = scalar_select %p26, %s28, %s17
    %p30 = scmp.ge.s32.totalorder %s29, 1
    %s31 = scalar_select %p30, 0, %s29
    %s32 = sadd.s32 1, %s16
    %s33 = scalar_select %p30, %s32, %s16
    %p34 = scmp.ge.s32.totalorder %s33, 28
    %s35 = scalar_select %p34, 0, %s33
    %s36 = ssub.s32 %s16, %s35
    %s37 = ssub.s32 %s18, %s27
    %s38 = sor.u32 %s36, %s37
    %p39 = scmp.eq.s32.totalorder %s38, 0
    %s41 = sadd.s32 %s40, 1
    %s42 = scalar_select %p39, %s40, %s41
    %p45 = pneg %p39
    %p46 = scmp.eq.s32.totalorder %s9, 27
    %p47 = por %p45, %p46
    %p48 = scmp.ne.s32.totalorder %s40, %s43
    %p49 = scmp.eq.s32.totalorder %s9, 0
    %p50 = por %p48, %p49
    %p51 = scmp.ne.s32.totalorder %s40, %s43
    %p52 = scmp.eq.s32.totalorder %s14, 27
    %p53 = por %p51, %p52
    %p54 = scmp.ne.s32.totalorder %s43, %s44
    %p55 = scmp.eq.s32.totalorder %s14, 0
    %p56 = por %p54, %p55
    %p57 = scmp.ne.s32.totalorder %s43, %s44
    %p58 = scmp.eq.s32.totalorder %s15, 27
    %p59 = por %p57, %p58
    %p61 = scmp.ne.s32.totalorder %s44, %s60
    %p62 = scmp.eq.s32.totalorder %s15, 0
    %p63 = por %p61, %p62
    %s64 = ssub.s32 %s18, %s27
    %s65 = ssub.s32 %s17, %s31
    %s66 = sor.u32 %s64, %s65
    %p67 = scmp.eq.s32.totalorder %s66, 0
    %s69 = sadd.s32 %s68, 1
    %s70 = scalar_select %p67, %s68, %s69
    %p73 = pneg %p67
    %p74 = scmp.eq.s32.totalorder %s9, 27
    %p75 = por %p73, %p74
    %p76 = scmp.ne.s32.totalorder %s68, %s71
    %p77 = scmp.eq.s32.totalorder %s9, 0
    %p78 = por %p76, %p77
    %p79 = scmp.ne.s32.totalorder %s68, %s71
    %p80 = scmp.eq.s32.totalorder %s14, 27
    %p81 = por %p79, %p80
    %p82 = scmp.ne.s32.totalorder %s71, %s72
    %p83 = scmp.eq.s32.totalorder %s14, 0
    %p84 = por %p82, %p83
    %p85 = scmp.ne.s32.totalorder %s71, %s72
    %p86 = scmp.eq.s32.totalorder %s15, 27
    %p87 = por %p85, %p86
    %p89 = scmp.ne.s32.totalorder %s72, %s88
    %p90 = scmp.eq.s32.totalorder %s15, 0
    %p91 = por %p89, %p90
    %s92 = ssub.s32 %s17, %s31
    %p93 = scmp.eq.s32.totalorder %s92, 0
    %s95 = sadd.s32 %s94, 1
    %s96 = scalar_select %p93, %s94, %s95
    %p99 = pneg %p93
    %p100 = scmp.eq.s32.totalorder %s9, 27
    %p101 = por %p99, %p100
    %p102 = scmp.ne.s32.totalorder %s94, %s97
    %p103 = scmp.eq.s32.totalorder %s9, 0
    %p104 = por %p102, %p103
    %p105 = scmp.ne.s32.totalorder %s94, %s97
    %p106 = scmp.eq.s32.totalorder %s14, 27
    %p107 = por %p105, %p106
    %p108 = scmp.ne.s32.totalorder %s97, %s98
    %p109 = scmp.eq.s32.totalorder %s14, 0
    %p110 = por %p108, %p109
    %p111 = scmp.ne.s32.totalorder %s97, %s98
    %p112 = scmp.eq.s32.totalorder %s15, 27
    %p113 = por %p111, %p112
    %p115 = scmp.ne.s32.totalorder %s98, %s114
    %p116 = scmp.eq.s32.totalorder %s15, 0
    %p117 = por %p115, %p116
    %s118 = ssub.s32 %s16, %s35
    %s119 = ssub.s32 %s17, %s31
    %s120 = sor.u32 %s118, %s119
    %p121 = scmp.eq.s32.totalorder %s120, 0
    %s123 = sadd.s32 %s122, 1
    %s124 = scalar_select %p121, %s122, %s123
    %p127 = pneg %p121
    %p128 = scmp.eq.s32.totalorder %s9, 27
    %p129 = por %p127, %p128
    %p130 = scmp.ne.s32.totalorder %s122, %s125
    %p131 = scmp.eq.s32.totalorder %s9, 0
    %p132 = por %p130, %p131
    %p133 = scmp.ne.s32.totalorder %s122, %s125
    %p134 = scmp.eq.s32.totalorder %s14, 27
    %p135 = por %p133, %p134
    %p136 = scmp.ne.s32.totalorder %s125, %s126
    %p137 = scmp.eq.s32.totalorder %s14, 0
    %p138 = por %p136, %p137
    %p139 = scmp.ne.s32.totalorder %s125, %s126
    %p140 = scmp.eq.s32.totalorder %s15, 27
    %p141 = por %p139, %p140
    %p143 = scmp.ne.s32.totalorder %s126, %s142
    %p144 = scmp.eq.s32.totalorder %s15, 0
    %p145 = por %p143, %p144
    %p146 = scmp.le.s32.totalorder 1, %s9
    %p147 = scmp.lt.s32.totalorder %s9, 29
    %p148 = pnand %p146, %p147
    %p149 = pneg %p148
    // Predicated region
    $region9: #{tpu_custom_call.1} parent=5 // pred_check
      _
    $region10: #{tpu_custom_call.1} parent=5 // pred_check_branch
      %151 = sbr.rel (%p148) target = $region12
    $region11: #{tpu_custom_call.1} parent=5 // pred_region
      %s152 = ssub.s32 %s9, 1
      // Predicated region
      $region13: #{tpu_custom_call.1} parent=11 // pred_check
        %p153 = pneg %p84
      $region14: #{tpu_custom_call.1} parent=11 // pred_check_branch
        %155 = sbr.rel (%p153) target = $region16
      $region15: #{tpu_custom_call.1} parent=11 // pred_region
        %s156 = smul.u32 4, %s21
        %p157 = scmp.lt.s32.totalorder %s156, 3
        %s158 = scalar_select %p157, %s156, 3
        %p159 = scmp.lt.s32.totalorder %s20, 0
        %s160 = scalar_select %p159, %s20, 0
        %s161 = sadd.s32 %s160, %s158
        %s162 = smul.addr %s161, 4
        %s163 = scalar_lea.vmem %s1, %s162
        %s164 = smul.u32 4, %s21
      $region16: #{tpu_custom_call.1} parent=11 // pred_fallthru
        _
      // Predicated region
      $region17: #{tpu_custom_call.1} parent=11 // pred_check
        %p165 = pneg %p110
      $region18: #{tpu_custom_call.1} parent=11 // pred_check_branch
        %167 = sbr.rel (%p165) target = $region20
      $region19: #{tpu_custom_call.1} parent=11 // pred_region
        %p168 = scmp.lt.s32.totalorder %s20, 0
        %s169 = scalar_select %p168, %s20, 0
        %s170 = scalar_lea.vmem %s2, %s169
      $region20: #{tpu_custom_call.1} parent=11 // pred_fallthru
        _
    $region12: #{tpu_custom_call.1} parent=5 // pred_fallthru
      _
    %p171 = scmp.lt.s32.totalorder %s9, 28
    // Predicated region
    $region21: #{tpu_custom_call.1} parent=5 // pred_check
      %p172 = pneg %p171
    $region22: #{tpu_custom_call.1} parent=5 // pred_check_branch
      %174 = sbr.rel (%p172) target = $region24
    $region23: #{tpu_custom_call.1} parent=5 // pred_region
      // Predicated region
      $region25: #{tpu_custom_call.1} parent=23 // pred_check
        %p175 = pneg %p50
      $region26: #{tpu_custom_call.1} parent=23 // pred_check_branch
        %177 = sbr.rel (%p175) target = $region28
      $region27: #{tpu_custom_call.1} parent=23 // pred_region
        %s178 = smul.u32 448, %s16
        %p179 = scmp.lt.s32.totalorder %s178, 12543
        %s180 = scalar_select %p179, %s178, 12543
        %p181 = scmp.lt.s32.totalorder %s18, 0
        %s182 = scalar_select %p181, %s18, 0
        %s183 = sadd.s32 %s182, %s180
        %s184 = smul.addr %s183, 4
        %s185 = scalar_lea.vmem %s0, %s184
        %s186 = smul.u32 448, %s16
      $region28: #{tpu_custom_call.1} parent=23 // pred_fallthru
        _
    $region24: #{tpu_custom_call.1} parent=5 // pred_fallthru
      _
    %p187 = scmp.le.s32.totalorder 1, %s9
    %p188 = scmp.lt.s32.totalorder %s9, 29
    %p189 = pnand %p187, %p188
    %p190 = pneg %p189
    // Predicated region
    $region29: #{tpu_custom_call.1} parent=5 // pred_check
      _
    $region30: #{tpu_custom_call.1} parent=5 // pred_check_branch
      %192 = sbr.rel (%p189) target = $region32
    $region31: #{tpu_custom_call.1} parent=5 // pred_region
      %s193 = ssub.s32 %s9, 1
      %s194 = smul.u32 448, %s19
      %p195 = scmp.lt.s32.totalorder %s194, 12543
      %s196 = scalar_select %p195, %s194, 12543
      %p197 = scmp.lt.s32.totalorder %s21, 0
      %s198 = scalar_select %p197, %s21, 0
      %s199 = sadd.s32 %s198, %s196
      %s200 = smul.addr %s199, 4
      %s201 = scalar_lea.vmem %s0, %s200
      %p202 = pneg %p56
      %p203 = pneg %p53
      %s204 = smul.u32 4, %s21
      %p205 = scmp.lt.s32.totalorder %s204, 3
      %s206 = scalar_select %p205, %s204, 3
      %p207 = scmp.lt.s32.totalorder %s20, 0
      %s208 = scalar_select %p207, %s20, 0
      %s209 = sadd.s32 %s208, %s206
      %s210 = smul.addr %s209, 4
      %s211 = scalar_lea.vmem %s1, %s210
      %p212 = pneg %p84
      %p213 = pneg %p81
      %p214 = scmp.lt.s32.totalorder %s20, 0
      %s215 = scalar_select %p214, %s20, 0
      %s216 = scalar_lea.vmem %s2, %s215
      %p217 = pneg %p110
      %p218 = pneg %p107
      %p219 = pneg %p138
      %p220 = pneg %p135
      %s221 = smul.u32 448, %s19
      %p222 = scmp.lt.s32.totalorder %s221, 12543
      %s223 = scalar_select %p222, %s221, 12543
      %p224 = scmp.lt.s32.totalorder %s20, 0
      %s225 = scalar_select %p224, %s20, 0
      %s226 = sadd.s32 %s225, %s223
      %s227 = smul.addr %s226, 4
      %s228 = scalar_lea.vmem %s3, %s227
      %s229 = smul.u32 448, %s19
      %p230 = scmp.lt.s32.totalorder %s229, 12543
      %s231 = scalar_select %p230, %s229, 12543
      %p232 = scmp.lt.s32.totalorder %s21, 0
      %s233 = scalar_select %p232, %s21, 0
      %s234 = sadd.s32 %s233, %s231
      %s235 = smul.addr %s234, 4
      %s236 = scalar_lea.vmem %s0, %s235
      %s237 = smul.u32 448, %s19
      %s238 = smul.u32 4, %s21
      %p239 = scmp.lt.s32.totalorder %s238, 3
      %s240 = scalar_select %p239, %s238, 3
      %p241 = scmp.lt.s32.totalorder %s20, 0
      %s242 = scalar_select %p241, %s20, 0
      %s243 = sadd.s32 %s242, %s240
      %s244 = smul.addr %s243, 4
      %s245 = scalar_lea.vmem %s1, %s244
      %s246 = smul.u32 4, %s21
      %p247 = scmp.lt.s32.totalorder %s20, 0
      %s248 = scalar_select %p247, %s20, 0
      %s249 = scalar_lea.vmem %s2, %s248
      %s250 = smul.u32 448, %s19
      %p251 = scmp.lt.s32.totalorder %s250, 12543
      %s252 = scalar_select %p251, %s250, 12543
      %p253 = scmp.lt.s32.totalorder %s20, 0
      %s254 = scalar_select %p253, %s20, 0
      %s255 = sadd.s32 %s254, %s252
      %s256 = smul.addr %s255, 4
      %s257 = scalar_lea.vmem %s3, %s256
      %s258 = smul.u32 448, %s19
      %p260 = scmp.eq.s32.totalorder %s21, 0
      // Predicated region
      $region33: #{tpu_custom_call.1} parent=31 // pred_check
        %p261 = pneg %p260
      $region34: #{tpu_custom_call.1} parent=31 // pred_check_branch
        %263 = sbr.rel (%p261) target = $region36
      $region35: #{tpu_custom_call.1} parent=31 // pred_region
        %vm264 = vcmask 523264
        %265 = vst.msk [vmem:[#allocation2] sm:$0xff] %vm264, 0.0
        %266 = vst.msk [vmem:[#allocation2 + $0x8] sm:$0xff] %vm264, 0.0
        %267 = vst.msk [vmem:[#allocation2 + $0x10] sm:$0xff] %vm264, 0.0
        %268 = vst.msk [vmem:[#allocation2 + $0x18] sm:$0xff] %vm264, 0.0
        %269 = vst.msk [vmem:[#allocation2 + $0x20] sm:$0xff] %vm264, 0.0
        %270 = vst.msk [vmem:[#allocation2 + $0x28] sm:$0xff] %vm264, 0.0
        %271 = vst.msk [vmem:[#allocation2 + $0x30] sm:$0xff] %vm264, 0.0
        %272 = vst.msk [vmem:[#allocation2 + $0x38] sm:$0xff] %vm264, 0.0
        %273 = vst.msk [vmem:[#allocation2 + $0x40] sm:$0xff] %vm264, 0.0
        %274 = vst.msk [vmem:[#allocation2 + $0x48] sm:$0xff] %vm264, 0.0
        %275 = vst.msk [vmem:[#allocation2 + $0x50] sm:$0xff] %vm264, 0.0
        %276 = vst.msk [vmem:[#allocation2 + $0x58] sm:$0xff] %vm264, 0.0
        %277 = vst.msk [vmem:[#allocation2 + $0x60] sm:$0xff] %vm264, 0.0
        %278 = vst.msk [vmem:[#allocation2 + $0x68] sm:$0xff] %vm264, 0.0
        %279 = vst.msk [vmem:[#allocation2 + $0x70] sm:$0xff] %vm264, 0.0
        %280 = vst.msk [vmem:[#allocation2 + $0x78] sm:$0xff] %vm264, 0.0
        %281 = vst.msk [vmem:[#allocation2 + $0x80] sm:$0xff] %vm264, 0.0
        %282 = vst.msk [vmem:[#allocation2 + $0x88] sm:$0xff] %vm264, 0.0
        %283 = vst.msk [vmem:[#allocation2 + $0x90] sm:$0xff] %vm264, 0.0
        %284 = vst.msk [vmem:[#allocation2 + $0x98] sm:$0xff] %vm264, 0.0
        %285 = vst.msk [vmem:[#allocation2 + $0xa0] sm:$0xff] %vm264, 0.0
        %286 = vst.msk [vmem:[#allocation2 + $0xa8] sm:$0xff] %vm264, 0.0
        %287 = vst.msk [vmem:[#allocation2 + $0xb0] sm:$0xff] %vm264, 0.0
        %288 = vst.msk [vmem:[#allocation2 + $0xb8] sm:$0xff] %vm264, 0.0
        %289 = vst.msk [vmem:[#allocation2 + $0xc0] sm:$0xff] %vm264, 0.0
        %290 = vst.msk [vmem:[#allocation2 + $0xc8] sm:$0xff] %vm264, 0.0
        %291 = vst.msk [vmem:[#allocation2 + $0xd0] sm:$0xff] %vm264, 0.0
        %292 = vst.msk [vmem:[#allocation2 + $0xd8] sm:$0xff] %vm264, 0.0
        %293 = vst.msk [vmem:[#allocation2 + $0xe0] sm:$0xff] %vm264, 0.0
        %294 = vst.msk [vmem:[#allocation2 + $0xe8] sm:$0xff] %vm264, 0.0
        %295 = vst.msk [vmem:[#allocation2 + $0xf0] sm:$0xff] %vm264, 0.0
        %296 = vst.msk [vmem:[#allocation2 + $0xf8] sm:$0xff] %vm264, 0.0
        %297 = vst.msk [vmem:[#allocation2 + $0x100] sm:$0xff] %vm264, 0.0
        %298 = vst.msk [vmem:[#allocation2 + $0x108] sm:$0xff] %vm264, 0.0
        %299 = vst.msk [vmem:[#allocation2 + $0x110] sm:$0xff] %vm264, 0.0
        %300 = vst.msk [vmem:[#allocation2 + $0x118] sm:$0xff] %vm264, 0.0
        %301 = vst.msk [vmem:[#allocation2 + $0x120] sm:$0xff] %vm264, 0.0
        %302 = vst.msk [vmem:[#allocation2 + $0x128] sm:$0xff] %vm264, 0.0
        %303 = vst.msk [vmem:[#allocation2 + $0x130] sm:$0xff] %vm264, 0.0
        %304 = vst.msk [vmem:[#allocation2 + $0x138] sm:$0xff] %vm264, 0.0
        %305 = vst.msk [vmem:[#allocation2 + $0x140] sm:$0xff] %vm264, 0.0
        %306 = vst.msk [vmem:[#allocation2 + $0x148] sm:$0xff] %vm264, 0.0
        %307 = vst.msk [vmem:[#allocation2 + $0x150] sm:$0xff] %vm264, 0.0
        %308 = vst.msk [vmem:[#allocation2 + $0x158] sm:$0xff] %vm264, 0.0
        %309 = vst.msk [vmem:[#allocation2 + $0x160] sm:$0xff] %vm264, 0.0
        %310 = vst.msk [vmem:[#allocation2 + $0x168] sm:$0xff] %vm264, 0.0
        %311 = vst.msk [vmem:[#allocation2 + $0x170] sm:$0xff] %vm264, 0.0
        %312 = vst.msk [vmem:[#allocation2 + $0x178] sm:$0xff] %vm264, 0.0
        %313 = vst.msk [vmem:[#allocation2 + $0x180] sm:$0xff] %vm264, 0.0
        %314 = vst.msk [vmem:[#allocation2 + $0x188] sm:$0xff] %vm264, 0.0
        %315 = vst.msk [vmem:[#allocation2 + $0x190] sm:$0xff] %vm264, 0.0
        %316 = vst.msk [vmem:[#allocation2 + $0x198] sm:$0xff] %vm264, 0.0
        %317 = vst.msk [vmem:[#allocation2 + $0x1a0] sm:$0xff] %vm264, 0.0
        %318 = vst.msk [vmem:[#allocation2 + $0x1a8] sm:$0xff] %vm264, 0.0
        %319 = vst.msk [vmem:[#allocation2 + $0x1b0] sm:$0xff] %vm264, 0.0
        %320 = vst.msk [vmem:[#allocation2 + $0x1b8] sm:$0xff] %vm264, 0.0
        %321 = vst.msk [vmem:[#allocation2 + $0x1c0] sm:$0xff] %vm264, 0.0
        %322 = vst.msk [vmem:[#allocation2 + $0x1c8] sm:$0xff] %vm264, 0.0
        %323 = vst.msk [vmem:[#allocation2 + $0x1d0] sm:$0xff] %vm264, 0.0
        %324 = vst.msk [vmem:[#allocation2 + $0x1d8] sm:$0xff] %vm264, 0.0
        %325 = vst.msk [vmem:[#allocation2 + $0x1e0] sm:$0xff] %vm264, 0.0
        %326 = vst.msk [vmem:[#allocation2 + $0x1e8] sm:$0xff] %vm264, 0.0
        %327 = vst.msk [vmem:[#allocation2 + $0x1f0] sm:$0xff] %vm264, 0.0
        %328 = vst.msk [vmem:[#allocation2 + $0x1f8] sm:$0xff] %vm264, 0.0
        %329 = vst.msk [vmem:[#allocation2 + $0x200] sm:$0xff] %vm264, 0.0
        %330 = vst.msk [vmem:[#allocation2 + $0x208] sm:$0xff] %vm264, 0.0
        %331 = vst.msk [vmem:[#allocation2 + $0x210] sm:$0xff] %vm264, 0.0
        %332 = vst.msk [vmem:[#allocation2 + $0x218] sm:$0xff] %vm264, 0.0
        %333 = vst.msk [vmem:[#allocation2 + $0x220] sm:$0xff] %vm264, 0.0
        %334 = vst.msk [vmem:[#allocation2 + $0x228] sm:$0xff] %vm264, 0.0
        %335 = vst.msk [vmem:[#allocation2 + $0x230] sm:$0xff] %vm264, 0.0
        %336 = vst.msk [vmem:[#allocation2 + $0x238] sm:$0xff] %vm264, 0.0
        %337 = vst.msk [vmem:[#allocation2 + $0x240] sm:$0xff] %vm264, 0.0
        %338 = vst.msk [vmem:[#allocation2 + $0x248] sm:$0xff] %vm264, 0.0
        %339 = vst.msk [vmem:[#allocation2 + $0x250] sm:$0xff] %vm264, 0.0
        %340 = vst.msk [vmem:[#allocation2 + $0x258] sm:$0xff] %vm264, 0.0
        %341 = vst.msk [vmem:[#allocation2 + $0x260] sm:$0xff] %vm264, 0.0
        %342 = vst.msk [vmem:[#allocation2 + $0x268] sm:$0xff] %vm264, 0.0
        %343 = vst.msk [vmem:[#allocation2 + $0x270] sm:$0xff] %vm264, 0.0
        %344 = vst.msk [vmem:[#allocation2 + $0x278] sm:$0xff] %vm264, 0.0
        %345 = vst.msk [vmem:[#allocation2 + $0x280] sm:$0xff] %vm264, 0.0
        %346 = vst.msk [vmem:[#allocation2 + $0x288] sm:$0xff] %vm264, 0.0
        %347 = vst.msk [vmem:[#allocation2 + $0x290] sm:$0xff] %vm264, 0.0
        %348 = vst.msk [vmem:[#allocation2 + $0x298] sm:$0xff] %vm264, 0.0
        %349 = vst.msk [vmem:[#allocation2 + $0x2a0] sm:$0xff] %vm264, 0.0
        %350 = vst.msk [vmem:[#allocation2 + $0x2a8] sm:$0xff] %vm264, 0.0
        %351 = vst.msk [vmem:[#allocation2 + $0x2b0] sm:$0xff] %vm264, 0.0
        %352 = vst.msk [vmem:[#allocation2 + $0x2b8] sm:$0xff] %vm264, 0.0
        %353 = vst.msk [vmem:[#allocation2 + $0x2c0] sm:$0xff] %vm264, 0.0
        %354 = vst.msk [vmem:[#allocation2 + $0x2c8] sm:$0xff] %vm264, 0.0
        %355 = vst.msk [vmem:[#allocation2 + $0x2d0] sm:$0xff] %vm264, 0.0
        %356 = vst.msk [vmem:[#allocation2 + $0x2d8] sm:$0xff] %vm264, 0.0
        %357 = vst.msk [vmem:[#allocation2 + $0x2e0] sm:$0xff] %vm264, 0.0
        %358 = vst.msk [vmem:[#allocation2 + $0x2e8] sm:$0xff] %vm264, 0.0
        %359 = vst.msk [vmem:[#allocation2 + $0x2f0] sm:$0xff] %vm264, 0.0
        %360 = vst.msk [vmem:[#allocation2 + $0x2f8] sm:$0xff] %vm264, 0.0
        %361 = vst.msk [vmem:[#allocation2 + $0x300] sm:$0xff] %vm264, 0.0
        %362 = vst.msk [vmem:[#allocation2 + $0x308] sm:$0xff] %vm264, 0.0
        %363 = vst.msk [vmem:[#allocation2 + $0x310] sm:$0xff] %vm264, 0.0
        %364 = vst.msk [vmem:[#allocation2 + $0x318] sm:$0xff] %vm264, 0.0
        %365 = vst.msk [vmem:[#allocation2 + $0x320] sm:$0xff] %vm264, 0.0
        %366 = vst.msk [vmem:[#allocation2 + $0x328] sm:$0xff] %vm264, 0.0
        %367 = vst.msk [vmem:[#allocation2 + $0x330] sm:$0xff] %vm264, 0.0
        %368 = vst.msk [vmem:[#allocation2 + $0x338] sm:$0xff] %vm264, 0.0
        %369 = vst.msk [vmem:[#allocation2 + $0x340] sm:$0xff] %vm264, 0.0
        %370 = vst.msk [vmem:[#allocation2 + $0x348] sm:$0xff] %vm264, 0.0
        %371 = vst.msk [vmem:[#allocation2 + $0x350] sm:$0xff] %vm264, 0.0
        %372 = vst.msk [vmem:[#allocation2 + $0x358] sm:$0xff] %vm264, 0.0
        %373 = vst.msk [vmem:[#allocation2 + $0x360] sm:$0xff] %vm264, 0.0
        %374 = vst.msk [vmem:[#allocation2 + $0x368] sm:$0xff] %vm264, 0.0
        %375 = vst.msk [vmem:[#allocation2 + $0x370] sm:$0xff] %vm264, 0.0
        %376 = vst.msk [vmem:[#allocation2 + $0x378] sm:$0xff] %vm264, 0.0
        %377 = vst.msk [vmem:[#allocation2 + $0x380] sm:$0xff] %vm264, 0.0
        %378 = vst.msk [vmem:[#allocation2 + $0x388] sm:$0xff] %vm264, 0.0
        %379 = vst.msk [vmem:[#allocation2 + $0x390] sm:$0xff] %vm264, 0.0
        %380 = vst.msk [vmem:[#allocation2 + $0x398] sm:$0xff] %vm264, 0.0
        %381 = vst.msk [vmem:[#allocation2 + $0x3a0] sm:$0xff] %vm264, 0.0
        %382 = vst.msk [vmem:[#allocation2 + $0x3a8] sm:$0xff] %vm264, 0.0
        %383 = vst.msk [vmem:[#allocation2 + $0x3b0] sm:$0xff] %vm264, 0.0
        %384 = vst.msk [vmem:[#allocation2 + $0x3b8] sm:$0xff] %vm264, 0.0
        %385 = vst.msk [vmem:[#allocation2 + $0x3c0] sm:$0xff] %vm264, 0.0
        %386 = vst.msk [vmem:[#allocation2 + $0x3c8] sm:$0xff] %vm264, 0.0
        %387 = vst.msk [vmem:[#allocation2 + $0x3d0] sm:$0xff] %vm264, 0.0
        %388 = vst.msk [vmem:[#allocation2 + $0x3d8] sm:$0xff] %vm264, 0.0
        %389 = vst.msk [vmem:[#allocation2 + $0x3e0] sm:$0xff] %vm264, 0.0
        %390 = vst.msk [vmem:[#allocation2 + $0x3e8] sm:$0xff] %vm264, 0.0
        %391 = vst.msk [vmem:[#allocation2 + $0x3f0] sm:$0xff] %vm264, 0.0
        %392 = vst.msk [vmem:[#allocation2 + $0x3f8] sm:$0xff] %vm264, 0.0
        %393 = vst.msk [vmem:[#allocation2 + $0x400] sm:$0xff] %vm264, 0.0
        %394 = vst.msk [vmem:[#allocation2 + $0x408] sm:$0xff] %vm264, 0.0
        %395 = vst.msk [vmem:[#allocation2 + $0x410] sm:$0xff] %vm264, 0.0
        %396 = vst.msk [vmem:[#allocation2 + $0x418] sm:$0xff] %vm264, 0.0
        %397 = vst.msk [vmem:[#allocation2 + $0x420] sm:$0xff] %vm264, 0.0
        %398 = vst.msk [vmem:[#allocation2 + $0x428] sm:$0xff] %vm264, 0.0
        %399 = vst.msk [vmem:[#allocation2 + $0x430] sm:$0xff] %vm264, 0.0
        %400 = vst.msk [vmem:[#allocation2 + $0x438] sm:$0xff] %vm264, 0.0
        %401 = vst.msk [vmem:[#allocation2 + $0x440] sm:$0xff] %vm264, 0.0
        %402 = vst.msk [vmem:[#allocation2 + $0x448] sm:$0xff] %vm264, 0.0
        %403 = vst.msk [vmem:[#allocation2 + $0x450] sm:$0xff] %vm264, 0.0
        %404 = vst.msk [vmem:[#allocation2 + $0x458] sm:$0xff] %vm264, 0.0
        %405 = vst.msk [vmem:[#allocation2 + $0x460] sm:$0xff] %vm264, 0.0
        %406 = vst.msk [vmem:[#allocation2 + $0x468] sm:$0xff] %vm264, 0.0
        %407 = vst.msk [vmem:[#allocation2 + $0x470] sm:$0xff] %vm264, 0.0
        %408 = vst.msk [vmem:[#allocation2 + $0x478] sm:$0xff] %vm264, 0.0
        %409 = vst.msk [vmem:[#allocation2 + $0x480] sm:$0xff] %vm264, 0.0
        %410 = vst.msk [vmem:[#allocation2 + $0x488] sm:$0xff] %vm264, 0.0
        %411 = vst.msk [vmem:[#allocation2 + $0x490] sm:$0xff] %vm264, 0.0
        %412 = vst.msk [vmem:[#allocation2 + $0x498] sm:$0xff] %vm264, 0.0
        %413 = vst.msk [vmem:[#allocation2 + $0x4a0] sm:$0xff] %vm264, 0.0
        %414 = vst.msk [vmem:[#allocation2 + $0x4a8] sm:$0xff] %vm264, 0.0
        %415 = vst.msk [vmem:[#allocation2 + $0x4b0] sm:$0xff] %vm264, 0.0
        %416 = vst.msk [vmem:[#allocation2 + $0x4b8] sm:$0xff] %vm264, 0.0
        %417 = vst.msk [vmem:[#allocation2 + $0x4c0] sm:$0xff] %vm264, 0.0
        %418 = vst.msk [vmem:[#allocation2 + $0x4c8] sm:$0xff] %vm264, 0.0
        %419 = vst.msk [vmem:[#allocation2 + $0x4d0] sm:$0xff] %vm264, 0.0
        %420 = vst.msk [vmem:[#allocation2 + $0x4d8] sm:$0xff] %vm264, 0.0
        %421 = vst.msk [vmem:[#allocation2 + $0x4e0] sm:$0xff] %vm264, 0.0
        %422 = vst.msk [vmem:[#allocation2 + $0x4e8] sm:$0xff] %vm264, 0.0
        %423 = vst.msk [vmem:[#allocation2 + $0x4f0] sm:$0xff] %vm264, 0.0
        %424 = vst.msk [vmem:[#allocation2 + $0x4f8] sm:$0xff] %vm264, 0.0
        %425 = vst.msk [vmem:[#allocation2 + $0x500] sm:$0xff] %vm264, 0.0
        %426 = vst.msk [vmem:[#allocation2 + $0x508] sm:$0xff] %vm264, 0.0
        %427 = vst.msk [vmem:[#allocation2 + $0x510] sm:$0xff] %vm264, 0.0
        %428 = vst.msk [vmem:[#allocation2 + $0x518] sm:$0xff] %vm264, 0.0
        %429 = vst.msk [vmem:[#allocation2 + $0x520] sm:$0xff] %vm264, 0.0
        %430 = vst.msk [vmem:[#allocation2 + $0x528] sm:$0xff] %vm264, 0.0
        %431 = vst.msk [vmem:[#allocation2 + $0x530] sm:$0xff] %vm264, 0.0
        %432 = vst.msk [vmem:[#allocation2 + $0x538] sm:$0xff] %vm264, 0.0
        %433 = vst.msk [vmem:[#allocation2 + $0x540] sm:$0xff] %vm264, 0.0
        %434 = vst.msk [vmem:[#allocation2 + $0x548] sm:$0xff] %vm264, 0.0
        %435 = vst.msk [vmem:[#allocation2 + $0x550] sm:$0xff] %vm264, 0.0
        %436 = vst.msk [vmem:[#allocation2 + $0x558] sm:$0xff] %vm264, 0.0
        %437 = vst.msk [vmem:[#allocation2 + $0x560] sm:$0xff] %vm264, 0.0
        %438 = vst.msk [vmem:[#allocation2 + $0x568] sm:$0xff] %vm264, 0.0
        %439 = vst.msk [vmem:[#allocation2 + $0x570] sm:$0xff] %vm264, 0.0
        %440 = vst.msk [vmem:[#allocation2 + $0x578] sm:$0xff] %vm264, 0.0
        %441 = vst.msk [vmem:[#allocation2 + $0x580] sm:$0xff] %vm264, 0.0
        %442 = vst.msk [vmem:[#allocation2 + $0x588] sm:$0xff] %vm264, 0.0
        %443 = vst.msk [vmem:[#allocation2 + $0x590] sm:$0xff] %vm264, 0.0
        %444 = vst.msk [vmem:[#allocation2 + $0x598] sm:$0xff] %vm264, 0.0
        %445 = vst.msk [vmem:[#allocation2 + $0x5a0] sm:$0xff] %vm264, 0.0
        %446 = vst.msk [vmem:[#allocation2 + $0x5a8] sm:$0xff] %vm264, 0.0
        %447 = vst.msk [vmem:[#allocation2 + $0x5b0] sm:$0xff] %vm264, 0.0
        %448 = vst.msk [vmem:[#allocation2 + $0x5b8] sm:$0xff] %vm264, 0.0
        %449 = vst.msk [vmem:[#allocation2 + $0x5c0] sm:$0xff] %vm264, 0.0
        %450 = vst.msk [vmem:[#allocation2 + $0x5c8] sm:$0xff] %vm264, 0.0
        %451 = vst.msk [vmem:[#allocation2 + $0x5d0] sm:$0xff] %vm264, 0.0
        %452 = vst.msk [vmem:[#allocation2 + $0x5d8] sm:$0xff] %vm264, 0.0
        %453 = vst.msk [vmem:[#allocation2 + $0x5e0] sm:$0xff] %vm264, 0.0
        %454 = vst.msk [vmem:[#allocation2 + $0x5e8] sm:$0xff] %vm264, 0.0
        %455 = vst.msk [vmem:[#allocation2 + $0x5f0] sm:$0xff] %vm264, 0.0
        %456 = vst.msk [vmem:[#allocation2 + $0x5f8] sm:$0xff] %vm264, 0.0
        %457 = vst.msk [vmem:[#allocation2 + $0x600] sm:$0xff] %vm264, 0.0
        %458 = vst.msk [vmem:[#allocation2 + $0x608] sm:$0xff] %vm264, 0.0
        %459 = vst.msk [vmem:[#allocation2 + $0x610] sm:$0xff] %vm264, 0.0
        %460 = vst.msk [vmem:[#allocation2 + $0x618] sm:$0xff] %vm264, 0.0
        %461 = vst.msk [vmem:[#allocation2 + $0x620] sm:$0xff] %vm264, 0.0
        %462 = vst.msk [vmem:[#allocation2 + $0x628] sm:$0xff] %vm264, 0.0
        %463 = vst.msk [vmem:[#allocation2 + $0x630] sm:$0xff] %vm264, 0.0
        %464 = vst.msk [vmem:[#allocation2 + $0x638] sm:$0xff] %vm264, 0.0
        %465 = vst.msk [vmem:[#allocation2 + $0x640] sm:$0xff] %vm264, 0.0
        %466 = vst.msk [vmem:[#allocation2 + $0x648] sm:$0xff] %vm264, 0.0
        %467 = vst.msk [vmem:[#allocation2 + $0x650] sm:$0xff] %vm264, 0.0
        %468 = vst.msk [vmem:[#allocation2 + $0x658] sm:$0xff] %vm264, 0.0
        %469 = vst.msk [vmem:[#allocation2 + $0x660] sm:$0xff] %vm264, 0.0
        %470 = vst.msk [vmem:[#allocation2 + $0x668] sm:$0xff] %vm264, 0.0
        %471 = vst.msk [vmem:[#allocation2 + $0x670] sm:$0xff] %vm264, 0.0
        %472 = vst.msk [vmem:[#allocation2 + $0x678] sm:$0xff] %vm264, 0.0
        %473 = vst.msk [vmem:[#allocation2 + $0x680] sm:$0xff] %vm264, 0.0
        %474 = vst.msk [vmem:[#allocation2 + $0x688] sm:$0xff] %vm264, 0.0
        %475 = vst.msk [vmem:[#allocation2 + $0x690] sm:$0xff] %vm264, 0.0
        %476 = vst.msk [vmem:[#allocation2 + $0x698] sm:$0xff] %vm264, 0.0
        %477 = vst.msk [vmem:[#allocation2 + $0x6a0] sm:$0xff] %vm264, 0.0
        %478 = vst.msk [vmem:[#allocation2 + $0x6a8] sm:$0xff] %vm264, 0.0
        %479 = vst.msk [vmem:[#allocation2 + $0x6b0] sm:$0xff] %vm264, 0.0
        %480 = vst.msk [vmem:[#allocation2 + $0x6b8] sm:$0xff] %vm264, 0.0
        %481 = vst.msk [vmem:[#allocation2 + $0x6c0] sm:$0xff] %vm264, 0.0
        %482 = vst.msk [vmem:[#allocation2 + $0x6c8] sm:$0xff] %vm264, 0.0
        %483 = vst.msk [vmem:[#allocation2 + $0x6d0] sm:$0xff] %vm264, 0.0
        %484 = vst.msk [vmem:[#allocation2 + $0x6d8] sm:$0xff] %vm264, 0.0
        %485 = vst.msk [vmem:[#allocation2 + $0x6e0] sm:$0xff] %vm264, 0.0
        %486 = vst.msk [vmem:[#allocation2 + $0x6e8] sm:$0xff] %vm264, 0.0
        %487 = vst.msk [vmem:[#allocation2 + $0x6f0] sm:$0xff] %vm264, 0.0
        %488 = vst.msk [vmem:[#allocation2 + $0x6f8] sm:$0xff] %vm264, 0.0
        %489 = vst.msk [vmem:[#allocation2 + $0x700] sm:$0xff] %vm264, 0.0
        %490 = vst.msk [vmem:[#allocation2 + $0x708] sm:$0xff] %vm264, 0.0
        %491 = vst.msk [vmem:[#allocation2 + $0x710] sm:$0xff] %vm264, 0.0
        %492 = vst.msk [vmem:[#allocation2 + $0x718] sm:$0xff] %vm264, 0.0
        %493 = vst.msk [vmem:[#allocation2 + $0x720] sm:$0xff] %vm264, 0.0
        %494 = vst.msk [vmem:[#allocation2 + $0x728] sm:$0xff] %vm264, 0.0
        %495 = vst.msk [vmem:[#allocation2 + $0x730] sm:$0xff] %vm264, 0.0
        %496 = vst.msk [vmem:[#allocation2 + $0x738] sm:$0xff] %vm264, 0.0
        %497 = vst.msk [vmem:[#allocation2 + $0x740] sm:$0xff] %vm264, 0.0
        %498 = vst.msk [vmem:[#allocation2 + $0x748] sm:$0xff] %vm264, 0.0
        %499 = vst.msk [vmem:[#allocation2 + $0x750] sm:$0xff] %vm264, 0.0
        %500 = vst.msk [vmem:[#allocation2 + $0x758] sm:$0xff] %vm264, 0.0
        %501 = vst.msk [vmem:[#allocation2 + $0x760] sm:$0xff] %vm264, 0.0
        %502 = vst.msk [vmem:[#allocation2 + $0x768] sm:$0xff] %vm264, 0.0
        %503 = vst.msk [vmem:[#allocation2 + $0x770] sm:$0xff] %vm264, 0.0
        %504 = vst.msk [vmem:[#allocation2 + $0x778] sm:$0xff] %vm264, 0.0
        %505 = vst.msk [vmem:[#allocation2 + $0x780] sm:$0xff] %vm264, 0.0
        %506 = vst.msk [vmem:[#allocation2 + $0x788] sm:$0xff] %vm264, 0.0
        %507 = vst.msk [vmem:[#allocation2 + $0x790] sm:$0xff] %vm264, 0.0
        %508 = vst.msk [vmem:[#allocation2 + $0x798] sm:$0xff] %vm264, 0.0
        %509 = vst.msk [vmem:[#allocation2 + $0x7a0] sm:$0xff] %vm264, 0.0
        %510 = vst.msk [vmem:[#allocation2 + $0x7a8] sm:$0xff] %vm264, 0.0
        %511 = vst.msk [vmem:[#allocation2 + $0x7b0] sm:$0xff] %vm264, 0.0
        %512 = vst.msk [vmem:[#allocation2 + $0x7b8] sm:$0xff] %vm264, 0.0
        %513 = vst.msk [vmem:[#allocation2 + $0x7c0] sm:$0xff] %vm264, 0.0
        %514 = vst.msk [vmem:[#allocation2 + $0x7c8] sm:$0xff] %vm264, 0.0
        %515 = vst.msk [vmem:[#allocation2 + $0x7d0] sm:$0xff] %vm264, 0.0
        %516 = vst.msk [vmem:[#allocation2 + $0x7d8] sm:$0xff] %vm264, 0.0
        %517 = vst.msk [vmem:[#allocation2 + $0x7e0] sm:$0xff] %vm264, 0.0
        %518 = vst.msk [vmem:[#allocation2 + $0x7e8] sm:$0xff] %vm264, 0.0
        %519 = vst.msk [vmem:[#allocation2 + $0x7f0] sm:$0xff] %vm264, 0.0
        %520 = vst.msk [vmem:[#allocation2 + $0x7f8] sm:$0xff] %vm264, 0.0
        %521 = vst.msk [vmem:[#allocation2 + $0x800] sm:$0xff] %vm264, 0.0
        %522 = vst.msk [vmem:[#allocation2 + $0x808] sm:$0xff] %vm264, 0.0
        %523 = vst.msk [vmem:[#allocation2 + $0x810] sm:$0xff] %vm264, 0.0
        %524 = vst.msk [vmem:[#allocation2 + $0x818] sm:$0xff] %vm264, 0.0
        %525 = vst.msk [vmem:[#allocation2 + $0x820] sm:$0xff] %vm264, 0.0
        %526 = vst.msk [vmem:[#allocation2 + $0x828] sm:$0xff] %vm264, 0.0
        %527 = vst.msk [vmem:[#allocation2 + $0x830] sm:$0xff] %vm264, 0.0
        %528 = vst.msk [vmem:[#allocation2 + $0x838] sm:$0xff] %vm264, 0.0
        %529 = vst.msk [vmem:[#allocation2 + $0x840] sm:$0xff] %vm264, 0.0
        %530 = vst.msk [vmem:[#allocation2 + $0x848] sm:$0xff] %vm264, 0.0
        %531 = vst.msk [vmem:[#allocation2 + $0x850] sm:$0xff] %vm264, 0.0
        %532 = vst.msk [vmem:[#allocation2 + $0x858] sm:$0xff] %vm264, 0.0
        %533 = vst.msk [vmem:[#allocation2 + $0x860] sm:$0xff] %vm264, 0.0
        %534 = vst.msk [vmem:[#allocation2 + $0x868] sm:$0xff] %vm264, 0.0
        %535 = vst.msk [vmem:[#allocation2 + $0x870] sm:$0xff] %vm264, 0.0
        %536 = vst.msk [vmem:[#allocation2 + $0x878] sm:$0xff] %vm264, 0.0
        %537 = vst.msk [vmem:[#allocation2 + $0x880] sm:$0xff] %vm264, 0.0
        %538 = vst.msk [vmem:[#allocation2 + $0x888] sm:$0xff] %vm264, 0.0
        %539 = vst.msk [vmem:[#allocation2 + $0x890] sm:$0xff] %vm264, 0.0
        %540 = vst.msk [vmem:[#allocation2 + $0x898] sm:$0xff] %vm264, 0.0
        %541 = vst.msk [vmem:[#allocation2 + $0x8a0] sm:$0xff] %vm264, 0.0
        %542 = vst.msk [vmem:[#allocation2 + $0x8a8] sm:$0xff] %vm264, 0.0
        %543 = vst.msk [vmem:[#allocation2 + $0x8b0] sm:$0xff] %vm264, 0.0
        %544 = vst.msk [vmem:[#allocation2 + $0x8b8] sm:$0xff] %vm264, 0.0
        %545 = vst.msk [vmem:[#allocation2 + $0x8c0] sm:$0xff] %vm264, 0.0
        %546 = vst.msk [vmem:[#allocation2 + $0x8c8] sm:$0xff] %vm264, 0.0
        %547 = vst.msk [vmem:[#allocation2 + $0x8d0] sm:$0xff] %vm264, 0.0
        %548 = vst.msk [vmem:[#allocation2 + $0x8d8] sm:$0xff] %vm264, 0.0
        %549 = vst.msk [vmem:[#allocation2 + $0x8e0] sm:$0xff] %vm264, 0.0
        %550 = vst.msk [vmem:[#allocation2 + $0x8e8] sm:$0xff] %vm264, 0.0
        %551 = vst.msk [vmem:[#allocation2 + $0x8f0] sm:$0xff] %vm264, 0.0
        %552 = vst.msk [vmem:[#allocation2 + $0x8f8] sm:$0xff] %vm264, 0.0
        %553 = vst.msk [vmem:[#allocation2 + $0x900] sm:$0xff] %vm264, 0.0
        %554 = vst.msk [vmem:[#allocation2 + $0x908] sm:$0xff] %vm264, 0.0
        %555 = vst.msk [vmem:[#allocation2 + $0x910] sm:$0xff] %vm264, 0.0
        %556 = vst.msk [vmem:[#allocation2 + $0x918] sm:$0xff] %vm264, 0.0
        %557 = vst.msk [vmem:[#allocation2 + $0x920] sm:$0xff] %vm264, 0.0
        %558 = vst.msk [vmem:[#allocation2 + $0x928] sm:$0xff] %vm264, 0.0
        %559 = vst.msk [vmem:[#allocation2 + $0x930] sm:$0xff] %vm264, 0.0
        %560 = vst.msk [vmem:[#allocation2 + $0x938] sm:$0xff] %vm264, 0.0
        %561 = vst.msk [vmem:[#allocation2 + $0x940] sm:$0xff] %vm264, 0.0
        %562 = vst.msk [vmem:[#allocation2 + $0x948] sm:$0xff] %vm264, 0.0
        %563 = vst.msk [vmem:[#allocation2 + $0x950] sm:$0xff] %vm264, 0.0
        %564 = vst.msk [vmem:[#allocation2 + $0x958] sm:$0xff] %vm264, 0.0
        %565 = vst.msk [vmem:[#allocation2 + $0x960] sm:$0xff] %vm264, 0.0
        %566 = vst.msk [vmem:[#allocation2 + $0x968] sm:$0xff] %vm264, 0.0
        %567 = vst.msk [vmem:[#allocation2 + $0x970] sm:$0xff] %vm264, 0.0
        %568 = vst.msk [vmem:[#allocation2 + $0x978] sm:$0xff] %vm264, 0.0
        %569 = vst.msk [vmem:[#allocation2 + $0x980] sm:$0xff] %vm264, 0.0
        %570 = vst.msk [vmem:[#allocation2 + $0x988] sm:$0xff] %vm264, 0.0
        %571 = vst.msk [vmem:[#allocation2 + $0x990] sm:$0xff] %vm264, 0.0
        %572 = vst.msk [vmem:[#allocation2 + $0x998] sm:$0xff] %vm264, 0.0
        %573 = vst.msk [vmem:[#allocation2 + $0x9a0] sm:$0xff] %vm264, 0.0
        %574 = vst.msk [vmem:[#allocation2 + $0x9a8] sm:$0xff] %vm264, 0.0
        %575 = vst.msk [vmem:[#allocation2 + $0x9b0] sm:$0xff] %vm264, 0.0
        %576 = vst.msk [vmem:[#allocation2 + $0x9b8] sm:$0xff] %vm264, 0.0
        %577 = vst.msk [vmem:[#allocation2 + $0x9c0] sm:$0xff] %vm264, 0.0
        %578 = vst.msk [vmem:[#allocation2 + $0x9c8] sm:$0xff] %vm264, 0.0
        %579 = vst.msk [vmem:[#allocation2 + $0x9d0] sm:$0xff] %vm264, 0.0
        %580 = vst.msk [vmem:[#allocation2 + $0x9d8] sm:$0xff] %vm264, 0.0
        %581 = vst.msk [vmem:[#allocation2 + $0x9e0] sm:$0xff] %vm264, 0.0
        %582 = vst.msk [vmem:[#allocation2 + $0x9e8] sm:$0xff] %vm264, 0.0
        %583 = vst.msk [vmem:[#allocation2 + $0x9f0] sm:$0xff] %vm264, 0.0
        %584 = vst.msk [vmem:[#allocation2 + $0x9f8] sm:$0xff] %vm264, 0.0
        %585 = vst.msk [vmem:[#allocation2 + $0xa00] sm:$0xff] %vm264, 0.0
        %586 = vst.msk [vmem:[#allocation2 + $0xa08] sm:$0xff] %vm264, 0.0
        %587 = vst.msk [vmem:[#allocation2 + $0xa10] sm:$0xff] %vm264, 0.0
        %588 = vst.msk [vmem:[#allocation2 + $0xa18] sm:$0xff] %vm264, 0.0
        %589 = vst.msk [vmem:[#allocation2 + $0xa20] sm:$0xff] %vm264, 0.0
        %590 = vst.msk [vmem:[#allocation2 + $0xa28] sm:$0xff] %vm264, 0.0
        %591 = vst.msk [vmem:[#allocation2 + $0xa30] sm:$0xff] %vm264, 0.0
        %592 = vst.msk [vmem:[#allocation2 + $0xa38] sm:$0xff] %vm264, 0.0
        %593 = vst.msk [vmem:[#allocation2 + $0xa40] sm:$0xff] %vm264, 0.0
        %594 = vst.msk [vmem:[#allocation2 + $0xa48] sm:$0xff] %vm264, 0.0
        %595 = vst.msk [vmem:[#allocation2 + $0xa50] sm:$0xff] %vm264, 0.0
        %596 = vst.msk [vmem:[#allocation2 + $0xa58] sm:$0xff] %vm264, 0.0
        %597 = vst.msk [vmem:[#allocation2 + $0xa60] sm:$0xff] %vm264, 0.0
        %598 = vst.msk [vmem:[#allocation2 + $0xa68] sm:$0xff] %vm264, 0.0
        %599 = vst.msk [vmem:[#allocation2 + $0xa70] sm:$0xff] %vm264, 0.0
        %600 = vst.msk [vmem:[#allocation2 + $0xa78] sm:$0xff] %vm264, 0.0
        %601 = vst.msk [vmem:[#allocation2 + $0xa80] sm:$0xff] %vm264, 0.0
        %602 = vst.msk [vmem:[#allocation2 + $0xa88] sm:$0xff] %vm264, 0.0
        %603 = vst.msk [vmem:[#allocation2 + $0xa90] sm:$0xff] %vm264, 0.0
        %604 = vst.msk [vmem:[#allocation2 + $0xa98] sm:$0xff] %vm264, 0.0
        %605 = vst.msk [vmem:[#allocation2 + $0xaa0] sm:$0xff] %vm264, 0.0
        %606 = vst.msk [vmem:[#allocation2 + $0xaa8] sm:$0xff] %vm264, 0.0
        %607 = vst.msk [vmem:[#allocation2 + $0xab0] sm:$0xff] %vm264, 0.0
        %608 = vst.msk [vmem:[#allocation2 + $0xab8] sm:$0xff] %vm264, 0.0
        %609 = vst.msk [vmem:[#allocation2 + $0xac0] sm:$0xff] %vm264, 0.0
        %610 = vst.msk [vmem:[#allocation2 + $0xac8] sm:$0xff] %vm264, 0.0
        %611 = vst.msk [vmem:[#allocation2 + $0xad0] sm:$0xff] %vm264, 0.0
        %612 = vst.msk [vmem:[#allocation2 + $0xad8] sm:$0xff] %vm264, 0.0
        %613 = vst.msk [vmem:[#allocation2 + $0xae0] sm:$0xff] %vm264, 0.0
        %614 = vst.msk [vmem:[#allocation2 + $0xae8] sm:$0xff] %vm264, 0.0
        %615 = vst.msk [vmem:[#allocation2 + $0xaf0] sm:$0xff] %vm264, 0.0
        %616 = vst.msk [vmem:[#allocation2 + $0xaf8] sm:$0xff] %vm264, 0.0
        %617 = vst.msk [vmem:[#allocation2 + $0xb00] sm:$0xff] %vm264, 0.0
        %618 = vst.msk [vmem:[#allocation2 + $0xb08] sm:$0xff] %vm264, 0.0
        %619 = vst.msk [vmem:[#allocation2 + $0xb10] sm:$0xff] %vm264, 0.0
        %620 = vst.msk [vmem:[#allocation2 + $0xb18] sm:$0xff] %vm264, 0.0
        %621 = vst.msk [vmem:[#allocation2 + $0xb20] sm:$0xff] %vm264, 0.0
        %622 = vst.msk [vmem:[#allocation2 + $0xb28] sm:$0xff] %vm264, 0.0
        %623 = vst.msk [vmem:[#allocation2 + $0xb30] sm:$0xff] %vm264, 0.0
        %624 = vst.msk [vmem:[#allocation2 + $0xb38] sm:$0xff] %vm264, 0.0
        %625 = vst.msk [vmem:[#allocation2 + $0xb40] sm:$0xff] %vm264, 0.0
        %626 = vst.msk [vmem:[#allocation2 + $0xb48] sm:$0xff] %vm264, 0.0
        %627 = vst.msk [vmem:[#allocation2 + $0xb50] sm:$0xff] %vm264, 0.0
        %628 = vst.msk [vmem:[#allocation2 + $0xb58] sm:$0xff] %vm264, 0.0
        %629 = vst.msk [vmem:[#allocation2 + $0xb60] sm:$0xff] %vm264, 0.0
        %630 = vst.msk [vmem:[#allocation2 + $0xb68] sm:$0xff] %vm264, 0.0
        %631 = vst.msk [vmem:[#allocation2 + $0xb70] sm:$0xff] %vm264, 0.0
        %632 = vst.msk [vmem:[#allocation2 + $0xb78] sm:$0xff] %vm264, 0.0
        %633 = vst.msk [vmem:[#allocation2 + $0xb80] sm:$0xff] %vm264, 0.0
        %634 = vst.msk [vmem:[#allocation2 + $0xb88] sm:$0xff] %vm264, 0.0
        %635 = vst.msk [vmem:[#allocation2 + $0xb90] sm:$0xff] %vm264, 0.0
        %636 = vst.msk [vmem:[#allocation2 + $0xb98] sm:$0xff] %vm264, 0.0
        %637 = vst.msk [vmem:[#allocation2 + $0xba0] sm:$0xff] %vm264, 0.0
        %638 = vst.msk [vmem:[#allocation2 + $0xba8] sm:$0xff] %vm264, 0.0
        %639 = vst.msk [vmem:[#allocation2 + $0xbb0] sm:$0xff] %vm264, 0.0
        %640 = vst.msk [vmem:[#allocation2 + $0xbb8] sm:$0xff] %vm264, 0.0
        %641 = vst.msk [vmem:[#allocation2 + $0xbc0] sm:$0xff] %vm264, 0.0
        %642 = vst.msk [vmem:[#allocation2 + $0xbc8] sm:$0xff] %vm264, 0.0
        %643 = vst.msk [vmem:[#allocation2 + $0xbd0] sm:$0xff] %vm264, 0.0
        %644 = vst.msk [vmem:[#allocation2 + $0xbd8] sm:$0xff] %vm264, 0.0
        %645 = vst.msk [vmem:[#allocation2 + $0xbe0] sm:$0xff] %vm264, 0.0
        %646 = vst.msk [vmem:[#allocation2 + $0xbe8] sm:$0xff] %vm264, 0.0
        %647 = vst.msk [vmem:[#allocation2 + $0xbf0] sm:$0xff] %vm264, 0.0
        %648 = vst.msk [vmem:[#allocation2 + $0xbf8] sm:$0xff] %vm264, 0.0
        %649 = vst.msk [vmem:[#allocation2 + $0xc00] sm:$0xff] %vm264, 0.0
        %650 = vst.msk [vmem:[#allocation2 + $0xc08] sm:$0xff] %vm264, 0.0
        %651 = vst.msk [vmem:[#allocation2 + $0xc10] sm:$0xff] %vm264, 0.0
        %652 = vst.msk [vmem:[#allocation2 + $0xc18] sm:$0xff] %vm264, 0.0
        %653 = vst.msk [vmem:[#allocation2 + $0xc20] sm:$0xff] %vm264, 0.0
        %654 = vst.msk [vmem:[#allocation2 + $0xc28] sm:$0xff] %vm264, 0.0
        %655 = vst.msk [vmem:[#allocation2 + $0xc30] sm:$0xff] %vm264, 0.0
        %656 = vst.msk [vmem:[#allocation2 + $0xc38] sm:$0xff] %vm264, 0.0
        %657 = vst.msk [vmem:[#allocation2 + $0xc40] sm:$0xff] %vm264, 0.0
        %658 = vst.msk [vmem:[#allocation2 + $0xc48] sm:$0xff] %vm264, 0.0
        %659 = vst.msk [vmem:[#allocation2 + $0xc50] sm:$0xff] %vm264, 0.0
        %660 = vst.msk [vmem:[#allocation2 + $0xc58] sm:$0xff] %vm264, 0.0
        %661 = vst.msk [vmem:[#allocation2 + $0xc60] sm:$0xff] %vm264, 0.0
        %662 = vst.msk [vmem:[#allocation2 + $0xc68] sm:$0xff] %vm264, 0.0
        %663 = vst.msk [vmem:[#allocation2 + $0xc70] sm:$0xff] %vm264, 0.0
        %664 = vst.msk [vmem:[#allocation2 + $0xc78] sm:$0xff] %vm264, 0.0
        %665 = vst.msk [vmem:[#allocation2 + $0xc80] sm:$0xff] %vm264, 0.0
        %666 = vst.msk [vmem:[#allocation2 + $0xc88] sm:$0xff] %vm264, 0.0
        %667 = vst.msk [vmem:[#allocation2 + $0xc90] sm:$0xff] %vm264, 0.0
        %668 = vst.msk [vmem:[#allocation2 + $0xc98] sm:$0xff] %vm264, 0.0
        %669 = vst.msk [vmem:[#allocation2 + $0xca0] sm:$0xff] %vm264, 0.0
        %670 = vst.msk [vmem:[#allocation2 + $0xca8] sm:$0xff] %vm264, 0.0
        %671 = vst.msk [vmem:[#allocation2 + $0xcb0] sm:$0xff] %vm264, 0.0
        %672 = vst.msk [vmem:[#allocation2 + $0xcb8] sm:$0xff] %vm264, 0.0
        %673 = vst.msk [vmem:[#allocation2 + $0xcc0] sm:$0xff] %vm264, 0.0
        %674 = vst.msk [vmem:[#allocation2 + $0xcc8] sm:$0xff] %vm264, 0.0
        %675 = vst.msk [vmem:[#allocation2 + $0xcd0] sm:$0xff] %vm264, 0.0
        %676 = vst.msk [vmem:[#allocation2 + $0xcd8] sm:$0xff] %vm264, 0.0
        %677 = vst.msk [vmem:[#allocation2 + $0xce0] sm:$0xff] %vm264, 0.0
        %678 = vst.msk [vmem:[#allocation2 + $0xce8] sm:$0xff] %vm264, 0.0
        %679 = vst.msk [vmem:[#allocation2 + $0xcf0] sm:$0xff] %vm264, 0.0
        %680 = vst.msk [vmem:[#allocation2 + $0xcf8] sm:$0xff] %vm264, 0.0
        %681 = vst.msk [vmem:[#allocation2 + $0xd00] sm:$0xff] %vm264, 0.0
        %682 = vst.msk [vmem:[#allocation2 + $0xd08] sm:$0xff] %vm264, 0.0
        %683 = vst.msk [vmem:[#allocation2 + $0xd10] sm:$0xff] %vm264, 0.0
        %684 = vst.msk [vmem:[#allocation2 + $0xd18] sm:$0xff] %vm264, 0.0
        %685 = vst.msk [vmem:[#allocation2 + $0xd20] sm:$0xff] %vm264, 0.0
        %686 = vst.msk [vmem:[#allocation2 + $0xd28] sm:$0xff] %vm264, 0.0
        %687 = vst.msk [vmem:[#allocation2 + $0xd30] sm:$0xff] %vm264, 0.0
        %688 = vst.msk [vmem:[#allocation2 + $0xd38] sm:$0xff] %vm264, 0.0
        %689 = vst.msk [vmem:[#allocation2 + $0xd40] sm:$0xff] %vm264, 0.0
        %690 = vst.msk [vmem:[#allocation2 + $0xd48] sm:$0xff] %vm264, 0.0
        %691 = vst.msk [vmem:[#allocation2 + $0xd50] sm:$0xff] %vm264, 0.0
        %692 = vst.msk [vmem:[#allocation2 + $0xd58] sm:$0xff] %vm264, 0.0
        %693 = vst.msk [vmem:[#allocation2 + $0xd60] sm:$0xff] %vm264, 0.0
        %694 = vst.msk [vmem:[#allocation2 + $0xd68] sm:$0xff] %vm264, 0.0
        %695 = vst.msk [vmem:[#allocation2 + $0xd70] sm:$0xff] %vm264, 0.0
        %696 = vst.msk [vmem:[#allocation2 + $0xd78] sm:$0xff] %vm264, 0.0
        %697 = vst.msk [vmem:[#allocation2 + $0xd80] sm:$0xff] %vm264, 0.0
        %698 = vst.msk [vmem:[#allocation2 + $0xd88] sm:$0xff] %vm264, 0.0
        %699 = vst.msk [vmem:[#allocation2 + $0xd90] sm:$0xff] %vm264, 0.0
        %700 = vst.msk [vmem:[#allocation2 + $0xd98] sm:$0xff] %vm264, 0.0
        %701 = vst.msk [vmem:[#allocation2 + $0xda0] sm:$0xff] %vm264, 0.0
        %702 = vst.msk [vmem:[#allocation2 + $0xda8] sm:$0xff] %vm264, 0.0
        %703 = vst.msk [vmem:[#allocation2 + $0xdb0] sm:$0xff] %vm264, 0.0
        %704 = vst.msk [vmem:[#allocation2 + $0xdb8] sm:$0xff] %vm264, 0.0
        %705 = vst.msk [vmem:[#allocation2 + $0xdc0] sm:$0xff] %vm264, 0.0
        %706 = vst.msk [vmem:[#allocation2 + $0xdc8] sm:$0xff] %vm264, 0.0
        %707 = vst.msk [vmem:[#allocation2 + $0xdd0] sm:$0xff] %vm264, 0.0
        %708 = vst.msk [vmem:[#allocation2 + $0xdd8] sm:$0xff] %vm264, 0.0
        %709 = vst.msk [vmem:[#allocation2 + $0xde0] sm:$0xff] %vm264, 0.0
        %710 = vst.msk [vmem:[#allocation2 + $0xde8] sm:$0xff] %vm264, 0.0
        %711 = vst.msk [vmem:[#allocation2 + $0xdf0] sm:$0xff] %vm264, 0.0
        %712 = vst.msk [vmem:[#allocation2 + $0xdf8] sm:$0xff] %vm264, 0.0
      $region36: #{tpu_custom_call.1} parent=31 // pred_fallthru
        _
      %v713 = vld [vmem:[#allocation2] sm:$0xff]
      %v714 = vld [vmem:[#allocation2 + $0x8] sm:$0xff]
      %v715 = vld [vmem:[#allocation2 + $0x10] sm:$0xff]
      %v716 = vld [vmem:[#allocation2 + $0x18] sm:$0xff]
      %v717 = vld [vmem:[#allocation2 + $0x20] sm:$0xff]
      %v718 = vld [vmem:[#allocation2 + $0x28] sm:$0xff]
      %v719 = vld [vmem:[#allocation2 + $0x30] sm:$0xff]
      %v720 = vld [vmem:[#allocation2 + $0x38] sm:$0xff]
      %v721 = vld [vmem:[#allocation2 + $0x40] sm:$0xff]
      %v722 = vld [vmem:[#allocation2 + $0x48] sm:$0xff]
      %v723 = vld [vmem:[#allocation2 + $0x50] sm:$0xff]
      %v724 = vld [vmem:[#allocation2 + $0x58] sm:$0xff]
      %v725 = vld [vmem:[#allocation2 + $0x60] sm:$0xff]
      %v726 = vld [vmem:[#allocation2 + $0x68] sm:$0xff]
      %v727 = vld [vmem:[#allocation2 + $0x70] sm:$0xff]
      %v728 = vld [vmem:[#allocation2 + $0x78] sm:$0xff]
      %v729 = vld [vmem:[#allocation2 + $0x80] sm:$0xff]
      %v730 = vld [vmem:[#allocation2 + $0x88] sm:$0xff]
      %v731 = vld [vmem:[#allocation2 + $0x90] sm:$0xff]
      %v732 = vld [vmem:[#allocation2 + $0x98] sm:$0xff]
      %v733 = vld [vmem:[#allocation2 + $0xa0] sm:$0xff]
      %v734 = vld [vmem:[#allocation2 + $0xa8] sm:$0xff]
      %v735 = vld [vmem:[#allocation2 + $0xb0] sm:$0xff]
      %v736 = vld [vmem:[#allocation2 + $0xb8] sm:$0xff]
      %v737 = vld [vmem:[#allocation2 + $0xc0] sm:$0xff]
      %v738 = vld [vmem:[#allocation2 + $0xc8] sm:$0xff]
      %v739 = vld [vmem:[#allocation2 + $0xd0] sm:$0xff]
      %v740 = vld [vmem:[#allocation2 + $0xd8] sm:$0xff]
      %v741 = vld [vmem:[#allocation2 + $0xe0] sm:$0xff]
      %v742 = vld [vmem:[#allocation2 + $0xe8] sm:$0xff]
      %v743 = vld [vmem:[#allocation2 + $0xf0] sm:$0xff]
      %v744 = vld [vmem:[#allocation2 + $0xf8] sm:$0xff]
      %v745 = vld [vmem:[#allocation2 + $0x100] sm:$0xff]
      %v746 = vld [vmem:[#allocation2 + $0x108] sm:$0xff]
      %v747 = vld [vmem:[#allocation2 + $0x110] sm:$0xff]
      %v748 = vld [vmem:[#allocation2 + $0x118] sm:$0xff]
      %v749 = vld [vmem:[#allocation2 + $0x120] sm:$0xff]
      %v750 = vld [vmem:[#allocation2 + $0x128] sm:$0xff]
      %v751 = vld [vmem:[#allocation2 + $0x130] sm:$0xff]
      %v752 = vld [vmem:[#allocation2 + $0x138] sm:$0xff]
      %v753 = vld [vmem:[#allocation2 + $0x140] sm:$0xff]
      %v754 = vld [vmem:[#allocation2 + $0x148] sm:$0xff]
      %v755 = vld [vmem:[#allocation2 + $0x150] sm:$0xff]
      %v756 = vld [vmem:[#allocation2 + $0x158] sm:$0xff]
      %v757 = vld [vmem:[#allocation2 + $0x160] sm:$0xff]
      %v758 = vld [vmem:[#allocation2 + $0x168] sm:$0xff]
      %v759 = vld [vmem:[#allocation2 + $0x170] sm:$0xff]
      %v760 = vld [vmem:[#allocation2 + $0x178] sm:$0xff]
      %v761 = vld [vmem:[#allocation2 + $0x180] sm:$0xff]
      %v762 = vld [vmem:[#allocation2 + $0x188] sm:$0xff]
      %v763 = vld [vmem:[#allocation2 + $0x190] sm:$0xff]
      %v764 = vld [vmem:[#allocation2 + $0x198] sm:$0xff]
      %v765 = vld [vmem:[#allocation2 + $0x1a0] sm:$0xff]
      %v766 = vld [vmem:[#allocation2 + $0x1a8] sm:$0xff]
      %v767 = vld [vmem:[#allocation2 + $0x1b0] sm:$0xff]
      %v768 = vld [vmem:[#allocation2 + $0x1b8] sm:$0xff]
      %v769 = vld [vmem:[#allocation2 + $0x1c0] sm:$0xff]
      %v770 = vld [vmem:[#allocation2 + $0x1c8] sm:$0xff]
      %v771 = vld [vmem:[#allocation2 + $0x1d0] sm:$0xff]
      %v772 = vld [vmem:[#allocation2 + $0x1d8] sm:$0xff]
      %v773 = vld [vmem:[#allocation2 + $0x1e0] sm:$0xff]
      %v774 = vld [vmem:[#allocation2 + $0x1e8] sm:$0xff]
      %v775 = vld [vmem:[#allocation2 + $0x1f0] sm:$0xff]
      %v776 = vld [vmem:[#allocation2 + $0x1f8] sm:$0xff]
      %v777 = vld [vmem:[#allocation2 + $0x200] sm:$0xff]
      %v778 = vld [vmem:[#allocation2 + $0x208] sm:$0xff]
      %v779 = vld [vmem:[#allocation2 + $0x210] sm:$0xff]
      %v780 = vld [vmem:[#allocation2 + $0x218] sm:$0xff]
      %v781 = vld [vmem:[#allocation2 + $0x220] sm:$0xff]
      %v782 = vld [vmem:[#allocation2 + $0x228] sm:$0xff]
      %v783 = vld [vmem:[#allocation2 + $0x230] sm:$0xff]
      %v784 = vld [vmem:[#allocation2 + $0x238] sm:$0xff]
      %v785 = vld [vmem:[#allocation2 + $0x240] sm:$0xff]
      %v786 = vld [vmem:[#allocation2 + $0x248] sm:$0xff]
      %v787 = vld [vmem:[#allocation2 + $0x250] sm:$0xff]
      %v788 = vld [vmem:[#allocation2 + $0x258] sm:$0xff]
      %v789 = vld [vmem:[#allocation2 + $0x260] sm:$0xff]
      %v790 = vld [vmem:[#allocation2 + $0x268] sm:$0xff]
      %v791 = vld [vmem:[#allocation2 + $0x270] sm:$0xff]
      %v792 = vld [vmem:[#allocation2 + $0x278] sm:$0xff]
      %v793 = vld [vmem:[#allocation2 + $0x280] sm:$0xff]
      %v794 = vld [vmem:[#allocation2 + $0x288] sm:$0xff]
      %v795 = vld [vmem:[#allocation2 + $0x290] sm:$0xff]
      %v796 = vld [vmem:[#allocation2 + $0x298] sm:$0xff]
      %v797 = vld [vmem:[#allocation2 + $0x2a0] sm:$0xff]
      %v798 = vld [vmem:[#allocation2 + $0x2a8] sm:$0xff]
      %v799 = vld [vmem:[#allocation2 + $0x2b0] sm:$0xff]
      %v800 = vld [vmem:[#allocation2 + $0x2b8] sm:$0xff]
      %v801 = vld [vmem:[#allocation2 + $0x2c0] sm:$0xff]
      %v802 = vld [vmem:[#allocation2 + $0x2c8] sm:$0xff]
      %v803 = vld [vmem:[#allocation2 + $0x2d0] sm:$0xff]
      %v804 = vld [vmem:[#allocation2 + $0x2d8] sm:$0xff]
      %v805 = vld [vmem:[#allocation2 + $0x2e0] sm:$0xff]
      %v806 = vld [vmem:[#allocation2 + $0x2e8] sm:$0xff]
      %v807 = vld [vmem:[#allocation2 + $0x2f0] sm:$0xff]
      %v808 = vld [vmem:[#allocation2 + $0x2f8] sm:$0xff]
      %v809 = vld [vmem:[#allocation2 + $0x300] sm:$0xff]
      %v810 = vld [vmem:[#allocation2 + $0x308] sm:$0xff]
      %v811 = vld [vmem:[#allocation2 + $0x310] sm:$0xff]
      %v812 = vld [vmem:[#allocation2 + $0x318] sm:$0xff]
      %v813 = vld [vmem:[#allocation2 + $0x320] sm:$0xff]
      %v814 = vld [vmem:[#allocation2 + $0x328] sm:$0xff]
      %v815 = vld [vmem:[#allocation2 + $0x330] sm:$0xff]
      %v816 = vld [vmem:[#allocation2 + $0x338] sm:$0xff]
      %v817 = vld [vmem:[#allocation2 + $0x340] sm:$0xff]
      %v818 = vld [vmem:[#allocation2 + $0x348] sm:$0xff]
      %v819 = vld [vmem:[#allocation2 + $0x350] sm:$0xff]
      %v820 = vld [vmem:[#allocation2 + $0x358] sm:$0xff]
      %v821 = vld [vmem:[#allocation2 + $0x360] sm:$0xff]
      %v822 = vld [vmem:[#allocation2 + $0x368] sm:$0xff]
      %v823 = vld [vmem:[#allocation2 + $0x370] sm:$0xff]
      %v824 = vld [vmem:[#allocation2 + $0x378] sm:$0xff]
      %v825 = vld [vmem:[#allocation2 + $0x380] sm:$0xff]
      %v826 = vld [vmem:[#allocation2 + $0x388] sm:$0xff]
      %v827 = vld [vmem:[#allocation2 + $0x390] sm:$0xff]
      %v828 = vld [vmem:[#allocation2 + $0x398] sm:$0xff]
      %v829 = vld [vmem:[#allocation2 + $0x3a0] sm:$0xff]
      %v830 = vld [vmem:[#allocation2 + $0x3a8] sm:$0xff]
      %v831 = vld [vmem:[#allocation2 + $0x3b0] sm:$0xff]
      %v832 = vld [vmem:[#allocation2 + $0x3b8] sm:$0xff]
      %v833 = vld [vmem:[#allocation2 + $0x3c0] sm:$0xff]
      %v834 = vld [vmem:[#allocation2 + $0x3c8] sm:$0xff]
      %v835 = vld [vmem:[#allocation2 + $0x3d0] sm:$0xff]
      %v836 = vld [vmem:[#allocation2 + $0x3d8] sm:$0xff]
      %v837 = vld [vmem:[#allocation2 + $0x3e0] sm:$0xff]
      %v838 = vld [vmem:[#allocation2 + $0x3e8] sm:$0xff]
      %v839 = vld [vmem:[#allocation2 + $0x3f0] sm:$0xff]
      %v840 = vld [vmem:[#allocation2 + $0x3f8] sm:$0xff]
      %v841 = vld [vmem:[#allocation2 + $0x400] sm:$0xff]
      %v842 = vld [vmem:[#allocation2 + $0x408] sm:$0xff]
      %v843 = vld [vmem:[#allocation2 + $0x410] sm:$0xff]
      %v844 = vld [vmem:[#allocation2 + $0x418] sm:$0xff]
      %v845 = vld [vmem:[#allocation2 + $0x420] sm:$0xff]
      %v846 = vld [vmem:[#allocation2 + $0x428] sm:$0xff]
      %v847 = vld [vmem:[#allocation2 + $0x430] sm:$0xff]
      %v848 = vld [vmem:[#allocation2 + $0x438] sm:$0xff]
      %v849 = vld [vmem:[#allocation2 + $0x440] sm:$0xff]
      %v850 = vld [vmem:[#allocation2 + $0x448] sm:$0xff]
      %v851 = vld [vmem:[#allocation2 + $0x450] sm:$0xff]
      %v852 = vld [vmem:[#allocation2 + $0x458] sm:$0xff]
      %v853 = vld [vmem:[#allocation2 + $0x460] sm:$0xff]
      %v854 = vld [vmem:[#allocation2 + $0x468] sm:$0xff]
      %v855 = vld [vmem:[#allocation2 + $0x470] sm:$0xff]
      %v856 = vld [vmem:[#allocation2 + $0x478] sm:$0xff]
      %v857 = vld [vmem:[#allocation2 + $0x480] sm:$0xff]
      %v858 = vld [vmem:[#allocation2 + $0x488] sm:$0xff]
      %v859 = vld [vmem:[#allocation2 + $0x490] sm:$0xff]
      %v860 = vld [vmem:[#allocation2 + $0x498] sm:$0xff]
      %v861 = vld [vmem:[#allocation2 + $0x4a0] sm:$0xff]
      %v862 = vld [vmem:[#allocation2 + $0x4a8] sm:$0xff]
      %v863 = vld [vmem:[#allocation2 + $0x4b0] sm:$0xff]
      %v864 = vld [vmem:[#allocation2 + $0x4b8] sm:$0xff]
      %v865 = vld [vmem:[#allocation2 + $0x4c0] sm:$0xff]
      %v866 = vld [vmem:[#allocation2 + $0x4c8] sm:$0xff]
      %v867 = vld [vmem:[#allocation2 + $0x4d0] sm:$0xff]
      %v868 = vld [vmem:[#allocation2 + $0x4d8] sm:$0xff]
      %v869 = vld [vmem:[#allocation2 + $0x4e0] sm:$0xff]
      %v870 = vld [vmem:[#allocation2 + $0x4e8] sm:$0xff]
      %v871 = vld [vmem:[#allocation2 + $0x4f0] sm:$0xff]
      %v872 = vld [vmem:[#allocation2 + $0x4f8] sm:$0xff]
      %v873 = vld [vmem:[#allocation2 + $0x500] sm:$0xff]
      %v874 = vld [vmem:[#allocation2 + $0x508] sm:$0xff]
      %v875 = vld [vmem:[#allocation2 + $0x510] sm:$0xff]
      %v876 = vld [vmem:[#allocation2 + $0x518] sm:$0xff]
      %v877 = vld [vmem:[#allocation2 + $0x520] sm:$0xff]
      %v878 = vld [vmem:[#allocation2 + $0x528] sm:$0xff]
      %v879 = vld [vmem:[#allocation2 + $0x530] sm:$0xff]
      %v880 = vld [vmem:[#allocation2 + $0x538] sm:$0xff]
      %v881 = vld [vmem:[#allocation2 + $0x540] sm:$0xff]
      %v882 = vld [vmem:[#allocation2 + $0x548] sm:$0xff]
      %v883 = vld [vmem:[#allocation2 + $0x550] sm:$0xff]
      %v884 = vld [vmem:[#allocation2 + $0x558] sm:$0xff]
      %v885 = vld [vmem:[#allocation2 + $0x560] sm:$0xff]
      %v886 = vld [vmem:[#allocation2 + $0x568] sm:$0xff]
      %v887 = vld [vmem:[#allocation2 + $0x570] sm:$0xff]
      %v888 = vld [vmem:[#allocation2 + $0x578] sm:$0xff]
      %v889 = vld [vmem:[#allocation2 + $0x580] sm:$0xff]
      %v890 = vld [vmem:[#allocation2 + $0x588] sm:$0xff]
      %v891 = vld [vmem:[#allocation2 + $0x590] sm:$0xff]
      %v892 = vld [vmem:[#allocation2 + $0x598] sm:$0xff]
      %v893 = vld [vmem:[#allocation2 + $0x5a0] sm:$0xff]
      %v894 = vld [vmem:[#allocation2 + $0x5a8] sm:$0xff]
      %v895 = vld [vmem:[#allocation2 + $0x5b0] sm:$0xff]
      %v896 = vld [vmem:[#allocation2 + $0x5b8] sm:$0xff]
      %v897 = vld [vmem:[#allocation2 + $0x5c0] sm:$0xff]
      %v898 = vld [vmem:[#allocation2 + $0x5c8] sm:$0xff]
      %v899 = vld [vmem:[#allocation2 + $0x5d0] sm:$0xff]
      %v900 = vld [vmem:[#allocation2 + $0x5d8] sm:$0xff]
      %v901 = vld [vmem:[#allocation2 + $0x5e0] sm:$0xff]
      %v902 = vld [vmem:[#allocation2 + $0x5e8] sm:$0xff]
      %v903 = vld [vmem:[#allocation2 + $0x5f0] sm:$0xff]
      %v904 = vld [vmem:[#allocation2 + $0x5f8] sm:$0xff]
      %v905 = vld [vmem:[#allocation2 + $0x600] sm:$0xff]
      %v906 = vld [vmem:[#allocation2 + $0x608] sm:$0xff]
      %v907 = vld [vmem:[#allocation2 + $0x610] sm:$0xff]
      %v908 = vld [vmem:[#allocation2 + $0x618] sm:$0xff]
      %v909 = vld [vmem:[#allocation2 + $0x620] sm:$0xff]
      %v910 = vld [vmem:[#allocation2 + $0x628] sm:$0xff]
      %v911 = vld [vmem:[#allocation2 + $0x630] sm:$0xff]
      %v912 = vld [vmem:[#allocation2 + $0x638] sm:$0xff]
      %v913 = vld [vmem:[#allocation2 + $0x640] sm:$0xff]
      %v914 = vld [vmem:[#allocation2 + $0x648] sm:$0xff]
      %v915 = vld [vmem:[#allocation2 + $0x650] sm:$0xff]
      %v916 = vld [vmem:[#allocation2 + $0x658] sm:$0xff]
      %v917 = vld [vmem:[#allocation2 + $0x660] sm:$0xff]
      %v918 = vld [vmem:[#allocation2 + $0x668] sm:$0xff]
      %v919 = vld [vmem:[#allocation2 + $0x670] sm:$0xff]
      %v920 = vld [vmem:[#allocation2 + $0x678] sm:$0xff]
      %v921 = vld [vmem:[#allocation2 + $0x680] sm:$0xff]
      %v922 = vld [vmem:[#allocation2 + $0x688] sm:$0xff]
      %v923 = vld [vmem:[#allocation2 + $0x690] sm:$0xff]
      %v924 = vld [vmem:[#allocation2 + $0x698] sm:$0xff]
      %v925 = vld [vmem:[#allocation2 + $0x6a0] sm:$0xff]
      %v926 = vld [vmem:[#allocation2 + $0x6a8] sm:$0xff]
      %v927 = vld [vmem:[#allocation2 + $0x6b0] sm:$0xff]
      %v928 = vld [vmem:[#allocation2 + $0x6b8] sm:$0xff]
      %v929 = vld [vmem:[#allocation2 + $0x6c0] sm:$0xff]
      %v930 = vld [vmem:[#allocation2 + $0x6c8] sm:$0xff]
      %v931 = vld [vmem:[#allocation2 + $0x6d0] sm:$0xff]
      %v932 = vld [vmem:[#allocation2 + $0x6d8] sm:$0xff]
      %v933 = vld [vmem:[#allocation2 + $0x6e0] sm:$0xff]
      %v934 = vld [vmem:[#allocation2 + $0x6e8] sm:$0xff]
      %v935 = vld [vmem:[#allocation2 + $0x6f0] sm:$0xff]
      %v936 = vld [vmem:[#allocation2 + $0x6f8] sm:$0xff]
      %v937 = vld [vmem:[#allocation2 + $0x700] sm:$0xff]
      %v938 = vld [vmem:[#allocation2 + $0x708] sm:$0xff]
      %v939 = vld [vmem:[#allocation2 + $0x710] sm:$0xff]
      %v940 = vld [vmem:[#allocation2 + $0x718] sm:$0xff]
      %v941 = vld [vmem:[#allocation2 + $0x720] sm:$0xff]
      %v942 = vld [vmem:[#allocation2 + $0x728] sm:$0xff]
      %v943 = vld [vmem:[#allocation2 + $0x730] sm:$0xff]
      %v944 = vld [vmem:[#allocation2 + $0x738] sm:$0xff]
      %v945 = vld [vmem:[#allocation2 + $0x740] sm:$0xff]
      %v946 = vld [vmem:[#allocation2 + $0x748] sm:$0xff]
      %v947 = vld [vmem:[#allocation2 + $0x750] sm:$0xff]
      %v948 = vld [vmem:[#allocation2 + $0x758] sm:$0xff]
      %v949 = vld [vmem:[#allocation2 + $0x760] sm:$0xff]
      %v950 = vld [vmem:[#allocation2 + $0x768] sm:$0xff]
      %v951 = vld [vmem:[#allocation2 + $0x770] sm:$0xff]
      %v952 = vld [vmem:[#allocation2 + $0x778] sm:$0xff]
      %v953 = vld [vmem:[#allocation2 + $0x780] sm:$0xff]
      %v954 = vld [vmem:[#allocation2 + $0x788] sm:$0xff]
      %v955 = vld [vmem:[#allocation2 + $0x790] sm:$0xff]
      %v956 = vld [vmem:[#allocation2 + $0x798] sm:$0xff]
      %v957 = vld [vmem:[#allocation2 + $0x7a0] sm:$0xff]
      %v958 = vld [vmem:[#allocation2 + $0x7a8] sm:$0xff]
      %v959 = vld [vmem:[#allocation2 + $0x7b0] sm:$0xff]
      %v960 = vld [vmem:[#allocation2 + $0x7b8] sm:$0xff]
      %v961 = vld [vmem:[#allocation2 + $0x7c0] sm:$0xff]
      %v962 = vld [vmem:[#allocation2 + $0x7c8] sm:$0xff]
      %v963 = vld [vmem:[#allocation2 + $0x7d0] sm:$0xff]
      %v964 = vld [vmem:[#allocation2 + $0x7d8] sm:$0xff]
      %v965 = vld [vmem:[#allocation2 + $0x7e0] sm:$0xff]
      %v966 = vld [vmem:[#allocation2 + $0x7e8] sm:$0xff]
      %v967 = vld [vmem:[#allocation2 + $0x7f0] sm:$0xff]
      %v968 = vld [vmem:[#allocation2 + $0x7f8] sm:$0xff]
      %v969 = vld [vmem:[#allocation2 + $0x800] sm:$0xff]
      %v970 = vld [vmem:[#allocation2 + $0x808] sm:$0xff]
      %v971 = vld [vmem:[#allocation2 + $0x810] sm:$0xff]
      %v972 = vld [vmem:[#allocation2 + $0x818] sm:$0xff]
      %v973 = vld [vmem:[#allocation2 + $0x820] sm:$0xff]
      %v974 = vld [vmem:[#allocation2 + $0x828] sm:$0xff]
      %v975 = vld [vmem:[#allocation2 + $0x830] sm:$0xff]
      %v976 = vld [vmem:[#allocation2 + $0x838] sm:$0xff]
      %v977 = vld [vmem:[#allocation2 + $0x840] sm:$0xff]
      %v978 = vld [vmem:[#allocation2 + $0x848] sm:$0xff]
      %v979 = vld [vmem:[#allocation2 + $0x850] sm:$0xff]
      %v980 = vld [vmem:[#allocation2 + $0x858] sm:$0xff]
      %v981 = vld [vmem:[#allocation2 + $0x860] sm:$0xff]
      %v982 = vld [vmem:[#allocation2 + $0x868] sm:$0xff]
      %v983 = vld [vmem:[#allocation2 + $0x870] sm:$0xff]
      %v984 = vld [vmem:[#allocation2 + $0x878] sm:$0xff]
      %v985 = vld [vmem:[#allocation2 + $0x880] sm:$0xff]
      %v986 = vld [vmem:[#allocation2 + $0x888] sm:$0xff]
      %v987 = vld [vmem:[#allocation2 + $0x890] sm:$0xff]
      %v988 = vld [vmem:[#allocation2 + $0x898] sm:$0xff]
      %v989 = vld [vmem:[#allocation2 + $0x8a0] sm:$0xff]
      %v990 = vld [vmem:[#allocation2 + $0x8a8] sm:$0xff]
      %v991 = vld [vmem:[#allocation2 + $0x8b0] sm:$0xff]
      %v992 = vld [vmem:[#allocation2 + $0x8b8] sm:$0xff]
      %v993 = vld [vmem:[#allocation2 + $0x8c0] sm:$0xff]
      %v994 = vld [vmem:[#allocation2 + $0x8c8] sm:$0xff]
      %v995 = vld [vmem:[#allocation2 + $0x8d0] sm:$0xff]
      %v996 = vld [vmem:[#allocation2 + $0x8d8] sm:$0xff]
      %v997 = vld [vmem:[#allocation2 + $0x8e0] sm:$0xff]
      %v998 = vld [vmem:[#allocation2 + $0x8e8] sm:$0xff]
      %v999 = vld [vmem:[#allocation2 + $0x8f0] sm:$0xff]
      %v1000 = vld [vmem:[#allocation2 + $0x8f8] sm:$0xff]
      %v1001 = vld [vmem:[#allocation2 + $0x900] sm:$0xff]
      %v1002 = vld [vmem:[#allocation2 + $0x908] sm:$0xff]
      %v1003 = vld [vmem:[#allocation2 + $0x910] sm:$0xff]
      %v1004 = vld [vmem:[#allocation2 + $0x918] sm:$0xff]
      %v1005 = vld [vmem:[#allocation2 + $0x920] sm:$0xff]
      %v1006 = vld [vmem:[#allocation2 + $0x928] sm:$0xff]
      %v1007 = vld [vmem:[#allocation2 + $0x930] sm:$0xff]
      %v1008 = vld [vmem:[#allocation2 + $0x938] sm:$0xff]
      %v1009 = vld [vmem:[#allocation2 + $0x940] sm:$0xff]
      %v1010 = vld [vmem:[#allocation2 + $0x948] sm:$0xff]
      %v1011 = vld [vmem:[#allocation2 + $0x950] sm:$0xff]
      %v1012 = vld [vmem:[#allocation2 + $0x958] sm:$0xff]
      %v1013 = vld [vmem:[#allocation2 + $0x960] sm:$0xff]
      %v1014 = vld [vmem:[#allocation2 + $0x968] sm:$0xff]
      %v1015 = vld [vmem:[#allocation2 + $0x970] sm:$0xff]
      %v1016 = vld [vmem:[#allocation2 + $0x978] sm:$0xff]
      %v1017 = vld [vmem:[#allocation2 + $0x980] sm:$0xff]
      %v1018 = vld [vmem:[#allocation2 + $0x988] sm:$0xff]
      %v1019 = vld [vmem:[#allocation2 + $0x990] sm:$0xff]
      %v1020 = vld [vmem:[#allocation2 + $0x998] sm:$0xff]
      %v1021 = vld [vmem:[#allocation2 + $0x9a0] sm:$0xff]
      %v1022 = vld [vmem:[#allocation2 + $0x9a8] sm:$0xff]
      %v1023 = vld [vmem:[#allocation2 + $0x9b0] sm:$0xff]
      %v1024 = vld [vmem:[#allocation2 + $0x9b8] sm:$0xff]
      %v1025 = vld [vmem:[#allocation2 + $0x9c0] sm:$0xff]
      %v1026 = vld [vmem:[#allocation2 + $0x9c8] sm:$0xff]
      %v1027 = vld [vmem:[#allocation2 + $0x9d0] sm:$0xff]
      %v1028 = vld [vmem:[#allocation2 + $0x9d8] sm:$0xff]
      %v1029 = vld [vmem:[#allocation2 + $0x9e0] sm:$0xff]
      %v1030 = vld [vmem:[#allocation2 + $0x9e8] sm:$0xff]
      %v1031 = vld [vmem:[#allocation2 + $0x9f0] sm:$0xff]
      %v1032 = vld [vmem:[#allocation2 + $0x9f8] sm:$0xff]
      %v1033 = vld [vmem:[#allocation2 + $0xa00] sm:$0xff]
      %v1034 = vld [vmem:[#allocation2 + $0xa08] sm:$0xff]
      %v1035 = vld [vmem:[#allocation2 + $0xa10] sm:$0xff]
      %v1036 = vld [vmem:[#allocation2 + $0xa18] sm:$0xff]
      %v1037 = vld [vmem:[#allocation2 + $0xa20] sm:$0xff]
      %v1038 = vld [vmem:[#allocation2 + $0xa28] sm:$0xff]
      %v1039 = vld [vmem:[#allocation2 + $0xa30] sm:$0xff]
      %v1040 = vld [vmem:[#allocation2 + $0xa38] sm:$0xff]
      %v1041 = vld [vmem:[#allocation2 + $0xa40] sm:$0xff]
      %v1042 = vld [vmem:[#allocation2 + $0xa48] sm:$0xff]
      %v1043 = vld [vmem:[#allocation2 + $0xa50] sm:$0xff]
      %v1044 = vld [vmem:[#allocation2 + $0xa58] sm:$0xff]
      %v1045 = vld [vmem:[#allocation2 + $0xa60] sm:$0xff]
      %v1046 = vld [vmem:[#allocation2 + $0xa68] sm:$0xff]
      %v1047 = vld [vmem:[#allocation2 + $0xa70] sm:$0xff]
      %v1048 = vld [vmem:[#allocation2 + $0xa78] sm:$0xff]
      %v1049 = vld [vmem:[#allocation2 + $0xa80] sm:$0xff]
      %v1050 = vld [vmem:[#allocation2 + $0xa88] sm:$0xff]
      %v1051 = vld [vmem:[#allocation2 + $0xa90] sm:$0xff]
      %v1052 = vld [vmem:[#allocation2 + $0xa98] sm:$0xff]
      %v1053 = vld [vmem:[#allocation2 + $0xaa0] sm:$0xff]
      %v1054 = vld [vmem:[#allocation2 + $0xaa8] sm:$0xff]
      %v1055 = vld [vmem:[#allocation2 + $0xab0] sm:$0xff]
      %v1056 = vld [vmem:[#allocation2 + $0xab8] sm:$0xff]
      %v1057 = vld [vmem:[#allocation2 + $0xac0] sm:$0xff]
      %v1058 = vld [vmem:[#allocation2 + $0xac8] sm:$0xff]
      %v1059 = vld [vmem:[#allocation2 + $0xad0] sm:$0xff]
      %v1060 = vld [vmem:[#allocation2 + $0xad8] sm:$0xff]
      %v1061 = vld [vmem:[#allocation2 + $0xae0] sm:$0xff]
      %v1062 = vld [vmem:[#allocation2 + $0xae8] sm:$0xff]
      %v1063 = vld [vmem:[#allocation2 + $0xaf0] sm:$0xff]
      %v1064 = vld [vmem:[#allocation2 + $0xaf8] sm:$0xff]
      %v1065 = vld [vmem:[#allocation2 + $0xb00] sm:$0xff]
      %v1066 = vld [vmem:[#allocation2 + $0xb08] sm:$0xff]
      %v1067 = vld [vmem:[#allocation2 + $0xb10] sm:$0xff]
      %v1068 = vld [vmem:[#allocation2 + $0xb18] sm:$0xff]
      %v1069 = vld [vmem:[#allocation2 + $0xb20] sm:$0xff]
      %v1070 = vld [vmem:[#allocation2 + $0xb28] sm:$0xff]
      %v1071 = vld [vmem:[#allocation2 + $0xb30] sm:$0xff]
      %v1072 = vld [vmem:[#allocation2 + $0xb38] sm:$0xff]
      %v1073 = vld [vmem:[#allocation2 + $0xb40] sm:$0xff]
      %v1074 = vld [vmem:[#allocation2 + $0xb48] sm:$0xff]
      %v1075 = vld [vmem:[#allocation2 + $0xb50] sm:$0xff]
      %v1076 = vld [vmem:[#allocation2 + $0xb58] sm:$0xff]
      %v1077 = vld [vmem:[#allocation2 + $0xb60] sm:$0xff]
      %v1078 = vld [vmem:[#allocation2 + $0xb68] sm:$0xff]
      %v1079 = vld [vmem:[#allocation2 + $0xb70] sm:$0xff]
      %v1080 = vld [vmem:[#allocation2 + $0xb78] sm:$0xff]
      %v1081 = vld [vmem:[#allocation2 + $0xb80] sm:$0xff]
      %v1082 = vld [vmem:[#allocation2 + $0xb88] sm:$0xff]
      %v1083 = vld [vmem:[#allocation2 + $0xb90] sm:$0xff]
      %v1084 = vld [vmem:[#allocation2 + $0xb98] sm:$0xff]
      %v1085 = vld [vmem:[#allocation2 + $0xba0] sm:$0xff]
      %v1086 = vld [vmem:[#allocation2 + $0xba8] sm:$0xff]
      %v1087 = vld [vmem:[#allocation2 + $0xbb0] sm:$0xff]
      %v1088 = vld [vmem:[#allocation2 + $0xbb8] sm:$0xff]
      %v1089 = vld [vmem:[#allocation2 + $0xbc0] sm:$0xff]
      %v1090 = vld [vmem:[#allocation2 + $0xbc8] sm:$0xff]
      %v1091 = vld [vmem:[#allocation2 + $0xbd0] sm:$0xff]
      %v1092 = vld [vmem:[#allocation2 + $0xbd8] sm:$0xff]
      %v1093 = vld [vmem:[#allocation2 + $0xbe0] sm:$0xff]
      %v1094 = vld [vmem:[#allocation2 + $0xbe8] sm:$0xff]
      %v1095 = vld [vmem:[#allocation2 + $0xbf0] sm:$0xff]
      %v1096 = vld [vmem:[#allocation2 + $0xbf8] sm:$0xff]
      %v1097 = vld [vmem:[#allocation2 + $0xc00] sm:$0xff]
      %v1098 = vld [vmem:[#allocation2 + $0xc08] sm:$0xff]
      %v1099 = vld [vmem:[#allocation2 + $0xc10] sm:$0xff]
      %v1100 = vld [vmem:[#allocation2 + $0xc18] sm:$0xff]
      %v1101 = vld [vmem:[#allocation2 + $0xc20] sm:$0xff]
      %v1102 = vld [vmem:[#allocation2 + $0xc28] sm:$0xff]
      %v1103 = vld [vmem:[#allocation2 + $0xc30] sm:$0xff]
      %v1104 = vld [vmem:[#allocation2 + $0xc38] sm:$0xff]
      %v1105 = vld [vmem:[#allocation2 + $0xc40] sm:$0xff]
      %v1106 = vld [vmem:[#allocation2 + $0xc48] sm:$0xff]
      %v1107 = vld [vmem:[#allocation2 + $0xc50] sm:$0xff]
      %v1108 = vld [vmem:[#allocation2 + $0xc58] sm:$0xff]
      %v1109 = vld [vmem:[#allocation2 + $0xc60] sm:$0xff]
      %v1110 = vld [vmem:[#allocation2 + $0xc68] sm:$0xff]
      %v1111 = vld [vmem:[#allocation2 + $0xc70] sm:$0xff]
      %v1112 = vld [vmem:[#allocation2 + $0xc78] sm:$0xff]
      %v1113 = vld [vmem:[#allocation2 + $0xc80] sm:$0xff]
      %v1114 = vld [vmem:[#allocation2 + $0xc88] sm:$0xff]
      %v1115 = vld [vmem:[#allocation2 + $0xc90] sm:$0xff]
      %v1116 = vld [vmem:[#allocation2 + $0xc98] sm:$0xff]
      %v1117 = vld [vmem:[#allocation2 + $0xca0] sm:$0xff]
      %v1118 = vld [vmem:[#allocation2 + $0xca8] sm:$0xff]
      %v1119 = vld [vmem:[#allocation2 + $0xcb0] sm:$0xff]
      %v1120 = vld [vmem:[#allocation2 + $0xcb8] sm:$0xff]
      %v1121 = vld [vmem:[#allocation2 + $0xcc0] sm:$0xff]
      %v1122 = vld [vmem:[#allocation2 + $0xcc8] sm:$0xff]
      %v1123 = vld [vmem:[#allocation2 + $0xcd0] sm:$0xff]
      %v1124 = vld [vmem:[#allocation2 + $0xcd8] sm:$0xff]
      %v1125 = vld [vmem:[#allocation2 + $0xce0] sm:$0xff]
      %v1126 = vld [vmem:[#allocation2 + $0xce8] sm:$0xff]
      %v1127 = vld [vmem:[#allocation2 + $0xcf0] sm:$0xff]
      %v1128 = vld [vmem:[#allocation2 + $0xcf8] sm:$0xff]
      %v1129 = vld [vmem:[#allocation2 + $0xd00] sm:$0xff]
      %v1130 = vld [vmem:[#allocation2 + $0xd08] sm:$0xff]
      %v1131 = vld [vmem:[#allocation2 + $0xd10] sm:$0xff]
      %v1132 = vld [vmem:[#allocation2 + $0xd18] sm:$0xff]
      %v1133 = vld [vmem:[#allocation2 + $0xd20] sm:$0xff]
      %v1134 = vld [vmem:[#allocation2 + $0xd28] sm:$0xff]
      %v1135 = vld [vmem:[#allocation2 + $0xd30] sm:$0xff]
      %v1136 = vld [vmem:[#allocation2 + $0xd38] sm:$0xff]
      %v1137 = vld [vmem:[#allocation2 + $0xd40] sm:$0xff]
      %v1138 = vld [vmem:[#allocation2 + $0xd48] sm:$0xff]
      %v1139 = vld [vmem:[#allocation2 + $0xd50] sm:$0xff]
      %v1140 = vld [vmem:[#allocation2 + $0xd58] sm:$0xff]
      %v1141 = vld [vmem:[#allocation2 + $0xd60] sm:$0xff]
      %v1142 = vld [vmem:[#allocation2 + $0xd68] sm:$0xff]
      %v1143 = vld [vmem:[#allocation2 + $0xd70] sm:$0xff]
      %v1144 = vld [vmem:[#allocation2 + $0xd78] sm:$0xff]
      %v1145 = vld [vmem:[#allocation2 + $0xd80] sm:$0xff]
      %v1146 = vld [vmem:[#allocation2 + $0xd88] sm:$0xff]
      %v1147 = vld [vmem:[#allocation2 + $0xd90] sm:$0xff]
      %v1148 = vld [vmem:[#allocation2 + $0xd98] sm:$0xff]
      %v1149 = vld [vmem:[#allocation2 + $0xda0] sm:$0xff]
      %v1150 = vld [vmem:[#allocation2 + $0xda8] sm:$0xff]
      %v1151 = vld [vmem:[#allocation2 + $0xdb0] sm:$0xff]
      %v1152 = vld [vmem:[#allocation2 + $0xdb8] sm:$0xff]
      %v1153 = vld [vmem:[#allocation2 + $0xdc0] sm:$0xff]
      %v1154 = vld [vmem:[#allocation2 + $0xdc8] sm:$0xff]
      %v1155 = vld [vmem:[#allocation2 + $0xdd0] sm:$0xff]
      %v1156 = vld [vmem:[#allocation2 + $0xdd8] sm:$0xff]
      %v1157 = vld [vmem:[#allocation2 + $0xde0] sm:$0xff]
      %v1158 = vld [vmem:[#allocation2 + $0xde8] sm:$0xff]
      %v1159 = vld [vmem:[#allocation2 + $0xdf0] sm:$0xff]
      %v1160 = vld [vmem:[#allocation2 + $0xdf8] sm:$0xff]
      %v1161 = vld [vmem:[%s236] sm:$0xf]
      %v1162 = vld [vmem:[%s236 + $0x4] sm:$0xf]
      %v1163 = vld [vmem:[%s236 + $0x8] sm:$0xf]
      %v1164 = vld [vmem:[%s236 + $0xc] sm:$0xf]
      %v1165 = vld [vmem:[%s236 + $0x10] sm:$0xf]
      %v1166 = vld [vmem:[%s236 + $0x14] sm:$0xf]
      %v1167 = vld [vmem:[%s236 + $0x18] sm:$0xf]
      %v1168 = vld [vmem:[%s236 + $0x1c] sm:$0xf]
      %v1169 = vld [vmem:[%s236 + $0x20] sm:$0xf]
      %v1170 = vld [vmem:[%s236 + $0x24] sm:$0xf]
      %v1171 = vld [vmem:[%s236 + $0x28] sm:$0xf]
      %v1172 = vld [vmem:[%s236 + $0x2c] sm:$0xf]
      %v1173 = vld [vmem:[%s236 + $0x30] sm:$0xf]
      %v1174 = vld [vmem:[%s236 + $0x34] sm:$0xf]
      %v1175 = vld [vmem:[%s236 + $0x38] sm:$0xf]
      %v1176 = vld [vmem:[%s236 + $0x3c] sm:$0xf]
      %v1177 = vld [vmem:[%s236 + $0x40] sm:$0xf]
      %v1178 = vld [vmem:[%s236 + $0x44] sm:$0xf]
      %v1179 = vld [vmem:[%s236 + $0x48] sm:$0xf]
      %v1180 = vld [vmem:[%s236 + $0x4c] sm:$0xf]
      %v1181 = vld [vmem:[%s236 + $0x50] sm:$0xf]
      %v1182 = vld [vmem:[%s236 + $0x54] sm:$0xf]
      %v1183 = vld [vmem:[%s236 + $0x58] sm:$0xf]
      %v1184 = vld [vmem:[%s236 + $0x5c] sm:$0xf]
      %v1185 = vld [vmem:[%s236 + $0x60] sm:$0xf]
      %v1186 = vld [vmem:[%s236 + $0x64] sm:$0xf]
      %v1187 = vld [vmem:[%s236 + $0x68] sm:$0xf]
      %v1188 = vld [vmem:[%s236 + $0x6c] sm:$0xf]
      %v1189 = vld [vmem:[%s236 + $0x70] sm:$0xf]
      %v1190 = vld [vmem:[%s236 + $0x74] sm:$0xf]
      %v1191 = vld [vmem:[%s236 + $0x78] sm:$0xf]
      %v1192 = vld [vmem:[%s236 + $0x7c] sm:$0xf]
      %v1193 = vld [vmem:[%s236 + $0x80] sm:$0xf]
      %v1194 = vld [vmem:[%s236 + $0x84] sm:$0xf]
      %v1195 = vld [vmem:[%s236 + $0x88] sm:$0xf]
      %v1196 = vld [vmem:[%s236 + $0x8c] sm:$0xf]
      %v1197 = vld [vmem:[%s236 + $0x90] sm:$0xf]
      %v1198 = vld [vmem:[%s236 + $0x94] sm:$0xf]
      %v1199 = vld [vmem:[%s236 + $0x98] sm:$0xf]
      %v1200 = vld [vmem:[%s236 + $0x9c] sm:$0xf]
      %v1201 = vld [vmem:[%s236 + $0xa0] sm:$0xf]
      %v1202 = vld [vmem:[%s236 + $0xa4] sm:$0xf]
      %v1203 = vld [vmem:[%s236 + $0xa8] sm:$0xf]
      %v1204 = vld [vmem:[%s236 + $0xac] sm:$0xf]
      %v1205 = vld [vmem:[%s236 + $0xb0] sm:$0xf]
      %v1206 = vld [vmem:[%s236 + $0xb4] sm:$0xf]
      %v1207 = vld [vmem:[%s236 + $0xb8] sm:$0xf]
      %v1208 = vld [vmem:[%s236 + $0xbc] sm:$0xf]
      %v1209 = vld [vmem:[%s236 + $0xc0] sm:$0xf]
      %v1210 = vld [vmem:[%s236 + $0xc4] sm:$0xf]
      %v1211 = vld [vmem:[%s236 + $0xc8] sm:$0xf]
      %v1212 = vld [vmem:[%s236 + $0xcc] sm:$0xf]
      %v1213 = vld [vmem:[%s236 + $0xd0] sm:$0xf]
      %v1214 = vld [vmem:[%s236 + $0xd4] sm:$0xf]
      %v1215 = vld [vmem:[%s236 + $0xd8] sm:$0xf]
      %v1216 = vld [vmem:[%s236 + $0xdc] sm:$0xf]
      %v1217 = vld [vmem:[%s236 + $0xe0] sm:$0xf]
      %v1218 = vld [vmem:[%s236 + $0xe4] sm:$0xf]
      %v1219 = vld [vmem:[%s236 + $0xe8] sm:$0xf]
      %v1220 = vld [vmem:[%s236 + $0xec] sm:$0xf]
      %v1221 = vld [vmem:[%s236 + $0xf0] sm:$0xf]
      %v1222 = vld [vmem:[%s236 + $0xf4] sm:$0xf]
      %v1223 = vld [vmem:[%s236 + $0xf8] sm:$0xf]
      %v1224 = vld [vmem:[%s236 + $0xfc] sm:$0xf]
      %v1225 = vld [vmem:[%s236 + $0x100] sm:$0xf]
      %v1226 = vld [vmem:[%s236 + $0x104] sm:$0xf]
      %v1227 = vld [vmem:[%s236 + $0x108] sm:$0xf]
      %v1228 = vld [vmem:[%s236 + $0x10c] sm:$0xf]
      %v1229 = vld [vmem:[%s236 + $0x110] sm:$0xf]
      %v1230 = vld [vmem:[%s236 + $0x114] sm:$0xf]
      %v1231 = vld [vmem:[%s236 + $0x118] sm:$0xf]
      %v1232 = vld [vmem:[%s236 + $0x11c] sm:$0xf]
      %v1233 = vld [vmem:[%s236 + $0x120] sm:$0xf]
      %v1234 = vld [vmem:[%s236 + $0x124] sm:$0xf]
      %v1235 = vld [vmem:[%s236 + $0x128] sm:$0xf]
      %v1236 = vld [vmem:[%s236 + $0x12c] sm:$0xf]
      %v1237 = vld [vmem:[%s236 + $0x130] sm:$0xf]
      %v1238 = vld [vmem:[%s236 + $0x134] sm:$0xf]
      %v1239 = vld [vmem:[%s236 + $0x138] sm:$0xf]
      %v1240 = vld [vmem:[%s236 + $0x13c] sm:$0xf]
      %v1241 = vld [vmem:[%s236 + $0x140] sm:$0xf]
      %v1242 = vld [vmem:[%s236 + $0x144] sm:$0xf]
      %v1243 = vld [vmem:[%s236 + $0x148] sm:$0xf]
      %v1244 = vld [vmem:[%s236 + $0x14c] sm:$0xf]
      %v1245 = vld [vmem:[%s236 + $0x150] sm:$0xf]
      %v1246 = vld [vmem:[%s236 + $0x154] sm:$0xf]
      %v1247 = vld [vmem:[%s236 + $0x158] sm:$0xf]
      %v1248 = vld [vmem:[%s236 + $0x15c] sm:$0xf]
      %v1249 = vld [vmem:[%s236 + $0x160] sm:$0xf]
      %v1250 = vld [vmem:[%s236 + $0x164] sm:$0xf]
      %v1251 = vld [vmem:[%s236 + $0x168] sm:$0xf]
      %v1252 = vld [vmem:[%s236 + $0x16c] sm:$0xf]
      %v1253 = vld [vmem:[%s236 + $0x170] sm:$0xf]
      %v1254 = vld [vmem:[%s236 + $0x174] sm:$0xf]
      %v1255 = vld [vmem:[%s236 + $0x178] sm:$0xf]
      %v1256 = vld [vmem:[%s236 + $0x17c] sm:$0xf]
      %v1257 = vld [vmem:[%s236 + $0x180] sm:$0xf]
      %v1258 = vld [vmem:[%s236 + $0x184] sm:$0xf]
      %v1259 = vld [vmem:[%s236 + $0x188] sm:$0xf]
      %v1260 = vld [vmem:[%s236 + $0x18c] sm:$0xf]
      %v1261 = vld [vmem:[%s236 + $0x190] sm:$0xf]
      %v1262 = vld [vmem:[%s236 + $0x194] sm:$0xf]
      %v1263 = vld [vmem:[%s236 + $0x198] sm:$0xf]
      %v1264 = vld [vmem:[%s236 + $0x19c] sm:$0xf]
      %v1265 = vld [vmem:[%s236 + $0x1a0] sm:$0xf]
      %v1266 = vld [vmem:[%s236 + $0x1a4] sm:$0xf]
      %v1267 = vld [vmem:[%s236 + $0x1a8] sm:$0xf]
      %v1268 = vld [vmem:[%s236 + $0x1ac] sm:$0xf]
      %v1269 = vld [vmem:[%s236 + $0x1b0] sm:$0xf]
      %v1270 = vld [vmem:[%s236 + $0x1b4] sm:$0xf]
      %v1271 = vld [vmem:[%s236 + $0x1b8] sm:$0xf]
      %v1272 = vld [vmem:[%s236 + $0x1bc] sm:$0xf]
      %v1273 = vld [vmem:[%s236 + $0x1c0] sm:$0xf]
      %v1274 = vld [vmem:[%s236 + $0x1c4] sm:$0xf]
      %v1275 = vld [vmem:[%s236 + $0x1c8] sm:$0xf]
      %v1276 = vld [vmem:[%s236 + $0x1cc] sm:$0xf]
      %v1277 = vld [vmem:[%s236 + $0x1d0] sm:$0xf]
      %v1278 = vld [vmem:[%s236 + $0x1d4] sm:$0xf]
      %v1279 = vld [vmem:[%s236 + $0x1d8] sm:$0xf]
      %v1280 = vld [vmem:[%s236 + $0x1dc] sm:$0xf]
      %v1281 = vld [vmem:[%s236 + $0x1e0] sm:$0xf]
      %v1282 = vld [vmem:[%s236 + $0x1e4] sm:$0xf]
      %v1283 = vld [vmem:[%s236 + $0x1e8] sm:$0xf]
      %v1284 = vld [vmem:[%s236 + $0x1ec] sm:$0xf]
      %v1285 = vld [vmem:[%s236 + $0x1f0] sm:$0xf]
      %v1286 = vld [vmem:[%s236 + $0x1f4] sm:$0xf]
      %v1287 = vld [vmem:[%s236 + $0x1f8] sm:$0xf]
      %v1288 = vld [vmem:[%s236 + $0x1fc] sm:$0xf]
      %v1289 = vld [vmem:[%s236 + $0x200] sm:$0xf]
      %v1290 = vld [vmem:[%s236 + $0x204] sm:$0xf]
      %v1291 = vld [vmem:[%s236 + $0x208] sm:$0xf]
      %v1292 = vld [vmem:[%s236 + $0x20c] sm:$0xf]
      %v1293 = vld [vmem:[%s236 + $0x210] sm:$0xf]
      %v1294 = vld [vmem:[%s236 + $0x214] sm:$0xf]
      %v1295 = vld [vmem:[%s236 + $0x218] sm:$0xf]
      %v1296 = vld [vmem:[%s236 + $0x21c] sm:$0xf]
      %v1297 = vld [vmem:[%s236 + $0x220] sm:$0xf]
      %v1298 = vld [vmem:[%s236 + $0x224] sm:$0xf]
      %v1299 = vld [vmem:[%s236 + $0x228] sm:$0xf]
      %v1300 = vld [vmem:[%s236 + $0x22c] sm:$0xf]
      %v1301 = vld [vmem:[%s236 + $0x230] sm:$0xf]
      %v1302 = vld [vmem:[%s236 + $0x234] sm:$0xf]
      %v1303 = vld [vmem:[%s236 + $0x238] sm:$0xf]
      %v1304 = vld [vmem:[%s236 + $0x23c] sm:$0xf]
      %v1305 = vld [vmem:[%s236 + $0x240] sm:$0xf]
      %v1306 = vld [vmem:[%s236 + $0x244] sm:$0xf]
      %v1307 = vld [vmem:[%s236 + $0x248] sm:$0xf]
      %v1308 = vld [vmem:[%s236 + $0x24c] sm:$0xf]
      %v1309 = vld [vmem:[%s236 + $0x250] sm:$0xf]
      %v1310 = vld [vmem:[%s236 + $0x254] sm:$0xf]
      %v1311 = vld [vmem:[%s236 + $0x258] sm:$0xf]
      %v1312 = vld [vmem:[%s236 + $0x25c] sm:$0xf]
      %v1313 = vld [vmem:[%s236 + $0x260] sm:$0xf]
      %v1314 = vld [vmem:[%s236 + $0x264] sm:$0xf]
      %v1315 = vld [vmem:[%s236 + $0x268] sm:$0xf]
      %v1316 = vld [vmem:[%s236 + $0x26c] sm:$0xf]
      %v1317 = vld [vmem:[%s236 + $0x270] sm:$0xf]
      %v1318 = vld [vmem:[%s236 + $0x274] sm:$0xf]
      %v1319 = vld [vmem:[%s236 + $0x278] sm:$0xf]
      %v1320 = vld [vmem:[%s236 + $0x27c] sm:$0xf]
      %v1321 = vld [vmem:[%s236 + $0x280] sm:$0xf]
      %v1322 = vld [vmem:[%s236 + $0x284] sm:$0xf]
      %v1323 = vld [vmem:[%s236 + $0x288] sm:$0xf]
      %v1324 = vld [vmem:[%s236 + $0x28c] sm:$0xf]
      %v1325 = vld [vmem:[%s236 + $0x290] sm:$0xf]
      %v1326 = vld [vmem:[%s236 + $0x294] sm:$0xf]
      %v1327 = vld [vmem:[%s236 + $0x298] sm:$0xf]
      %v1328 = vld [vmem:[%s236 + $0x29c] sm:$0xf]
      %v1329 = vld [vmem:[%s236 + $0x2a0] sm:$0xf]
      %v1330 = vld [vmem:[%s236 + $0x2a4] sm:$0xf]
      %v1331 = vld [vmem:[%s236 + $0x2a8] sm:$0xf]
      %v1332 = vld [vmem:[%s236 + $0x2ac] sm:$0xf]
      %v1333 = vld [vmem:[%s236 + $0x2b0] sm:$0xf]
      %v1334 = vld [vmem:[%s236 + $0x2b4] sm:$0xf]
      %v1335 = vld [vmem:[%s236 + $0x2b8] sm:$0xf]
      %v1336 = vld [vmem:[%s236 + $0x2bc] sm:$0xf]
      %v1337 = vld [vmem:[%s236 + $0x2c0] sm:$0xf]
      %v1338 = vld [vmem:[%s236 + $0x2c4] sm:$0xf]
      %v1339 = vld [vmem:[%s236 + $0x2c8] sm:$0xf]
      %v1340 = vld [vmem:[%s236 + $0x2cc] sm:$0xf]
      %v1341 = vld [vmem:[%s236 + $0x2d0] sm:$0xf]
      %v1342 = vld [vmem:[%s236 + $0x2d4] sm:$0xf]
      %v1343 = vld [vmem:[%s236 + $0x2d8] sm:$0xf]
      %v1344 = vld [vmem:[%s236 + $0x2dc] sm:$0xf]
      %v1345 = vld [vmem:[%s236 + $0x2e0] sm:$0xf]
      %v1346 = vld [vmem:[%s236 + $0x2e4] sm:$0xf]
      %v1347 = vld [vmem:[%s236 + $0x2e8] sm:$0xf]
      %v1348 = vld [vmem:[%s236 + $0x2ec] sm:$0xf]
      %v1349 = vld [vmem:[%s236 + $0x2f0] sm:$0xf]
      %v1350 = vld [vmem:[%s236 + $0x2f4] sm:$0xf]
      %v1351 = vld [vmem:[%s236 + $0x2f8] sm:$0xf]
      %v1352 = vld [vmem:[%s236 + $0x2fc] sm:$0xf]
      %v1353 = vld [vmem:[%s236 + $0x300] sm:$0xf]
      %v1354 = vld [vmem:[%s236 + $0x304] sm:$0xf]
      %v1355 = vld [vmem:[%s236 + $0x308] sm:$0xf]
      %v1356 = vld [vmem:[%s236 + $0x30c] sm:$0xf]
      %v1357 = vld [vmem:[%s236 + $0x310] sm:$0xf]
      %v1358 = vld [vmem:[%s236 + $0x314] sm:$0xf]
      %v1359 = vld [vmem:[%s236 + $0x318] sm:$0xf]
      %v1360 = vld [vmem:[%s236 + $0x31c] sm:$0xf]
      %v1361 = vld [vmem:[%s236 + $0x320] sm:$0xf]
      %v1362 = vld [vmem:[%s236 + $0x324] sm:$0xf]
      %v1363 = vld [vmem:[%s236 + $0x328] sm:$0xf]
      %v1364 = vld [vmem:[%s236 + $0x32c] sm:$0xf]
      %v1365 = vld [vmem:[%s236 + $0x330] sm:$0xf]
      %v1366 = vld [vmem:[%s236 + $0x334] sm:$0xf]
      %v1367 = vld [vmem:[%s236 + $0x338] sm:$0xf]
      %v1368 = vld [vmem:[%s236 + $0x33c] sm:$0xf]
      %v1369 = vld [vmem:[%s236 + $0x340] sm:$0xf]
      %v1370 = vld [vmem:[%s236 + $0x344] sm:$0xf]
      %v1371 = vld [vmem:[%s236 + $0x348] sm:$0xf]
      %v1372 = vld [vmem:[%s236 + $0x34c] sm:$0xf]
      %v1373 = vld [vmem:[%s236 + $0x350] sm:$0xf]
      %v1374 = vld [vmem:[%s236 + $0x354] sm:$0xf]
      %v1375 = vld [vmem:[%s236 + $0x358] sm:$0xf]
      %v1376 = vld [vmem:[%s236 + $0x35c] sm:$0xf]
      %v1377 = vld [vmem:[%s236 + $0x360] sm:$0xf]
      %v1378 = vld [vmem:[%s236 + $0x364] sm:$0xf]
      %v1379 = vld [vmem:[%s236 + $0x368] sm:$0xf]
      %v1380 = vld [vmem:[%s236 + $0x36c] sm:$0xf]
      %v1381 = vld [vmem:[%s236 + $0x370] sm:$0xf]
      %v1382 = vld [vmem:[%s236 + $0x374] sm:$0xf]
      %v1383 = vld [vmem:[%s236 + $0x378] sm:$0xf]
      %v1384 = vld [vmem:[%s236 + $0x37c] sm:$0xf]
      %v1385 = vld [vmem:[%s236 + $0x380] sm:$0xf]
      %v1386 = vld [vmem:[%s236 + $0x384] sm:$0xf]
      %v1387 = vld [vmem:[%s236 + $0x388] sm:$0xf]
      %v1388 = vld [vmem:[%s236 + $0x38c] sm:$0xf]
      %v1389 = vld [vmem:[%s236 + $0x390] sm:$0xf]
      %v1390 = vld [vmem:[%s236 + $0x394] sm:$0xf]
      %v1391 = vld [vmem:[%s236 + $0x398] sm:$0xf]
      %v1392 = vld [vmem:[%s236 + $0x39c] sm:$0xf]
      %v1393 = vld [vmem:[%s236 + $0x3a0] sm:$0xf]
      %v1394 = vld [vmem:[%s236 + $0x3a4] sm:$0xf]
      %v1395 = vld [vmem:[%s236 + $0x3a8] sm:$0xf]
      %v1396 = vld [vmem:[%s236 + $0x3ac] sm:$0xf]
      %v1397 = vld [vmem:[%s236 + $0x3b0] sm:$0xf]
      %v1398 = vld [vmem:[%s236 + $0x3b4] sm:$0xf]
      %v1399 = vld [vmem:[%s236 + $0x3b8] sm:$0xf]
      %v1400 = vld [vmem:[%s236 + $0x3bc] sm:$0xf]
      %v1401 = vld [vmem:[%s236 + $0x3c0] sm:$0xf]
      %v1402 = vld [vmem:[%s236 + $0x3c4] sm:$0xf]
      %v1403 = vld [vmem:[%s236 + $0x3c8] sm:$0xf]
      %v1404 = vld [vmem:[%s236 + $0x3cc] sm:$0xf]
      %v1405 = vld [vmem:[%s236 + $0x3d0] sm:$0xf]
      %v1406 = vld [vmem:[%s236 + $0x3d4] sm:$0xf]
      %v1407 = vld [vmem:[%s236 + $0x3d8] sm:$0xf]
      %v1408 = vld [vmem:[%s236 + $0x3dc] sm:$0xf]
      %v1409 = vld [vmem:[%s236 + $0x3e0] sm:$0xf]
      %v1410 = vld [vmem:[%s236 + $0x3e4] sm:$0xf]
      %v1411 = vld [vmem:[%s236 + $0x3e8] sm:$0xf]
      %v1412 = vld [vmem:[%s236 + $0x3ec] sm:$0xf]
      %v1413 = vld [vmem:[%s236 + $0x3f0] sm:$0xf]
      %v1414 = vld [vmem:[%s236 + $0x3f4] sm:$0xf]
      %v1415 = vld [vmem:[%s236 + $0x3f8] sm:$0xf]
      %v1416 = vld [vmem:[%s236 + $0x3fc] sm:$0xf]
      %v1417 = vld [vmem:[%s236 + $0x400] sm:$0xf]
      %v1418 = vld [vmem:[%s236 + $0x404] sm:$0xf]
      %v1419 = vld [vmem:[%s236 + $0x408] sm:$0xf]
      %v1420 = vld [vmem:[%s236 + $0x40c] sm:$0xf]
      %v1421 = vld [vmem:[%s236 + $0x410] sm:$0xf]
      %v1422 = vld [vmem:[%s236 + $0x414] sm:$0xf]
      %v1423 = vld [vmem:[%s236 + $0x418] sm:$0xf]
      %v1424 = vld [vmem:[%s236 + $0x41c] sm:$0xf]
      %v1425 = vld [vmem:[%s236 + $0x420] sm:$0xf]
      %v1426 = vld [vmem:[%s236 + $0x424] sm:$0xf]
      %v1427 = vld [vmem:[%s236 + $0x428] sm:$0xf]
      %v1428 = vld [vmem:[%s236 + $0x42c] sm:$0xf]
      %v1429 = vld [vmem:[%s236 + $0x430] sm:$0xf]
      %v1430 = vld [vmem:[%s236 + $0x434] sm:$0xf]
      %v1431 = vld [vmem:[%s236 + $0x438] sm:$0xf]
      %v1432 = vld [vmem:[%s236 + $0x43c] sm:$0xf]
      %v1433 = vld [vmem:[%s236 + $0x440] sm:$0xf]
      %v1434 = vld [vmem:[%s236 + $0x444] sm:$0xf]
      %v1435 = vld [vmem:[%s236 + $0x448] sm:$0xf]
      %v1436 = vld [vmem:[%s236 + $0x44c] sm:$0xf]
      %v1437 = vld [vmem:[%s236 + $0x450] sm:$0xf]
      %v1438 = vld [vmem:[%s236 + $0x454] sm:$0xf]
      %v1439 = vld [vmem:[%s236 + $0x458] sm:$0xf]
      %v1440 = vld [vmem:[%s236 + $0x45c] sm:$0xf]
      %v1441 = vld [vmem:[%s236 + $0x460] sm:$0xf]
      %v1442 = vld [vmem:[%s236 + $0x464] sm:$0xf]
      %v1443 = vld [vmem:[%s236 + $0x468] sm:$0xf]
      %v1444 = vld [vmem:[%s236 + $0x46c] sm:$0xf]
      %v1445 = vld [vmem:[%s236 + $0x470] sm:$0xf]
      %v1446 = vld [vmem:[%s236 + $0x474] sm:$0xf]
      %v1447 = vld [vmem:[%s236 + $0x478] sm:$0xf]
      %v1448 = vld [vmem:[%s236 + $0x47c] sm:$0xf]
      %v1449 = vld [vmem:[%s236 + $0x480] sm:$0xf]
      %v1450 = vld [vmem:[%s236 + $0x484] sm:$0xf]
      %v1451 = vld [vmem:[%s236 + $0x488] sm:$0xf]
      %v1452 = vld [vmem:[%s236 + $0x48c] sm:$0xf]
      %v1453 = vld [vmem:[%s236 + $0x490] sm:$0xf]
      %v1454 = vld [vmem:[%s236 + $0x494] sm:$0xf]
      %v1455 = vld [vmem:[%s236 + $0x498] sm:$0xf]
      %v1456 = vld [vmem:[%s236 + $0x49c] sm:$0xf]
      %v1457 = vld [vmem:[%s236 + $0x4a0] sm:$0xf]
      %v1458 = vld [vmem:[%s236 + $0x4a4] sm:$0xf]
      %v1459 = vld [vmem:[%s236 + $0x4a8] sm:$0xf]
      %v1460 = vld [vmem:[%s236 + $0x4ac] sm:$0xf]
      %v1461 = vld [vmem:[%s236 + $0x4b0] sm:$0xf]
      %v1462 = vld [vmem:[%s236 + $0x4b4] sm:$0xf]
      %v1463 = vld [vmem:[%s236 + $0x4b8] sm:$0xf]
      %v1464 = vld [vmem:[%s236 + $0x4bc] sm:$0xf]
      %v1465 = vld [vmem:[%s236 + $0x4c0] sm:$0xf]
      %v1466 = vld [vmem:[%s236 + $0x4c4] sm:$0xf]
      %v1467 = vld [vmem:[%s236 + $0x4c8] sm:$0xf]
      %v1468 = vld [vmem:[%s236 + $0x4cc] sm:$0xf]
      %v1469 = vld [vmem:[%s236 + $0x4d0] sm:$0xf]
      %v1470 = vld [vmem:[%s236 + $0x4d4] sm:$0xf]
      %v1471 = vld [vmem:[%s236 + $0x4d8] sm:$0xf]
      %v1472 = vld [vmem:[%s236 + $0x4dc] sm:$0xf]
      %v1473 = vld [vmem:[%s236 + $0x4e0] sm:$0xf]
      %v1474 = vld [vmem:[%s236 + $0x4e4] sm:$0xf]
      %v1475 = vld [vmem:[%s236 + $0x4e8] sm:$0xf]
      %v1476 = vld [vmem:[%s236 + $0x4ec] sm:$0xf]
      %v1477 = vld [vmem:[%s236 + $0x4f0] sm:$0xf]
      %v1478 = vld [vmem:[%s236 + $0x4f4] sm:$0xf]
      %v1479 = vld [vmem:[%s236 + $0x4f8] sm:$0xf]
      %v1480 = vld [vmem:[%s236 + $0x4fc] sm:$0xf]
      %v1481 = vld [vmem:[%s236 + $0x500] sm:$0xf]
      %v1482 = vld [vmem:[%s236 + $0x504] sm:$0xf]
      %v1483 = vld [vmem:[%s236 + $0x508] sm:$0xf]
      %v1484 = vld [vmem:[%s236 + $0x50c] sm:$0xf]
      %v1485 = vld [vmem:[%s236 + $0x510] sm:$0xf]
      %v1486 = vld [vmem:[%s236 + $0x514] sm:$0xf]
      %v1487 = vld [vmem:[%s236 + $0x518] sm:$0xf]
      %v1488 = vld [vmem:[%s236 + $0x51c] sm:$0xf]
      %v1489 = vld [vmem:[%s236 + $0x520] sm:$0xf]
      %v1490 = vld [vmem:[%s236 + $0x524] sm:$0xf]
      %v1491 = vld [vmem:[%s236 + $0x528] sm:$0xf]
      %v1492 = vld [vmem:[%s236 + $0x52c] sm:$0xf]
      %v1493 = vld [vmem:[%s236 + $0x530] sm:$0xf]
      %v1494 = vld [vmem:[%s236 + $0x534] sm:$0xf]
      %v1495 = vld [vmem:[%s236 + $0x538] sm:$0xf]
      %v1496 = vld [vmem:[%s236 + $0x53c] sm:$0xf]
      %v1497 = vld [vmem:[%s236 + $0x540] sm:$0xf]
      %v1498 = vld [vmem:[%s236 + $0x544] sm:$0xf]
      %v1499 = vld [vmem:[%s236 + $0x548] sm:$0xf]
      %v1500 = vld [vmem:[%s236 + $0x54c] sm:$0xf]
      %v1501 = vld [vmem:[%s236 + $0x550] sm:$0xf]
      %v1502 = vld [vmem:[%s236 + $0x554] sm:$0xf]
      %v1503 = vld [vmem:[%s236 + $0x558] sm:$0xf]
      %v1504 = vld [vmem:[%s236 + $0x55c] sm:$0xf]
      %v1505 = vld [vmem:[%s236 + $0x560] sm:$0xf]
      %v1506 = vld [vmem:[%s236 + $0x564] sm:$0xf]
      %v1507 = vld [vmem:[%s236 + $0x568] sm:$0xf]
      %v1508 = vld [vmem:[%s236 + $0x56c] sm:$0xf]
      %v1509 = vld [vmem:[%s236 + $0x570] sm:$0xf]
      %v1510 = vld [vmem:[%s236 + $0x574] sm:$0xf]
      %v1511 = vld [vmem:[%s236 + $0x578] sm:$0xf]
      %v1512 = vld [vmem:[%s236 + $0x57c] sm:$0xf]
      %v1513 = vld [vmem:[%s236 + $0x580] sm:$0xf]
      %v1514 = vld [vmem:[%s236 + $0x584] sm:$0xf]
      %v1515 = vld [vmem:[%s236 + $0x588] sm:$0xf]
      %v1516 = vld [vmem:[%s236 + $0x58c] sm:$0xf]
      %v1517 = vld [vmem:[%s236 + $0x590] sm:$0xf]
      %v1518 = vld [vmem:[%s236 + $0x594] sm:$0xf]
      %v1519 = vld [vmem:[%s236 + $0x598] sm:$0xf]
      %v1520 = vld [vmem:[%s236 + $0x59c] sm:$0xf]
      %v1521 = vld [vmem:[%s236 + $0x5a0] sm:$0xf]
      %v1522 = vld [vmem:[%s236 + $0x5a4] sm:$0xf]
      %v1523 = vld [vmem:[%s236 + $0x5a8] sm:$0xf]
      %v1524 = vld [vmem:[%s236 + $0x5ac] sm:$0xf]
      %v1525 = vld [vmem:[%s236 + $0x5b0] sm:$0xf]
      %v1526 = vld [vmem:[%s236 + $0x5b4] sm:$0xf]
      %v1527 = vld [vmem:[%s236 + $0x5b8] sm:$0xf]
      %v1528 = vld [vmem:[%s236 + $0x5bc] sm:$0xf]
      %v1529 = vld [vmem:[%s236 + $0x5c0] sm:$0xf]
      %v1530 = vld [vmem:[%s236 + $0x5c4] sm:$0xf]
      %v1531 = vld [vmem:[%s236 + $0x5c8] sm:$0xf]
      %v1532 = vld [vmem:[%s236 + $0x5cc] sm:$0xf]
      %v1533 = vld [vmem:[%s236 + $0x5d0] sm:$0xf]
      %v1534 = vld [vmem:[%s236 + $0x5d4] sm:$0xf]
      %v1535 = vld [vmem:[%s236 + $0x5d8] sm:$0xf]
      %v1536 = vld [vmem:[%s236 + $0x5dc] sm:$0xf]
      %v1537 = vld [vmem:[%s236 + $0x5e0] sm:$0xf]
      %v1538 = vld [vmem:[%s236 + $0x5e4] sm:$0xf]
      %v1539 = vld [vmem:[%s236 + $0x5e8] sm:$0xf]
      %v1540 = vld [vmem:[%s236 + $0x5ec] sm:$0xf]
      %v1541 = vld [vmem:[%s236 + $0x5f0] sm:$0xf]
      %v1542 = vld [vmem:[%s236 + $0x5f4] sm:$0xf]
      %v1543 = vld [vmem:[%s236 + $0x5f8] sm:$0xf]
      %v1544 = vld [vmem:[%s236 + $0x5fc] sm:$0xf]
      %v1545 = vld [vmem:[%s236 + $0x600] sm:$0xf]
      %v1546 = vld [vmem:[%s236 + $0x604] sm:$0xf]
      %v1547 = vld [vmem:[%s236 + $0x608] sm:$0xf]
      %v1548 = vld [vmem:[%s236 + $0x60c] sm:$0xf]
      %v1549 = vld [vmem:[%s236 + $0x610] sm:$0xf]
      %v1550 = vld [vmem:[%s236 + $0x614] sm:$0xf]
      %v1551 = vld [vmem:[%s236 + $0x618] sm:$0xf]
      %v1552 = vld [vmem:[%s236 + $0x61c] sm:$0xf]
      %v1553 = vld [vmem:[%s236 + $0x620] sm:$0xf]
      %v1554 = vld [vmem:[%s236 + $0x624] sm:$0xf]
      %v1555 = vld [vmem:[%s236 + $0x628] sm:$0xf]
      %v1556 = vld [vmem:[%s236 + $0x62c] sm:$0xf]
      %v1557 = vld [vmem:[%s236 + $0x630] sm:$0xf]
      %v1558 = vld [vmem:[%s236 + $0x634] sm:$0xf]
      %v1559 = vld [vmem:[%s236 + $0x638] sm:$0xf]
      %v1560 = vld [vmem:[%s236 + $0x63c] sm:$0xf]
      %v1561 = vld [vmem:[%s236 + $0x640] sm:$0xf]
      %v1562 = vld [vmem:[%s236 + $0x644] sm:$0xf]
      %v1563 = vld [vmem:[%s236 + $0x648] sm:$0xf]
      %v1564 = vld [vmem:[%s236 + $0x64c] sm:$0xf]
      %v1565 = vld [vmem:[%s236 + $0x650] sm:$0xf]
      %v1566 = vld [vmem:[%s236 + $0x654] sm:$0xf]
      %v1567 = vld [vmem:[%s236 + $0x658] sm:$0xf]
      %v1568 = vld [vmem:[%s236 + $0x65c] sm:$0xf]
      %v1569 = vld [vmem:[%s236 + $0x660] sm:$0xf]
      %v1570 = vld [vmem:[%s236 + $0x664] sm:$0xf]
      %v1571 = vld [vmem:[%s236 + $0x668] sm:$0xf]
      %v1572 = vld [vmem:[%s236 + $0x66c] sm:$0xf]
      %v1573 = vld [vmem:[%s236 + $0x670] sm:$0xf]
      %v1574 = vld [vmem:[%s236 + $0x674] sm:$0xf]
      %v1575 = vld [vmem:[%s236 + $0x678] sm:$0xf]
      %v1576 = vld [vmem:[%s236 + $0x67c] sm:$0xf]
      %v1577 = vld [vmem:[%s236 + $0x680] sm:$0xf]
      %v1578 = vld [vmem:[%s236 + $0x684] sm:$0xf]
      %v1579 = vld [vmem:[%s236 + $0x688] sm:$0xf]
      %v1580 = vld [vmem:[%s236 + $0x68c] sm:$0xf]
      %v1581 = vld [vmem:[%s236 + $0x690] sm:$0xf]
      %v1582 = vld [vmem:[%s236 + $0x694] sm:$0xf]
      %v1583 = vld [vmem:[%s236 + $0x698] sm:$0xf]
      %v1584 = vld [vmem:[%s236 + $0x69c] sm:$0xf]
      %v1585 = vld [vmem:[%s236 + $0x6a0] sm:$0xf]
      %v1586 = vld [vmem:[%s236 + $0x6a4] sm:$0xf]
      %v1587 = vld [vmem:[%s236 + $0x6a8] sm:$0xf]
      %v1588 = vld [vmem:[%s236 + $0x6ac] sm:$0xf]
      %v1589 = vld [vmem:[%s236 + $0x6b0] sm:$0xf]
      %v1590 = vld [vmem:[%s236 + $0x6b4] sm:$0xf]
      %v1591 = vld [vmem:[%s236 + $0x6b8] sm:$0xf]
      %v1592 = vld [vmem:[%s236 + $0x6bc] sm:$0xf]
      %v1593 = vld [vmem:[%s236 + $0x6c0] sm:$0xf]
      %v1594 = vld [vmem:[%s236 + $0x6c4] sm:$0xf]
      %v1595 = vld [vmem:[%s236 + $0x6c8] sm:$0xf]
      %v1596 = vld [vmem:[%s236 + $0x6cc] sm:$0xf]
      %v1597 = vld [vmem:[%s236 + $0x6d0] sm:$0xf]
      %v1598 = vld [vmem:[%s236 + $0x6d4] sm:$0xf]
      %v1599 = vld [vmem:[%s236 + $0x6d8] sm:$0xf]
      %v1600 = vld [vmem:[%s236 + $0x6dc] sm:$0xf]
      %v1601 = vld [vmem:[%s236 + $0x6e0] sm:$0xf]
      %v1602 = vld [vmem:[%s236 + $0x6e4] sm:$0xf]
      %v1603 = vld [vmem:[%s236 + $0x6e8] sm:$0xf]
      %v1604 = vld [vmem:[%s236 + $0x6ec] sm:$0xf]
      %v1605 = vld [vmem:[%s236 + $0x6f0] sm:$0xf]
      %v1606 = vld [vmem:[%s236 + $0x6f4] sm:$0xf]
      %v1607 = vld [vmem:[%s236 + $0x6f8] sm:$0xf]
      %v1608 = vld [vmem:[%s236 + $0x6fc] sm:$0xf]
      %v1609 = vld [vmem:[%s245] sm:$0xf]
      %v1610 = vld [vmem:[%s245 + $0x4] sm:$0xf]
      %v1611 = vld [vmem:[%s245 + $0x8] sm:$0xf]
      %v1612 = vld [vmem:[%s245 + $0xc] sm:$0x3]
      %v2061 = vunpack.c.l.b16 %v1161
      %v2062 = vunpack.c.l.b16 %v1162
      %v2063 = vunpack.c.l.b16 %v1163
      %v2064 = vunpack.c.l.b16 %v1164
      %v2065 = vunpack.c.l.b16 %v1165
      %v2066 = vunpack.c.l.b16 %v1166
      %v2067 = vunpack.c.l.b16 %v1167
      %v2068 = vunpack.c.l.b16 %v1168
      %v2069 = vunpack.c.l.b16 %v1169
      %v2070 = vunpack.c.l.b16 %v1170
      %v2071 = vunpack.c.l.b16 %v1171
      %v2072 = vunpack.c.l.b16 %v1172
      %v2073 = vunpack.c.l.b16 %v1173
      %v2074 = vunpack.c.l.b16 %v1174
      %v2075 = vunpack.c.l.b16 %v1175
      %v2076 = vunpack.c.l.b16 %v1176
      %v2077 = vunpack.c.l.b16 %v1177
      %v2078 = vunpack.c.l.b16 %v1178
      %v2079 = vunpack.c.l.b16 %v1179
      %v2080 = vunpack.c.l.b16 %v1180
      %v2081 = vunpack.c.l.b16 %v1181
      %v2082 = vunpack.c.l.b16 %v1182
      %v2083 = vunpack.c.l.b16 %v1183
      %v2084 = vunpack.c.l.b16 %v1184
      %v2085 = vunpack.c.l.b16 %v1185
      %v2086 = vunpack.c.l.b16 %v1186
      %v2087 = vunpack.c.l.b16 %v1187
      %v2088 = vunpack.c.l.b16 %v1188
      %v2089 = vunpack.c.l.b16 %v1189
      %v2090 = vunpack.c.l.b16 %v1190
      %v2091 = vunpack.c.l.b16 %v1191
      %v2092 = vunpack.c.l.b16 %v1192
      %v2093 = vunpack.c.l.b16 %v1193
      %v2094 = vunpack.c.l.b16 %v1194
      %v2095 = vunpack.c.l.b16 %v1195
      %v2096 = vunpack.c.l.b16 %v1196
      %v2097 = vunpack.c.l.b16 %v1197
      %v2098 = vunpack.c.l.b16 %v1198
      %v2099 = vunpack.c.l.b16 %v1199
      %v2100 = vunpack.c.l.b16 %v1200
      %v2101 = vunpack.c.l.b16 %v1201
      %v2102 = vunpack.c.l.b16 %v1202
      %v2103 = vunpack.c.l.b16 %v1203
      %v2104 = vunpack.c.l.b16 %v1204
      %v2105 = vunpack.c.l.b16 %v1205
      %v2106 = vunpack.c.l.b16 %v1206
      %v2107 = vunpack.c.l.b16 %v1207
      %v2108 = vunpack.c.l.b16 %v1208
      %v2109 = vunpack.c.l.b16 %v1209
      %v2110 = vunpack.c.l.b16 %v1210
      %v2111 = vunpack.c.l.b16 %v1211
      %v2112 = vunpack.c.l.b16 %v1212
      %v2113 = vunpack.c.l.b16 %v1213
      %v2114 = vunpack.c.l.b16 %v1214
      %v2115 = vunpack.c.l.b16 %v1215
      %v2116 = vunpack.c.l.b16 %v1216
      %v2117 = vunpack.c.l.b16 %v1217
      %v2118 = vunpack.c.l.b16 %v1218
      %v2119 = vunpack.c.l.b16 %v1219
      %v2120 = vunpack.c.l.b16 %v1220
      %v2121 = vunpack.c.l.b16 %v1221
      %v2122 = vunpack.c.l.b16 %v1222
      %v2123 = vunpack.c.l.b16 %v1223
      %v2124 = vunpack.c.l.b16 %v1224
      %v2125 = vunpack.c.l.b16 %v1225
      %v2126 = vunpack.c.l.b16 %v1226
      %v2127 = vunpack.c.l.b16 %v1227
      %v2128 = vunpack.c.l.b16 %v1228
      %v2129 = vunpack.c.l.b16 %v1229
      %v2130 = vunpack.c.l.b16 %v1230
      %v2131 = vunpack.c.l.b16 %v1231
      %v2132 = vunpack.c.l.b16 %v1232
      %v2133 = vunpack.c.l.b16 %v1233
      %v2134 = vunpack.c.l.b16 %v1234
      %v2135 = vunpack.c.l.b16 %v1235
      %v2136 = vunpack.c.l.b16 %v1236
      %v2137 = vunpack.c.l.b16 %v1237
      %v2138 = vunpack.c.l.b16 %v1238
      %v2139 = vunpack.c.l.b16 %v1239
      %v2140 = vunpack.c.l.b16 %v1240
      %v2141 = vunpack.c.l.b16 %v1241
      %v2142 = vunpack.c.l.b16 %v1242
      %v2143 = vunpack.c.l.b16 %v1243
      %v2144 = vunpack.c.l.b16 %v1244
      %v2145 = vunpack.c.l.b16 %v1245
      %v2146 = vunpack.c.l.b16 %v1246
      %v2147 = vunpack.c.l.b16 %v1247
      %v2148 = vunpack.c.l.b16 %v1248
      %v2149 = vunpack.c.l.b16 %v1249
      %v2150 = vunpack.c.l.b16 %v1250
      %v2151 = vunpack.c.l.b16 %v1251
      %v2152 = vunpack.c.l.b16 %v1252
      %v2153 = vunpack.c.l.b16 %v1253
      %v2154 = vunpack.c.l.b16 %v1254
      %v2155 = vunpack.c.l.b16 %v1255
      %v2156 = vunpack.c.l.b16 %v1256
      %v2157 = vunpack.c.l.b16 %v1257
      %v2158 = vunpack.c.l.b16 %v1258
      %v2159 = vunpack.c.l.b16 %v1259
      %v2160 = vunpack.c.l.b16 %v1260
      %v2161 = vunpack.c.l.b16 %v1261
      %v2162 = vunpack.c.l.b16 %v1262
      %v2163 = vunpack.c.l.b16 %v1263
      %v2164 = vunpack.c.l.b16 %v1264
      %v2165 = vunpack.c.l.b16 %v1265
      %v2166 = vunpack.c.l.b16 %v1266
      %v2167 = vunpack.c.l.b16 %v1267
      %v2168 = vunpack.c.l.b16 %v1268
      %v2169 = vunpack.c.l.b16 %v1269
      %v2170 = vunpack.c.l.b16 %v1270
      %v2171 = vunpack.c.l.b16 %v1271
      %v2172 = vunpack.c.l.b16 %v1272
      %v2173 = vunpack.c.l.b16 %v1273
      %v2174 = vunpack.c.l.b16 %v1274
      %v2175 = vunpack.c.l.b16 %v1275
      %v2176 = vunpack.c.l.b16 %v1276
      %v2177 = vunpack.c.l.b16 %v1277
      %v2178 = vunpack.c.l.b16 %v1278
      %v2179 = vunpack.c.l.b16 %v1279
      %v2180 = vunpack.c.l.b16 %v1280
      %v2181 = vunpack.c.l.b16 %v1281
      %v2182 = vunpack.c.l.b16 %v1282
      %v2183 = vunpack.c.l.b16 %v1283
      %v2184 = vunpack.c.l.b16 %v1284
      %v2185 = vunpack.c.l.b16 %v1285
      %v2186 = vunpack.c.l.b16 %v1286
      %v2187 = vunpack.c.l.b16 %v1287
      %v2188 = vunpack.c.l.b16 %v1288
      %v2189 = vunpack.c.l.b16 %v1289
      %v2190 = vunpack.c.l.b16 %v1290
      %v2191 = vunpack.c.l.b16 %v1291
      %v2192 = vunpack.c.l.b16 %v1292
      %v2193 = vunpack.c.l.b16 %v1293
      %v2194 = vunpack.c.l.b16 %v1294
      %v2195 = vunpack.c.l.b16 %v1295
      %v2196 = vunpack.c.l.b16 %v1296
      %v2197 = vunpack.c.l.b16 %v1297
      %v2198 = vunpack.c.l.b16 %v1298
      %v2199 = vunpack.c.l.b16 %v1299
      %v2200 = vunpack.c.l.b16 %v1300
      %v2201 = vunpack.c.l.b16 %v1301
      %v2202 = vunpack.c.l.b16 %v1302
      %v2203 = vunpack.c.l.b16 %v1303
      %v2204 = vunpack.c.l.b16 %v1304
      %v2205 = vunpack.c.l.b16 %v1305
      %v2206 = vunpack.c.l.b16 %v1306
      %v2207 = vunpack.c.l.b16 %v1307
      %v2208 = vunpack.c.l.b16 %v1308
      %v2209 = vunpack.c.l.b16 %v1309
      %v2210 = vunpack.c.l.b16 %v1310
      %v2211 = vunpack.c.l.b16 %v1311
      %v2212 = vunpack.c.l.b16 %v1312
      %v2213 = vunpack.c.l.b16 %v1313
      %v2214 = vunpack.c.l.b16 %v1314
      %v2215 = vunpack.c.l.b16 %v1315
      %v2216 = vunpack.c.l.b16 %v1316
      %v2217 = vunpack.c.l.b16 %v1317
      %v2218 = vunpack.c.l.b16 %v1318
      %v2219 = vunpack.c.l.b16 %v1319
      %v2220 = vunpack.c.l.b16 %v1320
      %v2221 = vunpack.c.l.b16 %v1321
      %v2222 = vunpack.c.l.b16 %v1322
      %v2223 = vunpack.c.l.b16 %v1323
      %v2224 = vunpack.c.l.b16 %v1324
      %v2225 = vunpack.c.l.b16 %v1325
      %v2226 = vunpack.c.l.b16 %v1326
      %v2227 = vunpack.c.l.b16 %v1327
      %v2228 = vunpack.c.l.b16 %v1328
      %v2229 = vunpack.c.l.b16 %v1329
      %v2230 = vunpack.c.l.b16 %v1330
      %v2231 = vunpack.c.l.b16 %v1331
      %v2232 = vunpack.c.l.b16 %v1332
      %v2233 = vunpack.c.l.b16 %v1333
      %v2234 = vunpack.c.l.b16 %v1334
      %v2235 = vunpack.c.l.b16 %v1335
      %v2236 = vunpack.c.l.b16 %v1336
      %v2237 = vunpack.c.l.b16 %v1337
      %v2238 = vunpack.c.l.b16 %v1338
      %v2239 = vunpack.c.l.b16 %v1339
      %v2240 = vunpack.c.l.b16 %v1340
      %v2241 = vunpack.c.l.b16 %v1341
      %v2242 = vunpack.c.l.b16 %v1342
      %v2243 = vunpack.c.l.b16 %v1343
      %v2244 = vunpack.c.l.b16 %v1344
      %v2245 = vunpack.c.l.b16 %v1345
      %v2246 = vunpack.c.l.b16 %v1346
      %v2247 = vunpack.c.l.b16 %v1347
      %v2248 = vunpack.c.l.b16 %v1348
      %v2249 = vunpack.c.l.b16 %v1349
      %v2250 = vunpack.c.l.b16 %v1350
      %v2251 = vunpack.c.l.b16 %v1351
      %v2252 = vunpack.c.l.b16 %v1352
      %v2253 = vunpack.c.l.b16 %v1353
      %v2254 = vunpack.c.l.b16 %v1354
      %v2255 = vunpack.c.l.b16 %v1355
      %v2256 = vunpack.c.l.b16 %v1356
      %v2257 = vunpack.c.l.b16 %v1357
      %v2258 = vunpack.c.l.b16 %v1358
      %v2259 = vunpack.c.l.b16 %v1359
      %v2260 = vunpack.c.l.b16 %v1360
      %v2261 = vunpack.c.l.b16 %v1361
      %v2262 = vunpack.c.l.b16 %v1362
      %v2263 = vunpack.c.l.b16 %v1363
      %v2264 = vunpack.c.l.b16 %v1364
      %v2265 = vunpack.c.l.b16 %v1365
      %v2266 = vunpack.c.l.b16 %v1366
      %v2267 = vunpack.c.l.b16 %v1367
      %v2268 = vunpack.c.l.b16 %v1368
      %v2269 = vunpack.c.l.b16 %v1369
      %v2270 = vunpack.c.l.b16 %v1370
      %v2271 = vunpack.c.l.b16 %v1371
      %v2272 = vunpack.c.l.b16 %v1372
      %v2273 = vunpack.c.l.b16 %v1373
      %v2274 = vunpack.c.l.b16 %v1374
      %v2275 = vunpack.c.l.b16 %v1375
      %v2276 = vunpack.c.l.b16 %v1376
      %v2277 = vunpack.c.l.b16 %v1377
      %v2278 = vunpack.c.l.b16 %v1378
      %v2279 = vunpack.c.l.b16 %v1379
      %v2280 = vunpack.c.l.b16 %v1380
      %v2281 = vunpack.c.l.b16 %v1381
      %v2282 = vunpack.c.l.b16 %v1382
      %v2283 = vunpack.c.l.b16 %v1383
      %v2284 = vunpack.c.l.b16 %v1384
      %v2285 = vunpack.c.l.b16 %v1385
      %v2286 = vunpack.c.l.b16 %v1386
      %v2287 = vunpack.c.l.b16 %v1387
      %v2288 = vunpack.c.l.b16 %v1388
      %v2289 = vunpack.c.l.b16 %v1389
      %v2290 = vunpack.c.l.b16 %v1390
      %v2291 = vunpack.c.l.b16 %v1391
      %v2292 = vunpack.c.l.b16 %v1392
      %v2293 = vunpack.c.l.b16 %v1393
      %v2294 = vunpack.c.l.b16 %v1394
      %v2295 = vunpack.c.l.b16 %v1395
      %v2296 = vunpack.c.l.b16 %v1396
      %v2297 = vunpack.c.l.b16 %v1397
      %v2298 = vunpack.c.l.b16 %v1398
      %v2299 = vunpack.c.l.b16 %v1399
      %v2300 = vunpack.c.l.b16 %v1400
      %v2301 = vunpack.c.l.b16 %v1401
      %v2302 = vunpack.c.l.b16 %v1402
      %v2303 = vunpack.c.l.b16 %v1403
      %v2304 = vunpack.c.l.b16 %v1404
      %v2305 = vunpack.c.l.b16 %v1405
      %v2306 = vunpack.c.l.b16 %v1406
      %v2307 = vunpack.c.l.b16 %v1407
      %v2308 = vunpack.c.l.b16 %v1408
      %v2309 = vunpack.c.l.b16 %v1409
      %v2310 = vunpack.c.l.b16 %v1410
      %v2311 = vunpack.c.l.b16 %v1411
      %v2312 = vunpack.c.l.b16 %v1412
      %v2313 = vunpack.c.l.b16 %v1413
      %v2314 = vunpack.c.l.b16 %v1414
      %v2315 = vunpack.c.l.b16 %v1415
      %v2316 = vunpack.c.l.b16 %v1416
      %v2317 = vunpack.c.l.b16 %v1417
      %v2318 = vunpack.c.l.b16 %v1418
      %v2319 = vunpack.c.l.b16 %v1419
      %v2320 = vunpack.c.l.b16 %v1420
      %v2321 = vunpack.c.l.b16 %v1421
      %v2322 = vunpack.c.l.b16 %v1422
      %v2323 = vunpack.c.l.b16 %v1423
      %v2324 = vunpack.c.l.b16 %v1424
      %v2325 = vunpack.c.l.b16 %v1425
      %v2326 = vunpack.c.l.b16 %v1426
      %v2327 = vunpack.c.l.b16 %v1427
      %v2328 = vunpack.c.l.b16 %v1428
      %v2329 = vunpack.c.l.b16 %v1429
      %v2330 = vunpack.c.l.b16 %v1430
      %v2331 = vunpack.c.l.b16 %v1431
      %v2332 = vunpack.c.l.b16 %v1432
      %v2333 = vunpack.c.l.b16 %v1433
      %v2334 = vunpack.c.l.b16 %v1434
      %v2335 = vunpack.c.l.b16 %v1435
      %v2336 = vunpack.c.l.b16 %v1436
      %v2337 = vunpack.c.l.b16 %v1437
      %v2338 = vunpack.c.l.b16 %v1438
      %v2339 = vunpack.c.l.b16 %v1439
      %v2340 = vunpack.c.l.b16 %v1440
      %v2341 = vunpack.c.l.b16 %v1441
      %v2342 = vunpack.c.l.b16 %v1442
      %v2343 = vunpack.c.l.b16 %v1443
      %v2344 = vunpack.c.l.b16 %v1444
      %v2345 = vunpack.c.l.b16 %v1445
      %v2346 = vunpack.c.l.b16 %v1446
      %v2347 = vunpack.c.l.b16 %v1447
      %v2348 = vunpack.c.l.b16 %v1448
      %v2349 = vunpack.c.l.b16 %v1449
      %v2350 = vunpack.c.l.b16 %v1450
      %v2351 = vunpack.c.l.b16 %v1451
      %v2352 = vunpack.c.l.b16 %v1452
      %v2353 = vunpack.c.l.b16 %v1453
      %v2354 = vunpack.c.l.b16 %v1454
      %v2355 = vunpack.c.l.b16 %v1455
      %v2356 = vunpack.c.l.b16 %v1456
      %v2357 = vunpack.c.l.b16 %v1457
      %v2358 = vunpack.c.l.b16 %v1458
      %v2359 = vunpack.c.l.b16 %v1459
      %v2360 = vunpack.c.l.b16 %v1460
      %v2361 = vunpack.c.l.b16 %v1461
      %v2362 = vunpack.c.l.b16 %v1462
      %v2363 = vunpack.c.l.b16 %v1463
      %v2364 = vunpack.c.l.b16 %v1464
      %v2365 = vunpack.c.l.b16 %v1465
      %v2366 = vunpack.c.l.b16 %v1466
      %v2367 = vunpack.c.l.b16 %v1467
      %v2368 = vunpack.c.l.b16 %v1468
      %v2369 = vunpack.c.l.b16 %v1469
      %v2370 = vunpack.c.l.b16 %v1470
      %v2371 = vunpack.c.l.b16 %v1471
      %v2372 = vunpack.c.l.b16 %v1472
      %v2373 = vunpack.c.l.b16 %v1473
      %v2374 = vunpack.c.l.b16 %v1474
      %v2375 = vunpack.c.l.b16 %v1475
      %v2376 = vunpack.c.l.b16 %v1476
      %v2377 = vunpack.c.l.b16 %v1477
      %v2378 = vunpack.c.l.b16 %v1478
      %v2379 = vunpack.c.l.b16 %v1479
      %v2380 = vunpack.c.l.b16 %v1480
      %v2381 = vunpack.c.l.b16 %v1481
      %v2382 = vunpack.c.l.b16 %v1482
      %v2383 = vunpack.c.l.b16 %v1483
      %v2384 = vunpack.c.l.b16 %v1484
      %v2385 = vunpack.c.l.b16 %v1485
      %v2386 = vunpack.c.l.b16 %v1486
      %v2387 = vunpack.c.l.b16 %v1487
      %v2388 = vunpack.c.l.b16 %v1488
      %v2389 = vunpack.c.l.b16 %v1489
      %v2390 = vunpack.c.l.b16 %v1490
      %v2391 = vunpack.c.l.b16 %v1491
      %v2392 = vunpack.c.l.b16 %v1492
      %v2393 = vunpack.c.l.b16 %v1493
      %v2394 = vunpack.c.l.b16 %v1494
      %v2395 = vunpack.c.l.b16 %v1495
      %v2396 = vunpack.c.l.b16 %v1496
      %v2397 = vunpack.c.l.b16 %v1497
      %v2398 = vunpack.c.l.b16 %v1498
      %v2399 = vunpack.c.l.b16 %v1499
      %v2400 = vunpack.c.l.b16 %v1500
      %v2401 = vunpack.c.l.b16 %v1501
      %v2402 = vunpack.c.l.b16 %v1502
      %v2403 = vunpack.c.l.b16 %v1503
      %v2404 = vunpack.c.l.b16 %v1504
      %v2405 = vunpack.c.l.b16 %v1505
      %v2406 = vunpack.c.l.b16 %v1506
      %v2407 = vunpack.c.l.b16 %v1507
      %v2408 = vunpack.c.l.b16 %v1508
      %v2409 = vunpack.c.l.b16 %v1509
      %v2410 = vunpack.c.l.b16 %v1510
      %v2411 = vunpack.c.l.b16 %v1511
      %v2412 = vunpack.c.l.b16 %v1512
      %v2413 = vunpack.c.l.b16 %v1513
      %v2414 = vunpack.c.l.b16 %v1514
      %v2415 = vunpack.c.l.b16 %v1515
      %v2416 = vunpack.c.l.b16 %v1516
      %v2417 = vunpack.c.l.b16 %v1517
      %v2418 = vunpack.c.l.b16 %v1518
      %v2419 = vunpack.c.l.b16 %v1519
      %v2420 = vunpack.c.l.b16 %v1520
      %v2421 = vunpack.c.l.b16 %v1521
      %v2422 = vunpack.c.l.b16 %v1522
      %v2423 = vunpack.c.l.b16 %v1523
      %v2424 = vunpack.c.l.b16 %v1524
      %v2425 = vunpack.c.l.b16 %v1525
      %v2426 = vunpack.c.l.b16 %v1526
      %v2427 = vunpack.c.l.b16 %v1527
      %v2428 = vunpack.c.l.b16 %v1528
      %v2429 = vunpack.c.l.b16 %v1529
      %v2430 = vunpack.c.l.b16 %v1530
      %v2431 = vunpack.c.l.b16 %v1531
      %v2432 = vunpack.c.l.b16 %v1532
      %v2433 = vunpack.c.l.b16 %v1533
      %v2434 = vunpack.c.l.b16 %v1534
      %v2435 = vunpack.c.l.b16 %v1535
      %v2436 = vunpack.c.l.b16 %v1536
      %v2437 = vunpack.c.l.b16 %v1537
      %v2438 = vunpack.c.l.b16 %v1538
      %v2439 = vunpack.c.l.b16 %v1539
      %v2440 = vunpack.c.l.b16 %v1540
      %v2441 = vunpack.c.l.b16 %v1541
      %v2442 = vunpack.c.l.b16 %v1542
      %v2443 = vunpack.c.l.b16 %v1543
      %v2444 = vunpack.c.l.b16 %v1544
      %v2445 = vunpack.c.l.b16 %v1545
      %v2446 = vunpack.c.l.b16 %v1546
      %v2447 = vunpack.c.l.b16 %v1547
      %v2448 = vunpack.c.l.b16 %v1548
      %v2449 = vunpack.c.l.b16 %v1549
      %v2450 = vunpack.c.l.b16 %v1550
      %v2451 = vunpack.c.l.b16 %v1551
      %v2452 = vunpack.c.l.b16 %v1552
      %v2453 = vunpack.c.l.b16 %v1553
      %v2454 = vunpack.c.l.b16 %v1554
      %v2455 = vunpack.c.l.b16 %v1555
      %v2456 = vunpack.c.l.b16 %v1556
      %v2457 = vunpack.c.l.b16 %v1557
      %v2458 = vunpack.c.l.b16 %v1558
      %v2459 = vunpack.c.l.b16 %v1559
      %v2460 = vunpack.c.l.b16 %v1560
      %v2461 = vunpack.c.l.b16 %v1561
      %v2462 = vunpack.c.l.b16 %v1562
      %v2463 = vunpack.c.l.b16 %v1563
      %v2464 = vunpack.c.l.b16 %v1564
      %v2465 = vunpack.c.l.b16 %v1565
      %v2466 = vunpack.c.l.b16 %v1566
      %v2467 = vunpack.c.l.b16 %v1567
      %v2468 = vunpack.c.l.b16 %v1568
      %v2469 = vunpack.c.l.b16 %v1569
      %v2470 = vunpack.c.l.b16 %v1570
      %v2471 = vunpack.c.l.b16 %v1571
      %v2472 = vunpack.c.l.b16 %v1572
      %v2473 = vunpack.c.l.b16 %v1573
      %v2474 = vunpack.c.l.b16 %v1574
      %v2475 = vunpack.c.l.b16 %v1575
      %v2476 = vunpack.c.l.b16 %v1576
      %v2477 = vunpack.c.l.b16 %v1577
      %v2478 = vunpack.c.l.b16 %v1578
      %v2479 = vunpack.c.l.b16 %v1579
      %v2480 = vunpack.c.l.b16 %v1580
      %v2481 = vunpack.c.l.b16 %v1581
      %v2482 = vunpack.c.l.b16 %v1582
      %v2483 = vunpack.c.l.b16 %v1583
      %v2484 = vunpack.c.l.b16 %v1584
      %v2485 = vunpack.c.l.b16 %v1585
      %v2486 = vunpack.c.l.b16 %v1586
      %v2487 = vunpack.c.l.b16 %v1587
      %v2488 = vunpack.c.l.b16 %v1588
      %v2489 = vunpack.c.l.b16 %v1589
      %v2490 = vunpack.c.l.b16 %v1590
      %v2491 = vunpack.c.l.b16 %v1591
      %v2492 = vunpack.c.l.b16 %v1592
      %v2493 = vunpack.c.l.b16 %v1593
      %v2494 = vunpack.c.l.b16 %v1594
      %v2495 = vunpack.c.l.b16 %v1595
      %v2496 = vunpack.c.l.b16 %v1596
      %v2497 = vunpack.c.l.b16 %v1597
      %v2498 = vunpack.c.l.b16 %v1598
      %v2499 = vunpack.c.l.b16 %v1599
      %v2500 = vunpack.c.l.b16 %v1600
      %v2501 = vunpack.c.l.b16 %v1601
      %v2502 = vunpack.c.l.b16 %v1602
      %v2503 = vunpack.c.l.b16 %v1603
      %v2504 = vunpack.c.l.b16 %v1604
      %v2505 = vunpack.c.l.b16 %v1605
      %v2506 = vunpack.c.l.b16 %v1606
      %v2507 = vunpack.c.l.b16 %v1607
      %v2508 = vunpack.c.l.b16 %v1608
      %v2509 = vpack.c.b16 %v2062, %v2061
      %v2510 = vpack.c.b16 %v2064, %v2063
      %v2511 = vpack.c.b16 %v2066, %v2065
      %v2512 = vpack.c.b16 %v2068, %v2067
      %v2513 = vpack.c.b16 %v2070, %v2069
      %v2514 = vpack.c.b16 %v2072, %v2071
      %v2515 = vpack.c.b16 %v2074, %v2073
      %v2516 = vpack.c.b16 %v2076, %v2075
      %v2517 = vpack.c.b16 %v2078, %v2077
      %v2518 = vpack.c.b16 %v2080, %v2079
      %v2519 = vpack.c.b16 %v2082, %v2081
      %v2520 = vpack.c.b16 %v2084, %v2083
      %v2521 = vpack.c.b16 %v2086, %v2085
      %v2522 = vpack.c.b16 %v2088, %v2087
      %v2523 = vpack.c.b16 %v2090, %v2089
      %v2524 = vpack.c.b16 %v2092, %v2091
      %v2525 = vpack.c.b16 %v2094, %v2093
      %v2526 = vpack.c.b16 %v2096, %v2095
      %v2527 = vpack.c.b16 %v2098, %v2097
      %v2528 = vpack.c.b16 %v2100, %v2099
      %v2529 = vpack.c.b16 %v2102, %v2101
      %v2530 = vpack.c.b16 %v2104, %v2103
      %v2531 = vpack.c.b16 %v2106, %v2105
      %v2532 = vpack.c.b16 %v2108, %v2107
      %v2533 = vpack.c.b16 %v2110, %v2109
      %v2534 = vpack.c.b16 %v2112, %v2111
      %v2535 = vpack.c.b16 %v2114, %v2113
      %v2536 = vpack.c.b16 %v2116, %v2115
      %v2537 = vpack.c.b16 %v2118, %v2117
      %v2538 = vpack.c.b16 %v2120, %v2119
      %v2539 = vpack.c.b16 %v2122, %v2121
      %v2540 = vpack.c.b16 %v2124, %v2123
      %v2541 = vpack.c.b16 %v2126, %v2125
      %v2542 = vpack.c.b16 %v2128, %v2127
      %v2543 = vpack.c.b16 %v2130, %v2129
      %v2544 = vpack.c.b16 %v2132, %v2131
      %v2545 = vpack.c.b16 %v2134, %v2133
      %v2546 = vpack.c.b16 %v2136, %v2135
      %v2547 = vpack.c.b16 %v2138, %v2137
      %v2548 = vpack.c.b16 %v2140, %v2139
      %v2549 = vpack.c.b16 %v2142, %v2141
      %v2550 = vpack.c.b16 %v2144, %v2143
      %v2551 = vpack.c.b16 %v2146, %v2145
      %v2552 = vpack.c.b16 %v2148, %v2147
      %v2553 = vpack.c.b16 %v2150, %v2149
      %v2554 = vpack.c.b16 %v2152, %v2151
      %v2555 = vpack.c.b16 %v2154, %v2153
      %v2556 = vpack.c.b16 %v2156, %v2155
      %v2557 = vpack.c.b16 %v2158, %v2157
      %v2558 = vpack.c.b16 %v2160, %v2159
      %v2559 = vpack.c.b16 %v2162, %v2161
      %v2560 = vpack.c.b16 %v2164, %v2163
      %v2561 = vpack.c.b16 %v2166, %v2165
      %v2562 = vpack.c.b16 %v2168, %v2167
      %v2563 = vpack.c.b16 %v2170, %v2169
      %v2564 = vpack.c.b16 %v2172, %v2171
      %v2565 = vpack.c.b16 %v2174, %v2173
      %v2566 = vpack.c.b16 %v2176, %v2175
      %v2567 = vpack.c.b16 %v2178, %v2177
      %v2568 = vpack.c.b16 %v2180, %v2179
      %v2569 = vpack.c.b16 %v2182, %v2181
      %v2570 = vpack.c.b16 %v2184, %v2183
      %v2571 = vpack.c.b16 %v2186, %v2185
      %v2572 = vpack.c.b16 %v2188, %v2187
      %v2573 = vpack.c.b16 %v2190, %v2189
      %v2574 = vpack.c.b16 %v2192, %v2191
      %v2575 = vpack.c.b16 %v2194, %v2193
      %v2576 = vpack.c.b16 %v2196, %v2195
      %v2577 = vpack.c.b16 %v2198, %v2197
      %v2578 = vpack.c.b16 %v2200, %v2199
      %v2579 = vpack.c.b16 %v2202, %v2201
      %v2580 = vpack.c.b16 %v2204, %v2203
      %v2581 = vpack.c.b16 %v2206, %v2205
      %v2582 = vpack.c.b16 %v2208, %v2207
      %v2583 = vpack.c.b16 %v2210, %v2209
      %v2584 = vpack.c.b16 %v2212, %v2211
      %v2585 = vpack.c.b16 %v2214, %v2213
      %v2586 = vpack.c.b16 %v2216, %v2215
      %v2587 = vpack.c.b16 %v2218, %v2217
      %v2588 = vpack.c.b16 %v2220, %v2219
      %v2589 = vpack.c.b16 %v2222, %v2221
      %v2590 = vpack.c.b16 %v2224, %v2223
      %v2591 = vpack.c.b16 %v2226, %v2225
      %v2592 = vpack.c.b16 %v2228, %v2227
      %v2593 = vpack.c.b16 %v2230, %v2229
      %v2594 = vpack.c.b16 %v2232, %v2231
      %v2595 = vpack.c.b16 %v2234, %v2233
      %v2596 = vpack.c.b16 %v2236, %v2235
      %v2597 = vpack.c.b16 %v2238, %v2237
      %v2598 = vpack.c.b16 %v2240, %v2239
      %v2599 = vpack.c.b16 %v2242, %v2241
      %v2600 = vpack.c.b16 %v2244, %v2243
      %v2601 = vpack.c.b16 %v2246, %v2245
      %v2602 = vpack.c.b16 %v2248, %v2247
      %v2603 = vpack.c.b16 %v2250, %v2249
      %v2604 = vpack.c.b16 %v2252, %v2251
      %v2605 = vpack.c.b16 %v2254, %v2253
      %v2606 = vpack.c.b16 %v2256, %v2255
      %v2607 = vpack.c.b16 %v2258, %v2257
      %v2608 = vpack.c.b16 %v2260, %v2259
      %v2609 = vpack.c.b16 %v2262, %v2261
      %v2610 = vpack.c.b16 %v2264, %v2263
      %v2611 = vpack.c.b16 %v2266, %v2265
      %v2612 = vpack.c.b16 %v2268, %v2267
      %v2613 = vpack.c.b16 %v2270, %v2269
      %v2614 = vpack.c.b16 %v2272, %v2271
      %v2615 = vpack.c.b16 %v2274, %v2273
      %v2616 = vpack.c.b16 %v2276, %v2275
      %v2617 = vpack.c.b16 %v2278, %v2277
      %v2618 = vpack.c.b16 %v2280, %v2279
      %v2619 = vpack.c.b16 %v2282, %v2281
      %v2620 = vpack.c.b16 %v2284, %v2283
      %v2621 = vpack.c.b16 %v2286, %v2285
      %v2622 = vpack.c.b16 %v2288, %v2287
      %v2623 = vpack.c.b16 %v2290, %v2289
      %v2624 = vpack.c.b16 %v2292, %v2291
      %v2625 = vpack.c.b16 %v2294, %v2293
      %v2626 = vpack.c.b16 %v2296, %v2295
      %v2627 = vpack.c.b16 %v2298, %v2297
      %v2628 = vpack.c.b16 %v2300, %v2299
      %v2629 = vpack.c.b16 %v2302, %v2301
      %v2630 = vpack.c.b16 %v2304, %v2303
      %v2631 = vpack.c.b16 %v2306, %v2305
      %v2632 = vpack.c.b16 %v2308, %v2307
      %v2633 = vpack.c.b16 %v2310, %v2309
      %v2634 = vpack.c.b16 %v2312, %v2311
      %v2635 = vpack.c.b16 %v2314, %v2313
      %v2636 = vpack.c.b16 %v2316, %v2315
      %v2637 = vpack.c.b16 %v2318, %v2317
      %v2638 = vpack.c.b16 %v2320, %v2319
      %v2639 = vpack.c.b16 %v2322, %v2321
      %v2640 = vpack.c.b16 %v2324, %v2323
      %v2641 = vpack.c.b16 %v2326, %v2325
      %v2642 = vpack.c.b16 %v2328, %v2327
      %v2643 = vpack.c.b16 %v2330, %v2329
      %v2644 = vpack.c.b16 %v2332, %v2331
      %v2645 = vpack.c.b16 %v2334, %v2333
      %v2646 = vpack.c.b16 %v2336, %v2335
      %v2647 = vpack.c.b16 %v2338, %v2337
      %v2648 = vpack.c.b16 %v2340, %v2339
      %v2649 = vpack.c.b16 %v2342, %v2341
      %v2650 = vpack.c.b16 %v2344, %v2343
      %v2651 = vpack.c.b16 %v2346, %v2345
      %v2652 = vpack.c.b16 %v2348, %v2347
      %v2653 = vpack.c.b16 %v2350, %v2349
      %v2654 = vpack.c.b16 %v2352, %v2351
      %v2655 = vpack.c.b16 %v2354, %v2353
      %v2656 = vpack.c.b16 %v2356, %v2355
      %v2657 = vpack.c.b16 %v2358, %v2357
      %v2658 = vpack.c.b16 %v2360, %v2359
      %v2659 = vpack.c.b16 %v2362, %v2361
      %v2660 = vpack.c.b16 %v2364, %v2363
      %v2661 = vpack.c.b16 %v2366, %v2365
      %v2662 = vpack.c.b16 %v2368, %v2367
      %v2663 = vpack.c.b16 %v2370, %v2369
      %v2664 = vpack.c.b16 %v2372, %v2371
      %v2665 = vpack.c.b16 %v2374, %v2373
      %v2666 = vpack.c.b16 %v2376, %v2375
      %v2667 = vpack.c.b16 %v2378, %v2377
      %v2668 = vpack.c.b16 %v2380, %v2379
      %v2669 = vpack.c.b16 %v2382, %v2381
      %v2670 = vpack.c.b16 %v2384, %v2383
      %v2671 = vpack.c.b16 %v2386, %v2385
      %v2672 = vpack.c.b16 %v2388, %v2387
      %v2673 = vpack.c.b16 %v2390, %v2389
      %v2674 = vpack.c.b16 %v2392, %v2391
      %v2675 = vpack.c.b16 %v2394, %v2393
      %v2676 = vpack.c.b16 %v2396, %v2395
      %v2677 = vpack.c.b16 %v2398, %v2397
      %v2678 = vpack.c.b16 %v2400, %v2399
      %v2679 = vpack.c.b16 %v2402, %v2401
      %v2680 = vpack.c.b16 %v2404, %v2403
      %v2681 = vpack.c.b16 %v2406, %v2405
      %v2682 = vpack.c.b16 %v2408, %v2407
      %v2683 = vpack.c.b16 %v2410, %v2409
      %v2684 = vpack.c.b16 %v2412, %v2411
      %v2685 = vpack.c.b16 %v2414, %v2413
      %v2686 = vpack.c.b16 %v2416, %v2415
      %v2687 = vpack.c.b16 %v2418, %v2417
      %v2688 = vpack.c.b16 %v2420, %v2419
      %v2689 = vpack.c.b16 %v2422, %v2421
      %v2690 = vpack.c.b16 %v2424, %v2423
      %v2691 = vpack.c.b16 %v2426, %v2425
      %v2692 = vpack.c.b16 %v2428, %v2427
      %v2693 = vpack.c.b16 %v2430, %v2429
      %v2694 = vpack.c.b16 %v2432, %v2431
      %v2695 = vpack.c.b16 %v2434, %v2433
      %v2696 = vpack.c.b16 %v2436, %v2435
      %v2697 = vpack.c.b16 %v2438, %v2437
      %v2698 = vpack.c.b16 %v2440, %v2439
      %v2699 = vpack.c.b16 %v2442, %v2441
      %v2700 = vpack.c.b16 %v2444, %v2443
      %v2701 = vpack.c.b16 %v2446, %v2445
      %v2702 = vpack.c.b16 %v2448, %v2447
      %v2703 = vpack.c.b16 %v2450, %v2449
      %v2704 = vpack.c.b16 %v2452, %v2451
      %v2705 = vpack.c.b16 %v2454, %v2453
      %v2706 = vpack.c.b16 %v2456, %v2455
      %v2707 = vpack.c.b16 %v2458, %v2457
      %v2708 = vpack.c.b16 %v2460, %v2459
      %v2709 = vpack.c.b16 %v2462, %v2461
      %v2710 = vpack.c.b16 %v2464, %v2463
      %v2711 = vpack.c.b16 %v2466, %v2465
      %v2712 = vpack.c.b16 %v2468, %v2467
      %v2713 = vpack.c.b16 %v2470, %v2469
      %v2714 = vpack.c.b16 %v2472, %v2471
      %v2715 = vpack.c.b16 %v2474, %v2473
      %v2716 = vpack.c.b16 %v2476, %v2475
      %v2717 = vpack.c.b16 %v2478, %v2477
      %v2718 = vpack.c.b16 %v2480, %v2479
      %v2719 = vpack.c.b16 %v2482, %v2481
      %v2720 = vpack.c.b16 %v2484, %v2483
      %v2721 = vpack.c.b16 %v2486, %v2485
      %v2722 = vpack.c.b16 %v2488, %v2487
      %v2723 = vpack.c.b16 %v2490, %v2489
      %v2724 = vpack.c.b16 %v2492, %v2491
      %v2725 = vpack.c.b16 %v2494, %v2493
      %v2726 = vpack.c.b16 %v2496, %v2495
      %v2727 = vpack.c.b16 %v2498, %v2497
      %v2728 = vpack.c.b16 %v2500, %v2499
      %v2729 = vpack.c.b16 %v2502, %v2501
      %v2730 = vpack.c.b16 %v2504, %v2503
      %v2731 = vpack.c.b16 %v2506, %v2505
      %v2732 = vpack.c.b16 %v2508, %v2507
      %v2737 = vunpack.c.l.b16 %v1609
      %v2738 = vunpack.c.l.b16 %v1610
      %v2739 = vunpack.c.l.b16 %v1611
      %v2740 = vunpack.c.l.b16 %v1612
      %v2741 = vpack.c.b16 %v2738, %v2737
      %v2742 = vpack.c.b16 %v2740, %v2739
      %vm2744 = vcmask 220160
      %v2746 = vsel %vm2744, %v2509, 0
      %v2749 = vsel %vm2744, %v2510, 0
      %v2752 = vsel %vm2744, %v2511, 0
      %v2755 = vsel %vm2744, %v2512, 0
      %v2758 = vsel %vm2744, %v2513, 0
      %v2761 = vsel %vm2744, %v2514, 0
      %v2764 = vsel %vm2744, %v2515, 0
      %v2767 = vsel %vm2744, %v2516, 0
      %v2770 = vsel %vm2744, %v2517, 0
      %v2773 = vsel %vm2744, %v2518, 0
      %v2776 = vsel %vm2744, %v2519, 0
      %v2779 = vsel %vm2744, %v2520, 0
      %v2782 = vsel %vm2744, %v2521, 0
      %v2785 = vsel %vm2744, %v2522, 0
      %v2788 = vsel %vm2744, %v2523, 0
      %v2791 = vsel %vm2744, %v2524, 0
      %v2794 = vsel %vm2744, %v2525, 0
      %v2797 = vsel %vm2744, %v2526, 0
      %v2800 = vsel %vm2744, %v2527, 0
      %v2803 = vsel %vm2744, %v2528, 0
      %v2806 = vsel %vm2744, %v2529, 0
      %v2809 = vsel %vm2744, %v2530, 0
      %v2812 = vsel %vm2744, %v2531, 0
      %v2815 = vsel %vm2744, %v2532, 0
      %v2818 = vsel %vm2744, %v2533, 0
      %v2821 = vsel %vm2744, %v2534, 0
      %v2824 = vsel %vm2744, %v2535, 0
      %v2827 = vsel %vm2744, %v2536, 0
      %v2830 = vsel %vm2744, %v2537, 0
      %v2833 = vsel %vm2744, %v2538, 0
      %v2836 = vsel %vm2744, %v2539, 0
      %v2839 = vsel %vm2744, %v2540, 0
      %v2842 = vsel %vm2744, %v2541, 0
      %v2845 = vsel %vm2744, %v2542, 0
      %v2848 = vsel %vm2744, %v2543, 0
      %v2851 = vsel %vm2744, %v2544, 0
      %v2854 = vsel %vm2744, %v2545, 0
      %v2857 = vsel %vm2744, %v2546, 0
      %v2860 = vsel %vm2744, %v2547, 0
      %v2863 = vsel %vm2744, %v2548, 0
      %v2866 = vsel %vm2744, %v2549, 0
      %v2869 = vsel %vm2744, %v2550, 0
      %v2872 = vsel %vm2744, %v2551, 0
      %v2875 = vsel %vm2744, %v2552, 0
      %v2878 = vsel %vm2744, %v2553, 0
      %v2881 = vsel %vm2744, %v2554, 0
      %v2884 = vsel %vm2744, %v2555, 0
      %v2887 = vsel %vm2744, %v2556, 0
      %v2890 = vsel %vm2744, %v2557, 0
      %v2893 = vsel %vm2744, %v2558, 0
      %v2896 = vsel %vm2744, %v2559, 0
      %v2899 = vsel %vm2744, %v2560, 0
      %v2902 = vsel %vm2744, %v2561, 0
      %v2905 = vsel %vm2744, %v2562, 0
      %v2908 = vsel %vm2744, %v2563, 0
      %v2911 = vsel %vm2744, %v2564, 0
      %v2914 = vsel %vm2744, %v2565, 0
      %v2917 = vsel %vm2744, %v2566, 0
      %v2920 = vsel %vm2744, %v2567, 0
      %v2923 = vsel %vm2744, %v2568, 0
      %v2926 = vsel %vm2744, %v2569, 0
      %v2929 = vsel %vm2744, %v2570, 0
      %v2932 = vsel %vm2744, %v2571, 0
      %v2935 = vsel %vm2744, %v2572, 0
      %v2938 = vsel %vm2744, %v2573, 0
      %v2941 = vsel %vm2744, %v2574, 0
      %v2944 = vsel %vm2744, %v2575, 0
      %v2947 = vsel %vm2744, %v2576, 0
      %v2950 = vsel %vm2744, %v2577, 0
      %v2953 = vsel %vm2744, %v2578, 0
      %v2956 = vsel %vm2744, %v2579, 0
      %v2959 = vsel %vm2744, %v2580, 0
      %v2962 = vsel %vm2744, %v2581, 0
      %v2965 = vsel %vm2744, %v2582, 0
      %v2968 = vsel %vm2744, %v2583, 0
      %v2971 = vsel %vm2744, %v2584, 0
      %v2974 = vsel %vm2744, %v2585, 0
      %v2977 = vsel %vm2744, %v2586, 0
      %v2980 = vsel %vm2744, %v2587, 0
      %v2983 = vsel %vm2744, %v2588, 0
      %v2986 = vsel %vm2744, %v2589, 0
      %v2989 = vsel %vm2744, %v2590, 0
      %v2992 = vsel %vm2744, %v2591, 0
      %v2995 = vsel %vm2744, %v2592, 0
      %v2998 = vsel %vm2744, %v2593, 0
      %v3001 = vsel %vm2744, %v2594, 0
      %v3004 = vsel %vm2744, %v2595, 0
      %v3007 = vsel %vm2744, %v2596, 0
      %v3010 = vsel %vm2744, %v2597, 0
      %v3013 = vsel %vm2744, %v2598, 0
      %v3016 = vsel %vm2744, %v2599, 0
      %v3019 = vsel %vm2744, %v2600, 0
      %v3022 = vsel %vm2744, %v2601, 0
      %v3025 = vsel %vm2744, %v2602, 0
      %v3028 = vsel %vm2744, %v2603, 0
      %v3031 = vsel %vm2744, %v2604, 0
      %v3034 = vsel %vm2744, %v2605, 0
      %v3037 = vsel %vm2744, %v2606, 0
      %v3040 = vsel %vm2744, %v2607, 0
      %v3043 = vsel %vm2744, %v2608, 0
      %v3046 = vsel %vm2744, %v2609, 0
      %v3049 = vsel %vm2744, %v2610, 0
      %v3052 = vsel %vm2744, %v2611, 0
      %v3055 = vsel %vm2744, %v2612, 0
      %v3058 = vsel %vm2744, %v2613, 0
      %v3061 = vsel %vm2744, %v2614, 0
      %v3064 = vsel %vm2744, %v2615, 0
      %v3067 = vsel %vm2744, %v2616, 0
      %v3070 = vsel %vm2744, %v2617, 0
      %v3073 = vsel %vm2744, %v2618, 0
      %v3076 = vsel %vm2744, %v2619, 0
      %v3079 = vsel %vm2744, %v2620, 0
      %v3082 = vsel %vm2744, %v2621, 0
      %v3085 = vsel %vm2744, %v2622, 0
      %v3088 = vsel %vm2744, %v2623, 0
      %v3091 = vsel %vm2744, %v2624, 0
      %v3094 = vsel %vm2744, %v2625, 0
      %v3097 = vsel %vm2744, %v2626, 0
      %v3100 = vsel %vm2744, %v2627, 0
      %v3103 = vsel %vm2744, %v2628, 0
      %v3106 = vsel %vm2744, %v2629, 0
      %v3109 = vsel %vm2744, %v2630, 0
      %v3112 = vsel %vm2744, %v2631, 0
      %v3115 = vsel %vm2744, %v2632, 0
      %v3118 = vsel %vm2744, %v2633, 0
      %v3121 = vsel %vm2744, %v2634, 0
      %v3124 = vsel %vm2744, %v2635, 0
      %v3127 = vsel %vm2744, %v2636, 0
      %v3130 = vsel %vm2744, %v2637, 0
      %v3133 = vsel %vm2744, %v2638, 0
      %v3136 = vsel %vm2744, %v2639, 0
      %v3139 = vsel %vm2744, %v2640, 0
      %v3142 = vsel %vm2744, %v2641, 0
      %v3145 = vsel %vm2744, %v2642, 0
      %v3148 = vsel %vm2744, %v2643, 0
      %v3151 = vsel %vm2744, %v2644, 0
      %v3154 = vsel %vm2744, %v2645, 0
      %v3157 = vsel %vm2744, %v2646, 0
      %v3160 = vsel %vm2744, %v2647, 0
      %v3163 = vsel %vm2744, %v2648, 0
      %v3166 = vsel %vm2744, %v2649, 0
      %v3169 = vsel %vm2744, %v2650, 0
      %v3172 = vsel %vm2744, %v2651, 0
      %v3175 = vsel %vm2744, %v2652, 0
      %v3178 = vsel %vm2744, %v2653, 0
      %v3181 = vsel %vm2744, %v2654, 0
      %v3184 = vsel %vm2744, %v2655, 0
      %v3187 = vsel %vm2744, %v2656, 0
      %v3190 = vsel %vm2744, %v2657, 0
      %v3193 = vsel %vm2744, %v2658, 0
      %v3196 = vsel %vm2744, %v2659, 0
      %v3199 = vsel %vm2744, %v2660, 0
      %v3202 = vsel %vm2744, %v2661, 0
      %v3205 = vsel %vm2744, %v2662, 0
      %v3208 = vsel %vm2744, %v2663, 0
      %v3211 = vsel %vm2744, %v2664, 0
      %v3214 = vsel %vm2744, %v2665, 0
      %v3217 = vsel %vm2744, %v2666, 0
      %v3220 = vsel %vm2744, %v2667, 0
      %v3223 = vsel %vm2744, %v2668, 0
      %v3226 = vsel %vm2744, %v2669, 0
      %v3229 = vsel %vm2744, %v2670, 0
      %v3232 = vsel %vm2744, %v2671, 0
      %v3235 = vsel %vm2744, %v2672, 0
      %v3238 = vsel %vm2744, %v2673, 0
      %v3241 = vsel %vm2744, %v2674, 0
      %v3244 = vsel %vm2744, %v2675, 0
      %v3247 = vsel %vm2744, %v2676, 0
      %v3250 = vsel %vm2744, %v2677, 0
      %v3253 = vsel %vm2744, %v2678, 0
      %v3256 = vsel %vm2744, %v2679, 0
      %v3259 = vsel %vm2744, %v2680, 0
      %v3262 = vsel %vm2744, %v2681, 0
      %v3265 = vsel %vm2744, %v2682, 0
      %v3268 = vsel %vm2744, %v2683, 0
      %v3271 = vsel %vm2744, %v2684, 0
      %v3274 = vsel %vm2744, %v2685, 0
      %v3277 = vsel %vm2744, %v2686, 0
      %v3280 = vsel %vm2744, %v2687, 0
      %v3283 = vsel %vm2744, %v2688, 0
      %v3286 = vsel %vm2744, %v2689, 0
      %v3289 = vsel %vm2744, %v2690, 0
      %v3292 = vsel %vm2744, %v2691, 0
      %v3295 = vsel %vm2744, %v2692, 0
      %v3298 = vsel %vm2744, %v2693, 0
      %v3301 = vsel %vm2744, %v2694, 0
      %v3304 = vsel %vm2744, %v2695, 0
      %v3307 = vsel %vm2744, %v2696, 0
      %v3310 = vsel %vm2744, %v2697, 0
      %v3313 = vsel %vm2744, %v2698, 0
      %v3316 = vsel %vm2744, %v2699, 0
      %v3319 = vsel %vm2744, %v2700, 0
      %v3322 = vsel %vm2744, %v2701, 0
      %v3325 = vsel %vm2744, %v2702, 0
      %v3328 = vsel %vm2744, %v2703, 0
      %v3331 = vsel %vm2744, %v2704, 0
      %v3334 = vsel %vm2744, %v2705, 0
      %v3337 = vsel %vm2744, %v2706, 0
      %v3340 = vsel %vm2744, %v2707, 0
      %v3343 = vsel %vm2744, %v2708, 0
      %v3346 = vsel %vm2744, %v2709, 0
      %v3349 = vsel %vm2744, %v2710, 0
      %v3352 = vsel %vm2744, %v2711, 0
      %v3355 = vsel %vm2744, %v2712, 0
      %v3358 = vsel %vm2744, %v2713, 0
      %v3361 = vsel %vm2744, %v2714, 0
      %v3364 = vsel %vm2744, %v2715, 0
      %v3367 = vsel %vm2744, %v2716, 0
      %v3370 = vsel %vm2744, %v2717, 0
      %v3373 = vsel %vm2744, %v2718, 0
      %v3376 = vsel %vm2744, %v2719, 0
      %v3379 = vsel %vm2744, %v2720, 0
      %v3382 = vsel %vm2744, %v2721, 0
      %v3385 = vsel %vm2744, %v2722, 0
      %v3388 = vsel %vm2744, %v2723, 0
      %v3391 = vsel %vm2744, %v2724, 0
      %v3394 = vsel %vm2744, %v2725, 0
      %v3397 = vsel %vm2744, %v2726, 0
      %v3400 = vsel %vm2744, %v2727, 0
      %v3403 = vsel %vm2744, %v2728, 0
      %v3406 = vsel %vm2744, %v2729, 0
      %v3409 = vsel %vm2744, %v2730, 0
      %v3412 = vsel %vm2744, %v2731, 0
      %v3415 = vsel %vm2744, %v2732, 0
      %vm3417 = vcmask 1044480
      %vm3418 = vcmask 1045504
      %v3419 = vsel %vm3417, 4294967295, 65535
      %v3420 = vsel %vm3418, %v3419, 0
      %v3422 = vand.u32 %v2742, %v3420
      %3424 = vmatprep.subr.bf16.mxu0 0
      %3425 = vmatpush1.bf16.msra.mxu0 0
      %3426 = vmatprep.subr.bf16.mxu0 0
      %3427 = vmatpush1.bf16.msra.mxu0 0
      %3428 = vmatprep.subr.bf16.mxu0 0
      %3429 = vmatpush1.bf16.msra.mxu0 0
      %3430 = vmatprep.subr.bf16.mxu0 0
      %3431 = vmatpush1.bf16.msra.mxu0 0
      %3432 = vmatprep.subr.bf16.mxu0 0
      %3433 = vmatpush1.bf16.msra.mxu0 0
      %3434 = vmatprep.subr.bf16.mxu0 0
      %3435 = vmatpush1.bf16.msra.mxu0 0
      %3436 = vmatprep.subr.bf16.mxu0 0
      %3437 = vmatpush1.bf16.msra.mxu0 %v3422
      %3438 = vmatprep.subr.bf16.mxu0 0
      %3439 = vmatpush1.bf16.msra.mxu0 %v2741
      %3440 = vmatprep.subr.bf16.mxu0 0
      %3441 = vmatpush2.bf16.msra.mxu0 0
      %3442 = vmatprep.subr.bf16.mxu0 0
      %3443 = vmatpush2.bf16.msra.mxu0 0
      %3444 = vmatprep.subr.bf16.mxu0 0
      %3445 = vmatpush2.bf16.msra.mxu0 0
      %3446 = vmatprep.subr.bf16.mxu0 0
      %3447 = vmatpush2.bf16.msra.mxu0 0
      %3448 = vmatprep.subr.bf16.mxu0 0
      %3449 = vmatpush2.bf16.msra.mxu0 0
      %3450 = vmatprep.subr.bf16.mxu0 0
      %3451 = vmatpush2.bf16.msra.mxu0 0
      %3452 = vmatprep.subr.bf16.mxu0 0
      %3453 = vmatpush2.bf16.msra.mxu0 0
      %3454 = vmatprep.subr.bf16.mxu0 0
      %3455 = vmatpush2.bf16.msra.mxu0 0
      %3456 = vmatprep.mubr.bf16.mxu0 0
      %3457 = vmatmul.mubr.bf16.gmra.mxu0 %v2746
      %v3458 = vpop.f32.mrf.mxu0
      %v3459 = vadd.f32 0.0, %v3458
      %v3460 = vpop.f32.mrf.mxu0
      %v3461 = vpop.f32.mrf.mxu0
      %v3462 = vadd.f32 0.0, %v3461
      %v3463 = vpop.f32.mrf.mxu0
      %3464 = vmatprep.mubr.bf16.mxu0 0
      %3465 = vmatmul.mubr.bf16.gmra.mxu0 %v2749
      %v3466 = vpop.f32.mrf.mxu0
      %v3467 = vadd.f32 0.0, %v3466
      %v3468 = vpop.f32.mrf.mxu0
      %v3469 = vpop.f32.mrf.mxu0
      %v3470 = vadd.f32 0.0, %v3469
      %v3471 = vpop.f32.mrf.mxu0
      %3472 = vmatprep.mubr.bf16.mxu0 0
      %3473 = vmatmul.mubr.bf16.gmra.mxu0 %v2752
      %v3474 = vpop.f32.mrf.mxu0
      %v3475 = vadd.f32 0.0, %v3474
      %v3476 = vpop.f32.mrf.mxu0
      %v3477 = vpop.f32.mrf.mxu0
      %v3478 = vadd.f32 0.0, %v3477
      %v3479 = vpop.f32.mrf.mxu0
      %3480 = vmatprep.mubr.bf16.mxu0 0
      %3481 = vmatmul.mubr.bf16.gmra.mxu0 %v2755
      %v3482 = vpop.f32.mrf.mxu0
      %v3483 = vadd.f32 0.0, %v3482
      %v3484 = vpop.f32.mrf.mxu0
      %v3485 = vpop.f32.mrf.mxu0
      %v3486 = vadd.f32 0.0, %v3485
      %v3487 = vpop.f32.mrf.mxu0
      %3488 = vmatprep.mubr.bf16.mxu0 0
      %3489 = vmatmul.mubr.bf16.gmra.mxu0 %v2758
      %v3490 = vpop.f32.mrf.mxu0
      %v3491 = vadd.f32 0.0, %v3490
      %v3492 = vpop.f32.mrf.mxu0
      %v3493 = vpop.f32.mrf.mxu0
      %v3494 = vadd.f32 0.0, %v3493
      %v3495 = vpop.f32.mrf.mxu0
      %3496 = vmatprep.mubr.bf16.mxu0 0
      %3497 = vmatmul.mubr.bf16.gmra.mxu0 %v2761
      %v3498 = vpop.f32.mrf.mxu0
      %v3499 = vadd.f32 0.0, %v3498
      %v3500 = vpop.f32.mrf.mxu0
      %v3501 = vpop.f32.mrf.mxu0
      %v3502 = vadd.f32 0.0, %v3501
      %v3503 = vpop.f32.mrf.mxu0
      %3504 = vmatprep.mubr.bf16.mxu0 0
      %3505 = vmatmul.mubr.bf16.gmra.mxu0 %v2764
      %v3506 = vpop.f32.mrf.mxu0
      %v3507 = vadd.f32 0.0, %v3506
      %v3508 = vpop.f32.mrf.mxu0
      %v3509 = vpop.f32.mrf.mxu0
      %v3510 = vadd.f32 0.0, %v3509
      %v3511 = vpop.f32.mrf.mxu0
      %3512 = vmatprep.mubr.bf16.mxu0 0
      %3513 = vmatmul.mubr.bf16.gmra.mxu0 %v2767
      %v3514 = vpop.f32.mrf.mxu0
      %v3515 = vadd.f32 0.0, %v3514
      %v3516 = vpop.f32.mrf.mxu0
      %v3517 = vpop.f32.mrf.mxu0
      %v3518 = vadd.f32 0.0, %v3517
      %v3519 = vpop.f32.mrf.mxu0
      %3520 = vmatprep.mubr.bf16.mxu0 0
      %3521 = vmatmul.mubr.bf16.gmra.mxu0 %v2770
      %v3522 = vpop.f32.mrf.mxu0
      %v3523 = vadd.f32 0.0, %v3522
      %v3524 = vpop.f32.mrf.mxu0
      %v3525 = vpop.f32.mrf.mxu0
      %v3526 = vadd.f32 0.0, %v3525
      %v3527 = vpop.f32.mrf.mxu0
      %3528 = vmatprep.mubr.bf16.mxu0 0
      %3529 = vmatmul.mubr.bf16.gmra.mxu0 %v2773
      %v3530 = vpop.f32.mrf.mxu0
      %v3531 = vadd.f32 0.0, %v3530
      %v3532 = vpop.f32.mrf.mxu0
      %v3533 = vpop.f32.mrf.mxu0
      %v3534 = vadd.f32 0.0, %v3533
      %v3535 = vpop.f32.mrf.mxu0
      %3536 = vmatprep.mubr.bf16.mxu0 0
      %3537 = vmatmul.mubr.bf16.gmra.mxu0 %v2776
      %v3538 = vpop.f32.mrf.mxu0
      %v3539 = vadd.f32 0.0, %v3538
      %v3540 = vpop.f32.mrf.mxu0
      %v3541 = vpop.f32.mrf.mxu0
      %v3542 = vadd.f32 0.0, %v3541
      %v3543 = vpop.f32.mrf.mxu0
      %3544 = vmatprep.mubr.bf16.mxu0 0
      %3545 = vmatmul.mubr.bf16.gmra.mxu0 %v2779
      %v3546 = vpop.f32.mrf.mxu0
      %v3547 = vadd.f32 0.0, %v3546
      %v3548 = vpop.f32.mrf.mxu0
      %v3549 = vpop.f32.mrf.mxu0
      %v3550 = vadd.f32 0.0, %v3549
      %v3551 = vpop.f32.mrf.mxu0
      %3552 = vmatprep.mubr.bf16.mxu0 0
      %3553 = vmatmul.mubr.bf16.gmra.mxu0 %v2782
      %v3554 = vpop.f32.mrf.mxu0
      %v3555 = vadd.f32 0.0, %v3554
      %v3556 = vpop.f32.mrf.mxu0
      %v3557 = vpop.f32.mrf.mxu0
      %v3558 = vadd.f32 0.0, %v3557
      %v3559 = vpop.f32.mrf.mxu0
      %3560 = vmatprep.mubr.bf16.mxu0 0
      %3561 = vmatmul.mubr.bf16.gmra.mxu0 %v2785
      %v3562 = vpop.f32.mrf.mxu0
      %v3563 = vadd.f32 0.0, %v3562
      %v3564 = vpop.f32.mrf.mxu0
      %v3565 = vpop.f32.mrf.mxu0
      %v3566 = vadd.f32 0.0, %v3565
      %v3567 = vpop.f32.mrf.mxu0
      %3568 = vmatprep.mubr.bf16.mxu0 0
      %3569 = vmatmul.mubr.bf16.gmra.mxu0 %v2788
      %v3570 = vpop.f32.mrf.mxu0
      %v3571 = vadd.f32 0.0, %v3570
      %v3572 = vpop.f32.mrf.mxu0
      %v3573 = vpop.f32.mrf.mxu0
      %v3574 = vadd.f32 0.0, %v3573
      %v3575 = vpop.f32.mrf.mxu0
      %3576 = vmatprep.mubr.bf16.mxu0 0
      %3577 = vmatmul.mubr.bf16.gmra.mxu0 %v2791
      %v3578 = vpop.f32.mrf.mxu0
      %v3579 = vadd.f32 0.0, %v3578
      %v3580 = vpop.f32.mrf.mxu0
      %v3581 = vpop.f32.mrf.mxu0
      %v3582 = vadd.f32 0.0, %v3581
      %v3583 = vpop.f32.mrf.mxu0
      %3584 = vmatprep.mubr.bf16.mxu0 0
      %3585 = vmatmul.mubr.bf16.gmra.mxu0 %v2794
      %v3586 = vpop.f32.mrf.mxu0
      %v3587 = vadd.f32 0.0, %v3586
      %v3588 = vpop.f32.mrf.mxu0
      %v3589 = vpop.f32.mrf.mxu0
      %v3590 = vadd.f32 0.0, %v3589
      %v3591 = vpop.f32.mrf.mxu0
      %3592 = vmatprep.mubr.bf16.mxu0 0
      %3593 = vmatmul.mubr.bf16.gmra.mxu0 %v2797
      %v3594 = vpop.f32.mrf.mxu0
      %v3595 = vadd.f32 0.0, %v3594
      %v3596 = vpop.f32.mrf.mxu0
      %v3597 = vpop.f32.mrf.mxu0
      %v3598 = vadd.f32 0.0, %v3597
      %v3599 = vpop.f32.mrf.mxu0
      %3600 = vmatprep.mubr.bf16.mxu0 0
      %3601 = vmatmul.mubr.bf16.gmra.mxu0 %v2800
      %v3602 = vpop.f32.mrf.mxu0
      %v3603 = vadd.f32 0.0, %v3602
      %v3604 = vpop.f32.mrf.mxu0
      %v3605 = vpop.f32.mrf.mxu0
      %v3606 = vadd.f32 0.0, %v3605
      %v3607 = vpop.f32.mrf.mxu0
      %3608 = vmatprep.mubr.bf16.mxu0 0
      %3609 = vmatmul.mubr.bf16.gmra.mxu0 %v2803
      %v3610 = vpop.f32.mrf.mxu0
      %v3611 = vadd.f32 0.0, %v3610
      %v3612 = vpop.f32.mrf.mxu0
      %v3613 = vpop.f32.mrf.mxu0
      %v3614 = vadd.f32 0.0, %v3613
      %v3615 = vpop.f32.mrf.mxu0
      %3616 = vmatprep.mubr.bf16.mxu0 0
      %3617 = vmatmul.mubr.bf16.gmra.mxu0 %v2806
      %v3618 = vpop.f32.mrf.mxu0
      %v3619 = vadd.f32 0.0, %v3618
      %v3620 = vpop.f32.mrf.mxu0
      %v3621 = vpop.f32.mrf.mxu0
      %v3622 = vadd.f32 0.0, %v3621
      %v3623 = vpop.f32.mrf.mxu0
      %3624 = vmatprep.mubr.bf16.mxu0 0
      %3625 = vmatmul.mubr.bf16.gmra.mxu0 %v2809
      %v3626 = vpop.f32.mrf.mxu0
      %v3627 = vadd.f32 0.0, %v3626
      %v3628 = vpop.f32.mrf.mxu0
      %v3629 = vpop.f32.mrf.mxu0
      %v3630 = vadd.f32 0.0, %v3629
      %v3631 = vpop.f32.mrf.mxu0
      %3632 = vmatprep.mubr.bf16.mxu0 0
      %3633 = vmatmul.mubr.bf16.gmra.mxu0 %v2812
      %v3634 = vpop.f32.mrf.mxu0
      %v3635 = vadd.f32 0.0, %v3634
      %v3636 = vpop.f32.mrf.mxu0
      %v3637 = vpop.f32.mrf.mxu0
      %v3638 = vadd.f32 0.0, %v3637
      %v3639 = vpop.f32.mrf.mxu0
      %3640 = vmatprep.mubr.bf16.mxu0 0
      %3641 = vmatmul.mubr.bf16.gmra.mxu0 %v2815
      %v3642 = vpop.f32.mrf.mxu0
      %v3643 = vadd.f32 0.0, %v3642
      %v3644 = vpop.f32.mrf.mxu0
      %v3645 = vpop.f32.mrf.mxu0
      %v3646 = vadd.f32 0.0, %v3645
      %v3647 = vpop.f32.mrf.mxu0
      %3648 = vmatprep.mubr.bf16.mxu0 0
      %3649 = vmatmul.mubr.bf16.gmra.mxu0 %v2818
      %v3650 = vpop.f32.mrf.mxu0
      %v3651 = vadd.f32 0.0, %v3650
      %v3652 = vpop.f32.mrf.mxu0
      %v3653 = vpop.f32.mrf.mxu0
      %v3654 = vadd.f32 0.0, %v3653
      %v3655 = vpop.f32.mrf.mxu0
      %3656 = vmatprep.mubr.bf16.mxu0 0
      %3657 = vmatmul.mubr.bf16.gmra.mxu0 %v2821
      %v3658 = vpop.f32.mrf.mxu0
      %v3659 = vadd.f32 0.0, %v3658
      %v3660 = vpop.f32.mrf.mxu0
      %v3661 = vpop.f32.mrf.mxu0
      %v3662 = vadd.f32 0.0, %v3661
      %v3663 = vpop.f32.mrf.mxu0
      %3664 = vmatprep.mubr.bf16.mxu0 0
      %3665 = vmatmul.mubr.bf16.gmra.mxu0 %v2824
      %v3666 = vpop.f32.mrf.mxu0
      %v3667 = vadd.f32 0.0, %v3666
      %v3668 = vpop.f32.mrf.mxu0
      %v3669 = vpop.f32.mrf.mxu0
      %v3670 = vadd.f32 0.0, %v3669
      %v3671 = vpop.f32.mrf.mxu0
      %3672 = vmatprep.mubr.bf16.mxu0 0
      %3673 = vmatmul.mubr.bf16.gmra.mxu0 %v2827
      %v3674 = vpop.f32.mrf.mxu0
      %v3675 = vadd.f32 0.0, %v3674
      %v3676 = vpop.f32.mrf.mxu0
      %v3677 = vpop.f32.mrf.mxu0
      %v3678 = vadd.f32 0.0, %v3677
      %v3679 = vpop.f32.mrf.mxu0
      %3680 = vmatprep.mubr.bf16.mxu0 0
      %3681 = vmatmul.mubr.bf16.gmra.mxu0 %v2830
      %v3682 = vpop.f32.mrf.mxu0
      %v3683 = vadd.f32 0.0, %v3682
      %v3684 = vpop.f32.mrf.mxu0
      %v3685 = vpop.f32.mrf.mxu0
      %v3686 = vadd.f32 0.0, %v3685
      %v3687 = vpop.f32.mrf.mxu0
      %3688 = vmatprep.mubr.bf16.mxu0 0
      %3689 = vmatmul.mubr.bf16.gmra.mxu0 %v2833
      %v3690 = vpop.f32.mrf.mxu0
      %v3691 = vadd.f32 0.0, %v3690
      %v3692 = vpop.f32.mrf.mxu0
      %v3693 = vpop.f32.mrf.mxu0
      %v3694 = vadd.f32 0.0, %v3693
      %v3695 = vpop.f32.mrf.mxu0
      %3696 = vmatprep.mubr.bf16.mxu0 0
      %3697 = vmatmul.mubr.bf16.gmra.mxu0 %v2836
      %v3698 = vpop.f32.mrf.mxu0
      %v3699 = vadd.f32 0.0, %v3698
      %v3700 = vpop.f32.mrf.mxu0
      %v3701 = vpop.f32.mrf.mxu0
      %v3702 = vadd.f32 0.0, %v3701
      %v3703 = vpop.f32.mrf.mxu0
      %3704 = vmatprep.mubr.bf16.mxu0 0
      %3705 = vmatmul.mubr.bf16.gmra.mxu0 %v2839
      %v3706 = vpop.f32.mrf.mxu0
      %v3707 = vadd.f32 0.0, %v3706
      %v3708 = vpop.f32.mrf.mxu0
      %v3709 = vpop.f32.mrf.mxu0
      %v3710 = vadd.f32 0.0, %v3709
      %v3711 = vpop.f32.mrf.mxu0
      %3712 = vmatprep.mubr.bf16.mxu0 0
      %3713 = vmatmul.mubr.bf16.gmra.mxu0 %v2842
      %v3714 = vpop.f32.mrf.mxu0
      %v3715 = vadd.f32 0.0, %v3714
      %v3716 = vpop.f32.mrf.mxu0
      %v3717 = vpop.f32.mrf.mxu0
      %v3718 = vadd.f32 0.0, %v3717
      %v3719 = vpop.f32.mrf.mxu0
      %3720 = vmatprep.mubr.bf16.mxu0 0
      %3721 = vmatmul.mubr.bf16.gmra.mxu0 %v2845
      %v3722 = vpop.f32.mrf.mxu0
      %v3723 = vadd.f32 0.0, %v3722
      %v3724 = vpop.f32.mrf.mxu0
      %v3725 = vpop.f32.mrf.mxu0
      %v3726 = vadd.f32 0.0, %v3725
      %v3727 = vpop.f32.mrf.mxu0
      %3728 = vmatprep.mubr.bf16.mxu0 0
      %3729 = vmatmul.mubr.bf16.gmra.mxu0 %v2848
      %v3730 = vpop.f32.mrf.mxu0
      %v3731 = vadd.f32 0.0, %v3730
      %v3732 = vpop.f32.mrf.mxu0
      %v3733 = vpop.f32.mrf.mxu0
      %v3734 = vadd.f32 0.0, %v3733
      %v3735 = vpop.f32.mrf.mxu0
      %3736 = vmatprep.mubr.bf16.mxu0 0
      %3737 = vmatmul.mubr.bf16.gmra.mxu0 %v2851
      %v3738 = vpop.f32.mrf.mxu0
      %v3739 = vadd.f32 0.0, %v3738
      %v3740 = vpop.f32.mrf.mxu0
      %v3741 = vpop.f32.mrf.mxu0
      %v3742 = vadd.f32 0.0, %v3741
      %v3743 = vpop.f32.mrf.mxu0
      %3744 = vmatprep.mubr.bf16.mxu0 0
      %3745 = vmatmul.mubr.bf16.gmra.mxu0 %v2854
      %v3746 = vpop.f32.mrf.mxu0
      %v3747 = vadd.f32 0.0, %v3746
      %v3748 = vpop.f32.mrf.mxu0
      %v3749 = vpop.f32.mrf.mxu0
      %v3750 = vadd.f32 0.0, %v3749
      %v3751 = vpop.f32.mrf.mxu0
      %3752 = vmatprep.mubr.bf16.mxu0 0
      %3753 = vmatmul.mubr.bf16.gmra.mxu0 %v2857
      %v3754 = vpop.f32.mrf.mxu0
      %v3755 = vadd.f32 0.0, %v3754
      %v3756 = vpop.f32.mrf.mxu0
      %v3757 = vpop.f32.mrf.mxu0
      %v3758 = vadd.f32 0.0, %v3757
      %v3759 = vpop.f32.mrf.mxu0
      %3760 = vmatprep.mubr.bf16.mxu0 0
      %3761 = vmatmul.mubr.bf16.gmra.mxu0 %v2860
      %v3762 = vpop.f32.mrf.mxu0
      %v3763 = vadd.f32 0.0, %v3762
      %v3764 = vpop.f32.mrf.mxu0
      %v3765 = vpop.f32.mrf.mxu0
      %v3766 = vadd.f32 0.0, %v3765
      %v3767 = vpop.f32.mrf.mxu0
      %3768 = vmatprep.mubr.bf16.mxu0 0
      %3769 = vmatmul.mubr.bf16.gmra.mxu0 %v2863
      %v3770 = vpop.f32.mrf.mxu0
      %v3771 = vadd.f32 0.0, %v3770
      %v3772 = vpop.f32.mrf.mxu0
      %v3773 = vpop.f32.mrf.mxu0
      %v3774 = vadd.f32 0.0, %v3773
      %v3775 = vpop.f32.mrf.mxu0
      %3776 = vmatprep.mubr.bf16.mxu0 0
      %3777 = vmatmul.mubr.bf16.gmra.mxu0 %v2866
      %v3778 = vpop.f32.mrf.mxu0
      %v3779 = vadd.f32 0.0, %v3778
      %v3780 = vpop.f32.mrf.mxu0
      %v3781 = vpop.f32.mrf.mxu0
      %v3782 = vadd.f32 0.0, %v3781
      %v3783 = vpop.f32.mrf.mxu0
      %3784 = vmatprep.mubr.bf16.mxu0 0
      %3785 = vmatmul.mubr.bf16.gmra.mxu0 %v2869
      %v3786 = vpop.f32.mrf.mxu0
      %v3787 = vadd.f32 0.0, %v3786
      %v3788 = vpop.f32.mrf.mxu0
      %v3789 = vpop.f32.mrf.mxu0
      %v3790 = vadd.f32 0.0, %v3789
      %v3791 = vpop.f32.mrf.mxu0
      %3792 = vmatprep.mubr.bf16.mxu0 0
      %3793 = vmatmul.mubr.bf16.gmra.mxu0 %v2872
      %v3794 = vpop.f32.mrf.mxu0
      %v3795 = vadd.f32 0.0, %v3794
      %v3796 = vpop.f32.mrf.mxu0
      %v3797 = vpop.f32.mrf.mxu0
      %v3798 = vadd.f32 0.0, %v3797
      %v3799 = vpop.f32.mrf.mxu0
      %3800 = vmatprep.mubr.bf16.mxu0 0
      %3801 = vmatmul.mubr.bf16.gmra.mxu0 %v2875
      %v3802 = vpop.f32.mrf.mxu0
      %v3803 = vadd.f32 0.0, %v3802
      %v3804 = vpop.f32.mrf.mxu0
      %v3805 = vpop.f32.mrf.mxu0
      %v3806 = vadd.f32 0.0, %v3805
      %v3807 = vpop.f32.mrf.mxu0
      %3808 = vmatprep.mubr.bf16.mxu0 0
      %3809 = vmatmul.mubr.bf16.gmra.mxu0 %v2878
      %v3810 = vpop.f32.mrf.mxu0
      %v3811 = vadd.f32 0.0, %v3810
      %v3812 = vpop.f32.mrf.mxu0
      %v3813 = vpop.f32.mrf.mxu0
      %v3814 = vadd.f32 0.0, %v3813
      %v3815 = vpop.f32.mrf.mxu0
      %3816 = vmatprep.mubr.bf16.mxu0 0
      %3817 = vmatmul.mubr.bf16.gmra.mxu0 %v2881
      %v3818 = vpop.f32.mrf.mxu0
      %v3819 = vadd.f32 0.0, %v3818
      %v3820 = vpop.f32.mrf.mxu0
      %v3821 = vpop.f32.mrf.mxu0
      %v3822 = vadd.f32 0.0, %v3821
      %v3823 = vpop.f32.mrf.mxu0
      %3824 = vmatprep.mubr.bf16.mxu0 0
      %3825 = vmatmul.mubr.bf16.gmra.mxu0 %v2884
      %v3826 = vpop.f32.mrf.mxu0
      %v3827 = vadd.f32 0.0, %v3826
      %v3828 = vpop.f32.mrf.mxu0
      %v3829 = vpop.f32.mrf.mxu0
      %v3830 = vadd.f32 0.0, %v3829
      %v3831 = vpop.f32.mrf.mxu0
      %3832 = vmatprep.mubr.bf16.mxu0 0
      %3833 = vmatmul.mubr.bf16.gmra.mxu0 %v2887
      %v3834 = vpop.f32.mrf.mxu0
      %v3835 = vadd.f32 0.0, %v3834
      %v3836 = vpop.f32.mrf.mxu0
      %v3837 = vpop.f32.mrf.mxu0
      %v3838 = vadd.f32 0.0, %v3837
      %v3839 = vpop.f32.mrf.mxu0
      %3840 = vmatprep.mubr.bf16.mxu0 0
      %3841 = vmatmul.mubr.bf16.gmra.mxu0 %v2890
      %v3842 = vpop.f32.mrf.mxu0
      %v3843 = vadd.f32 0.0, %v3842
      %v3844 = vpop.f32.mrf.mxu0
      %v3845 = vpop.f32.mrf.mxu0
      %v3846 = vadd.f32 0.0, %v3845
      %v3847 = vpop.f32.mrf.mxu0
      %3848 = vmatprep.mubr.bf16.mxu0 0
      %3849 = vmatmul.mubr.bf16.gmra.mxu0 %v2893
      %v3850 = vpop.f32.mrf.mxu0
      %v3851 = vadd.f32 0.0, %v3850
      %v3852 = vpop.f32.mrf.mxu0
      %v3853 = vpop.f32.mrf.mxu0
      %v3854 = vadd.f32 0.0, %v3853
      %v3855 = vpop.f32.mrf.mxu0
      %3856 = vmatprep.mubr.bf16.mxu0 0
      %3857 = vmatmul.mubr.bf16.gmra.mxu0 %v2896
      %v3858 = vpop.f32.mrf.mxu0
      %v3859 = vadd.f32 0.0, %v3858
      %v3860 = vpop.f32.mrf.mxu0
      %v3861 = vpop.f32.mrf.mxu0
      %v3862 = vadd.f32 0.0, %v3861
      %v3863 = vpop.f32.mrf.mxu0
      %3864 = vmatprep.mubr.bf16.mxu0 0
      %3865 = vmatmul.mubr.bf16.gmra.mxu0 %v2899
      %v3866 = vpop.f32.mrf.mxu0
      %v3867 = vadd.f32 0.0, %v3866
      %v3868 = vpop.f32.mrf.mxu0
      %v3869 = vpop.f32.mrf.mxu0
      %v3870 = vadd.f32 0.0, %v3869
      %v3871 = vpop.f32.mrf.mxu0
      %3872 = vmatprep.mubr.bf16.mxu0 0
      %3873 = vmatmul.mubr.bf16.gmra.mxu0 %v2902
      %v3874 = vpop.f32.mrf.mxu0
      %v3875 = vadd.f32 0.0, %v3874
      %v3876 = vpop.f32.mrf.mxu0
      %v3877 = vpop.f32.mrf.mxu0
      %v3878 = vadd.f32 0.0, %v3877
      %v3879 = vpop.f32.mrf.mxu0
      %3880 = vmatprep.mubr.bf16.mxu0 0
      %3881 = vmatmul.mubr.bf16.gmra.mxu0 %v2905
      %v3882 = vpop.f32.mrf.mxu0
      %v3883 = vadd.f32 0.0, %v3882
      %v3884 = vpop.f32.mrf.mxu0
      %v3885 = vpop.f32.mrf.mxu0
      %v3886 = vadd.f32 0.0, %v3885
      %v3887 = vpop.f32.mrf.mxu0
      %3888 = vmatprep.mubr.bf16.mxu0 0
      %3889 = vmatmul.mubr.bf16.gmra.mxu0 %v2908
      %v3890 = vpop.f32.mrf.mxu0
      %v3891 = vadd.f32 0.0, %v3890
      %v3892 = vpop.f32.mrf.mxu0
      %v3893 = vpop.f32.mrf.mxu0
      %v3894 = vadd.f32 0.0, %v3893
      %v3895 = vpop.f32.mrf.mxu0
      %3896 = vmatprep.mubr.bf16.mxu0 0
      %3897 = vmatmul.mubr.bf16.gmra.mxu0 %v2911
      %v3898 = vpop.f32.mrf.mxu0
      %v3899 = vadd.f32 0.0, %v3898
      %v3900 = vpop.f32.mrf.mxu0
      %v3901 = vpop.f32.mrf.mxu0
      %v3902 = vadd.f32 0.0, %v3901
      %v3903 = vpop.f32.mrf.mxu0
      %3904 = vmatprep.mubr.bf16.mxu0 0
      %3905 = vmatmul.mubr.bf16.gmra.mxu0 %v2914
      %v3906 = vpop.f32.mrf.mxu0
      %v3907 = vadd.f32 0.0, %v3906
      %v3908 = vpop.f32.mrf.mxu0
      %v3909 = vpop.f32.mrf.mxu0
      %v3910 = vadd.f32 0.0, %v3909
      %v3911 = vpop.f32.mrf.mxu0
      %3912 = vmatprep.mubr.bf16.mxu0 0
      %3913 = vmatmul.mubr.bf16.gmra.mxu0 %v2917
      %v3914 = vpop.f32.mrf.mxu0
      %v3915 = vadd.f32 0.0, %v3914
      %v3916 = vpop.f32.mrf.mxu0
      %v3917 = vpop.f32.mrf.mxu0
      %v3918 = vadd.f32 0.0, %v3917
      %v3919 = vpop.f32.mrf.mxu0
      %3920 = vmatprep.mubr.bf16.mxu0 0
      %3921 = vmatmul.mubr.bf16.gmra.mxu0 %v2920
      %v3922 = vpop.f32.mrf.mxu0
      %v3923 = vadd.f32 0.0, %v3922
      %v3924 = vpop.f32.mrf.mxu0
      %v3925 = vpop.f32.mrf.mxu0
      %v3926 = vadd.f32 0.0, %v3925
      %v3927 = vpop.f32.mrf.mxu0
      %3928 = vmatprep.mubr.bf16.mxu0 0
      %3929 = vmatmul.mubr.bf16.gmra.mxu0 %v2923
      %v3930 = vpop.f32.mrf.mxu0
      %v3931 = vadd.f32 0.0, %v3930
      %v3932 = vpop.f32.mrf.mxu0
      %v3933 = vpop.f32.mrf.mxu0
      %v3934 = vadd.f32 0.0, %v3933
      %v3935 = vpop.f32.mrf.mxu0
      %3936 = vmatprep.mubr.bf16.mxu0 0
      %3937 = vmatmul.mubr.bf16.gmra.mxu0 %v2926
      %v3938 = vpop.f32.mrf.mxu0
      %v3939 = vadd.f32 0.0, %v3938
      %v3940 = vpop.f32.mrf.mxu0
      %v3941 = vpop.f32.mrf.mxu0
      %v3942 = vadd.f32 0.0, %v3941
      %v3943 = vpop.f32.mrf.mxu0
      %3944 = vmatprep.mubr.bf16.mxu0 0
      %3945 = vmatmul.mubr.bf16.gmra.mxu0 %v2929
      %v3946 = vpop.f32.mrf.mxu0
      %v3947 = vadd.f32 0.0, %v3946
      %v3948 = vpop.f32.mrf.mxu0
      %v3949 = vpop.f32.mrf.mxu0
      %v3950 = vadd.f32 0.0, %v3949
      %v3951 = vpop.f32.mrf.mxu0
      %3952 = vmatprep.mubr.bf16.mxu0 0
      %3953 = vmatmul.mubr.bf16.gmra.mxu0 %v2932
      %v3954 = vpop.f32.mrf.mxu0
      %v3955 = vadd.f32 0.0, %v3954
      %v3956 = vpop.f32.mrf.mxu0
      %v3957 = vpop.f32.mrf.mxu0
      %v3958 = vadd.f32 0.0, %v3957
      %v3959 = vpop.f32.mrf.mxu0
      %3960 = vmatprep.mubr.bf16.mxu0 0
      %3961 = vmatmul.mubr.bf16.gmra.mxu0 %v2935
      %v3962 = vpop.f32.mrf.mxu0
      %v3963 = vadd.f32 0.0, %v3962
      %v3964 = vpop.f32.mrf.mxu0
      %v3965 = vpop.f32.mrf.mxu0
      %v3966 = vadd.f32 0.0, %v3965
      %v3967 = vpop.f32.mrf.mxu0
      %3968 = vmatprep.mubr.bf16.mxu0 0
      %3969 = vmatmul.mubr.bf16.gmra.mxu0 %v2938
      %v3970 = vpop.f32.mrf.mxu0
      %v3971 = vadd.f32 0.0, %v3970
      %v3972 = vpop.f32.mrf.mxu0
      %v3973 = vpop.f32.mrf.mxu0
      %v3974 = vadd.f32 0.0, %v3973
      %v3975 = vpop.f32.mrf.mxu0
      %3976 = vmatprep.mubr.bf16.mxu0 0
      %3977 = vmatmul.mubr.bf16.gmra.mxu0 %v2941
      %v3978 = vpop.f32.mrf.mxu0
      %v3979 = vadd.f32 0.0, %v3978
      %v3980 = vpop.f32.mrf.mxu0
      %v3981 = vpop.f32.mrf.mxu0
      %v3982 = vadd.f32 0.0, %v3981
      %v3983 = vpop.f32.mrf.mxu0
      %3984 = vmatprep.mubr.bf16.mxu0 0
      %3985 = vmatmul.mubr.bf16.gmra.mxu0 %v2944
      %v3986 = vpop.f32.mrf.mxu0
      %v3987 = vadd.f32 0.0, %v3986
      %v3988 = vpop.f32.mrf.mxu0
      %v3989 = vpop.f32.mrf.mxu0
      %v3990 = vadd.f32 0.0, %v3989
      %v3991 = vpop.f32.mrf.mxu0
      %3992 = vmatprep.mubr.bf16.mxu0 0
      %3993 = vmatmul.mubr.bf16.gmra.mxu0 %v2947
      %v3994 = vpop.f32.mrf.mxu0
      %v3995 = vadd.f32 0.0, %v3994
      %v3996 = vpop.f32.mrf.mxu0
      %v3997 = vpop.f32.mrf.mxu0
      %v3998 = vadd.f32 0.0, %v3997
      %v3999 = vpop.f32.mrf.mxu0
      %4000 = vmatprep.mubr.bf16.mxu0 0
      %4001 = vmatmul.mubr.bf16.gmra.mxu0 %v2950
      %v4002 = vpop.f32.mrf.mxu0
      %v4003 = vadd.f32 0.0, %v4002
      %v4004 = vpop.f32.mrf.mxu0
      %v4005 = vpop.f32.mrf.mxu0
      %v4006 = vadd.f32 0.0, %v4005
      %v4007 = vpop.f32.mrf.mxu0
      %4008 = vmatprep.mubr.bf16.mxu0 0
      %4009 = vmatmul.mubr.bf16.gmra.mxu0 %v2953
      %v4010 = vpop.f32.mrf.mxu0
      %v4011 = vadd.f32 0.0, %v4010
      %v4012 = vpop.f32.mrf.mxu0
      %v4013 = vpop.f32.mrf.mxu0
      %v4014 = vadd.f32 0.0, %v4013
      %v4015 = vpop.f32.mrf.mxu0
      %4016 = vmatprep.mubr.bf16.mxu0 0
      %4017 = vmatmul.mubr.bf16.gmra.mxu0 %v2956
      %v4018 = vpop.f32.mrf.mxu0
      %v4019 = vadd.f32 0.0, %v4018
      %v4020 = vpop.f32.mrf.mxu0
      %v4021 = vpop.f32.mrf.mxu0
      %v4022 = vadd.f32 0.0, %v4021
      %v4023 = vpop.f32.mrf.mxu0
      %4024 = vmatprep.mubr.bf16.mxu0 0
      %4025 = vmatmul.mubr.bf16.gmra.mxu0 %v2959
      %v4026 = vpop.f32.mrf.mxu0
      %v4027 = vadd.f32 0.0, %v4026
      %v4028 = vpop.f32.mrf.mxu0
      %v4029 = vpop.f32.mrf.mxu0
      %v4030 = vadd.f32 0.0, %v4029
      %v4031 = vpop.f32.mrf.mxu0
      %4032 = vmatprep.mubr.bf16.mxu0 0
      %4033 = vmatmul.mubr.bf16.gmra.mxu0 %v2962
      %v4034 = vpop.f32.mrf.mxu0
      %v4035 = vadd.f32 0.0, %v4034
      %v4036 = vpop.f32.mrf.mxu0
      %v4037 = vpop.f32.mrf.mxu0
      %v4038 = vadd.f32 0.0, %v4037
      %v4039 = vpop.f32.mrf.mxu0
      %4040 = vmatprep.mubr.bf16.mxu0 0
      %4041 = vmatmul.mubr.bf16.gmra.mxu0 %v2965
      %v4042 = vpop.f32.mrf.mxu0
      %v4043 = vadd.f32 0.0, %v4042
      %v4044 = vpop.f32.mrf.mxu0
      %v4045 = vpop.f32.mrf.mxu0
      %v4046 = vadd.f32 0.0, %v4045
      %v4047 = vpop.f32.mrf.mxu0
      %4048 = vmatprep.mubr.bf16.mxu0 0
      %4049 = vmatmul.mubr.bf16.gmra.mxu0 %v2968
      %v4050 = vpop.f32.mrf.mxu0
      %v4051 = vadd.f32 0.0, %v4050
      %v4052 = vpop.f32.mrf.mxu0
      %v4053 = vpop.f32.mrf.mxu0
      %v4054 = vadd.f32 0.0, %v4053
      %v4055 = vpop.f32.mrf.mxu0
      %4056 = vmatprep.mubr.bf16.mxu0 0
      %4057 = vmatmul.mubr.bf16.gmra.mxu0 %v2971
      %v4058 = vpop.f32.mrf.mxu0
      %v4059 = vadd.f32 0.0, %v4058
      %v4060 = vpop.f32.mrf.mxu0
      %v4061 = vpop.f32.mrf.mxu0
      %v4062 = vadd.f32 0.0, %v4061
      %v4063 = vpop.f32.mrf.mxu0
      %4064 = vmatprep.mubr.bf16.mxu0 0
      %4065 = vmatmul.mubr.bf16.gmra.mxu0 %v2974
      %v4066 = vpop.f32.mrf.mxu0
      %v4067 = vadd.f32 0.0, %v4066
      %v4068 = vpop.f32.mrf.mxu0
      %v4069 = vpop.f32.mrf.mxu0
      %v4070 = vadd.f32 0.0, %v4069
      %v4071 = vpop.f32.mrf.mxu0
      %4072 = vmatprep.mubr.bf16.mxu0 0
      %4073 = vmatmul.mubr.bf16.gmra.mxu0 %v2977
      %v4074 = vpop.f32.mrf.mxu0
      %v4075 = vadd.f32 0.0, %v4074
      %v4076 = vpop.f32.mrf.mxu0
      %v4077 = vpop.f32.mrf.mxu0
      %v4078 = vadd.f32 0.0, %v4077
      %v4079 = vpop.f32.mrf.mxu0
      %4080 = vmatprep.mubr.bf16.mxu0 0
      %4081 = vmatmul.mubr.bf16.gmra.mxu0 %v2980
      %v4082 = vpop.f32.mrf.mxu0
      %v4083 = vadd.f32 0.0, %v4082
      %v4084 = vpop.f32.mrf.mxu0
      %v4085 = vpop.f32.mrf.mxu0
      %v4086 = vadd.f32 0.0, %v4085
      %v4087 = vpop.f32.mrf.mxu0
      %4088 = vmatprep.mubr.bf16.mxu0 0
      %4089 = vmatmul.mubr.bf16.gmra.mxu0 %v2983
      %v4090 = vpop.f32.mrf.mxu0
      %v4091 = vadd.f32 0.0, %v4090
      %v4092 = vpop.f32.mrf.mxu0
      %v4093 = vpop.f32.mrf.mxu0
      %v4094 = vadd.f32 0.0, %v4093
      %v4095 = vpop.f32.mrf.mxu0
      %4096 = vmatprep.mubr.bf16.mxu0 0
      %4097 = vmatmul.mubr.bf16.gmra.mxu0 %v2986
      %v4098 = vpop.f32.mrf.mxu0
      %v4099 = vadd.f32 0.0, %v4098
      %v4100 = vpop.f32.mrf.mxu0
      %v4101 = vpop.f32.mrf.mxu0
      %v4102 = vadd.f32 0.0, %v4101
      %v4103 = vpop.f32.mrf.mxu0
      %4104 = vmatprep.mubr.bf16.mxu0 0
      %4105 = vmatmul.mubr.bf16.gmra.mxu0 %v2989
      %v4106 = vpop.f32.mrf.mxu0
      %v4107 = vadd.f32 0.0, %v4106
      %v4108 = vpop.f32.mrf.mxu0
      %v4109 = vpop.f32.mrf.mxu0
      %v4110 = vadd.f32 0.0, %v4109
      %v4111 = vpop.f32.mrf.mxu0
      %4112 = vmatprep.mubr.bf16.mxu0 0
      %4113 = vmatmul.mubr.bf16.gmra.mxu0 %v2992
      %v4114 = vpop.f32.mrf.mxu0
      %v4115 = vadd.f32 0.0, %v4114
      %v4116 = vpop.f32.mrf.mxu0
      %v4117 = vpop.f32.mrf.mxu0
      %v4118 = vadd.f32 0.0, %v4117
      %v4119 = vpop.f32.mrf.mxu0
      %4120 = vmatprep.mubr.bf16.mxu0 0
      %4121 = vmatmul.mubr.bf16.gmra.mxu0 %v2995
      %v4122 = vpop.f32.mrf.mxu0
      %v4123 = vadd.f32 0.0, %v4122
      %v4124 = vpop.f32.mrf.mxu0
      %v4125 = vpop.f32.mrf.mxu0
      %v4126 = vadd.f32 0.0, %v4125
      %v4127 = vpop.f32.mrf.mxu0
      %4128 = vmatprep.mubr.bf16.mxu0 0
      %4129 = vmatmul.mubr.bf16.gmra.mxu0 %v2998
      %v4130 = vpop.f32.mrf.mxu0
      %v4131 = vadd.f32 0.0, %v4130
      %v4132 = vpop.f32.mrf.mxu0
      %v4133 = vpop.f32.mrf.mxu0
      %v4134 = vadd.f32 0.0, %v4133
      %v4135 = vpop.f32.mrf.mxu0
      %4136 = vmatprep.mubr.bf16.mxu0 0
      %4137 = vmatmul.mubr.bf16.gmra.mxu0 %v3001
      %v4138 = vpop.f32.mrf.mxu0
      %v4139 = vadd.f32 0.0, %v4138
      %v4140 = vpop.f32.mrf.mxu0
      %v4141 = vpop.f32.mrf.mxu0
      %v4142 = vadd.f32 0.0, %v4141
      %v4143 = vpop.f32.mrf.mxu0
      %4144 = vmatprep.mubr.bf16.mxu0 0
      %4145 = vmatmul.mubr.bf16.gmra.mxu0 %v3004
      %v4146 = vpop.f32.mrf.mxu0
      %v4147 = vadd.f32 0.0, %v4146
      %v4148 = vpop.f32.mrf.mxu0
      %v4149 = vpop.f32.mrf.mxu0
      %v4150 = vadd.f32 0.0, %v4149
      %v4151 = vpop.f32.mrf.mxu0
      %4152 = vmatprep.mubr.bf16.mxu0 0
      %4153 = vmatmul.mubr.bf16.gmra.mxu0 %v3007
      %v4154 = vpop.f32.mrf.mxu0
      %v4155 = vadd.f32 0.0, %v4154
      %v4156 = vpop.f32.mrf.mxu0
      %v4157 = vpop.f32.mrf.mxu0
      %v4158 = vadd.f32 0.0, %v4157
      %v4159 = vpop.f32.mrf.mxu0
      %4160 = vmatprep.mubr.bf16.mxu0 0
      %4161 = vmatmul.mubr.bf16.gmra.mxu0 %v3010
      %v4162 = vpop.f32.mrf.mxu0
      %v4163 = vadd.f32 0.0, %v4162
      %v4164 = vpop.f32.mrf.mxu0
      %v4165 = vpop.f32.mrf.mxu0
      %v4166 = vadd.f32 0.0, %v4165
      %v4167 = vpop.f32.mrf.mxu0
      %4168 = vmatprep.mubr.bf16.mxu0 0
      %4169 = vmatmul.mubr.bf16.gmra.mxu0 %v3013
      %v4170 = vpop.f32.mrf.mxu0
      %v4171 = vadd.f32 0.0, %v4170
      %v4172 = vpop.f32.mrf.mxu0
      %v4173 = vpop.f32.mrf.mxu0
      %v4174 = vadd.f32 0.0, %v4173
      %v4175 = vpop.f32.mrf.mxu0
      %4176 = vmatprep.mubr.bf16.mxu0 0
      %4177 = vmatmul.mubr.bf16.gmra.mxu0 %v3016
      %v4178 = vpop.f32.mrf.mxu0
      %v4179 = vadd.f32 0.0, %v4178
      %v4180 = vpop.f32.mrf.mxu0
      %v4181 = vpop.f32.mrf.mxu0
      %v4182 = vadd.f32 0.0, %v4181
      %v4183 = vpop.f32.mrf.mxu0
      %4184 = vmatprep.mubr.bf16.mxu0 0
      %4185 = vmatmul.mubr.bf16.gmra.mxu0 %v3019
      %v4186 = vpop.f32.mrf.mxu0
      %v4187 = vadd.f32 0.0, %v4186
      %v4188 = vpop.f32.mrf.mxu0
      %v4189 = vpop.f32.mrf.mxu0
      %v4190 = vadd.f32 0.0, %v4189
      %v4191 = vpop.f32.mrf.mxu0
      %4192 = vmatprep.mubr.bf16.mxu0 0
      %4193 = vmatmul.mubr.bf16.gmra.mxu0 %v3022
      %v4194 = vpop.f32.mrf.mxu0
      %v4195 = vadd.f32 0.0, %v4194
      %v4196 = vpop.f32.mrf.mxu0
      %v4197 = vpop.f32.mrf.mxu0
      %v4198 = vadd.f32 0.0, %v4197
      %v4199 = vpop.f32.mrf.mxu0
      %4200 = vmatprep.mubr.bf16.mxu0 0
      %4201 = vmatmul.mubr.bf16.gmra.mxu0 %v3025
      %v4202 = vpop.f32.mrf.mxu0
      %v4203 = vadd.f32 0.0, %v4202
      %v4204 = vpop.f32.mrf.mxu0
      %v4205 = vpop.f32.mrf.mxu0
      %v4206 = vadd.f32 0.0, %v4205
      %v4207 = vpop.f32.mrf.mxu0
      %4208 = vmatprep.mubr.bf16.mxu0 0
      %4209 = vmatmul.mubr.bf16.gmra.mxu0 %v3028
      %v4210 = vpop.f32.mrf.mxu0
      %v4211 = vadd.f32 0.0, %v4210
      %v4212 = vpop.f32.mrf.mxu0
      %v4213 = vpop.f32.mrf.mxu0
      %v4214 = vadd.f32 0.0, %v4213
      %v4215 = vpop.f32.mrf.mxu0
      %4216 = vmatprep.mubr.bf16.mxu0 0
      %4217 = vmatmul.mubr.bf16.gmra.mxu0 %v3031
      %v4218 = vpop.f32.mrf.mxu0
      %v4219 = vadd.f32 0.0, %v4218
      %v4220 = vpop.f32.mrf.mxu0
      %v4221 = vpop.f32.mrf.mxu0
      %v4222 = vadd.f32 0.0, %v4221
      %v4223 = vpop.f32.mrf.mxu0
      %4224 = vmatprep.mubr.bf16.mxu0 0
      %4225 = vmatmul.mubr.bf16.gmra.mxu0 %v3034
      %v4226 = vpop.f32.mrf.mxu0
      %v4227 = vadd.f32 0.0, %v4226
      %v4228 = vpop.f32.mrf.mxu0
      %v4229 = vpop.f32.mrf.mxu0
      %v4230 = vadd.f32 0.0, %v4229
      %v4231 = vpop.f32.mrf.mxu0
      %4232 = vmatprep.mubr.bf16.mxu0 0
      %4233 = vmatmul.mubr.bf16.gmra.mxu0 %v3037
      %v4234 = vpop.f32.mrf.mxu0
      %v4235 = vadd.f32 0.0, %v4234
      %v4236 = vpop.f32.mrf.mxu0
      %v4237 = vpop.f32.mrf.mxu0
      %v4238 = vadd.f32 0.0, %v4237
      %v4239 = vpop.f32.mrf.mxu0
      %4240 = vmatprep.mubr.bf16.mxu0 0
      %4241 = vmatmul.mubr.bf16.gmra.mxu0 %v3040
      %v4242 = vpop.f32.mrf.mxu0
      %v4243 = vadd.f32 0.0, %v4242
      %v4244 = vpop.f32.mrf.mxu0
      %v4245 = vpop.f32.mrf.mxu0
      %v4246 = vadd.f32 0.0, %v4245
      %v4247 = vpop.f32.mrf.mxu0
      %4248 = vmatprep.mubr.bf16.mxu0 0
      %4249 = vmatmul.mubr.bf16.gmra.mxu0 %v3043
      %v4250 = vpop.f32.mrf.mxu0
      %v4251 = vadd.f32 0.0, %v4250
      %v4252 = vpop.f32.mrf.mxu0
      %v4253 = vpop.f32.mrf.mxu0
      %v4254 = vadd.f32 0.0, %v4253
      %v4255 = vpop.f32.mrf.mxu0
      %4256 = vmatprep.mubr.bf16.mxu0 0
      %4257 = vmatmul.mubr.bf16.gmra.mxu0 %v3046
      %v4258 = vpop.f32.mrf.mxu0
      %v4259 = vadd.f32 0.0, %v4258
      %v4260 = vpop.f32.mrf.mxu0
      %v4261 = vpop.f32.mrf.mxu0
      %v4262 = vadd.f32 0.0, %v4261
      %v4263 = vpop.f32.mrf.mxu0
      %4264 = vmatprep.mubr.bf16.mxu0 0
      %4265 = vmatmul.mubr.bf16.gmra.mxu0 %v3049
      %v4266 = vpop.f32.mrf.mxu0
      %v4267 = vadd.f32 0.0, %v4266
      %v4268 = vpop.f32.mrf.mxu0
      %v4269 = vpop.f32.mrf.mxu0
      %v4270 = vadd.f32 0.0, %v4269
      %v4271 = vpop.f32.mrf.mxu0
      %4272 = vmatprep.mubr.bf16.mxu0 0
      %4273 = vmatmul.mubr.bf16.gmra.mxu0 %v3052
      %v4274 = vpop.f32.mrf.mxu0
      %v4275 = vadd.f32 0.0, %v4274
      %v4276 = vpop.f32.mrf.mxu0
      %v4277 = vpop.f32.mrf.mxu0
      %v4278 = vadd.f32 0.0, %v4277
      %v4279 = vpop.f32.mrf.mxu0
      %4280 = vmatprep.mubr.bf16.mxu0 0
      %4281 = vmatmul.mubr.bf16.gmra.mxu0 %v3055
      %v4282 = vpop.f32.mrf.mxu0
      %v4283 = vadd.f32 0.0, %v4282
      %v4284 = vpop.f32.mrf.mxu0
      %v4285 = vpop.f32.mrf.mxu0
      %v4286 = vadd.f32 0.0, %v4285
      %v4287 = vpop.f32.mrf.mxu0
      %4288 = vmatprep.mubr.bf16.mxu0 0
      %4289 = vmatmul.mubr.bf16.gmra.mxu0 %v3058
      %v4290 = vpop.f32.mrf.mxu0
      %v4291 = vadd.f32 0.0, %v4290
      %v4292 = vpop.f32.mrf.mxu0
      %v4293 = vpop.f32.mrf.mxu0
      %v4294 = vadd.f32 0.0, %v4293
      %v4295 = vpop.f32.mrf.mxu0
      %4296 = vmatprep.mubr.bf16.mxu0 0
      %4297 = vmatmul.mubr.bf16.gmra.mxu0 %v3061
      %v4298 = vpop.f32.mrf.mxu0
      %v4299 = vadd.f32 0.0, %v4298
      %v4300 = vpop.f32.mrf.mxu0
      %v4301 = vpop.f32.mrf.mxu0
      %v4302 = vadd.f32 0.0, %v4301
      %v4303 = vpop.f32.mrf.mxu0
      %4304 = vmatprep.mubr.bf16.mxu0 0
      %4305 = vmatmul.mubr.bf16.gmra.mxu0 %v3064
      %v4306 = vpop.f32.mrf.mxu0
      %v4307 = vadd.f32 0.0, %v4306
      %v4308 = vpop.f32.mrf.mxu0
      %v4309 = vpop.f32.mrf.mxu0
      %v4310 = vadd.f32 0.0, %v4309
      %v4311 = vpop.f32.mrf.mxu0
      %4312 = vmatprep.mubr.bf16.mxu0 0
      %4313 = vmatmul.mubr.bf16.gmra.mxu0 %v3067
      %v4314 = vpop.f32.mrf.mxu0
      %v4315 = vadd.f32 0.0, %v4314
      %v4316 = vpop.f32.mrf.mxu0
      %v4317 = vpop.f32.mrf.mxu0
      %v4318 = vadd.f32 0.0, %v4317
      %v4319 = vpop.f32.mrf.mxu0
      %4320 = vmatprep.mubr.bf16.mxu0 0
      %4321 = vmatmul.mubr.bf16.gmra.mxu0 %v3070
      %v4322 = vpop.f32.mrf.mxu0
      %v4323 = vadd.f32 0.0, %v4322
      %v4324 = vpop.f32.mrf.mxu0
      %v4325 = vpop.f32.mrf.mxu0
      %v4326 = vadd.f32 0.0, %v4325
      %v4327 = vpop.f32.mrf.mxu0
      %4328 = vmatprep.mubr.bf16.mxu0 0
      %4329 = vmatmul.mubr.bf16.gmra.mxu0 %v3073
      %v4330 = vpop.f32.mrf.mxu0
      %v4331 = vadd.f32 0.0, %v4330
      %v4332 = vpop.f32.mrf.mxu0
      %v4333 = vpop.f32.mrf.mxu0
      %v4334 = vadd.f32 0.0, %v4333
      %v4335 = vpop.f32.mrf.mxu0
      %4336 = vmatprep.mubr.bf16.mxu0 0
      %4337 = vmatmul.mubr.bf16.gmra.mxu0 %v3076
      %v4338 = vpop.f32.mrf.mxu0
      %v4339 = vadd.f32 0.0, %v4338
      %v4340 = vpop.f32.mrf.mxu0
      %v4341 = vpop.f32.mrf.mxu0
      %v4342 = vadd.f32 0.0, %v4341
      %v4343 = vpop.f32.mrf.mxu0
      %4344 = vmatprep.mubr.bf16.mxu0 0
      %4345 = vmatmul.mubr.bf16.gmra.mxu0 %v3079
      %v4346 = vpop.f32.mrf.mxu0
      %v4347 = vadd.f32 0.0, %v4346
      %v4348 = vpop.f32.mrf.mxu0
      %v4349 = vpop.f32.mrf.mxu0
      %v4350 = vadd.f32 0.0, %v4349
      %v4351 = vpop.f32.mrf.mxu0
      %4352 = vmatprep.mubr.bf16.mxu0 0
      %4353 = vmatmul.mubr.bf16.gmra.mxu0 %v3082
      %v4354 = vpop.f32.mrf.mxu0
      %v4355 = vadd.f32 0.0, %v4354
      %v4356 = vpop.f32.mrf.mxu0
      %v4357 = vpop.f32.mrf.mxu0
      %v4358 = vadd.f32 0.0, %v4357
      %v4359 = vpop.f32.mrf.mxu0
      %4360 = vmatprep.mubr.bf16.mxu0 0
      %4361 = vmatmul.mubr.bf16.gmra.mxu0 %v3085
      %v4362 = vpop.f32.mrf.mxu0
      %v4363 = vadd.f32 0.0, %v4362
      %v4364 = vpop.f32.mrf.mxu0
      %v4365 = vpop.f32.mrf.mxu0
      %v4366 = vadd.f32 0.0, %v4365
      %v4367 = vpop.f32.mrf.mxu0
      %4368 = vmatprep.mubr.bf16.mxu0 0
      %4369 = vmatmul.mubr.bf16.gmra.mxu0 %v3088
      %v4370 = vpop.f32.mrf.mxu0
      %v4371 = vadd.f32 0.0, %v4370
      %v4372 = vpop.f32.mrf.mxu0
      %v4373 = vpop.f32.mrf.mxu0
      %v4374 = vadd.f32 0.0, %v4373
      %v4375 = vpop.f32.mrf.mxu0
      %4376 = vmatprep.mubr.bf16.mxu0 0
      %4377 = vmatmul.mubr.bf16.gmra.mxu0 %v3091
      %v4378 = vpop.f32.mrf.mxu0
      %v4379 = vadd.f32 0.0, %v4378
      %v4380 = vpop.f32.mrf.mxu0
      %v4381 = vpop.f32.mrf.mxu0
      %v4382 = vadd.f32 0.0, %v4381
      %v4383 = vpop.f32.mrf.mxu0
      %4384 = vmatprep.mubr.bf16.mxu0 0
      %4385 = vmatmul.mubr.bf16.gmra.mxu0 %v3094
      %v4386 = vpop.f32.mrf.mxu0
      %v4387 = vadd.f32 0.0, %v4386
      %v4388 = vpop.f32.mrf.mxu0
      %v4389 = vpop.f32.mrf.mxu0
      %v4390 = vadd.f32 0.0, %v4389
      %v4391 = vpop.f32.mrf.mxu0
      %4392 = vmatprep.mubr.bf16.mxu0 0
      %4393 = vmatmul.mubr.bf16.gmra.mxu0 %v3097
      %v4394 = vpop.f32.mrf.mxu0
      %v4395 = vadd.f32 0.0, %v4394
      %v4396 = vpop.f32.mrf.mxu0
      %v4397 = vpop.f32.mrf.mxu0
      %v4398 = vadd.f32 0.0, %v4397
      %v4399 = vpop.f32.mrf.mxu0
      %4400 = vmatprep.mubr.bf16.mxu0 0
      %4401 = vmatmul.mubr.bf16.gmra.mxu0 %v3100
      %v4402 = vpop.f32.mrf.mxu0
      %v4403 = vadd.f32 0.0, %v4402
      %v4404 = vpop.f32.mrf.mxu0
      %v4405 = vpop.f32.mrf.mxu0
      %v4406 = vadd.f32 0.0, %v4405
      %v4407 = vpop.f32.mrf.mxu0
      %4408 = vmatprep.mubr.bf16.mxu0 0
      %4409 = vmatmul.mubr.bf16.gmra.mxu0 %v3103
      %v4410 = vpop.f32.mrf.mxu0
      %v4411 = vadd.f32 0.0, %v4410
      %v4412 = vpop.f32.mrf.mxu0
      %v4413 = vpop.f32.mrf.mxu0
      %v4414 = vadd.f32 0.0, %v4413
      %v4415 = vpop.f32.mrf.mxu0
      %4416 = vmatprep.mubr.bf16.mxu0 0
      %4417 = vmatmul.mubr.bf16.gmra.mxu0 %v3106
      %v4418 = vpop.f32.mrf.mxu0
      %v4419 = vadd.f32 0.0, %v4418
      %v4420 = vpop.f32.mrf.mxu0
      %v4421 = vpop.f32.mrf.mxu0
      %v4422 = vadd.f32 0.0, %v4421
      %v4423 = vpop.f32.mrf.mxu0
      %4424 = vmatprep.mubr.bf16.mxu0 0
      %4425 = vmatmul.mubr.bf16.gmra.mxu0 %v3109
      %v4426 = vpop.f32.mrf.mxu0
      %v4427 = vadd.f32 0.0, %v4426
      %v4428 = vpop.f32.mrf.mxu0
      %v4429 = vpop.f32.mrf.mxu0
      %v4430 = vadd.f32 0.0, %v4429
      %v4431 = vpop.f32.mrf.mxu0
      %4432 = vmatprep.mubr.bf16.mxu0 0
      %4433 = vmatmul.mubr.bf16.gmra.mxu0 %v3112
      %v4434 = vpop.f32.mrf.mxu0
      %v4435 = vadd.f32 0.0, %v4434
      %v4436 = vpop.f32.mrf.mxu0
      %v4437 = vpop.f32.mrf.mxu0
      %v4438 = vadd.f32 0.0, %v4437
      %v4439 = vpop.f32.mrf.mxu0
      %4440 = vmatprep.mubr.bf16.mxu0 0
      %4441 = vmatmul.mubr.bf16.gmra.mxu0 %v3115
      %v4442 = vpop.f32.mrf.mxu0
      %v4443 = vadd.f32 0.0, %v4442
      %v4444 = vpop.f32.mrf.mxu0
      %v4445 = vpop.f32.mrf.mxu0
      %v4446 = vadd.f32 0.0, %v4445
      %v4447 = vpop.f32.mrf.mxu0
      %4448 = vmatprep.mubr.bf16.mxu0 0
      %4449 = vmatmul.mubr.bf16.gmra.mxu0 %v3118
      %v4450 = vpop.f32.mrf.mxu0
      %v4451 = vadd.f32 0.0, %v4450
      %v4452 = vpop.f32.mrf.mxu0
      %v4453 = vpop.f32.mrf.mxu0
      %v4454 = vadd.f32 0.0, %v4453
      %v4455 = vpop.f32.mrf.mxu0
      %4456 = vmatprep.mubr.bf16.mxu0 0
      %4457 = vmatmul.mubr.bf16.gmra.mxu0 %v3121
      %v4458 = vpop.f32.mrf.mxu0
      %v4459 = vadd.f32 0.0, %v4458
      %v4460 = vpop.f32.mrf.mxu0
      %v4461 = vpop.f32.mrf.mxu0
      %v4462 = vadd.f32 0.0, %v4461
      %v4463 = vpop.f32.mrf.mxu0
      %4464 = vmatprep.mubr.bf16.mxu0 0
      %4465 = vmatmul.mubr.bf16.gmra.mxu0 %v3124
      %v4466 = vpop.f32.mrf.mxu0
      %v4467 = vadd.f32 0.0, %v4466
      %v4468 = vpop.f32.mrf.mxu0
      %v4469 = vpop.f32.mrf.mxu0
      %v4470 = vadd.f32 0.0, %v4469
      %v4471 = vpop.f32.mrf.mxu0
      %4472 = vmatprep.mubr.bf16.mxu0 0
      %4473 = vmatmul.mubr.bf16.gmra.mxu0 %v3127
      %v4474 = vpop.f32.mrf.mxu0
      %v4475 = vadd.f32 0.0, %v4474
      %v4476 = vpop.f32.mrf.mxu0
      %v4477 = vpop.f32.mrf.mxu0
      %v4478 = vadd.f32 0.0, %v4477
      %v4479 = vpop.f32.mrf.mxu0
      %4480 = vmatprep.mubr.bf16.mxu0 0
      %4481 = vmatmul.mubr.bf16.gmra.mxu0 %v3130
      %v4482 = vpop.f32.mrf.mxu0
      %v4483 = vadd.f32 0.0, %v4482
      %v4484 = vpop.f32.mrf.mxu0
      %v4485 = vpop.f32.mrf.mxu0
      %v4486 = vadd.f32 0.0, %v4485
      %v4487 = vpop.f32.mrf.mxu0
      %4488 = vmatprep.mubr.bf16.mxu0 0
      %4489 = vmatmul.mubr.bf16.gmra.mxu0 %v3133
      %v4490 = vpop.f32.mrf.mxu0
      %v4491 = vadd.f32 0.0, %v4490
      %v4492 = vpop.f32.mrf.mxu0
      %v4493 = vpop.f32.mrf.mxu0
      %v4494 = vadd.f32 0.0, %v4493
      %v4495 = vpop.f32.mrf.mxu0
      %4496 = vmatprep.mubr.bf16.mxu0 0
      %4497 = vmatmul.mubr.bf16.gmra.mxu0 %v3136
      %v4498 = vpop.f32.mrf.mxu0
      %v4499 = vadd.f32 0.0, %v4498
      %v4500 = vpop.f32.mrf.mxu0
      %v4501 = vpop.f32.mrf.mxu0
      %v4502 = vadd.f32 0.0, %v4501
      %v4503 = vpop.f32.mrf.mxu0
      %4504 = vmatprep.mubr.bf16.mxu0 0
      %4505 = vmatmul.mubr.bf16.gmra.mxu0 %v3139
      %v4506 = vpop.f32.mrf.mxu0
      %v4507 = vadd.f32 0.0, %v4506
      %v4508 = vpop.f32.mrf.mxu0
      %v4509 = vpop.f32.mrf.mxu0
      %v4510 = vadd.f32 0.0, %v4509
      %v4511 = vpop.f32.mrf.mxu0
      %4512 = vmatprep.mubr.bf16.mxu0 0
      %4513 = vmatmul.mubr.bf16.gmra.mxu0 %v3142
      %v4514 = vpop.f32.mrf.mxu0
      %v4515 = vadd.f32 0.0, %v4514
      %v4516 = vpop.f32.mrf.mxu0
      %v4517 = vpop.f32.mrf.mxu0
      %v4518 = vadd.f32 0.0, %v4517
      %v4519 = vpop.f32.mrf.mxu0
      %4520 = vmatprep.mubr.bf16.mxu0 0
      %4521 = vmatmul.mubr.bf16.gmra.mxu0 %v3145
      %v4522 = vpop.f32.mrf.mxu0
      %v4523 = vadd.f32 0.0, %v4522
      %v4524 = vpop.f32.mrf.mxu0
      %v4525 = vpop.f32.mrf.mxu0
      %v4526 = vadd.f32 0.0, %v4525
      %v4527 = vpop.f32.mrf.mxu0
      %4528 = vmatprep.mubr.bf16.mxu0 0
      %4529 = vmatmul.mubr.bf16.gmra.mxu0 %v3148
      %v4530 = vpop.f32.mrf.mxu0
      %v4531 = vadd.f32 0.0, %v4530
      %v4532 = vpop.f32.mrf.mxu0
      %v4533 = vpop.f32.mrf.mxu0
      %v4534 = vadd.f32 0.0, %v4533
      %v4535 = vpop.f32.mrf.mxu0
      %4536 = vmatprep.mubr.bf16.mxu0 0
      %4537 = vmatmul.mubr.bf16.gmra.mxu0 %v3151
      %v4538 = vpop.f32.mrf.mxu0
      %v4539 = vadd.f32 0.0, %v4538
      %v4540 = vpop.f32.mrf.mxu0
      %v4541 = vpop.f32.mrf.mxu0
      %v4542 = vadd.f32 0.0, %v4541
      %v4543 = vpop.f32.mrf.mxu0
      %4544 = vmatprep.mubr.bf16.mxu0 0
      %4545 = vmatmul.mubr.bf16.gmra.mxu0 %v3154
      %v4546 = vpop.f32.mrf.mxu0
      %v4547 = vadd.f32 0.0, %v4546
      %v4548 = vpop.f32.mrf.mxu0
      %v4549 = vpop.f32.mrf.mxu0
      %v4550 = vadd.f32 0.0, %v4549
      %v4551 = vpop.f32.mrf.mxu0
      %4552 = vmatprep.mubr.bf16.mxu0 0
      %4553 = vmatmul.mubr.bf16.gmra.mxu0 %v3157
      %v4554 = vpop.f32.mrf.mxu0
      %v4555 = vadd.f32 0.0, %v4554
      %v4556 = vpop.f32.mrf.mxu0
      %v4557 = vpop.f32.mrf.mxu0
      %v4558 = vadd.f32 0.0, %v4557
      %v4559 = vpop.f32.mrf.mxu0
      %4560 = vmatprep.mubr.bf16.mxu0 0
      %4561 = vmatmul.mubr.bf16.gmra.mxu0 %v3160
      %v4562 = vpop.f32.mrf.mxu0
      %v4563 = vadd.f32 0.0, %v4562
      %v4564 = vpop.f32.mrf.mxu0
      %v4565 = vpop.f32.mrf.mxu0
      %v4566 = vadd.f32 0.0, %v4565
      %v4567 = vpop.f32.mrf.mxu0
      %4568 = vmatprep.mubr.bf16.mxu0 0
      %4569 = vmatmul.mubr.bf16.gmra.mxu0 %v3163
      %v4570 = vpop.f32.mrf.mxu0
      %v4571 = vadd.f32 0.0, %v4570
      %v4572 = vpop.f32.mrf.mxu0
      %v4573 = vpop.f32.mrf.mxu0
      %v4574 = vadd.f32 0.0, %v4573
      %v4575 = vpop.f32.mrf.mxu0
      %4576 = vmatprep.mubr.bf16.mxu0 0
      %4577 = vmatmul.mubr.bf16.gmra.mxu0 %v3166
      %v4578 = vpop.f32.mrf.mxu0
      %v4579 = vadd.f32 0.0, %v4578
      %v4580 = vpop.f32.mrf.mxu0
      %v4581 = vpop.f32.mrf.mxu0
      %v4582 = vadd.f32 0.0, %v4581
      %v4583 = vpop.f32.mrf.mxu0
      %4584 = vmatprep.mubr.bf16.mxu0 0
      %4585 = vmatmul.mubr.bf16.gmra.mxu0 %v3169
      %v4586 = vpop.f32.mrf.mxu0
      %v4587 = vadd.f32 0.0, %v4586
      %v4588 = vpop.f32.mrf.mxu0
      %v4589 = vpop.f32.mrf.mxu0
      %v4590 = vadd.f32 0.0, %v4589
      %v4591 = vpop.f32.mrf.mxu0
      %4592 = vmatprep.mubr.bf16.mxu0 0
      %4593 = vmatmul.mubr.bf16.gmra.mxu0 %v3172
      %v4594 = vpop.f32.mrf.mxu0
      %v4595 = vadd.f32 0.0, %v4594
      %v4596 = vpop.f32.mrf.mxu0
      %v4597 = vpop.f32.mrf.mxu0
      %v4598 = vadd.f32 0.0, %v4597
      %v4599 = vpop.f32.mrf.mxu0
      %4600 = vmatprep.mubr.bf16.mxu0 0
      %4601 = vmatmul.mubr.bf16.gmra.mxu0 %v3175
      %v4602 = vpop.f32.mrf.mxu0
      %v4603 = vadd.f32 0.0, %v4602
      %v4604 = vpop.f32.mrf.mxu0
      %v4605 = vpop.f32.mrf.mxu0
      %v4606 = vadd.f32 0.0, %v4605
      %v4607 = vpop.f32.mrf.mxu0
      %4608 = vmatprep.mubr.bf16.mxu0 0
      %4609 = vmatmul.mubr.bf16.gmra.mxu0 %v3178
      %v4610 = vpop.f32.mrf.mxu0
      %v4611 = vadd.f32 0.0, %v4610
      %v4612 = vpop.f32.mrf.mxu0
      %v4613 = vpop.f32.mrf.mxu0
      %v4614 = vadd.f32 0.0, %v4613
      %v4615 = vpop.f32.mrf.mxu0
      %4616 = vmatprep.mubr.bf16.mxu0 0
      %4617 = vmatmul.mubr.bf16.gmra.mxu0 %v3181
      %v4618 = vpop.f32.mrf.mxu0
      %v4619 = vadd.f32 0.0, %v4618
      %v4620 = vpop.f32.mrf.mxu0
      %v4621 = vpop.f32.mrf.mxu0
      %v4622 = vadd.f32 0.0, %v4621
      %v4623 = vpop.f32.mrf.mxu0
      %4624 = vmatprep.mubr.bf16.mxu0 0
      %4625 = vmatmul.mubr.bf16.gmra.mxu0 %v3184
      %v4626 = vpop.f32.mrf.mxu0
      %v4627 = vadd.f32 0.0, %v4626
      %v4628 = vpop.f32.mrf.mxu0
      %v4629 = vpop.f32.mrf.mxu0
      %v4630 = vadd.f32 0.0, %v4629
      %v4631 = vpop.f32.mrf.mxu0
      %4632 = vmatprep.mubr.bf16.mxu0 0
      %4633 = vmatmul.mubr.bf16.gmra.mxu0 %v3187
      %v4634 = vpop.f32.mrf.mxu0
      %v4635 = vadd.f32 0.0, %v4634
      %v4636 = vpop.f32.mrf.mxu0
      %v4637 = vpop.f32.mrf.mxu0
      %v4638 = vadd.f32 0.0, %v4637
      %v4639 = vpop.f32.mrf.mxu0
      %4640 = vmatprep.mubr.bf16.mxu0 0
      %4641 = vmatmul.mubr.bf16.gmra.mxu0 %v3190
      %v4642 = vpop.f32.mrf.mxu0
      %v4643 = vadd.f32 0.0, %v4642
      %v4644 = vpop.f32.mrf.mxu0
      %v4645 = vpop.f32.mrf.mxu0
      %v4646 = vadd.f32 0.0, %v4645
      %v4647 = vpop.f32.mrf.mxu0
      %4648 = vmatprep.mubr.bf16.mxu0 0
      %4649 = vmatmul.mubr.bf16.gmra.mxu0 %v3193
      %v4650 = vpop.f32.mrf.mxu0
      %v4651 = vadd.f32 0.0, %v4650
      %v4652 = vpop.f32.mrf.mxu0
      %v4653 = vpop.f32.mrf.mxu0
      %v4654 = vadd.f32 0.0, %v4653
      %v4655 = vpop.f32.mrf.mxu0
      %4656 = vmatprep.mubr.bf16.mxu0 0
      %4657 = vmatmul.mubr.bf16.gmra.mxu0 %v3196
      %v4658 = vpop.f32.mrf.mxu0
      %v4659 = vadd.f32 0.0, %v4658
      %v4660 = vpop.f32.mrf.mxu0
      %v4661 = vpop.f32.mrf.mxu0
      %v4662 = vadd.f32 0.0, %v4661
      %v4663 = vpop.f32.mrf.mxu0
      %4664 = vmatprep.mubr.bf16.mxu0 0
      %4665 = vmatmul.mubr.bf16.gmra.mxu0 %v3199
      %v4666 = vpop.f32.mrf.mxu0
      %v4667 = vadd.f32 0.0, %v4666
      %v4668 = vpop.f32.mrf.mxu0
      %v4669 = vpop.f32.mrf.mxu0
      %v4670 = vadd.f32 0.0, %v4669
      %v4671 = vpop.f32.mrf.mxu0
      %4672 = vmatprep.mubr.bf16.mxu0 0
      %4673 = vmatmul.mubr.bf16.gmra.mxu0 %v3202
      %v4674 = vpop.f32.mrf.mxu0
      %v4675 = vadd.f32 0.0, %v4674
      %v4676 = vpop.f32.mrf.mxu0
      %v4677 = vpop.f32.mrf.mxu0
      %v4678 = vadd.f32 0.0, %v4677
      %v4679 = vpop.f32.mrf.mxu0
      %4680 = vmatprep.mubr.bf16.mxu0 0
      %4681 = vmatmul.mubr.bf16.gmra.mxu0 %v3205
      %v4682 = vpop.f32.mrf.mxu0
      %v4683 = vadd.f32 0.0, %v4682
      %v4684 = vpop.f32.mrf.mxu0
      %v4685 = vpop.f32.mrf.mxu0
      %v4686 = vadd.f32 0.0, %v4685
      %v4687 = vpop.f32.mrf.mxu0
      %4688 = vmatprep.mubr.bf16.mxu0 0
      %4689 = vmatmul.mubr.bf16.gmra.mxu0 %v3208
      %v4690 = vpop.f32.mrf.mxu0
      %v4691 = vadd.f32 0.0, %v4690
      %v4692 = vpop.f32.mrf.mxu0
      %v4693 = vpop.f32.mrf.mxu0
      %v4694 = vadd.f32 0.0, %v4693
      %v4695 = vpop.f32.mrf.mxu0
      %4696 = vmatprep.mubr.bf16.mxu0 0
      %4697 = vmatmul.mubr.bf16.gmra.mxu0 %v3211
      %v4698 = vpop.f32.mrf.mxu0
      %v4699 = vadd.f32 0.0, %v4698
      %v4700 = vpop.f32.mrf.mxu0
      %v4701 = vpop.f32.mrf.mxu0
      %v4702 = vadd.f32 0.0, %v4701
      %v4703 = vpop.f32.mrf.mxu0
      %4704 = vmatprep.mubr.bf16.mxu0 0
      %4705 = vmatmul.mubr.bf16.gmra.mxu0 %v3214
      %v4706 = vpop.f32.mrf.mxu0
      %v4707 = vadd.f32 0.0, %v4706
      %v4708 = vpop.f32.mrf.mxu0
      %v4709 = vpop.f32.mrf.mxu0
      %v4710 = vadd.f32 0.0, %v4709
      %v4711 = vpop.f32.mrf.mxu0
      %4712 = vmatprep.mubr.bf16.mxu0 0
      %4713 = vmatmul.mubr.bf16.gmra.mxu0 %v3217
      %v4714 = vpop.f32.mrf.mxu0
      %v4715 = vadd.f32 0.0, %v4714
      %v4716 = vpop.f32.mrf.mxu0
      %v4717 = vpop.f32.mrf.mxu0
      %v4718 = vadd.f32 0.0, %v4717
      %v4719 = vpop.f32.mrf.mxu0
      %4720 = vmatprep.mubr.bf16.mxu0 0
      %4721 = vmatmul.mubr.bf16.gmra.mxu0 %v3220
      %v4722 = vpop.f32.mrf.mxu0
      %v4723 = vadd.f32 0.0, %v4722
      %v4724 = vpop.f32.mrf.mxu0
      %v4725 = vpop.f32.mrf.mxu0
      %v4726 = vadd.f32 0.0, %v4725
      %v4727 = vpop.f32.mrf.mxu0
      %4728 = vmatprep.mubr.bf16.mxu0 0
      %4729 = vmatmul.mubr.bf16.gmra.mxu0 %v3223
      %v4730 = vpop.f32.mrf.mxu0
      %v4731 = vadd.f32 0.0, %v4730
      %v4732 = vpop.f32.mrf.mxu0
      %v4733 = vpop.f32.mrf.mxu0
      %v4734 = vadd.f32 0.0, %v4733
      %v4735 = vpop.f32.mrf.mxu0
      %4736 = vmatprep.mubr.bf16.mxu0 0
      %4737 = vmatmul.mubr.bf16.gmra.mxu0 %v3226
      %v4738 = vpop.f32.mrf.mxu0
      %v4739 = vadd.f32 0.0, %v4738
      %v4740 = vpop.f32.mrf.mxu0
      %v4741 = vpop.f32.mrf.mxu0
      %v4742 = vadd.f32 0.0, %v4741
      %v4743 = vpop.f32.mrf.mxu0
      %4744 = vmatprep.mubr.bf16.mxu0 0
      %4745 = vmatmul.mubr.bf16.gmra.mxu0 %v3229
      %v4746 = vpop.f32.mrf.mxu0
      %v4747 = vadd.f32 0.0, %v4746
      %v4748 = vpop.f32.mrf.mxu0
      %v4749 = vpop.f32.mrf.mxu0
      %v4750 = vadd.f32 0.0, %v4749
      %v4751 = vpop.f32.mrf.mxu0
      %4752 = vmatprep.mubr.bf16.mxu0 0
      %4753 = vmatmul.mubr.bf16.gmra.mxu0 %v3232
      %v4754 = vpop.f32.mrf.mxu0
      %v4755 = vadd.f32 0.0, %v4754
      %v4756 = vpop.f32.mrf.mxu0
      %v4757 = vpop.f32.mrf.mxu0
      %v4758 = vadd.f32 0.0, %v4757
      %v4759 = vpop.f32.mrf.mxu0
      %4760 = vmatprep.mubr.bf16.mxu0 0
      %4761 = vmatmul.mubr.bf16.gmra.mxu0 %v3235
      %v4762 = vpop.f32.mrf.mxu0
      %v4763 = vadd.f32 0.0, %v4762
      %v4764 = vpop.f32.mrf.mxu0
      %v4765 = vpop.f32.mrf.mxu0
      %v4766 = vadd.f32 0.0, %v4765
      %v4767 = vpop.f32.mrf.mxu0
      %4768 = vmatprep.mubr.bf16.mxu0 0
      %4769 = vmatmul.mubr.bf16.gmra.mxu0 %v3238
      %v4770 = vpop.f32.mrf.mxu0
      %v4771 = vadd.f32 0.0, %v4770
      %v4772 = vpop.f32.mrf.mxu0
      %v4773 = vpop.f32.mrf.mxu0
      %v4774 = vadd.f32 0.0, %v4773
      %v4775 = vpop.f32.mrf.mxu0
      %4776 = vmatprep.mubr.bf16.mxu0 0
      %4777 = vmatmul.mubr.bf16.gmra.mxu0 %v3241
      %v4778 = vpop.f32.mrf.mxu0
      %v4779 = vadd.f32 0.0, %v4778
      %v4780 = vpop.f32.mrf.mxu0
      %v4781 = vpop.f32.mrf.mxu0
      %v4782 = vadd.f32 0.0, %v4781
      %v4783 = vpop.f32.mrf.mxu0
      %4784 = vmatprep.mubr.bf16.mxu0 0
      %4785 = vmatmul.mubr.bf16.gmra.mxu0 %v3244
      %v4786 = vpop.f32.mrf.mxu0
      %v4787 = vadd.f32 0.0, %v4786
      %v4788 = vpop.f32.mrf.mxu0
      %v4789 = vpop.f32.mrf.mxu0
      %v4790 = vadd.f32 0.0, %v4789
      %v4791 = vpop.f32.mrf.mxu0
      %4792 = vmatprep.mubr.bf16.mxu0 0
      %4793 = vmatmul.mubr.bf16.gmra.mxu0 %v3247
      %v4794 = vpop.f32.mrf.mxu0
      %v4795 = vadd.f32 0.0, %v4794
      %v4796 = vpop.f32.mrf.mxu0
      %v4797 = vpop.f32.mrf.mxu0
      %v4798 = vadd.f32 0.0, %v4797
      %v4799 = vpop.f32.mrf.mxu0
      %4800 = vmatprep.mubr.bf16.mxu0 0
      %4801 = vmatmul.mubr.bf16.gmra.mxu0 %v3250
      %v4802 = vpop.f32.mrf.mxu0
      %v4803 = vadd.f32 0.0, %v4802
      %v4804 = vpop.f32.mrf.mxu0
      %v4805 = vpop.f32.mrf.mxu0
      %v4806 = vadd.f32 0.0, %v4805
      %v4807 = vpop.f32.mrf.mxu0
      %4808 = vmatprep.mubr.bf16.mxu0 0
      %4809 = vmatmul.mubr.bf16.gmra.mxu0 %v3253
      %v4810 = vpop.f32.mrf.mxu0
      %v4811 = vadd.f32 0.0, %v4810
      %v4812 = vpop.f32.mrf.mxu0
      %v4813 = vpop.f32.mrf.mxu0
      %v4814 = vadd.f32 0.0, %v4813
      %v4815 = vpop.f32.mrf.mxu0
      %4816 = vmatprep.mubr.bf16.mxu0 0
      %4817 = vmatmul.mubr.bf16.gmra.mxu0 %v3256
      %v4818 = vpop.f32.mrf.mxu0
      %v4819 = vadd.f32 0.0, %v4818
      %v4820 = vpop.f32.mrf.mxu0
      %v4821 = vpop.f32.mrf.mxu0
      %v4822 = vadd.f32 0.0, %v4821
      %v4823 = vpop.f32.mrf.mxu0
      %4824 = vmatprep.mubr.bf16.mxu0 0
      %4825 = vmatmul.mubr.bf16.gmra.mxu0 %v3259
      %v4826 = vpop.f32.mrf.mxu0
      %v4827 = vadd.f32 0.0, %v4826
      %v4828 = vpop.f32.mrf.mxu0
      %v4829 = vpop.f32.mrf.mxu0
      %v4830 = vadd.f32 0.0, %v4829
      %v4831 = vpop.f32.mrf.mxu0
      %4832 = vmatprep.mubr.bf16.mxu0 0
      %4833 = vmatmul.mubr.bf16.gmra.mxu0 %v3262
      %v4834 = vpop.f32.mrf.mxu0
      %v4835 = vadd.f32 0.0, %v4834
      %v4836 = vpop.f32.mrf.mxu0
      %v4837 = vpop.f32.mrf.mxu0
      %v4838 = vadd.f32 0.0, %v4837
      %v4839 = vpop.f32.mrf.mxu0
      %4840 = vmatprep.mubr.bf16.mxu0 0
      %4841 = vmatmul.mubr.bf16.gmra.mxu0 %v3265
      %v4842 = vpop.f32.mrf.mxu0
      %v4843 = vadd.f32 0.0, %v4842
      %v4844 = vpop.f32.mrf.mxu0
      %v4845 = vpop.f32.mrf.mxu0
      %v4846 = vadd.f32 0.0, %v4845
      %v4847 = vpop.f32.mrf.mxu0
      %4848 = vmatprep.mubr.bf16.mxu0 0
      %4849 = vmatmul.mubr.bf16.gmra.mxu0 %v3268
      %v4850 = vpop.f32.mrf.mxu0
      %v4851 = vadd.f32 0.0, %v4850
      %v4852 = vpop.f32.mrf.mxu0
      %v4853 = vpop.f32.mrf.mxu0
      %v4854 = vadd.f32 0.0, %v4853
      %v4855 = vpop.f32.mrf.mxu0
      %4856 = vmatprep.mubr.bf16.mxu0 0
      %4857 = vmatmul.mubr.bf16.gmra.mxu0 %v3271
      %v4858 = vpop.f32.mrf.mxu0
      %v4859 = vadd.f32 0.0, %v4858
      %v4860 = vpop.f32.mrf.mxu0
      %v4861 = vpop.f32.mrf.mxu0
      %v4862 = vadd.f32 0.0, %v4861
      %v4863 = vpop.f32.mrf.mxu0
      %4864 = vmatprep.mubr.bf16.mxu0 0
      %4865 = vmatmul.mubr.bf16.gmra.mxu0 %v3274
      %v4866 = vpop.f32.mrf.mxu0
      %v4867 = vadd.f32 0.0, %v4866
      %v4868 = vpop.f32.mrf.mxu0
      %v4869 = vpop.f32.mrf.mxu0
      %v4870 = vadd.f32 0.0, %v4869
      %v4871 = vpop.f32.mrf.mxu0
      %4872 = vmatprep.mubr.bf16.mxu0 0
      %4873 = vmatmul.mubr.bf16.gmra.mxu0 %v3277
      %v4874 = vpop.f32.mrf.mxu0
      %v4875 = vadd.f32 0.0, %v4874
      %v4876 = vpop.f32.mrf.mxu0
      %v4877 = vpop.f32.mrf.mxu0
      %v4878 = vadd.f32 0.0, %v4877
      %v4879 = vpop.f32.mrf.mxu0
      %4880 = vmatprep.mubr.bf16.mxu0 0
      %4881 = vmatmul.mubr.bf16.gmra.mxu0 %v3280
      %v4882 = vpop.f32.mrf.mxu0
      %v4883 = vadd.f32 0.0, %v4882
      %v4884 = vpop.f32.mrf.mxu0
      %v4885 = vpop.f32.mrf.mxu0
      %v4886 = vadd.f32 0.0, %v4885
      %v4887 = vpop.f32.mrf.mxu0
      %4888 = vmatprep.mubr.bf16.mxu0 0
      %4889 = vmatmul.mubr.bf16.gmra.mxu0 %v3283
      %v4890 = vpop.f32.mrf.mxu0
      %v4891 = vadd.f32 0.0, %v4890
      %v4892 = vpop.f32.mrf.mxu0
      %v4893 = vpop.f32.mrf.mxu0
      %v4894 = vadd.f32 0.0, %v4893
      %v4895 = vpop.f32.mrf.mxu0
      %4896 = vmatprep.mubr.bf16.mxu0 0
      %4897 = vmatmul.mubr.bf16.gmra.mxu0 %v3286
      %v4898 = vpop.f32.mrf.mxu0
      %v4899 = vadd.f32 0.0, %v4898
      %v4900 = vpop.f32.mrf.mxu0
      %v4901 = vpop.f32.mrf.mxu0
      %v4902 = vadd.f32 0.0, %v4901
      %v4903 = vpop.f32.mrf.mxu0
      %4904 = vmatprep.mubr.bf16.mxu0 0
      %4905 = vmatmul.mubr.bf16.gmra.mxu0 %v3289
      %v4906 = vpop.f32.mrf.mxu0
      %v4907 = vadd.f32 0.0, %v4906
      %v4908 = vpop.f32.mrf.mxu0
      %v4909 = vpop.f32.mrf.mxu0
      %v4910 = vadd.f32 0.0, %v4909
      %v4911 = vpop.f32.mrf.mxu0
      %4912 = vmatprep.mubr.bf16.mxu0 0
      %4913 = vmatmul.mubr.bf16.gmra.mxu0 %v3292
      %v4914 = vpop.f32.mrf.mxu0
      %v4915 = vadd.f32 0.0, %v4914
      %v4916 = vpop.f32.mrf.mxu0
      %v4917 = vpop.f32.mrf.mxu0
      %v4918 = vadd.f32 0.0, %v4917
      %v4919 = vpop.f32.mrf.mxu0
      %4920 = vmatprep.mubr.bf16.mxu0 0
      %4921 = vmatmul.mubr.bf16.gmra.mxu0 %v3295
      %v4922 = vpop.f32.mrf.mxu0
      %v4923 = vadd.f32 0.0, %v4922
      %v4924 = vpop.f32.mrf.mxu0
      %v4925 = vpop.f32.mrf.mxu0
      %v4926 = vadd.f32 0.0, %v4925
      %v4927 = vpop.f32.mrf.mxu0
      %4928 = vmatprep.mubr.bf16.mxu0 0
      %4929 = vmatmul.mubr.bf16.gmra.mxu0 %v3298
      %v4930 = vpop.f32.mrf.mxu0
      %v4931 = vadd.f32 0.0, %v4930
      %v4932 = vpop.f32.mrf.mxu0
      %v4933 = vpop.f32.mrf.mxu0
      %v4934 = vadd.f32 0.0, %v4933
      %v4935 = vpop.f32.mrf.mxu0
      %4936 = vmatprep.mubr.bf16.mxu0 0
      %4937 = vmatmul.mubr.bf16.gmra.mxu0 %v3301
      %v4938 = vpop.f32.mrf.mxu0
      %v4939 = vadd.f32 0.0, %v4938
      %v4940 = vpop.f32.mrf.mxu0
      %v4941 = vpop.f32.mrf.mxu0
      %v4942 = vadd.f32 0.0, %v4941
      %v4943 = vpop.f32.mrf.mxu0
      %4944 = vmatprep.mubr.bf16.mxu0 0
      %4945 = vmatmul.mubr.bf16.gmra.mxu0 %v3304
      %v4946 = vpop.f32.mrf.mxu0
      %v4947 = vadd.f32 0.0, %v4946
      %v4948 = vpop.f32.mrf.mxu0
      %v4949 = vpop.f32.mrf.mxu0
      %v4950 = vadd.f32 0.0, %v4949
      %v4951 = vpop.f32.mrf.mxu0
      %4952 = vmatprep.mubr.bf16.mxu0 0
      %4953 = vmatmul.mubr.bf16.gmra.mxu0 %v3307
      %v4954 = vpop.f32.mrf.mxu0
      %v4955 = vadd.f32 0.0, %v4954
      %v4956 = vpop.f32.mrf.mxu0
      %v4957 = vpop.f32.mrf.mxu0
      %v4958 = vadd.f32 0.0, %v4957
      %v4959 = vpop.f32.mrf.mxu0
      %4960 = vmatprep.mubr.bf16.mxu0 0
      %4961 = vmatmul.mubr.bf16.gmra.mxu0 %v3310
      %v4962 = vpop.f32.mrf.mxu0
      %v4963 = vadd.f32 0.0, %v4962
      %v4964 = vpop.f32.mrf.mxu0
      %v4965 = vpop.f32.mrf.mxu0
      %v4966 = vadd.f32 0.0, %v4965
      %v4967 = vpop.f32.mrf.mxu0
      %4968 = vmatprep.mubr.bf16.mxu0 0
      %4969 = vmatmul.mubr.bf16.gmra.mxu0 %v3313
      %v4970 = vpop.f32.mrf.mxu0
      %v4971 = vadd.f32 0.0, %v4970
      %v4972 = vpop.f32.mrf.mxu0
      %v4973 = vpop.f32.mrf.mxu0
      %v4974 = vadd.f32 0.0, %v4973
      %v4975 = vpop.f32.mrf.mxu0
      %4976 = vmatprep.mubr.bf16.mxu0 0
      %4977 = vmatmul.mubr.bf16.gmra.mxu0 %v3316
      %v4978 = vpop.f32.mrf.mxu0
      %v4979 = vadd.f32 0.0, %v4978
      %v4980 = vpop.f32.mrf.mxu0
      %v4981 = vpop.f32.mrf.mxu0
      %v4982 = vadd.f32 0.0, %v4981
      %v4983 = vpop.f32.mrf.mxu0
      %4984 = vmatprep.mubr.bf16.mxu0 0
      %4985 = vmatmul.mubr.bf16.gmra.mxu0 %v3319
      %v4986 = vpop.f32.mrf.mxu0
      %v4987 = vadd.f32 0.0, %v4986
      %v4988 = vpop.f32.mrf.mxu0
      %v4989 = vpop.f32.mrf.mxu0
      %v4990 = vadd.f32 0.0, %v4989
      %v4991 = vpop.f32.mrf.mxu0
      %4992 = vmatprep.mubr.bf16.mxu0 0
      %4993 = vmatmul.mubr.bf16.gmra.mxu0 %v3322
      %v4994 = vpop.f32.mrf.mxu0
      %v4995 = vadd.f32 0.0, %v4994
      %v4996 = vpop.f32.mrf.mxu0
      %v4997 = vpop.f32.mrf.mxu0
      %v4998 = vadd.f32 0.0, %v4997
      %v4999 = vpop.f32.mrf.mxu0
      %5000 = vmatprep.mubr.bf16.mxu0 0
      %5001 = vmatmul.mubr.bf16.gmra.mxu0 %v3325
      %v5002 = vpop.f32.mrf.mxu0
      %v5003 = vadd.f32 0.0, %v5002
      %v5004 = vpop.f32.mrf.mxu0
      %v5005 = vpop.f32.mrf.mxu0
      %v5006 = vadd.f32 0.0, %v5005
      %v5007 = vpop.f32.mrf.mxu0
      %5008 = vmatprep.mubr.bf16.mxu0 0
      %5009 = vmatmul.mubr.bf16.gmra.mxu0 %v3328
      %v5010 = vpop.f32.mrf.mxu0
      %v5011 = vadd.f32 0.0, %v5010
      %v5012 = vpop.f32.mrf.mxu0
      %v5013 = vpop.f32.mrf.mxu0
      %v5014 = vadd.f32 0.0, %v5013
      %v5015 = vpop.f32.mrf.mxu0
      %5016 = vmatprep.mubr.bf16.mxu0 0
      %5017 = vmatmul.mubr.bf16.gmra.mxu0 %v3331
      %v5018 = vpop.f32.mrf.mxu0
      %v5019 = vadd.f32 0.0, %v5018
      %v5020 = vpop.f32.mrf.mxu0
      %v5021 = vpop.f32.mrf.mxu0
      %v5022 = vadd.f32 0.0, %v5021
      %v5023 = vpop.f32.mrf.mxu0
      %5024 = vmatprep.mubr.bf16.mxu0 0
      %5025 = vmatmul.mubr.bf16.gmra.mxu0 %v3334
      %v5026 = vpop.f32.mrf.mxu0
      %v5027 = vadd.f32 0.0, %v5026
      %v5028 = vpop.f32.mrf.mxu0
      %v5029 = vpop.f32.mrf.mxu0
      %v5030 = vadd.f32 0.0, %v5029
      %v5031 = vpop.f32.mrf.mxu0
      %5032 = vmatprep.mubr.bf16.mxu0 0
      %5033 = vmatmul.mubr.bf16.gmra.mxu0 %v3337
      %v5034 = vpop.f32.mrf.mxu0
      %v5035 = vadd.f32 0.0, %v5034
      %v5036 = vpop.f32.mrf.mxu0
      %v5037 = vpop.f32.mrf.mxu0
      %v5038 = vadd.f32 0.0, %v5037
      %v5039 = vpop.f32.mrf.mxu0
      %5040 = vmatprep.mubr.bf16.mxu0 0
      %5041 = vmatmul.mubr.bf16.gmra.mxu0 %v3340
      %v5042 = vpop.f32.mrf.mxu0
      %v5043 = vadd.f32 0.0, %v5042
      %v5044 = vpop.f32.mrf.mxu0
      %v5045 = vpop.f32.mrf.mxu0
      %v5046 = vadd.f32 0.0, %v5045
      %v5047 = vpop.f32.mrf.mxu0
      %5048 = vmatprep.mubr.bf16.mxu0 0
      %5049 = vmatmul.mubr.bf16.gmra.mxu0 %v3343
      %v5050 = vpop.f32.mrf.mxu0
      %v5051 = vadd.f32 0.0, %v5050
      %v5052 = vpop.f32.mrf.mxu0
      %v5053 = vpop.f32.mrf.mxu0
      %v5054 = vadd.f32 0.0, %v5053
      %v5055 = vpop.f32.mrf.mxu0
      %5056 = vmatprep.mubr.bf16.mxu0 0
      %5057 = vmatmul.mubr.bf16.gmra.mxu0 %v3346
      %v5058 = vpop.f32.mrf.mxu0
      %v5059 = vadd.f32 0.0, %v5058
      %v5060 = vpop.f32.mrf.mxu0
      %v5061 = vpop.f32.mrf.mxu0
      %v5062 = vadd.f32 0.0, %v5061
      %v5063 = vpop.f32.mrf.mxu0
      %5064 = vmatprep.mubr.bf16.mxu0 0
      %5065 = vmatmul.mubr.bf16.gmra.mxu0 %v3349
      %v5066 = vpop.f32.mrf.mxu0
      %v5067 = vadd.f32 0.0, %v5066
      %v5068 = vpop.f32.mrf.mxu0
      %v5069 = vpop.f32.mrf.mxu0
      %v5070 = vadd.f32 0.0, %v5069
      %v5071 = vpop.f32.mrf.mxu0
      %5072 = vmatprep.mubr.bf16.mxu0 0
      %5073 = vmatmul.mubr.bf16.gmra.mxu0 %v3352
      %v5074 = vpop.f32.mrf.mxu0
      %v5075 = vadd.f32 0.0, %v5074
      %v5076 = vpop.f32.mrf.mxu0
      %v5077 = vpop.f32.mrf.mxu0
      %v5078 = vadd.f32 0.0, %v5077
      %v5079 = vpop.f32.mrf.mxu0
      %5080 = vmatprep.mubr.bf16.mxu0 0
      %5081 = vmatmul.mubr.bf16.gmra.mxu0 %v3355
      %v5082 = vpop.f32.mrf.mxu0
      %v5083 = vadd.f32 0.0, %v5082
      %v5084 = vpop.f32.mrf.mxu0
      %v5085 = vpop.f32.mrf.mxu0
      %v5086 = vadd.f32 0.0, %v5085
      %v5087 = vpop.f32.mrf.mxu0
      %5088 = vmatprep.mubr.bf16.mxu0 0
      %5089 = vmatmul.mubr.bf16.gmra.mxu0 %v3358
      %v5090 = vpop.f32.mrf.mxu0
      %v5091 = vadd.f32 0.0, %v5090
      %v5092 = vpop.f32.mrf.mxu0
      %v5093 = vpop.f32.mrf.mxu0
      %v5094 = vadd.f32 0.0, %v5093
      %v5095 = vpop.f32.mrf.mxu0
      %5096 = vmatprep.mubr.bf16.mxu0 0
      %5097 = vmatmul.mubr.bf16.gmra.mxu0 %v3361
      %v5098 = vpop.f32.mrf.mxu0
      %v5099 = vadd.f32 0.0, %v5098
      %v5100 = vpop.f32.mrf.mxu0
      %v5101 = vpop.f32.mrf.mxu0
      %v5102 = vadd.f32 0.0, %v5101
      %v5103 = vpop.f32.mrf.mxu0
      %5104 = vmatprep.mubr.bf16.mxu0 0
      %5105 = vmatmul.mubr.bf16.gmra.mxu0 %v3364
      %v5106 = vpop.f32.mrf.mxu0
      %v5107 = vadd.f32 0.0, %v5106
      %v5108 = vpop.f32.mrf.mxu0
      %v5109 = vpop.f32.mrf.mxu0
      %v5110 = vadd.f32 0.0, %v5109
      %v5111 = vpop.f32.mrf.mxu0
      %5112 = vmatprep.mubr.bf16.mxu0 0
      %5113 = vmatmul.mubr.bf16.gmra.mxu0 %v3367
      %v5114 = vpop.f32.mrf.mxu0
      %v5115 = vadd.f32 0.0, %v5114
      %v5116 = vpop.f32.mrf.mxu0
      %v5117 = vpop.f32.mrf.mxu0
      %v5118 = vadd.f32 0.0, %v5117
      %v5119 = vpop.f32.mrf.mxu0
      %5120 = vmatprep.mubr.bf16.mxu0 0
      %5121 = vmatmul.mubr.bf16.gmra.mxu0 %v3370
      %v5122 = vpop.f32.mrf.mxu0
      %v5123 = vadd.f32 0.0, %v5122
      %v5124 = vpop.f32.mrf.mxu0
      %v5125 = vpop.f32.mrf.mxu0
      %v5126 = vadd.f32 0.0, %v5125
      %v5127 = vpop.f32.mrf.mxu0
      %5128 = vmatprep.mubr.bf16.mxu0 0
      %5129 = vmatmul.mubr.bf16.gmra.mxu0 %v3373
      %v5130 = vpop.f32.mrf.mxu0
      %v5131 = vadd.f32 0.0, %v5130
      %v5132 = vpop.f32.mrf.mxu0
      %v5133 = vpop.f32.mrf.mxu0
      %v5134 = vadd.f32 0.0, %v5133
      %v5135 = vpop.f32.mrf.mxu0
      %5136 = vmatprep.mubr.bf16.mxu0 0
      %5137 = vmatmul.mubr.bf16.gmra.mxu0 %v3376
      %v5138 = vpop.f32.mrf.mxu0
      %v5139 = vadd.f32 0.0, %v5138
      %v5140 = vpop.f32.mrf.mxu0
      %v5141 = vpop.f32.mrf.mxu0
      %v5142 = vadd.f32 0.0, %v5141
      %v5143 = vpop.f32.mrf.mxu0
      %5144 = vmatprep.mubr.bf16.mxu0 0
      %5145 = vmatmul.mubr.bf16.gmra.mxu0 %v3379
      %v5146 = vpop.f32.mrf.mxu0
      %v5147 = vadd.f32 0.0, %v5146
      %v5148 = vpop.f32.mrf.mxu0
      %v5149 = vpop.f32.mrf.mxu0
      %v5150 = vadd.f32 0.0, %v5149
      %v5151 = vpop.f32.mrf.mxu0
      %5152 = vmatprep.mubr.bf16.mxu0 0
      %5153 = vmatmul.mubr.bf16.gmra.mxu0 %v3382
      %v5154 = vpop.f32.mrf.mxu0
      %v5155 = vadd.f32 0.0, %v5154
      %v5156 = vpop.f32.mrf.mxu0
      %v5157 = vpop.f32.mrf.mxu0
      %v5158 = vadd.f32 0.0, %v5157
      %v5159 = vpop.f32.mrf.mxu0
      %5160 = vmatprep.mubr.bf16.mxu0 0
      %5161 = vmatmul.mubr.bf16.gmra.mxu0 %v3385
      %v5162 = vpop.f32.mrf.mxu0
      %v5163 = vadd.f32 0.0, %v5162
      %v5164 = vpop.f32.mrf.mxu0
      %v5165 = vpop.f32.mrf.mxu0
      %v5166 = vadd.f32 0.0, %v5165
      %v5167 = vpop.f32.mrf.mxu0
      %5168 = vmatprep.mubr.bf16.mxu0 0
      %5169 = vmatmul.mubr.bf16.gmra.mxu0 %v3388
      %v5170 = vpop.f32.mrf.mxu0
      %v5171 = vadd.f32 0.0, %v5170
      %v5172 = vpop.f32.mrf.mxu0
      %v5173 = vpop.f32.mrf.mxu0
      %v5174 = vadd.f32 0.0, %v5173
      %v5175 = vpop.f32.mrf.mxu0
      %5176 = vmatprep.mubr.bf16.mxu0 0
      %5177 = vmatmul.mubr.bf16.gmra.mxu0 %v3391
      %v5178 = vpop.f32.mrf.mxu0
      %v5179 = vadd.f32 0.0, %v5178
      %v5180 = vpop.f32.mrf.mxu0
      %v5181 = vpop.f32.mrf.mxu0
      %v5182 = vadd.f32 0.0, %v5181
      %v5183 = vpop.f32.mrf.mxu0
      %5184 = vmatprep.mubr.bf16.mxu0 0
      %5185 = vmatmul.mubr.bf16.gmra.mxu0 %v3394
      %v5186 = vpop.f32.mrf.mxu0
      %v5187 = vadd.f32 0.0, %v5186
      %v5188 = vpop.f32.mrf.mxu0
      %v5189 = vpop.f32.mrf.mxu0
      %v5190 = vadd.f32 0.0, %v5189
      %v5191 = vpop.f32.mrf.mxu0
      %5192 = vmatprep.mubr.bf16.mxu0 0
      %5193 = vmatmul.mubr.bf16.gmra.mxu0 %v3397
      %v5194 = vpop.f32.mrf.mxu0
      %v5195 = vadd.f32 0.0, %v5194
      %v5196 = vpop.f32.mrf.mxu0
      %v5197 = vpop.f32.mrf.mxu0
      %v5198 = vadd.f32 0.0, %v5197
      %v5199 = vpop.f32.mrf.mxu0
      %5200 = vmatprep.mubr.bf16.mxu0 0
      %5201 = vmatmul.mubr.bf16.gmra.mxu0 %v3400
      %v5202 = vpop.f32.mrf.mxu0
      %v5203 = vadd.f32 0.0, %v5202
      %v5204 = vpop.f32.mrf.mxu0
      %v5205 = vpop.f32.mrf.mxu0
      %v5206 = vadd.f32 0.0, %v5205
      %v5207 = vpop.f32.mrf.mxu0
      %5208 = vmatprep.mubr.bf16.mxu0 0
      %5209 = vmatmul.mubr.bf16.gmra.mxu0 %v3403
      %v5210 = vpop.f32.mrf.mxu0
      %v5211 = vadd.f32 0.0, %v5210
      %v5212 = vpop.f32.mrf.mxu0
      %v5213 = vpop.f32.mrf.mxu0
      %v5214 = vadd.f32 0.0, %v5213
      %v5215 = vpop.f32.mrf.mxu0
      %5216 = vmatprep.mubr.bf16.mxu0 0
      %5217 = vmatmul.mubr.bf16.gmra.mxu0 %v3406
      %v5218 = vpop.f32.mrf.mxu0
      %v5219 = vadd.f32 0.0, %v5218
      %v5220 = vpop.f32.mrf.mxu0
      %v5221 = vpop.f32.mrf.mxu0
      %v5222 = vadd.f32 0.0, %v5221
      %v5223 = vpop.f32.mrf.mxu0
      %5224 = vmatprep.mubr.bf16.mxu0 0
      %5225 = vmatmul.mubr.bf16.gmra.mxu0 %v3409
      %v5226 = vpop.f32.mrf.mxu0
      %v5227 = vadd.f32 0.0, %v5226
      %v5228 = vpop.f32.mrf.mxu0
      %v5229 = vpop.f32.mrf.mxu0
      %v5230 = vadd.f32 0.0, %v5229
      %v5231 = vpop.f32.mrf.mxu0
      %5232 = vmatprep.mubr.bf16.mxu0 0
      %5233 = vmatmul.mubr.bf16.gmra.mxu0 %v3412
      %v5234 = vpop.f32.mrf.mxu0
      %v5235 = vadd.f32 0.0, %v5234
      %v5236 = vpop.f32.mrf.mxu0
      %v5237 = vpop.f32.mrf.mxu0
      %v5238 = vadd.f32 0.0, %v5237
      %v5239 = vpop.f32.mrf.mxu0
      %5240 = vmatprep.mubr.bf16.mxu0 0
      %5241 = vmatmul.mubr.bf16.gmra.mxu0 %v3415
      %v5242 = vpop.f32.mrf.mxu0
      %v5243 = vadd.f32 0.0, %v5242
      %v5244 = vpop.f32.mrf.mxu0
      %v5245 = vpop.f32.mrf.mxu0
      %v5246 = vadd.f32 0.0, %v5245
      %v5247 = vpop.f32.mrf.mxu0
      %5248 = vdwg.mxu0
      %v5249 = vadd.f32 %v713, %v3459
      %v5250 = vadd.f32 %v714, %v3462
      %v5251 = vadd.f32 %v715, %v3467
      %v5252 = vadd.f32 %v716, %v3470
      %v5253 = vadd.f32 %v717, %v3475
      %v5254 = vadd.f32 %v718, %v3478
      %v5255 = vadd.f32 %v719, %v3483
      %v5256 = vadd.f32 %v720, %v3486
      %v5257 = vadd.f32 %v721, %v3491
      %v5258 = vadd.f32 %v722, %v3494
      %v5259 = vadd.f32 %v723, %v3499
      %v5260 = vadd.f32 %v724, %v3502
      %v5261 = vadd.f32 %v725, %v3507
      %v5262 = vadd.f32 %v726, %v3510
      %v5263 = vadd.f32 %v727, %v3515
      %v5264 = vadd.f32 %v728, %v3518
      %v5265 = vadd.f32 %v729, %v3523
      %v5266 = vadd.f32 %v730, %v3526
      %v5267 = vadd.f32 %v731, %v3531
      %v5268 = vadd.f32 %v732, %v3534
      %v5269 = vadd.f32 %v733, %v3539
      %v5270 = vadd.f32 %v734, %v3542
      %v5271 = vadd.f32 %v735, %v3547
      %v5272 = vadd.f32 %v736, %v3550
      %v5273 = vadd.f32 %v737, %v3555
      %v5274 = vadd.f32 %v738, %v3558
      %v5275 = vadd.f32 %v739, %v3563
      %v5276 = vadd.f32 %v740, %v3566
      %v5277 = vadd.f32 %v741, %v3571
      %v5278 = vadd.f32 %v742, %v3574
      %v5279 = vadd.f32 %v743, %v3579
      %v5280 = vadd.f32 %v744, %v3582
      %v5281 = vadd.f32 %v745, %v3587
      %v5282 = vadd.f32 %v746, %v3590
      %v5283 = vadd.f32 %v747, %v3595
      %v5284 = vadd.f32 %v748, %v3598
      %v5285 = vadd.f32 %v749, %v3603
      %v5286 = vadd.f32 %v750, %v3606
      %v5287 = vadd.f32 %v751, %v3611
      %v5288 = vadd.f32 %v752, %v3614
      %v5289 = vadd.f32 %v753, %v3619
      %v5290 = vadd.f32 %v754, %v3622
      %v5291 = vadd.f32 %v755, %v3627
      %v5292 = vadd.f32 %v756, %v3630
      %v5293 = vadd.f32 %v757, %v3635
      %v5294 = vadd.f32 %v758, %v3638
      %v5295 = vadd.f32 %v759, %v3643
      %v5296 = vadd.f32 %v760, %v3646
      %v5297 = vadd.f32 %v761, %v3651
      %v5298 = vadd.f32 %v762, %v3654
      %v5299 = vadd.f32 %v763, %v3659
      %v5300 = vadd.f32 %v764, %v3662
      %v5301 = vadd.f32 %v765, %v3667
      %v5302 = vadd.f32 %v766, %v3670
      %v5303 = vadd.f32 %v767, %v3675
      %v5304 = vadd.f32 %v768, %v3678
      %v5305 = vadd.f32 %v769, %v3683
      %v5306 = vadd.f32 %v770, %v3686
      %v5307 = vadd.f32 %v771, %v3691
      %v5308 = vadd.f32 %v772, %v3694
      %v5309 = vadd.f32 %v773, %v3699
      %v5310 = vadd.f32 %v774, %v3702
      %v5311 = vadd.f32 %v775, %v3707
      %v5312 = vadd.f32 %v776, %v3710
      %v5313 = vadd.f32 %v777, %v3715
      %v5314 = vadd.f32 %v778, %v3718
      %v5315 = vadd.f32 %v779, %v3723
      %v5316 = vadd.f32 %v780, %v3726
      %v5317 = vadd.f32 %v781, %v3731
      %v5318 = vadd.f32 %v782, %v3734
      %v5319 = vadd.f32 %v783, %v3739
      %v5320 = vadd.f32 %v784, %v3742
      %v5321 = vadd.f32 %v785, %v3747
      %v5322 = vadd.f32 %v786, %v3750
      %v5323 = vadd.f32 %v787, %v3755
      %v5324 = vadd.f32 %v788, %v3758
      %v5325 = vadd.f32 %v789, %v3763
      %v5326 = vadd.f32 %v790, %v3766
      %v5327 = vadd.f32 %v791, %v3771
      %v5328 = vadd.f32 %v792, %v3774
      %v5329 = vadd.f32 %v793, %v3779
      %v5330 = vadd.f32 %v794, %v3782
      %v5331 = vadd.f32 %v795, %v3787
      %v5332 = vadd.f32 %v796, %v3790
      %v5333 = vadd.f32 %v797, %v3795
      %v5334 = vadd.f32 %v798, %v3798
      %v5335 = vadd.f32 %v799, %v3803
      %v5336 = vadd.f32 %v800, %v3806
      %v5337 = vadd.f32 %v801, %v3811
      %v5338 = vadd.f32 %v802, %v3814
      %v5339 = vadd.f32 %v803, %v3819
      %v5340 = vadd.f32 %v804, %v3822
      %v5341 = vadd.f32 %v805, %v3827
      %v5342 = vadd.f32 %v806, %v3830
      %v5343 = vadd.f32 %v807, %v3835
      %v5344 = vadd.f32 %v808, %v3838
      %v5345 = vadd.f32 %v809, %v3843
      %v5346 = vadd.f32 %v810, %v3846
      %v5347 = vadd.f32 %v811, %v3851
      %v5348 = vadd.f32 %v812, %v3854
      %v5349 = vadd.f32 %v813, %v3859
      %v5350 = vadd.f32 %v814, %v3862
      %v5351 = vadd.f32 %v815, %v3867
      %v5352 = vadd.f32 %v816, %v3870
      %v5353 = vadd.f32 %v817, %v3875
      %v5354 = vadd.f32 %v818, %v3878
      %v5355 = vadd.f32 %v819, %v3883
      %v5356 = vadd.f32 %v820, %v3886
      %v5357 = vadd.f32 %v821, %v3891
      %v5358 = vadd.f32 %v822, %v3894
      %v5359 = vadd.f32 %v823, %v3899
      %v5360 = vadd.f32 %v824, %v3902
      %v5361 = vadd.f32 %v825, %v3907
      %v5362 = vadd.f32 %v826, %v3910
      %v5363 = vadd.f32 %v827, %v3915
      %v5364 = vadd.f32 %v828, %v3918
      %v5365 = vadd.f32 %v829, %v3923
      %v5366 = vadd.f32 %v830, %v3926
      %v5367 = vadd.f32 %v831, %v3931
      %v5368 = vadd.f32 %v832, %v3934
      %v5369 = vadd.f32 %v833, %v3939
      %v5370 = vadd.f32 %v834, %v3942
      %v5371 = vadd.f32 %v835, %v3947
      %v5372 = vadd.f32 %v836, %v3950
      %v5373 = vadd.f32 %v837, %v3955
      %v5374 = vadd.f32 %v838, %v3958
      %v5375 = vadd.f32 %v839, %v3963
      %v5376 = vadd.f32 %v840, %v3966
      %v5377 = vadd.f32 %v841, %v3971
      %v5378 = vadd.f32 %v842, %v3974
      %v5379 = vadd.f32 %v843, %v3979
      %v5380 = vadd.f32 %v844, %v3982
      %v5381 = vadd.f32 %v845, %v3987
      %v5382 = vadd.f32 %v846, %v3990
      %v5383 = vadd.f32 %v847, %v3995
      %v5384 = vadd.f32 %v848, %v3998
      %v5385 = vadd.f32 %v849, %v4003
      %v5386 = vadd.f32 %v850, %v4006
      %v5387 = vadd.f32 %v851, %v4011
      %v5388 = vadd.f32 %v852, %v4014
      %v5389 = vadd.f32 %v853, %v4019
      %v5390 = vadd.f32 %v854, %v4022
      %v5391 = vadd.f32 %v855, %v4027
      %v5392 = vadd.f32 %v856, %v4030
      %v5393 = vadd.f32 %v857, %v4035
      %v5394 = vadd.f32 %v858, %v4038
      %v5395 = vadd.f32 %v859, %v4043
      %v5396 = vadd.f32 %v860, %v4046
      %v5397 = vadd.f32 %v861, %v4051
      %v5398 = vadd.f32 %v862, %v4054
      %v5399 = vadd.f32 %v863, %v4059
      %v5400 = vadd.f32 %v864, %v4062
      %v5401 = vadd.f32 %v865, %v4067
      %v5402 = vadd.f32 %v866, %v4070
      %v5403 = vadd.f32 %v867, %v4075
      %v5404 = vadd.f32 %v868, %v4078
      %v5405 = vadd.f32 %v869, %v4083
      %v5406 = vadd.f32 %v870, %v4086
      %v5407 = vadd.f32 %v871, %v4091
      %v5408 = vadd.f32 %v872, %v4094
      %v5409 = vadd.f32 %v873, %v4099
      %v5410 = vadd.f32 %v874, %v4102
      %v5411 = vadd.f32 %v875, %v4107
      %v5412 = vadd.f32 %v876, %v4110
      %v5413 = vadd.f32 %v877, %v4115
      %v5414 = vadd.f32 %v878, %v4118
      %v5415 = vadd.f32 %v879, %v4123
      %v5416 = vadd.f32 %v880, %v4126
      %v5417 = vadd.f32 %v881, %v4131
      %v5418 = vadd.f32 %v882, %v4134
      %v5419 = vadd.f32 %v883, %v4139
      %v5420 = vadd.f32 %v884, %v4142
      %v5421 = vadd.f32 %v885, %v4147
      %v5422 = vadd.f32 %v886, %v4150
      %v5423 = vadd.f32 %v887, %v4155
      %v5424 = vadd.f32 %v888, %v4158
      %v5425 = vadd.f32 %v889, %v4163
      %v5426 = vadd.f32 %v890, %v4166
      %v5427 = vadd.f32 %v891, %v4171
      %v5428 = vadd.f32 %v892, %v4174
      %v5429 = vadd.f32 %v893, %v4179
      %v5430 = vadd.f32 %v894, %v4182
      %v5431 = vadd.f32 %v895, %v4187
      %v5432 = vadd.f32 %v896, %v4190
      %v5433 = vadd.f32 %v897, %v4195
      %v5434 = vadd.f32 %v898, %v4198
      %v5435 = vadd.f32 %v899, %v4203
      %v5436 = vadd.f32 %v900, %v4206
      %v5437 = vadd.f32 %v901, %v4211
      %v5438 = vadd.f32 %v902, %v4214
      %v5439 = vadd.f32 %v903, %v4219
      %v5440 = vadd.f32 %v904, %v4222
      %v5441 = vadd.f32 %v905, %v4227
      %v5442 = vadd.f32 %v906, %v4230
      %v5443 = vadd.f32 %v907, %v4235
      %v5444 = vadd.f32 %v908, %v4238
      %v5445 = vadd.f32 %v909, %v4243
      %v5446 = vadd.f32 %v910, %v4246
      %v5447 = vadd.f32 %v911, %v4251
      %v5448 = vadd.f32 %v912, %v4254
      %v5449 = vadd.f32 %v913, %v4259
      %v5450 = vadd.f32 %v914, %v4262
      %v5451 = vadd.f32 %v915, %v4267
      %v5452 = vadd.f32 %v916, %v4270
      %v5453 = vadd.f32 %v917, %v4275
      %v5454 = vadd.f32 %v918, %v4278
      %v5455 = vadd.f32 %v919, %v4283
      %v5456 = vadd.f32 %v920, %v4286
      %v5457 = vadd.f32 %v921, %v4291
      %v5458 = vadd.f32 %v922, %v4294
      %v5459 = vadd.f32 %v923, %v4299
      %v5460 = vadd.f32 %v924, %v4302
      %v5461 = vadd.f32 %v925, %v4307
      %v5462 = vadd.f32 %v926, %v4310
      %v5463 = vadd.f32 %v927, %v4315
      %v5464 = vadd.f32 %v928, %v4318
      %v5465 = vadd.f32 %v929, %v4323
      %v5466 = vadd.f32 %v930, %v4326
      %v5467 = vadd.f32 %v931, %v4331
      %v5468 = vadd.f32 %v932, %v4334
      %v5469 = vadd.f32 %v933, %v4339
      %v5470 = vadd.f32 %v934, %v4342
      %v5471 = vadd.f32 %v935, %v4347
      %v5472 = vadd.f32 %v936, %v4350
      %v5473 = vadd.f32 %v937, %v4355
      %v5474 = vadd.f32 %v938, %v4358
      %v5475 = vadd.f32 %v939, %v4363
      %v5476 = vadd.f32 %v940, %v4366
      %v5477 = vadd.f32 %v941, %v4371
      %v5478 = vadd.f32 %v942, %v4374
      %v5479 = vadd.f32 %v943, %v4379
      %v5480 = vadd.f32 %v944, %v4382
      %v5481 = vadd.f32 %v945, %v4387
      %v5482 = vadd.f32 %v946, %v4390
      %v5483 = vadd.f32 %v947, %v4395
      %v5484 = vadd.f32 %v948, %v4398
      %v5485 = vadd.f32 %v949, %v4403
      %v5486 = vadd.f32 %v950, %v4406
      %v5487 = vadd.f32 %v951, %v4411
      %v5488 = vadd.f32 %v952, %v4414
      %v5489 = vadd.f32 %v953, %v4419
      %v5490 = vadd.f32 %v954, %v4422
      %v5491 = vadd.f32 %v955, %v4427
      %v5492 = vadd.f32 %v956, %v4430
      %v5493 = vadd.f32 %v957, %v4435
      %v5494 = vadd.f32 %v958, %v4438
      %v5495 = vadd.f32 %v959, %v4443
      %v5496 = vadd.f32 %v960, %v4446
      %v5497 = vadd.f32 %v961, %v4451
      %v5498 = vadd.f32 %v962, %v4454
      %v5499 = vadd.f32 %v963, %v4459
      %v5500 = vadd.f32 %v964, %v4462
      %v5501 = vadd.f32 %v965, %v4467
      %v5502 = vadd.f32 %v966, %v4470
      %v5503 = vadd.f32 %v967, %v4475
      %v5504 = vadd.f32 %v968, %v4478
      %v5505 = vadd.f32 %v969, %v4483
      %v5506 = vadd.f32 %v970, %v4486
      %v5507 = vadd.f32 %v971, %v4491
      %v5508 = vadd.f32 %v972, %v4494
      %v5509 = vadd.f32 %v973, %v4499
      %v5510 = vadd.f32 %v974, %v4502
      %v5511 = vadd.f32 %v975, %v4507
      %v5512 = vadd.f32 %v976, %v4510
      %v5513 = vadd.f32 %v977, %v4515
      %v5514 = vadd.f32 %v978, %v4518
      %v5515 = vadd.f32 %v979, %v4523
      %v5516 = vadd.f32 %v980, %v4526
      %v5517 = vadd.f32 %v981, %v4531
      %v5518 = vadd.f32 %v982, %v4534
      %v5519 = vadd.f32 %v983, %v4539
      %v5520 = vadd.f32 %v984, %v4542
      %v5521 = vadd.f32 %v985, %v4547
      %v5522 = vadd.f32 %v986, %v4550
      %v5523 = vadd.f32 %v987, %v4555
      %v5524 = vadd.f32 %v988, %v4558
      %v5525 = vadd.f32 %v989, %v4563
      %v5526 = vadd.f32 %v990, %v4566
      %v5527 = vadd.f32 %v991, %v4571
      %v5528 = vadd.f32 %v992, %v4574
      %v5529 = vadd.f32 %v993, %v4579
      %v5530 = vadd.f32 %v994, %v4582
      %v5531 = vadd.f32 %v995, %v4587
      %v5532 = vadd.f32 %v996, %v4590
      %v5533 = vadd.f32 %v997, %v4595
      %v5534 = vadd.f32 %v998, %v4598
      %v5535 = vadd.f32 %v999, %v4603
      %v5536 = vadd.f32 %v1000, %v4606
      %v5537 = vadd.f32 %v1001, %v4611
      %v5538 = vadd.f32 %v1002, %v4614
      %v5539 = vadd.f32 %v1003, %v4619
      %v5540 = vadd.f32 %v1004, %v4622
      %v5541 = vadd.f32 %v1005, %v4627
      %v5542 = vadd.f32 %v1006, %v4630
      %v5543 = vadd.f32 %v1007, %v4635
      %v5544 = vadd.f32 %v1008, %v4638
      %v5545 = vadd.f32 %v1009, %v4643
      %v5546 = vadd.f32 %v1010, %v4646
      %v5547 = vadd.f32 %v1011, %v4651
      %v5548 = vadd.f32 %v1012, %v4654
      %v5549 = vadd.f32 %v1013, %v4659
      %v5550 = vadd.f32 %v1014, %v4662
      %v5551 = vadd.f32 %v1015, %v4667
      %v5552 = vadd.f32 %v1016, %v4670
      %v5553 = vadd.f32 %v1017, %v4675
      %v5554 = vadd.f32 %v1018, %v4678
      %v5555 = vadd.f32 %v1019, %v4683
      %v5556 = vadd.f32 %v1020, %v4686
      %v5557 = vadd.f32 %v1021, %v4691
      %v5558 = vadd.f32 %v1022, %v4694
      %v5559 = vadd.f32 %v1023, %v4699
      %v5560 = vadd.f32 %v1024, %v4702
      %v5561 = vadd.f32 %v1025, %v4707
      %v5562 = vadd.f32 %v1026, %v4710
      %v5563 = vadd.f32 %v1027, %v4715
      %v5564 = vadd.f32 %v1028, %v4718
      %v5565 = vadd.f32 %v1029, %v4723
      %v5566 = vadd.f32 %v1030, %v4726
      %v5567 = vadd.f32 %v1031, %v4731
      %v5568 = vadd.f32 %v1032, %v4734
      %v5569 = vadd.f32 %v1033, %v4739
      %v5570 = vadd.f32 %v1034, %v4742
      %v5571 = vadd.f32 %v1035, %v4747
      %v5572 = vadd.f32 %v1036, %v4750
      %v5573 = vadd.f32 %v1037, %v4755
      %v5574 = vadd.f32 %v1038, %v4758
      %v5575 = vadd.f32 %v1039, %v4763
      %v5576 = vadd.f32 %v1040, %v4766
      %v5577 = vadd.f32 %v1041, %v4771
      %v5578 = vadd.f32 %v1042, %v4774
      %v5579 = vadd.f32 %v1043, %v4779
      %v5580 = vadd.f32 %v1044, %v4782
      %v5581 = vadd.f32 %v1045, %v4787
      %v5582 = vadd.f32 %v1046, %v4790
      %v5583 = vadd.f32 %v1047, %v4795
      %v5584 = vadd.f32 %v1048, %v4798
      %v5585 = vadd.f32 %v1049, %v4803
      %v5586 = vadd.f32 %v1050, %v4806
      %v5587 = vadd.f32 %v1051, %v4811
      %v5588 = vadd.f32 %v1052, %v4814
      %v5589 = vadd.f32 %v1053, %v4819
      %v5590 = vadd.f32 %v1054, %v4822
      %v5591 = vadd.f32 %v1055, %v4827
      %v5592 = vadd.f32 %v1056, %v4830
      %v5593 = vadd.f32 %v1057, %v4835
      %v5594 = vadd.f32 %v1058, %v4838
      %v5595 = vadd.f32 %v1059, %v4843
      %v5596 = vadd.f32 %v1060, %v4846
      %v5597 = vadd.f32 %v1061, %v4851
      %v5598 = vadd.f32 %v1062, %v4854
      %v5599 = vadd.f32 %v1063, %v4859
      %v5600 = vadd.f32 %v1064, %v4862
      %v5601 = vadd.f32 %v1065, %v4867
      %v5602 = vadd.f32 %v1066, %v4870
      %v5603 = vadd.f32 %v1067, %v4875
      %v5604 = vadd.f32 %v1068, %v4878
      %v5605 = vadd.f32 %v1069, %v4883
      %v5606 = vadd.f32 %v1070, %v4886
      %v5607 = vadd.f32 %v1071, %v4891
      %v5608 = vadd.f32 %v1072, %v4894
      %v5609 = vadd.f32 %v1073, %v4899
      %v5610 = vadd.f32 %v1074, %v4902
      %v5611 = vadd.f32 %v1075, %v4907
      %v5612 = vadd.f32 %v1076, %v4910
      %v5613 = vadd.f32 %v1077, %v4915
      %v5614 = vadd.f32 %v1078, %v4918
      %v5615 = vadd.f32 %v1079, %v4923
      %v5616 = vadd.f32 %v1080, %v4926
      %v5617 = vadd.f32 %v1081, %v4931
      %v5618 = vadd.f32 %v1082, %v4934
      %v5619 = vadd.f32 %v1083, %v4939
      %v5620 = vadd.f32 %v1084, %v4942
      %v5621 = vadd.f32 %v1085, %v4947
      %v5622 = vadd.f32 %v1086, %v4950
      %v5623 = vadd.f32 %v1087, %v4955
      %v5624 = vadd.f32 %v1088, %v4958
      %v5625 = vadd.f32 %v1089, %v4963
      %v5626 = vadd.f32 %v1090, %v4966
      %v5627 = vadd.f32 %v1091, %v4971
      %v5628 = vadd.f32 %v1092, %v4974
      %v5629 = vadd.f32 %v1093, %v4979
      %v5630 = vadd.f32 %v1094, %v4982
      %v5631 = vadd.f32 %v1095, %v4987
      %v5632 = vadd.f32 %v1096, %v4990
      %v5633 = vadd.f32 %v1097, %v4995
      %v5634 = vadd.f32 %v1098, %v4998
      %v5635 = vadd.f32 %v1099, %v5003
      %v5636 = vadd.f32 %v1100, %v5006
      %v5637 = vadd.f32 %v1101, %v5011
      %v5638 = vadd.f32 %v1102, %v5014
      %v5639 = vadd.f32 %v1103, %v5019
      %v5640 = vadd.f32 %v1104, %v5022
      %v5641 = vadd.f32 %v1105, %v5027
      %v5642 = vadd.f32 %v1106, %v5030
      %v5643 = vadd.f32 %v1107, %v5035
      %v5644 = vadd.f32 %v1108, %v5038
      %v5645 = vadd.f32 %v1109, %v5043
      %v5646 = vadd.f32 %v1110, %v5046
      %v5647 = vadd.f32 %v1111, %v5051
      %v5648 = vadd.f32 %v1112, %v5054
      %v5649 = vadd.f32 %v1113, %v5059
      %v5650 = vadd.f32 %v1114, %v5062
      %v5651 = vadd.f32 %v1115, %v5067
      %v5652 = vadd.f32 %v1116, %v5070
      %v5653 = vadd.f32 %v1117, %v5075
      %v5654 = vadd.f32 %v1118, %v5078
      %v5655 = vadd.f32 %v1119, %v5083
      %v5656 = vadd.f32 %v1120, %v5086
      %v5657 = vadd.f32 %v1121, %v5091
      %v5658 = vadd.f32 %v1122, %v5094
      %v5659 = vadd.f32 %v1123, %v5099
      %v5660 = vadd.f32 %v1124, %v5102
      %v5661 = vadd.f32 %v1125, %v5107
      %v5662 = vadd.f32 %v1126, %v5110
      %v5663 = vadd.f32 %v1127, %v5115
      %v5664 = vadd.f32 %v1128, %v5118
      %v5665 = vadd.f32 %v1129, %v5123
      %v5666 = vadd.f32 %v1130, %v5126
      %v5667 = vadd.f32 %v1131, %v5131
      %v5668 = vadd.f32 %v1132, %v5134
      %v5669 = vadd.f32 %v1133, %v5139
      %v5670 = vadd.f32 %v1134, %v5142
      %v5671 = vadd.f32 %v1135, %v5147
      %v5672 = vadd.f32 %v1136, %v5150
      %v5673 = vadd.f32 %v1137, %v5155
      %v5674 = vadd.f32 %v1138, %v5158
      %v5675 = vadd.f32 %v1139, %v5163
      %v5676 = vadd.f32 %v1140, %v5166
      %v5677 = vadd.f32 %v1141, %v5171
      %v5678 = vadd.f32 %v1142, %v5174
      %v5679 = vadd.f32 %v1143, %v5179
      %v5680 = vadd.f32 %v1144, %v5182
      %v5681 = vadd.f32 %v1145, %v5187
      %v5682 = vadd.f32 %v1146, %v5190
      %v5683 = vadd.f32 %v1147, %v5195
      %v5684 = vadd.f32 %v1148, %v5198
      %v5685 = vadd.f32 %v1149, %v5203
      %v5686 = vadd.f32 %v1150, %v5206
      %v5687 = vadd.f32 %v1151, %v5211
      %v5688 = vadd.f32 %v1152, %v5214
      %v5689 = vadd.f32 %v1153, %v5219
      %v5690 = vadd.f32 %v1154, %v5222
      %v5691 = vadd.f32 %v1155, %v5227
      %v5692 = vadd.f32 %v1156, %v5230
      %v5693 = vadd.f32 %v1157, %v5235
      %v5694 = vadd.f32 %v1158, %v5238
      %v5695 = vadd.f32 %v1159, %v5243
      %v5696 = vadd.f32 %v1160, %v5246
      %vm5697 = vcmask 523264
      %5698 = vst.msk [vmem:[#allocation2] sm:$0xff] %vm5697, %v5249
      %5699 = vst.msk [vmem:[#allocation2 + $0x8] sm:$0xff] %vm5697, %v5250
      %5700 = vst.msk [vmem:[#allocation2 + $0x10] sm:$0xff] %vm5697, %v5251
      %5701 = vst.msk [vmem:[#allocation2 + $0x18] sm:$0xff] %vm5697, %v5252
      %5702 = vst.msk [vmem:[#allocation2 + $0x20] sm:$0xff] %vm5697, %v5253
      %5703 = vst.msk [vmem:[#allocation2 + $0x28] sm:$0xff] %vm5697, %v5254
      %5704 = vst.msk [vmem:[#allocation2 + $0x30] sm:$0xff] %vm5697, %v5255
      %5705 = vst.msk [vmem:[#allocation2 + $0x38] sm:$0xff] %vm5697, %v5256
      %5706 = vst.msk [vmem:[#allocation2 + $0x40] sm:$0xff] %vm5697, %v5257
      %5707 = vst.msk [vmem:[#allocation2 + $0x48] sm:$0xff] %vm5697, %v5258
      %5708 = vst.msk [vmem:[#allocation2 + $0x50] sm:$0xff] %vm5697, %v5259
      %5709 = vst.msk [vmem:[#allocation2 + $0x58] sm:$0xff] %vm5697, %v5260
      %5710 = vst.msk [vmem:[#allocation2 + $0x60] sm:$0xff] %vm5697, %v5261
      %5711 = vst.msk [vmem:[#allocation2 + $0x68] sm:$0xff] %vm5697, %v5262
      %5712 = vst.msk [vmem:[#allocation2 + $0x70] sm:$0xff] %vm5697, %v5263
      %5713 = vst.msk [vmem:[#allocation2 + $0x78] sm:$0xff] %vm5697, %v5264
      %5714 = vst.msk [vmem:[#allocation2 + $0x80] sm:$0xff] %vm5697, %v5265
      %5715 = vst.msk [vmem:[#allocation2 + $0x88] sm:$0xff] %vm5697, %v5266
      %5716 = vst.msk [vmem:[#allocation2 + $0x90] sm:$0xff] %vm5697, %v5267
      %5717 = vst.msk [vmem:[#allocation2 + $0x98] sm:$0xff] %vm5697, %v5268
      %5718 = vst.msk [vmem:[#allocation2 + $0xa0] sm:$0xff] %vm5697, %v5269
      %5719 = vst.msk [vmem:[#allocation2 + $0xa8] sm:$0xff] %vm5697, %v5270
      %5720 = vst.msk [vmem:[#allocation2 + $0xb0] sm:$0xff] %vm5697, %v5271
      %5721 = vst.msk [vmem:[#allocation2 + $0xb8] sm:$0xff] %vm5697, %v5272
      %5722 = vst.msk [vmem:[#allocation2 + $0xc0] sm:$0xff] %vm5697, %v5273
      %5723 = vst.msk [vmem:[#allocation2 + $0xc8] sm:$0xff] %vm5697, %v5274
      %5724 = vst.msk [vmem:[#allocation2 + $0xd0] sm:$0xff] %vm5697, %v5275
      %5725 = vst.msk [vmem:[#allocation2 + $0xd8] sm:$0xff] %vm5697, %v5276
      %5726 = vst.msk [vmem:[#allocation2 + $0xe0] sm:$0xff] %vm5697, %v5277
      %5727 = vst.msk [vmem:[#allocation2 + $0xe8] sm:$0xff] %vm5697, %v5278
      %5728 = vst.msk [vmem:[#allocation2 + $0xf0] sm:$0xff] %vm5697, %v5279
      %5729 = vst.msk [vmem:[#allocation2 + $0xf8] sm:$0xff] %vm5697, %v5280
      %5730 = vst.msk [vmem:[#allocation2 + $0x100] sm:$0xff] %vm5697, %v5281
      %5731 = vst.msk [vmem:[#allocation2 + $0x108] sm:$0xff] %vm5697, %v5282
      %5732 = vst.msk [vmem:[#allocation2 + $0x110] sm:$0xff] %vm5697, %v5283
      %5733 = vst.msk [vmem:[#allocation2 + $0x118] sm:$0xff] %vm5697, %v5284
      %5734 = vst.msk [vmem:[#allocation2 + $0x120] sm:$0xff] %vm5697, %v5285
      %5735 = vst.msk [vmem:[#allocation2 + $0x128] sm:$0xff] %vm5697, %v5286
      %5736 = vst.msk [vmem:[#allocation2 + $0x130] sm:$0xff] %vm5697, %v5287
      %5737 = vst.msk [vmem:[#allocation2 + $0x138] sm:$0xff] %vm5697, %v5288
      %5738 = vst.msk [vmem:[#allocation2 + $0x140] sm:$0xff] %vm5697, %v5289
      %5739 = vst.msk [vmem:[#allocation2 + $0x148] sm:$0xff] %vm5697, %v5290
      %5740 = vst.msk [vmem:[#allocation2 + $0x150] sm:$0xff] %vm5697, %v5291
      %5741 = vst.msk [vmem:[#allocation2 + $0x158] sm:$0xff] %vm5697, %v5292
      %5742 = vst.msk [vmem:[#allocation2 + $0x160] sm:$0xff] %vm5697, %v5293
      %5743 = vst.msk [vmem:[#allocation2 + $0x168] sm:$0xff] %vm5697, %v5294
      %5744 = vst.msk [vmem:[#allocation2 + $0x170] sm:$0xff] %vm5697, %v5295
      %5745 = vst.msk [vmem:[#allocation2 + $0x178] sm:$0xff] %vm5697, %v5296
      %5746 = vst.msk [vmem:[#allocation2 + $0x180] sm:$0xff] %vm5697, %v5297
      %5747 = vst.msk [vmem:[#allocation2 + $0x188] sm:$0xff] %vm5697, %v5298
      %5748 = vst.msk [vmem:[#allocation2 + $0x190] sm:$0xff] %vm5697, %v5299
      %5749 = vst.msk [vmem:[#allocation2 + $0x198] sm:$0xff] %vm5697, %v5300
      %5750 = vst.msk [vmem:[#allocation2 + $0x1a0] sm:$0xff] %vm5697, %v5301
      %5751 = vst.msk [vmem:[#allocation2 + $0x1a8] sm:$0xff] %vm5697, %v5302
      %5752 = vst.msk [vmem:[#allocation2 + $0x1b0] sm:$0xff] %vm5697, %v5303
      %5753 = vst.msk [vmem:[#allocation2 + $0x1b8] sm:$0xff] %vm5697, %v5304
      %5754 = vst.msk [vmem:[#allocation2 + $0x1c0] sm:$0xff] %vm5697, %v5305
      %5755 = vst.msk [vmem:[#allocation2 + $0x1c8] sm:$0xff] %vm5697, %v5306
      %5756 = vst.msk [vmem:[#allocation2 + $0x1d0] sm:$0xff] %vm5697, %v5307
      %5757 = vst.msk [vmem:[#allocation2 + $0x1d8] sm:$0xff] %vm5697, %v5308
      %5758 = vst.msk [vmem:[#allocation2 + $0x1e0] sm:$0xff] %vm5697, %v5309
      %5759 = vst.msk [vmem:[#allocation2 + $0x1e8] sm:$0xff] %vm5697, %v5310
      %5760 = vst.msk [vmem:[#allocation2 + $0x1f0] sm:$0xff] %vm5697, %v5311
      %5761 = vst.msk [vmem:[#allocation2 + $0x1f8] sm:$0xff] %vm5697, %v5312
      %5762 = vst.msk [vmem:[#allocation2 + $0x200] sm:$0xff] %vm5697, %v5313
      %5763 = vst.msk [vmem:[#allocation2 + $0x208] sm:$0xff] %vm5697, %v5314
      %5764 = vst.msk [vmem:[#allocation2 + $0x210] sm:$0xff] %vm5697, %v5315
      %5765 = vst.msk [vmem:[#allocation2 + $0x218] sm:$0xff] %vm5697, %v5316
      %5766 = vst.msk [vmem:[#allocation2 + $0x220] sm:$0xff] %vm5697, %v5317
      %5767 = vst.msk [vmem:[#allocation2 + $0x228] sm:$0xff] %vm5697, %v5318
      %5768 = vst.msk [vmem:[#allocation2 + $0x230] sm:$0xff] %vm5697, %v5319
      %5769 = vst.msk [vmem:[#allocation2 + $0x238] sm:$0xff] %vm5697, %v5320
      %5770 = vst.msk [vmem:[#allocation2 + $0x240] sm:$0xff] %vm5697, %v5321
      %5771 = vst.msk [vmem:[#allocation2 + $0x248] sm:$0xff] %vm5697, %v5322
      %5772 = vst.msk [vmem:[#allocation2 + $0x250] sm:$0xff] %vm5697, %v5323
      %5773 = vst.msk [vmem:[#allocation2 + $0x258] sm:$0xff] %vm5697, %v5324
      %5774 = vst.msk [vmem:[#allocation2 + $0x260] sm:$0xff] %vm5697, %v5325
      %5775 = vst.msk [vmem:[#allocation2 + $0x268] sm:$0xff] %vm5697, %v5326
      %5776 = vst.msk [vmem:[#allocation2 + $0x270] sm:$0xff] %vm5697, %v5327
      %5777 = vst.msk [vmem:[#allocation2 + $0x278] sm:$0xff] %vm5697, %v5328
      %5778 = vst.msk [vmem:[#allocation2 + $0x280] sm:$0xff] %vm5697, %v5329
      %5779 = vst.msk [vmem:[#allocation2 + $0x288] sm:$0xff] %vm5697, %v5330
      %5780 = vst.msk [vmem:[#allocation2 + $0x290] sm:$0xff] %vm5697, %v5331
      %5781 = vst.msk [vmem:[#allocation2 + $0x298] sm:$0xff] %vm5697, %v5332
      %5782 = vst.msk [vmem:[#allocation2 + $0x2a0] sm:$0xff] %vm5697, %v5333
      %5783 = vst.msk [vmem:[#allocation2 + $0x2a8] sm:$0xff] %vm5697, %v5334
      %5784 = vst.msk [vmem:[#allocation2 + $0x2b0] sm:$0xff] %vm5697, %v5335
      %5785 = vst.msk [vmem:[#allocation2 + $0x2b8] sm:$0xff] %vm5697, %v5336
      %5786 = vst.msk [vmem:[#allocation2 + $0x2c0] sm:$0xff] %vm5697, %v5337
      %5787 = vst.msk [vmem:[#allocation2 + $0x2c8] sm:$0xff] %vm5697, %v5338
      %5788 = vst.msk [vmem:[#allocation2 + $0x2d0] sm:$0xff] %vm5697, %v5339
      %5789 = vst.msk [vmem:[#allocation2 + $0x2d8] sm:$0xff] %vm5697, %v5340
      %5790 = vst.msk [vmem:[#allocation2 + $0x2e0] sm:$0xff] %vm5697, %v5341
      %5791 = vst.msk [vmem:[#allocation2 + $0x2e8] sm:$0xff] %vm5697, %v5342
      %5792 = vst.msk [vmem:[#allocation2 + $0x2f0] sm:$0xff] %vm5697, %v5343
      %5793 = vst.msk [vmem:[#allocation2 + $0x2f8] sm:$0xff] %vm5697, %v5344
      %5794 = vst.msk [vmem:[#allocation2 + $0x300] sm:$0xff] %vm5697, %v5345
      %5795 = vst.msk [vmem:[#allocation2 + $0x308] sm:$0xff] %vm5697, %v5346
      %5796 = vst.msk [vmem:[#allocation2 + $0x310] sm:$0xff] %vm5697, %v5347
      %5797 = vst.msk [vmem:[#allocation2 + $0x318] sm:$0xff] %vm5697, %v5348
      %5798 = vst.msk [vmem:[#allocation2 + $0x320] sm:$0xff] %vm5697, %v5349
      %5799 = vst.msk [vmem:[#allocation2 + $0x328] sm:$0xff] %vm5697, %v5350
      %5800 = vst.msk [vmem:[#allocation2 + $0x330] sm:$0xff] %vm5697, %v5351
      %5801 = vst.msk [vmem:[#allocation2 + $0x338] sm:$0xff] %vm5697, %v5352
      %5802 = vst.msk [vmem:[#allocation2 + $0x340] sm:$0xff] %vm5697, %v5353
      %5803 = vst.msk [vmem:[#allocation2 + $0x348] sm:$0xff] %vm5697, %v5354
      %5804 = vst.msk [vmem:[#allocation2 + $0x350] sm:$0xff] %vm5697, %v5355
      %5805 = vst.msk [vmem:[#allocation2 + $0x358] sm:$0xff] %vm5697, %v5356
      %5806 = vst.msk [vmem:[#allocation2 + $0x360] sm:$0xff] %vm5697, %v5357
      %5807 = vst.msk [vmem:[#allocation2 + $0x368] sm:$0xff] %vm5697, %v5358
      %5808 = vst.msk [vmem:[#allocation2 + $0x370] sm:$0xff] %vm5697, %v5359
      %5809 = vst.msk [vmem:[#allocation2 + $0x378] sm:$0xff] %vm5697, %v5360
      %5810 = vst.msk [vmem:[#allocation2 + $0x380] sm:$0xff] %vm5697, %v5361
      %5811 = vst.msk [vmem:[#allocation2 + $0x388] sm:$0xff] %vm5697, %v5362
      %5812 = vst.msk [vmem:[#allocation2 + $0x390] sm:$0xff] %vm5697, %v5363
      %5813 = vst.msk [vmem:[#allocation2 + $0x398] sm:$0xff] %vm5697, %v5364
      %5814 = vst.msk [vmem:[#allocation2 + $0x3a0] sm:$0xff] %vm5697, %v5365
      %5815 = vst.msk [vmem:[#allocation2 + $0x3a8] sm:$0xff] %vm5697, %v5366
      %5816 = vst.msk [vmem:[#allocation2 + $0x3b0] sm:$0xff] %vm5697, %v5367
      %5817 = vst.msk [vmem:[#allocation2 + $0x3b8] sm:$0xff] %vm5697, %v5368
      %5818 = vst.msk [vmem:[#allocation2 + $0x3c0] sm:$0xff] %vm5697, %v5369
      %5819 = vst.msk [vmem:[#allocation2 + $0x3c8] sm:$0xff] %vm5697, %v5370
      %5820 = vst.msk [vmem:[#allocation2 + $0x3d0] sm:$0xff] %vm5697, %v5371
      %5821 = vst.msk [vmem:[#allocation2 + $0x3d8] sm:$0xff] %vm5697, %v5372
      %5822 = vst.msk [vmem:[#allocation2 + $0x3e0] sm:$0xff] %vm5697, %v5373
      %5823 = vst.msk [vmem:[#allocation2 + $0x3e8] sm:$0xff] %vm5697, %v5374
      %5824 = vst.msk [vmem:[#allocation2 + $0x3f0] sm:$0xff] %vm5697, %v5375
      %5825 = vst.msk [vmem:[#allocation2 + $0x3f8] sm:$0xff] %vm5697, %v5376
      %5826 = vst.msk [vmem:[#allocation2 + $0x400] sm:$0xff] %vm5697, %v5377
      %5827 = vst.msk [vmem:[#allocation2 + $0x408] sm:$0xff] %vm5697, %v5378
      %5828 = vst.msk [vmem:[#allocation2 + $0x410] sm:$0xff] %vm5697, %v5379
      %5829 = vst.msk [vmem:[#allocation2 + $0x418] sm:$0xff] %vm5697, %v5380
      %5830 = vst.msk [vmem:[#allocation2 + $0x420] sm:$0xff] %vm5697, %v5381
      %5831 = vst.msk [vmem:[#allocation2 + $0x428] sm:$0xff] %vm5697, %v5382
      %5832 = vst.msk [vmem:[#allocation2 + $0x430] sm:$0xff] %vm5697, %v5383
      %5833 = vst.msk [vmem:[#allocation2 + $0x438] sm:$0xff] %vm5697, %v5384
      %5834 = vst.msk [vmem:[#allocation2 + $0x440] sm:$0xff] %vm5697, %v5385
      %5835 = vst.msk [vmem:[#allocation2 + $0x448] sm:$0xff] %vm5697, %v5386
      %5836 = vst.msk [vmem:[#allocation2 + $0x450] sm:$0xff] %vm5697, %v5387
      %5837 = vst.msk [vmem:[#allocation2 + $0x458] sm:$0xff] %vm5697, %v5388
      %5838 = vst.msk [vmem:[#allocation2 + $0x460] sm:$0xff] %vm5697, %v5389
      %5839 = vst.msk [vmem:[#allocation2 + $0x468] sm:$0xff] %vm5697, %v5390
      %5840 = vst.msk [vmem:[#allocation2 + $0x470] sm:$0xff] %vm5697, %v5391
      %5841 = vst.msk [vmem:[#allocation2 + $0x478] sm:$0xff] %vm5697, %v5392
      %5842 = vst.msk [vmem:[#allocation2 + $0x480] sm:$0xff] %vm5697, %v5393
      %5843 = vst.msk [vmem:[#allocation2 + $0x488] sm:$0xff] %vm5697, %v5394
      %5844 = vst.msk [vmem:[#allocation2 + $0x490] sm:$0xff] %vm5697, %v5395
      %5845 = vst.msk [vmem:[#allocation2 + $0x498] sm:$0xff] %vm5697, %v5396
      %5846 = vst.msk [vmem:[#allocation2 + $0x4a0] sm:$0xff] %vm5697, %v5397
      %5847 = vst.msk [vmem:[#allocation2 + $0x4a8] sm:$0xff] %vm5697, %v5398
      %5848 = vst.msk [vmem:[#allocation2 + $0x4b0] sm:$0xff] %vm5697, %v5399
      %5849 = vst.msk [vmem:[#allocation2 + $0x4b8] sm:$0xff] %vm5697, %v5400
      %5850 = vst.msk [vmem:[#allocation2 + $0x4c0] sm:$0xff] %vm5697, %v5401
      %5851 = vst.msk [vmem:[#allocation2 + $0x4c8] sm:$0xff] %vm5697, %v5402
      %5852 = vst.msk [vmem:[#allocation2 + $0x4d0] sm:$0xff] %vm5697, %v5403
      %5853 = vst.msk [vmem:[#allocation2 + $0x4d8] sm:$0xff] %vm5697, %v5404
      %5854 = vst.msk [vmem:[#allocation2 + $0x4e0] sm:$0xff] %vm5697, %v5405
      %5855 = vst.msk [vmem:[#allocation2 + $0x4e8] sm:$0xff] %vm5697, %v5406
      %5856 = vst.msk [vmem:[#allocation2 + $0x4f0] sm:$0xff] %vm5697, %v5407
      %5857 = vst.msk [vmem:[#allocation2 + $0x4f8] sm:$0xff] %vm5697, %v5408
      %5858 = vst.msk [vmem:[#allocation2 + $0x500] sm:$0xff] %vm5697, %v5409
      %5859 = vst.msk [vmem:[#allocation2 + $0x508] sm:$0xff] %vm5697, %v5410
      %5860 = vst.msk [vmem:[#allocation2 + $0x510] sm:$0xff] %vm5697, %v5411
      %5861 = vst.msk [vmem:[#allocation2 + $0x518] sm:$0xff] %vm5697, %v5412
      %5862 = vst.msk [vmem:[#allocation2 + $0x520] sm:$0xff] %vm5697, %v5413
      %5863 = vst.msk [vmem:[#allocation2 + $0x528] sm:$0xff] %vm5697, %v5414
      %5864 = vst.msk [vmem:[#allocation2 + $0x530] sm:$0xff] %vm5697, %v5415
      %5865 = vst.msk [vmem:[#allocation2 + $0x538] sm:$0xff] %vm5697, %v5416
      %5866 = vst.msk [vmem:[#allocation2 + $0x540] sm:$0xff] %vm5697, %v5417
      %5867 = vst.msk [vmem:[#allocation2 + $0x548] sm:$0xff] %vm5697, %v5418
      %5868 = vst.msk [vmem:[#allocation2 + $0x550] sm:$0xff] %vm5697, %v5419
      %5869 = vst.msk [vmem:[#allocation2 + $0x558] sm:$0xff] %vm5697, %v5420
      %5870 = vst.msk [vmem:[#allocation2 + $0x560] sm:$0xff] %vm5697, %v5421
      %5871 = vst.msk [vmem:[#allocation2 + $0x568] sm:$0xff] %vm5697, %v5422
      %5872 = vst.msk [vmem:[#allocation2 + $0x570] sm:$0xff] %vm5697, %v5423
      %5873 = vst.msk [vmem:[#allocation2 + $0x578] sm:$0xff] %vm5697, %v5424
      %5874 = vst.msk [vmem:[#allocation2 + $0x580] sm:$0xff] %vm5697, %v5425
      %5875 = vst.msk [vmem:[#allocation2 + $0x588] sm:$0xff] %vm5697, %v5426
      %5876 = vst.msk [vmem:[#allocation2 + $0x590] sm:$0xff] %vm5697, %v5427
      %5877 = vst.msk [vmem:[#allocation2 + $0x598] sm:$0xff] %vm5697, %v5428
      %5878 = vst.msk [vmem:[#allocation2 + $0x5a0] sm:$0xff] %vm5697, %v5429
      %5879 = vst.msk [vmem:[#allocation2 + $0x5a8] sm:$0xff] %vm5697, %v5430
      %5880 = vst.msk [vmem:[#allocation2 + $0x5b0] sm:$0xff] %vm5697, %v5431
      %5881 = vst.msk [vmem:[#allocation2 + $0x5b8] sm:$0xff] %vm5697, %v5432
      %5882 = vst.msk [vmem:[#allocation2 + $0x5c0] sm:$0xff] %vm5697, %v5433
      %5883 = vst.msk [vmem:[#allocation2 + $0x5c8] sm:$0xff] %vm5697, %v5434
      %5884 = vst.msk [vmem:[#allocation2 + $0x5d0] sm:$0xff] %vm5697, %v5435
      %5885 = vst.msk [vmem:[#allocation2 + $0x5d8] sm:$0xff] %vm5697, %v5436
      %5886 = vst.msk [vmem:[#allocation2 + $0x5e0] sm:$0xff] %vm5697, %v5437
      %5887 = vst.msk [vmem:[#allocation2 + $0x5e8] sm:$0xff] %vm5697, %v5438
      %5888 = vst.msk [vmem:[#allocation2 + $0x5f0] sm:$0xff] %vm5697, %v5439
      %5889 = vst.msk [vmem:[#allocation2 + $0x5f8] sm:$0xff] %vm5697, %v5440
      %5890 = vst.msk [vmem:[#allocation2 + $0x600] sm:$0xff] %vm5697, %v5441
      %5891 = vst.msk [vmem:[#allocation2 + $0x608] sm:$0xff] %vm5697, %v5442
      %5892 = vst.msk [vmem:[#allocation2 + $0x610] sm:$0xff] %vm5697, %v5443
      %5893 = vst.msk [vmem:[#allocation2 + $0x618] sm:$0xff] %vm5697, %v5444
      %5894 = vst.msk [vmem:[#allocation2 + $0x620] sm:$0xff] %vm5697, %v5445
      %5895 = vst.msk [vmem:[#allocation2 + $0x628] sm:$0xff] %vm5697, %v5446
      %5896 = vst.msk [vmem:[#allocation2 + $0x630] sm:$0xff] %vm5697, %v5447
      %5897 = vst.msk [vmem:[#allocation2 + $0x638] sm:$0xff] %vm5697, %v5448
      %5898 = vst.msk [vmem:[#allocation2 + $0x640] sm:$0xff] %vm5697, %v5449
      %5899 = vst.msk [vmem:[#allocation2 + $0x648] sm:$0xff] %vm5697, %v5450
      %5900 = vst.msk [vmem:[#allocation2 + $0x650] sm:$0xff] %vm5697, %v5451
      %5901 = vst.msk [vmem:[#allocation2 + $0x658] sm:$0xff] %vm5697, %v5452
      %5902 = vst.msk [vmem:[#allocation2 + $0x660] sm:$0xff] %vm5697, %v5453
      %5903 = vst.msk [vmem:[#allocation2 + $0x668] sm:$0xff] %vm5697, %v5454
      %5904 = vst.msk [vmem:[#allocation2 + $0x670] sm:$0xff] %vm5697, %v5455
      %5905 = vst.msk [vmem:[#allocation2 + $0x678] sm:$0xff] %vm5697, %v5456
      %5906 = vst.msk [vmem:[#allocation2 + $0x680] sm:$0xff] %vm5697, %v5457
      %5907 = vst.msk [vmem:[#allocation2 + $0x688] sm:$0xff] %vm5697, %v5458
      %5908 = vst.msk [vmem:[#allocation2 + $0x690] sm:$0xff] %vm5697, %v5459
      %5909 = vst.msk [vmem:[#allocation2 + $0x698] sm:$0xff] %vm5697, %v5460
      %5910 = vst.msk [vmem:[#allocation2 + $0x6a0] sm:$0xff] %vm5697, %v5461
      %5911 = vst.msk [vmem:[#allocation2 + $0x6a8] sm:$0xff] %vm5697, %v5462
      %5912 = vst.msk [vmem:[#allocation2 + $0x6b0] sm:$0xff] %vm5697, %v5463
      %5913 = vst.msk [vmem:[#allocation2 + $0x6b8] sm:$0xff] %vm5697, %v5464
      %5914 = vst.msk [vmem:[#allocation2 + $0x6c0] sm:$0xff] %vm5697, %v5465
      %5915 = vst.msk [vmem:[#allocation2 + $0x6c8] sm:$0xff] %vm5697, %v5466
      %5916 = vst.msk [vmem:[#allocation2 + $0x6d0] sm:$0xff] %vm5697, %v5467
      %5917 = vst.msk [vmem:[#allocation2 + $0x6d8] sm:$0xff] %vm5697, %v5468
      %5918 = vst.msk [vmem:[#allocation2 + $0x6e0] sm:$0xff] %vm5697, %v5469
      %5919 = vst.msk [vmem:[#allocation2 + $0x6e8] sm:$0xff] %vm5697, %v5470
      %5920 = vst.msk [vmem:[#allocation2 + $0x6f0] sm:$0xff] %vm5697, %v5471
      %5921 = vst.msk [vmem:[#allocation2 + $0x6f8] sm:$0xff] %vm5697, %v5472
      %5922 = vst.msk [vmem:[#allocation2 + $0x700] sm:$0xff] %vm5697, %v5473
      %5923 = vst.msk [vmem:[#allocation2 + $0x708] sm:$0xff] %vm5697, %v5474
      %5924 = vst.msk [vmem:[#allocation2 + $0x710] sm:$0xff] %vm5697, %v5475
      %5925 = vst.msk [vmem:[#allocation2 + $0x718] sm:$0xff] %vm5697, %v5476
      %5926 = vst.msk [vmem:[#allocation2 + $0x720] sm:$0xff] %vm5697, %v5477
      %5927 = vst.msk [vmem:[#allocation2 + $0x728] sm:$0xff] %vm5697, %v5478
      %5928 = vst.msk [vmem:[#allocation2 + $0x730] sm:$0xff] %vm5697, %v5479
      %5929 = vst.msk [vmem:[#allocation2 + $0x738] sm:$0xff] %vm5697, %v5480
      %5930 = vst.msk [vmem:[#allocation2 + $0x740] sm:$0xff] %vm5697, %v5481
      %5931 = vst.msk [vmem:[#allocation2 + $0x748] sm:$0xff] %vm5697, %v5482
      %5932 = vst.msk [vmem:[#allocation2 + $0x750] sm:$0xff] %vm5697, %v5483
      %5933 = vst.msk [vmem:[#allocation2 + $0x758] sm:$0xff] %vm5697, %v5484
      %5934 = vst.msk [vmem:[#allocation2 + $0x760] sm:$0xff] %vm5697, %v5485
      %5935 = vst.msk [vmem:[#allocation2 + $0x768] sm:$0xff] %vm5697, %v5486
      %5936 = vst.msk [vmem:[#allocation2 + $0x770] sm:$0xff] %vm5697, %v5487
      %5937 = vst.msk [vmem:[#allocation2 + $0x778] sm:$0xff] %vm5697, %v5488
      %5938 = vst.msk [vmem:[#allocation2 + $0x780] sm:$0xff] %vm5697, %v5489
      %5939 = vst.msk [vmem:[#allocation2 + $0x788] sm:$0xff] %vm5697, %v5490
      %5940 = vst.msk [vmem:[#allocation2 + $0x790] sm:$0xff] %vm5697, %v5491
      %5941 = vst.msk [vmem:[#allocation2 + $0x798] sm:$0xff] %vm5697, %v5492
      %5942 = vst.msk [vmem:[#allocation2 + $0x7a0] sm:$0xff] %vm5697, %v5493
      %5943 = vst.msk [vmem:[#allocation2 + $0x7a8] sm:$0xff] %vm5697, %v5494
      %5944 = vst.msk [vmem:[#allocation2 + $0x7b0] sm:$0xff] %vm5697, %v5495
      %5945 = vst.msk [vmem:[#allocation2 + $0x7b8] sm:$0xff] %vm5697, %v5496
      %5946 = vst.msk [vmem:[#allocation2 + $0x7c0] sm:$0xff] %vm5697, %v5497
      %5947 = vst.msk [vmem:[#allocation2 + $0x7c8] sm:$0xff] %vm5697, %v5498
      %5948 = vst.msk [vmem:[#allocation2 + $0x7d0] sm:$0xff] %vm5697, %v5499
      %5949 = vst.msk [vmem:[#allocation2 + $0x7d8] sm:$0xff] %vm5697, %v5500
      %5950 = vst.msk [vmem:[#allocation2 + $0x7e0] sm:$0xff] %vm5697, %v5501
      %5951 = vst.msk [vmem:[#allocation2 + $0x7e8] sm:$0xff] %vm5697, %v5502
      %5952 = vst.msk [vmem:[#allocation2 + $0x7f0] sm:$0xff] %vm5697, %v5503
      %5953 = vst.msk [vmem:[#allocation2 + $0x7f8] sm:$0xff] %vm5697, %v5504
      %5954 = vst.msk [vmem:[#allocation2 + $0x800] sm:$0xff] %vm5697, %v5505
      %5955 = vst.msk [vmem:[#allocation2 + $0x808] sm:$0xff] %vm5697, %v5506
      %5956 = vst.msk [vmem:[#allocation2 + $0x810] sm:$0xff] %vm5697, %v5507
      %5957 = vst.msk [vmem:[#allocation2 + $0x818] sm:$0xff] %vm5697, %v5508
      %5958 = vst.msk [vmem:[#allocation2 + $0x820] sm:$0xff] %vm5697, %v5509
      %5959 = vst.msk [vmem:[#allocation2 + $0x828] sm:$0xff] %vm5697, %v5510
      %5960 = vst.msk [vmem:[#allocation2 + $0x830] sm:$0xff] %vm5697, %v5511
      %5961 = vst.msk [vmem:[#allocation2 + $0x838] sm:$0xff] %vm5697, %v5512
      %5962 = vst.msk [vmem:[#allocation2 + $0x840] sm:$0xff] %vm5697, %v5513
      %5963 = vst.msk [vmem:[#allocation2 + $0x848] sm:$0xff] %vm5697, %v5514
      %5964 = vst.msk [vmem:[#allocation2 + $0x850] sm:$0xff] %vm5697, %v5515
      %5965 = vst.msk [vmem:[#allocation2 + $0x858] sm:$0xff] %vm5697, %v5516
      %5966 = vst.msk [vmem:[#allocation2 + $0x860] sm:$0xff] %vm5697, %v5517
      %5967 = vst.msk [vmem:[#allocation2 + $0x868] sm:$0xff] %vm5697, %v5518
      %5968 = vst.msk [vmem:[#allocation2 + $0x870] sm:$0xff] %vm5697, %v5519
      %5969 = vst.msk [vmem:[#allocation2 + $0x878] sm:$0xff] %vm5697, %v5520
      %5970 = vst.msk [vmem:[#allocation2 + $0x880] sm:$0xff] %vm5697, %v5521
      %5971 = vst.msk [vmem:[#allocation2 + $0x888] sm:$0xff] %vm5697, %v5522
      %5972 = vst.msk [vmem:[#allocation2 + $0x890] sm:$0xff] %vm5697, %v5523
      %5973 = vst.msk [vmem:[#allocation2 + $0x898] sm:$0xff] %vm5697, %v5524
      %5974 = vst.msk [vmem:[#allocation2 + $0x8a0] sm:$0xff] %vm5697, %v5525
      %5975 = vst.msk [vmem:[#allocation2 + $0x8a8] sm:$0xff] %vm5697, %v5526
      %5976 = vst.msk [vmem:[#allocation2 + $0x8b0] sm:$0xff] %vm5697, %v5527
      %5977 = vst.msk [vmem:[#allocation2 + $0x8b8] sm:$0xff] %vm5697, %v5528
      %5978 = vst.msk [vmem:[#allocation2 + $0x8c0] sm:$0xff] %vm5697, %v5529
      %5979 = vst.msk [vmem:[#allocation2 + $0x8c8] sm:$0xff] %vm5697, %v5530
      %5980 = vst.msk [vmem:[#allocation2 + $0x8d0] sm:$0xff] %vm5697, %v5531
      %5981 = vst.msk [vmem:[#allocation2 + $0x8d8] sm:$0xff] %vm5697, %v5532
      %5982 = vst.msk [vmem:[#allocation2 + $0x8e0] sm:$0xff] %vm5697, %v5533
      %5983 = vst.msk [vmem:[#allocation2 + $0x8e8] sm:$0xff] %vm5697, %v5534
      %5984 = vst.msk [vmem:[#allocation2 + $0x8f0] sm:$0xff] %vm5697, %v5535
      %5985 = vst.msk [vmem:[#allocation2 + $0x8f8] sm:$0xff] %vm5697, %v5536
      %5986 = vst.msk [vmem:[#allocation2 + $0x900] sm:$0xff] %vm5697, %v5537
      %5987 = vst.msk [vmem:[#allocation2 + $0x908] sm:$0xff] %vm5697, %v5538
      %5988 = vst.msk [vmem:[#allocation2 + $0x910] sm:$0xff] %vm5697, %v5539
      %5989 = vst.msk [vmem:[#allocation2 + $0x918] sm:$0xff] %vm5697, %v5540
      %5990 = vst.msk [vmem:[#allocation2 + $0x920] sm:$0xff] %vm5697, %v5541
      %5991 = vst.msk [vmem:[#allocation2 + $0x928] sm:$0xff] %vm5697, %v5542
      %5992 = vst.msk [vmem:[#allocation2 + $0x930] sm:$0xff] %vm5697, %v5543
      %5993 = vst.msk [vmem:[#allocation2 + $0x938] sm:$0xff] %vm5697, %v5544
      %5994 = vst.msk [vmem:[#allocation2 + $0x940] sm:$0xff] %vm5697, %v5545
      %5995 = vst.msk [vmem:[#allocation2 + $0x948] sm:$0xff] %vm5697, %v5546
      %5996 = vst.msk [vmem:[#allocation2 + $0x950] sm:$0xff] %vm5697, %v5547
      %5997 = vst.msk [vmem:[#allocation2 + $0x958] sm:$0xff] %vm5697, %v5548
      %5998 = vst.msk [vmem:[#allocation2 + $0x960] sm:$0xff] %vm5697, %v5549
      %5999 = vst.msk [vmem:[#allocation2 + $0x968] sm:$0xff] %vm5697, %v5550
      %6000 = vst.msk [vmem:[#allocation2 + $0x970] sm:$0xff] %vm5697, %v5551
      %6001 = vst.msk [vmem:[#allocation2 + $0x978] sm:$0xff] %vm5697, %v5552
      %6002 = vst.msk [vmem:[#allocation2 + $0x980] sm:$0xff] %vm5697, %v5553
      %6003 = vst.msk [vmem:[#allocation2 + $0x988] sm:$0xff] %vm5697, %v5554
      %6004 = vst.msk [vmem:[#allocation2 + $0x990] sm:$0xff] %vm5697, %v5555
      %6005 = vst.msk [vmem:[#allocation2 + $0x998] sm:$0xff] %vm5697, %v5556
      %6006 = vst.msk [vmem:[#allocation2 + $0x9a0] sm:$0xff] %vm5697, %v5557
      %6007 = vst.msk [vmem:[#allocation2 + $0x9a8] sm:$0xff] %vm5697, %v5558
      %6008 = vst.msk [vmem:[#allocation2 + $0x9b0] sm:$0xff] %vm5697, %v5559
      %6009 = vst.msk [vmem:[#allocation2 + $0x9b8] sm:$0xff] %vm5697, %v5560
      %6010 = vst.msk [vmem:[#allocation2 + $0x9c0] sm:$0xff] %vm5697, %v5561
      %6011 = vst.msk [vmem:[#allocation2 + $0x9c8] sm:$0xff] %vm5697, %v5562
      %6012 = vst.msk [vmem:[#allocation2 + $0x9d0] sm:$0xff] %vm5697, %v5563
      %6013 = vst.msk [vmem:[#allocation2 + $0x9d8] sm:$0xff] %vm5697, %v5564
      %6014 = vst.msk [vmem:[#allocation2 + $0x9e0] sm:$0xff] %vm5697, %v5565
      %6015 = vst.msk [vmem:[#allocation2 + $0x9e8] sm:$0xff] %vm5697, %v5566
      %6016 = vst.msk [vmem:[#allocation2 + $0x9f0] sm:$0xff] %vm5697, %v5567
      %6017 = vst.msk [vmem:[#allocation2 + $0x9f8] sm:$0xff] %vm5697, %v5568
      %6018 = vst.msk [vmem:[#allocation2 + $0xa00] sm:$0xff] %vm5697, %v5569
      %6019 = vst.msk [vmem:[#allocation2 + $0xa08] sm:$0xff] %vm5697, %v5570
      %6020 = vst.msk [vmem:[#allocation2 + $0xa10] sm:$0xff] %vm5697, %v5571
      %6021 = vst.msk [vmem:[#allocation2 + $0xa18] sm:$0xff] %vm5697, %v5572
      %6022 = vst.msk [vmem:[#allocation2 + $0xa20] sm:$0xff] %vm5697, %v5573
      %6023 = vst.msk [vmem:[#allocation2 + $0xa28] sm:$0xff] %vm5697, %v5574
      %6024 = vst.msk [vmem:[#allocation2 + $0xa30] sm:$0xff] %vm5697, %v5575
      %6025 = vst.msk [vmem:[#allocation2 + $0xa38] sm:$0xff] %vm5697, %v5576
      %6026 = vst.msk [vmem:[#allocation2 + $0xa40] sm:$0xff] %vm5697, %v5577
      %6027 = vst.msk [vmem:[#allocation2 + $0xa48] sm:$0xff] %vm5697, %v5578
      %6028 = vst.msk [vmem:[#allocation2 + $0xa50] sm:$0xff] %vm5697, %v5579
      %6029 = vst.msk [vmem:[#allocation2 + $0xa58] sm:$0xff] %vm5697, %v5580
      %6030 = vst.msk [vmem:[#allocation2 + $0xa60] sm:$0xff] %vm5697, %v5581
      %6031 = vst.msk [vmem:[#allocation2 + $0xa68] sm:$0xff] %vm5697, %v5582
      %6032 = vst.msk [vmem:[#allocation2 + $0xa70] sm:$0xff] %vm5697, %v5583
      %6033 = vst.msk [vmem:[#allocation2 + $0xa78] sm:$0xff] %vm5697, %v5584
      %6034 = vst.msk [vmem:[#allocation2 + $0xa80] sm:$0xff] %vm5697, %v5585
      %6035 = vst.msk [vmem:[#allocation2 + $0xa88] sm:$0xff] %vm5697, %v5586
      %6036 = vst.msk [vmem:[#allocation2 + $0xa90] sm:$0xff] %vm5697, %v5587
      %6037 = vst.msk [vmem:[#allocation2 + $0xa98] sm:$0xff] %vm5697, %v5588
      %6038 = vst.msk [vmem:[#allocation2 + $0xaa0] sm:$0xff] %vm5697, %v5589
      %6039 = vst.msk [vmem:[#allocation2 + $0xaa8] sm:$0xff] %vm5697, %v5590
      %6040 = vst.msk [vmem:[#allocation2 + $0xab0] sm:$0xff] %vm5697, %v5591
      %6041 = vst.msk [vmem:[#allocation2 + $0xab8] sm:$0xff] %vm5697, %v5592
      %6042 = vst.msk [vmem:[#allocation2 + $0xac0] sm:$0xff] %vm5697, %v5593
      %6043 = vst.msk [vmem:[#allocation2 + $0xac8] sm:$0xff] %vm5697, %v5594
      %6044 = vst.msk [vmem:[#allocation2 + $0xad0] sm:$0xff] %vm5697, %v5595
      %6045 = vst.msk [vmem:[#allocation2 + $0xad8] sm:$0xff] %vm5697, %v5596
      %6046 = vst.msk [vmem:[#allocation2 + $0xae0] sm:$0xff] %vm5697, %v5597
      %6047 = vst.msk [vmem:[#allocation2 + $0xae8] sm:$0xff] %vm5697, %v5598
      %6048 = vst.msk [vmem:[#allocation2 + $0xaf0] sm:$0xff] %vm5697, %v5599
      %6049 = vst.msk [vmem:[#allocation2 + $0xaf8] sm:$0xff] %vm5697, %v5600
      %6050 = vst.msk [vmem:[#allocation2 + $0xb00] sm:$0xff] %vm5697, %v5601
      %6051 = vst.msk [vmem:[#allocation2 + $0xb08] sm:$0xff] %vm5697, %v5602
      %6052 = vst.msk [vmem:[#allocation2 + $0xb10] sm:$0xff] %vm5697, %v5603
      %6053 = vst.msk [vmem:[#allocation2 + $0xb18] sm:$0xff] %vm5697, %v5604
      %6054 = vst.msk [vmem:[#allocation2 + $0xb20] sm:$0xff] %vm5697, %v5605
      %6055 = vst.msk [vmem:[#allocation2 + $0xb28] sm:$0xff] %vm5697, %v5606
      %6056 = vst.msk [vmem:[#allocation2 + $0xb30] sm:$0xff] %vm5697, %v5607
      %6057 = vst.msk [vmem:[#allocation2 + $0xb38] sm:$0xff] %vm5697, %v5608
      %6058 = vst.msk [vmem:[#allocation2 + $0xb40] sm:$0xff] %vm5697, %v5609
      %6059 = vst.msk [vmem:[#allocation2 + $0xb48] sm:$0xff] %vm5697, %v5610
      %6060 = vst.msk [vmem:[#allocation2 + $0xb50] sm:$0xff] %vm5697, %v5611
      %6061 = vst.msk [vmem:[#allocation2 + $0xb58] sm:$0xff] %vm5697, %v5612
      %6062 = vst.msk [vmem:[#allocation2 + $0xb60] sm:$0xff] %vm5697, %v5613
      %6063 = vst.msk [vmem:[#allocation2 + $0xb68] sm:$0xff] %vm5697, %v5614
      %6064 = vst.msk [vmem:[#allocation2 + $0xb70] sm:$0xff] %vm5697, %v5615
      %6065 = vst.msk [vmem:[#allocation2 + $0xb78] sm:$0xff] %vm5697, %v5616
      %6066 = vst.msk [vmem:[#allocation2 + $0xb80] sm:$0xff] %vm5697, %v5617
      %6067 = vst.msk [vmem:[#allocation2 + $0xb88] sm:$0xff] %vm5697, %v5618
      %6068 = vst.msk [vmem:[#allocation2 + $0xb90] sm:$0xff] %vm5697, %v5619
      %6069 = vst.msk [vmem:[#allocation2 + $0xb98] sm:$0xff] %vm5697, %v5620
      %6070 = vst.msk [vmem:[#allocation2 + $0xba0] sm:$0xff] %vm5697, %v5621
      %6071 = vst.msk [vmem:[#allocation2 + $0xba8] sm:$0xff] %vm5697, %v5622
      %6072 = vst.msk [vmem:[#allocation2 + $0xbb0] sm:$0xff] %vm5697, %v5623
      %6073 = vst.msk [vmem:[#allocation2 + $0xbb8] sm:$0xff] %vm5697, %v5624
      %6074 = vst.msk [vmem:[#allocation2 + $0xbc0] sm:$0xff] %vm5697, %v5625
      %6075 = vst.msk [vmem:[#allocation2 + $0xbc8] sm:$0xff] %vm5697, %v5626
      %6076 = vst.msk [vmem:[#allocation2 + $0xbd0] sm:$0xff] %vm5697, %v5627
      %6077 = vst.msk [vmem:[#allocation2 + $0xbd8] sm:$0xff] %vm5697, %v5628
      %6078 = vst.msk [vmem:[#allocation2 + $0xbe0] sm:$0xff] %vm5697, %v5629
      %6079 = vst.msk [vmem:[#allocation2 + $0xbe8] sm:$0xff] %vm5697, %v5630
      %6080 = vst.msk [vmem:[#allocation2 + $0xbf0] sm:$0xff] %vm5697, %v5631
      %6081 = vst.msk [vmem:[#allocation2 + $0xbf8] sm:$0xff] %vm5697, %v5632
      %6082 = vst.msk [vmem:[#allocation2 + $0xc00] sm:$0xff] %vm5697, %v5633
      %6083 = vst.msk [vmem:[#allocation2 + $0xc08] sm:$0xff] %vm5697, %v5634
      %6084 = vst.msk [vmem:[#allocation2 + $0xc10] sm:$0xff] %vm5697, %v5635
      %6085 = vst.msk [vmem:[#allocation2 + $0xc18] sm:$0xff] %vm5697, %v5636
      %6086 = vst.msk [vmem:[#allocation2 + $0xc20] sm:$0xff] %vm5697, %v5637
      %6087 = vst.msk [vmem:[#allocation2 + $0xc28] sm:$0xff] %vm5697, %v5638
      %6088 = vst.msk [vmem:[#allocation2 + $0xc30] sm:$0xff] %vm5697, %v5639
      %6089 = vst.msk [vmem:[#allocation2 + $0xc38] sm:$0xff] %vm5697, %v5640
      %6090 = vst.msk [vmem:[#allocation2 + $0xc40] sm:$0xff] %vm5697, %v5641
      %6091 = vst.msk [vmem:[#allocation2 + $0xc48] sm:$0xff] %vm5697, %v5642
      %6092 = vst.msk [vmem:[#allocation2 + $0xc50] sm:$0xff] %vm5697, %v5643
      %6093 = vst.msk [vmem:[#allocation2 + $0xc58] sm:$0xff] %vm5697, %v5644
      %6094 = vst.msk [vmem:[#allocation2 + $0xc60] sm:$0xff] %vm5697, %v5645
      %6095 = vst.msk [vmem:[#allocation2 + $0xc68] sm:$0xff] %vm5697, %v5646
      %6096 = vst.msk [vmem:[#allocation2 + $0xc70] sm:$0xff] %vm5697, %v5647
      %6097 = vst.msk [vmem:[#allocation2 + $0xc78] sm:$0xff] %vm5697, %v5648
      %6098 = vst.msk [vmem:[#allocation2 + $0xc80] sm:$0xff] %vm5697, %v5649
      %6099 = vst.msk [vmem:[#allocation2 + $0xc88] sm:$0xff] %vm5697, %v5650
      %6100 = vst.msk [vmem:[#allocation2 + $0xc90] sm:$0xff] %vm5697, %v5651
      %6101 = vst.msk [vmem:[#allocation2 + $0xc98] sm:$0xff] %vm5697, %v5652
      %6102 = vst.msk [vmem:[#allocation2 + $0xca0] sm:$0xff] %vm5697, %v5653
      %6103 = vst.msk [vmem:[#allocation2 + $0xca8] sm:$0xff] %vm5697, %v5654
      %6104 = vst.msk [vmem:[#allocation2 + $0xcb0] sm:$0xff] %vm5697, %v5655
      %6105 = vst.msk [vmem:[#allocation2 + $0xcb8] sm:$0xff] %vm5697, %v5656
      %6106 = vst.msk [vmem:[#allocation2 + $0xcc0] sm:$0xff] %vm5697, %v5657
      %6107 = vst.msk [vmem:[#allocation2 + $0xcc8] sm:$0xff] %vm5697, %v5658
      %6108 = vst.msk [vmem:[#allocation2 + $0xcd0] sm:$0xff] %vm5697, %v5659
      %6109 = vst.msk [vmem:[#allocation2 + $0xcd8] sm:$0xff] %vm5697, %v5660
      %6110 = vst.msk [vmem:[#allocation2 + $0xce0] sm:$0xff] %vm5697, %v5661
      %6111 = vst.msk [vmem:[#allocation2 + $0xce8] sm:$0xff] %vm5697, %v5662
      %6112 = vst.msk [vmem:[#allocation2 + $0xcf0] sm:$0xff] %vm5697, %v5663
      %6113 = vst.msk [vmem:[#allocation2 + $0xcf8] sm:$0xff] %vm5697, %v5664
      %6114 = vst.msk [vmem:[#allocation2 + $0xd00] sm:$0xff] %vm5697, %v5665
      %6115 = vst.msk [vmem:[#allocation2 + $0xd08] sm:$0xff] %vm5697, %v5666
      %6116 = vst.msk [vmem:[#allocation2 + $0xd10] sm:$0xff] %vm5697, %v5667
      %6117 = vst.msk [vmem:[#allocation2 + $0xd18] sm:$0xff] %vm5697, %v5668
      %6118 = vst.msk [vmem:[#allocation2 + $0xd20] sm:$0xff] %vm5697, %v5669
      %6119 = vst.msk [vmem:[#allocation2 + $0xd28] sm:$0xff] %vm5697, %v5670
      %6120 = vst.msk [vmem:[#allocation2 + $0xd30] sm:$0xff] %vm5697, %v5671
      %6121 = vst.msk [vmem:[#allocation2 + $0xd38] sm:$0xff] %vm5697, %v5672
      %6122 = vst.msk [vmem:[#allocation2 + $0xd40] sm:$0xff] %vm5697, %v5673
      %6123 = vst.msk [vmem:[#allocation2 + $0xd48] sm:$0xff] %vm5697, %v5674
      %6124 = vst.msk [vmem:[#allocation2 + $0xd50] sm:$0xff] %vm5697, %v5675
      %6125 = vst.msk [vmem:[#allocation2 + $0xd58] sm:$0xff] %vm5697, %v5676
      %6126 = vst.msk [vmem:[#allocation2 + $0xd60] sm:$0xff] %vm5697, %v5677
      %6127 = vst.msk [vmem:[#allocation2 + $0xd68] sm:$0xff] %vm5697, %v5678
      %6128 = vst.msk [vmem:[#allocation2 + $0xd70] sm:$0xff] %vm5697, %v5679
      %6129 = vst.msk [vmem:[#allocation2 + $0xd78] sm:$0xff] %vm5697, %v5680
      %6130 = vst.msk [vmem:[#allocation2 + $0xd80] sm:$0xff] %vm5697, %v5681
      %6131 = vst.msk [vmem:[#allocation2 + $0xd88] sm:$0xff] %vm5697, %v5682
      %6132 = vst.msk [vmem:[#allocation2 + $0xd90] sm:$0xff] %vm5697, %v5683
      %6133 = vst.msk [vmem:[#allocation2 + $0xd98] sm:$0xff] %vm5697, %v5684
      %6134 = vst.msk [vmem:[#allocation2 + $0xda0] sm:$0xff] %vm5697, %v5685
      %6135 = vst.msk [vmem:[#allocation2 + $0xda8] sm:$0xff] %vm5697, %v5686
      %6136 = vst.msk [vmem:[#allocation2 + $0xdb0] sm:$0xff] %vm5697, %v5687
      %6137 = vst.msk [vmem:[#allocation2 + $0xdb8] sm:$0xff] %vm5697, %v5688
      %6138 = vst.msk [vmem:[#allocation2 + $0xdc0] sm:$0xff] %vm5697, %v5689
      %6139 = vst.msk [vmem:[#allocation2 + $0xdc8] sm:$0xff] %vm5697, %v5690
      %6140 = vst.msk [vmem:[#allocation2 + $0xdd0] sm:$0xff] %vm5697, %v5691
      %6141 = vst.msk [vmem:[#allocation2 + $0xdd8] sm:$0xff] %vm5697, %v5692
      %6142 = vst.msk [vmem:[#allocation2 + $0xde0] sm:$0xff] %vm5697, %v5693
      %6143 = vst.msk [vmem:[#allocation2 + $0xde8] sm:$0xff] %vm5697, %v5694
      %6144 = vst.msk [vmem:[#allocation2 + $0xdf0] sm:$0xff] %vm5697, %v5695
      %6145 = vst.msk [vmem:[#allocation2 + $0xdf8] sm:$0xff] %vm5697, %v5696
      // Predicated region
      $region37: #{tpu_custom_call.1} parent=31 // pred_check
        %p6146 = pneg %p260
      $region38: #{tpu_custom_call.1} parent=31 // pred_check_branch
        %6148 = sbr.rel (%p6146) target = $region40
      $region39: #{tpu_custom_call.1} parent=31 // pred_region
        %v6149 = vld [vmem:[#allocation2] sm:$0xff]
        %v6150 = vld [vmem:[#allocation2 + $0x8] sm:$0xff]
        %v6151 = vld [vmem:[#allocation2 + $0x10] sm:$0xff]
        %v6152 = vld [vmem:[#allocation2 + $0x18] sm:$0xff]
        %v6153 = vld [vmem:[#allocation2 + $0x20] sm:$0xff]
        %v6154 = vld [vmem:[#allocation2 + $0x28] sm:$0xff]
        %v6155 = vld [vmem:[#allocation2 + $0x30] sm:$0xff]
        %v6156 = vld [vmem:[#allocation2 + $0x38] sm:$0xff]
        %v6157 = vld [vmem:[#allocation2 + $0x40] sm:$0xff]
        %v6158 = vld [vmem:[#allocation2 + $0x48] sm:$0xff]
        %v6159 = vld [vmem:[#allocation2 + $0x50] sm:$0xff]
        %v6160 = vld [vmem:[#allocation2 + $0x58] sm:$0xff]
        %v6161 = vld [vmem:[#allocation2 + $0x60] sm:$0xff]
        %v6162 = vld [vmem:[#allocation2 + $0x68] sm:$0xff]
        %v6163 = vld [vmem:[#allocation2 + $0x70] sm:$0xff]
        %v6164 = vld [vmem:[#allocation2 + $0x78] sm:$0xff]
        %v6165 = vld [vmem:[#allocation2 + $0x80] sm:$0xff]
        %v6166 = vld [vmem:[#allocation2 + $0x88] sm:$0xff]
        %v6167 = vld [vmem:[#allocation2 + $0x90] sm:$0xff]
        %v6168 = vld [vmem:[#allocation2 + $0x98] sm:$0xff]
        %v6169 = vld [vmem:[#allocation2 + $0xa0] sm:$0xff]
        %v6170 = vld [vmem:[#allocation2 + $0xa8] sm:$0xff]
        %v6171 = vld [vmem:[#allocation2 + $0xb0] sm:$0xff]
        %v6172 = vld [vmem:[#allocation2 + $0xb8] sm:$0xff]
        %v6173 = vld [vmem:[#allocation2 + $0xc0] sm:$0xff]
        %v6174 = vld [vmem:[#allocation2 + $0xc8] sm:$0xff]
        %v6175 = vld [vmem:[#allocation2 + $0xd0] sm:$0xff]
        %v6176 = vld [vmem:[#allocation2 + $0xd8] sm:$0xff]
        %v6177 = vld [vmem:[#allocation2 + $0xe0] sm:$0xff]
        %v6178 = vld [vmem:[#allocation2 + $0xe8] sm:$0xff]
        %v6179 = vld [vmem:[#allocation2 + $0xf0] sm:$0xff]
        %v6180 = vld [vmem:[#allocation2 + $0xf8] sm:$0xff]
        %v6181 = vld [vmem:[#allocation2 + $0x100] sm:$0xff]
        %v6182 = vld [vmem:[#allocation2 + $0x108] sm:$0xff]
        %v6183 = vld [vmem:[#allocation2 + $0x110] sm:$0xff]
        %v6184 = vld [vmem:[#allocation2 + $0x118] sm:$0xff]
        %v6185 = vld [vmem:[#allocation2 + $0x120] sm:$0xff]
        %v6186 = vld [vmem:[#allocation2 + $0x128] sm:$0xff]
        %v6187 = vld [vmem:[#allocation2 + $0x130] sm:$0xff]
        %v6188 = vld [vmem:[#allocation2 + $0x138] sm:$0xff]
        %v6189 = vld [vmem:[#allocation2 + $0x140] sm:$0xff]
        %v6190 = vld [vmem:[#allocation2 + $0x148] sm:$0xff]
        %v6191 = vld [vmem:[#allocation2 + $0x150] sm:$0xff]
        %v6192 = vld [vmem:[#allocation2 + $0x158] sm:$0xff]
        %v6193 = vld [vmem:[#allocation2 + $0x160] sm:$0xff]
        %v6194 = vld [vmem:[#allocation2 + $0x168] sm:$0xff]
        %v6195 = vld [vmem:[#allocation2 + $0x170] sm:$0xff]
        %v6196 = vld [vmem:[#allocation2 + $0x178] sm:$0xff]
        %v6197 = vld [vmem:[#allocation2 + $0x180] sm:$0xff]
        %v6198 = vld [vmem:[#allocation2 + $0x188] sm:$0xff]
        %v6199 = vld [vmem:[#allocation2 + $0x190] sm:$0xff]
        %v6200 = vld [vmem:[#allocation2 + $0x198] sm:$0xff]
        %v6201 = vld [vmem:[#allocation2 + $0x1a0] sm:$0xff]
        %v6202 = vld [vmem:[#allocation2 + $0x1a8] sm:$0xff]
        %v6203 = vld [vmem:[#allocation2 + $0x1b0] sm:$0xff]
        %v6204 = vld [vmem:[#allocation2 + $0x1b8] sm:$0xff]
        %v6205 = vld [vmem:[#allocation2 + $0x1c0] sm:$0xff]
        %v6206 = vld [vmem:[#allocation2 + $0x1c8] sm:$0xff]
        %v6207 = vld [vmem:[#allocation2 + $0x1d0] sm:$0xff]
        %v6208 = vld [vmem:[#allocation2 + $0x1d8] sm:$0xff]
        %v6209 = vld [vmem:[#allocation2 + $0x1e0] sm:$0xff]
        %v6210 = vld [vmem:[#allocation2 + $0x1e8] sm:$0xff]
        %v6211 = vld [vmem:[#allocation2 + $0x1f0] sm:$0xff]
        %v6212 = vld [vmem:[#allocation2 + $0x1f8] sm:$0xff]
        %v6213 = vld [vmem:[#allocation2 + $0x200] sm:$0xff]
        %v6214 = vld [vmem:[#allocation2 + $0x208] sm:$0xff]
        %v6215 = vld [vmem:[#allocation2 + $0x210] sm:$0xff]
        %v6216 = vld [vmem:[#allocation2 + $0x218] sm:$0xff]
        %v6217 = vld [vmem:[#allocation2 + $0x220] sm:$0xff]
        %v6218 = vld [vmem:[#allocation2 + $0x228] sm:$0xff]
        %v6219 = vld [vmem:[#allocation2 + $0x230] sm:$0xff]
        %v6220 = vld [vmem:[#allocation2 + $0x238] sm:$0xff]
        %v6221 = vld [vmem:[#allocation2 + $0x240] sm:$0xff]
        %v6222 = vld [vmem:[#allocation2 + $0x248] sm:$0xff]
        %v6223 = vld [vmem:[#allocation2 + $0x250] sm:$0xff]
        %v6224 = vld [vmem:[#allocation2 + $0x258] sm:$0xff]
        %v6225 = vld [vmem:[#allocation2 + $0x260] sm:$0xff]
        %v6226 = vld [vmem:[#allocation2 + $0x268] sm:$0xff]
        %v6227 = vld [vmem:[#allocation2 + $0x270] sm:$0xff]
        %v6228 = vld [vmem:[#allocation2 + $0x278] sm:$0xff]
        %v6229 = vld [vmem:[#allocation2 + $0x280] sm:$0xff]
        %v6230 = vld [vmem:[#allocation2 + $0x288] sm:$0xff]
        %v6231 = vld [vmem:[#allocation2 + $0x290] sm:$0xff]
        %v6232 = vld [vmem:[#allocation2 + $0x298] sm:$0xff]
        %v6233 = vld [vmem:[#allocation2 + $0x2a0] sm:$0xff]
        %v6234 = vld [vmem:[#allocation2 + $0x2a8] sm:$0xff]
        %v6235 = vld [vmem:[#allocation2 + $0x2b0] sm:$0xff]
        %v6236 = vld [vmem:[#allocation2 + $0x2b8] sm:$0xff]
        %v6237 = vld [vmem:[#allocation2 + $0x2c0] sm:$0xff]
        %v6238 = vld [vmem:[#allocation2 + $0x2c8] sm:$0xff]
        %v6239 = vld [vmem:[#allocation2 + $0x2d0] sm:$0xff]
        %v6240 = vld [vmem:[#allocation2 + $0x2d8] sm:$0xff]
        %v6241 = vld [vmem:[#allocation2 + $0x2e0] sm:$0xff]
        %v6242 = vld [vmem:[#allocation2 + $0x2e8] sm:$0xff]
        %v6243 = vld [vmem:[#allocation2 + $0x2f0] sm:$0xff]
        %v6244 = vld [vmem:[#allocation2 + $0x2f8] sm:$0xff]
        %v6245 = vld [vmem:[#allocation2 + $0x300] sm:$0xff]
        %v6246 = vld [vmem:[#allocation2 + $0x308] sm:$0xff]
        %v6247 = vld [vmem:[#allocation2 + $0x310] sm:$0xff]
        %v6248 = vld [vmem:[#allocation2 + $0x318] sm:$0xff]
        %v6249 = vld [vmem:[#allocation2 + $0x320] sm:$0xff]
        %v6250 = vld [vmem:[#allocation2 + $0x328] sm:$0xff]
        %v6251 = vld [vmem:[#allocation2 + $0x330] sm:$0xff]
        %v6252 = vld [vmem:[#allocation2 + $0x338] sm:$0xff]
        %v6253 = vld [vmem:[#allocation2 + $0x340] sm:$0xff]
        %v6254 = vld [vmem:[#allocation2 + $0x348] sm:$0xff]
        %v6255 = vld [vmem:[#allocation2 + $0x350] sm:$0xff]
        %v6256 = vld [vmem:[#allocation2 + $0x358] sm:$0xff]
        %v6257 = vld [vmem:[#allocation2 + $0x360] sm:$0xff]
        %v6258 = vld [vmem:[#allocation2 + $0x368] sm:$0xff]
        %v6259 = vld [vmem:[#allocation2 + $0x370] sm:$0xff]
        %v6260 = vld [vmem:[#allocation2 + $0x378] sm:$0xff]
        %v6261 = vld [vmem:[#allocation2 + $0x380] sm:$0xff]
        %v6262 = vld [vmem:[#allocation2 + $0x388] sm:$0xff]
        %v6263 = vld [vmem:[#allocation2 + $0x390] sm:$0xff]
        %v6264 = vld [vmem:[#allocation2 + $0x398] sm:$0xff]
        %v6265 = vld [vmem:[#allocation2 + $0x3a0] sm:$0xff]
        %v6266 = vld [vmem:[#allocation2 + $0x3a8] sm:$0xff]
        %v6267 = vld [vmem:[#allocation2 + $0x3b0] sm:$0xff]
        %v6268 = vld [vmem:[#allocation2 + $0x3b8] sm:$0xff]
        %v6269 = vld [vmem:[#allocation2 + $0x3c0] sm:$0xff]
        %v6270 = vld [vmem:[#allocation2 + $0x3c8] sm:$0xff]
        %v6271 = vld [vmem:[#allocation2 + $0x3d0] sm:$0xff]
        %v6272 = vld [vmem:[#allocation2 + $0x3d8] sm:$0xff]
        %v6273 = vld [vmem:[#allocation2 + $0x3e0] sm:$0xff]
        %v6274 = vld [vmem:[#allocation2 + $0x3e8] sm:$0xff]
        %v6275 = vld [vmem:[#allocation2 + $0x3f0] sm:$0xff]
        %v6276 = vld [vmem:[#allocation2 + $0x3f8] sm:$0xff]
        %v6277 = vld [vmem:[#allocation2 + $0x400] sm:$0xff]
        %v6278 = vld [vmem:[#allocation2 + $0x408] sm:$0xff]
        %v6279 = vld [vmem:[#allocation2 + $0x410] sm:$0xff]
        %v6280 = vld [vmem:[#allocation2 + $0x418] sm:$0xff]
        %v6281 = vld [vmem:[#allocation2 + $0x420] sm:$0xff]
        %v6282 = vld [vmem:[#allocation2 + $0x428] sm:$0xff]
        %v6283 = vld [vmem:[#allocation2 + $0x430] sm:$0xff]
        %v6284 = vld [vmem:[#allocation2 + $0x438] sm:$0xff]
        %v6285 = vld [vmem:[#allocation2 + $0x440] sm:$0xff]
        %v6286 = vld [vmem:[#allocation2 + $0x448] sm:$0xff]
        %v6287 = vld [vmem:[#allocation2 + $0x450] sm:$0xff]
        %v6288 = vld [vmem:[#allocation2 + $0x458] sm:$0xff]
        %v6289 = vld [vmem:[#allocation2 + $0x460] sm:$0xff]
        %v6290 = vld [vmem:[#allocation2 + $0x468] sm:$0xff]
        %v6291 = vld [vmem:[#allocation2 + $0x470] sm:$0xff]
        %v6292 = vld [vmem:[#allocation2 + $0x478] sm:$0xff]
        %v6293 = vld [vmem:[#allocation2 + $0x480] sm:$0xff]
        %v6294 = vld [vmem:[#allocation2 + $0x488] sm:$0xff]
        %v6295 = vld [vmem:[#allocation2 + $0x490] sm:$0xff]
        %v6296 = vld [vmem:[#allocation2 + $0x498] sm:$0xff]
        %v6297 = vld [vmem:[#allocation2 + $0x4a0] sm:$0xff]
        %v6298 = vld [vmem:[#allocation2 + $0x4a8] sm:$0xff]
        %v6299 = vld [vmem:[#allocation2 + $0x4b0] sm:$0xff]
        %v6300 = vld [vmem:[#allocation2 + $0x4b8] sm:$0xff]
        %v6301 = vld [vmem:[#allocation2 + $0x4c0] sm:$0xff]
        %v6302 = vld [vmem:[#allocation2 + $0x4c8] sm:$0xff]
        %v6303 = vld [vmem:[#allocation2 + $0x4d0] sm:$0xff]
        %v6304 = vld [vmem:[#allocation2 + $0x4d8] sm:$0xff]
        %v6305 = vld [vmem:[#allocation2 + $0x4e0] sm:$0xff]
        %v6306 = vld [vmem:[#allocation2 + $0x4e8] sm:$0xff]
        %v6307 = vld [vmem:[#allocation2 + $0x4f0] sm:$0xff]
        %v6308 = vld [vmem:[#allocation2 + $0x4f8] sm:$0xff]
        %v6309 = vld [vmem:[#allocation2 + $0x500] sm:$0xff]
        %v6310 = vld [vmem:[#allocation2 + $0x508] sm:$0xff]
        %v6311 = vld [vmem:[#allocation2 + $0x510] sm:$0xff]
        %v6312 = vld [vmem:[#allocation2 + $0x518] sm:$0xff]
        %v6313 = vld [vmem:[#allocation2 + $0x520] sm:$0xff]
        %v6314 = vld [vmem:[#allocation2 + $0x528] sm:$0xff]
        %v6315 = vld [vmem:[#allocation2 + $0x530] sm:$0xff]
        %v6316 = vld [vmem:[#allocation2 + $0x538] sm:$0xff]
        %v6317 = vld [vmem:[#allocation2 + $0x540] sm:$0xff]
        %v6318 = vld [vmem:[#allocation2 + $0x548] sm:$0xff]
        %v6319 = vld [vmem:[#allocation2 + $0x550] sm:$0xff]
        %v6320 = vld [vmem:[#allocation2 + $0x558] sm:$0xff]
        %v6321 = vld [vmem:[#allocation2 + $0x560] sm:$0xff]
        %v6322 = vld [vmem:[#allocation2 + $0x568] sm:$0xff]
        %v6323 = vld [vmem:[#allocation2 + $0x570] sm:$0xff]
        %v6324 = vld [vmem:[#allocation2 + $0x578] sm:$0xff]
        %v6325 = vld [vmem:[#allocation2 + $0x580] sm:$0xff]
        %v6326 = vld [vmem:[#allocation2 + $0x588] sm:$0xff]
        %v6327 = vld [vmem:[#allocation2 + $0x590] sm:$0xff]
        %v6328 = vld [vmem:[#allocation2 + $0x598] sm:$0xff]
        %v6329 = vld [vmem:[#allocation2 + $0x5a0] sm:$0xff]
        %v6330 = vld [vmem:[#allocation2 + $0x5a8] sm:$0xff]
        %v6331 = vld [vmem:[#allocation2 + $0x5b0] sm:$0xff]
        %v6332 = vld [vmem:[#allocation2 + $0x5b8] sm:$0xff]
        %v6333 = vld [vmem:[#allocation2 + $0x5c0] sm:$0xff]
        %v6334 = vld [vmem:[#allocation2 + $0x5c8] sm:$0xff]
        %v6335 = vld [vmem:[#allocation2 + $0x5d0] sm:$0xff]
        %v6336 = vld [vmem:[#allocation2 + $0x5d8] sm:$0xff]
        %v6337 = vld [vmem:[#allocation2 + $0x5e0] sm:$0xff]
        %v6338 = vld [vmem:[#allocation2 + $0x5e8] sm:$0xff]
        %v6339 = vld [vmem:[#allocation2 + $0x5f0] sm:$0xff]
        %v6340 = vld [vmem:[#allocation2 + $0x5f8] sm:$0xff]
        %v6341 = vld [vmem:[#allocation2 + $0x600] sm:$0xff]
        %v6342 = vld [vmem:[#allocation2 + $0x608] sm:$0xff]
        %v6343 = vld [vmem:[#allocation2 + $0x610] sm:$0xff]
        %v6344 = vld [vmem:[#allocation2 + $0x618] sm:$0xff]
        %v6345 = vld [vmem:[#allocation2 + $0x620] sm:$0xff]
        %v6346 = vld [vmem:[#allocation2 + $0x628] sm:$0xff]
        %v6347 = vld [vmem:[#allocation2 + $0x630] sm:$0xff]
        %v6348 = vld [vmem:[#allocation2 + $0x638] sm:$0xff]
        %v6349 = vld [vmem:[#allocation2 + $0x640] sm:$0xff]
        %v6350 = vld [vmem:[#allocation2 + $0x648] sm:$0xff]
        %v6351 = vld [vmem:[#allocation2 + $0x650] sm:$0xff]
        %v6352 = vld [vmem:[#allocation2 + $0x658] sm:$0xff]
        %v6353 = vld [vmem:[#allocation2 + $0x660] sm:$0xff]
        %v6354 = vld [vmem:[#allocation2 + $0x668] sm:$0xff]
        %v6355 = vld [vmem:[#allocation2 + $0x670] sm:$0xff]
        %v6356 = vld [vmem:[#allocation2 + $0x678] sm:$0xff]
        %v6357 = vld [vmem:[#allocation2 + $0x680] sm:$0xff]
        %v6358 = vld [vmem:[#allocation2 + $0x688] sm:$0xff]
        %v6359 = vld [vmem:[#allocation2 + $0x690] sm:$0xff]
        %v6360 = vld [vmem:[#allocation2 + $0x698] sm:$0xff]
        %v6361 = vld [vmem:[#allocation2 + $0x6a0] sm:$0xff]
        %v6362 = vld [vmem:[#allocation2 + $0x6a8] sm:$0xff]
        %v6363 = vld [vmem:[#allocation2 + $0x6b0] sm:$0xff]
        %v6364 = vld [vmem:[#allocation2 + $0x6b8] sm:$0xff]
        %v6365 = vld [vmem:[#allocation2 + $0x6c0] sm:$0xff]
        %v6366 = vld [vmem:[#allocation2 + $0x6c8] sm:$0xff]
        %v6367 = vld [vmem:[#allocation2 + $0x6d0] sm:$0xff]
        %v6368 = vld [vmem:[#allocation2 + $0x6d8] sm:$0xff]
        %v6369 = vld [vmem:[#allocation2 + $0x6e0] sm:$0xff]
        %v6370 = vld [vmem:[#allocation2 + $0x6e8] sm:$0xff]
        %v6371 = vld [vmem:[#allocation2 + $0x6f0] sm:$0xff]
        %v6372 = vld [vmem:[#allocation2 + $0x6f8] sm:$0xff]
        %v6373 = vld [vmem:[#allocation2 + $0x700] sm:$0xff]
        %v6374 = vld [vmem:[#allocation2 + $0x708] sm:$0xff]
        %v6375 = vld [vmem:[#allocation2 + $0x710] sm:$0xff]
        %v6376 = vld [vmem:[#allocation2 + $0x718] sm:$0xff]
        %v6377 = vld [vmem:[#allocation2 + $0x720] sm:$0xff]
        %v6378 = vld [vmem:[#allocation2 + $0x728] sm:$0xff]
        %v6379 = vld [vmem:[#allocation2 + $0x730] sm:$0xff]
        %v6380 = vld [vmem:[#allocation2 + $0x738] sm:$0xff]
        %v6381 = vld [vmem:[#allocation2 + $0x740] sm:$0xff]
        %v6382 = vld [vmem:[#allocation2 + $0x748] sm:$0xff]
        %v6383 = vld [vmem:[#allocation2 + $0x750] sm:$0xff]
        %v6384 = vld [vmem:[#allocation2 + $0x758] sm:$0xff]
        %v6385 = vld [vmem:[#allocation2 + $0x760] sm:$0xff]
        %v6386 = vld [vmem:[#allocation2 + $0x768] sm:$0xff]
        %v6387 = vld [vmem:[#allocation2 + $0x770] sm:$0xff]
        %v6388 = vld [vmem:[#allocation2 + $0x778] sm:$0xff]
        %v6389 = vld [vmem:[#allocation2 + $0x780] sm:$0xff]
        %v6390 = vld [vmem:[#allocation2 + $0x788] sm:$0xff]
        %v6391 = vld [vmem:[#allocation2 + $0x790] sm:$0xff]
        %v6392 = vld [vmem:[#allocation2 + $0x798] sm:$0xff]
        %v6393 = vld [vmem:[#allocation2 + $0x7a0] sm:$0xff]
        %v6394 = vld [vmem:[#allocation2 + $0x7a8] sm:$0xff]
        %v6395 = vld [vmem:[#allocation2 + $0x7b0] sm:$0xff]
        %v6396 = vld [vmem:[#allocation2 + $0x7b8] sm:$0xff]
        %v6397 = vld [vmem:[#allocation2 + $0x7c0] sm:$0xff]
        %v6398 = vld [vmem:[#allocation2 + $0x7c8] sm:$0xff]
        %v6399 = vld [vmem:[#allocation2 + $0x7d0] sm:$0xff]
        %v6400 = vld [vmem:[#allocation2 + $0x7d8] sm:$0xff]
        %v6401 = vld [vmem:[#allocation2 + $0x7e0] sm:$0xff]
        %v6402 = vld [vmem:[#allocation2 + $0x7e8] sm:$0xff]
        %v6403 = vld [vmem:[#allocation2 + $0x7f0] sm:$0xff]
        %v6404 = vld [vmem:[#allocation2 + $0x7f8] sm:$0xff]
        %v6405 = vld [vmem:[#allocation2 + $0x800] sm:$0xff]
        %v6406 = vld [vmem:[#allocation2 + $0x808] sm:$0xff]
        %v6407 = vld [vmem:[#allocation2 + $0x810] sm:$0xff]
        %v6408 = vld [vmem:[#allocation2 + $0x818] sm:$0xff]
        %v6409 = vld [vmem:[#allocation2 + $0x820] sm:$0xff]
        %v6410 = vld [vmem:[#allocation2 + $0x828] sm:$0xff]
        %v6411 = vld [vmem:[#allocation2 + $0x830] sm:$0xff]
        %v6412 = vld [vmem:[#allocation2 + $0x838] sm:$0xff]
        %v6413 = vld [vmem:[#allocation2 + $0x840] sm:$0xff]
        %v6414 = vld [vmem:[#allocation2 + $0x848] sm:$0xff]
        %v6415 = vld [vmem:[#allocation2 + $0x850] sm:$0xff]
        %v6416 = vld [vmem:[#allocation2 + $0x858] sm:$0xff]
        %v6417 = vld [vmem:[#allocation2 + $0x860] sm:$0xff]
        %v6418 = vld [vmem:[#allocation2 + $0x868] sm:$0xff]
        %v6419 = vld [vmem:[#allocation2 + $0x870] sm:$0xff]
        %v6420 = vld [vmem:[#allocation2 + $0x878] sm:$0xff]
        %v6421 = vld [vmem:[#allocation2 + $0x880] sm:$0xff]
        %v6422 = vld [vmem:[#allocation2 + $0x888] sm:$0xff]
        %v6423 = vld [vmem:[#allocation2 + $0x890] sm:$0xff]
        %v6424 = vld [vmem:[#allocation2 + $0x898] sm:$0xff]
        %v6425 = vld [vmem:[#allocation2 + $0x8a0] sm:$0xff]
        %v6426 = vld [vmem:[#allocation2 + $0x8a8] sm:$0xff]
        %v6427 = vld [vmem:[#allocation2 + $0x8b0] sm:$0xff]
        %v6428 = vld [vmem:[#allocation2 + $0x8b8] sm:$0xff]
        %v6429 = vld [vmem:[#allocation2 + $0x8c0] sm:$0xff]
        %v6430 = vld [vmem:[#allocation2 + $0x8c8] sm:$0xff]
        %v6431 = vld [vmem:[#allocation2 + $0x8d0] sm:$0xff]
        %v6432 = vld [vmem:[#allocation2 + $0x8d8] sm:$0xff]
        %v6433 = vld [vmem:[#allocation2 + $0x8e0] sm:$0xff]
        %v6434 = vld [vmem:[#allocation2 + $0x8e8] sm:$0xff]
        %v6435 = vld [vmem:[#allocation2 + $0x8f0] sm:$0xff]
        %v6436 = vld [vmem:[#allocation2 + $0x8f8] sm:$0xff]
        %v6437 = vld [vmem:[#allocation2 + $0x900] sm:$0xff]
        %v6438 = vld [vmem:[#allocation2 + $0x908] sm:$0xff]
        %v6439 = vld [vmem:[#allocation2 + $0x910] sm:$0xff]
        %v6440 = vld [vmem:[#allocation2 + $0x918] sm:$0xff]
        %v6441 = vld [vmem:[#allocation2 + $0x920] sm:$0xff]
        %v6442 = vld [vmem:[#allocation2 + $0x928] sm:$0xff]
        %v6443 = vld [vmem:[#allocation2 + $0x930] sm:$0xff]
        %v6444 = vld [vmem:[#allocation2 + $0x938] sm:$0xff]
        %v6445 = vld [vmem:[#allocation2 + $0x940] sm:$0xff]
        %v6446 = vld [vmem:[#allocation2 + $0x948] sm:$0xff]
        %v6447 = vld [vmem:[#allocation2 + $0x950] sm:$0xff]
        %v6448 = vld [vmem:[#allocation2 + $0x958] sm:$0xff]
        %v6449 = vld [vmem:[#allocation2 + $0x960] sm:$0xff]
        %v6450 = vld [vmem:[#allocation2 + $0x968] sm:$0xff]
        %v6451 = vld [vmem:[#allocation2 + $0x970] sm:$0xff]
        %v6452 = vld [vmem:[#allocation2 + $0x978] sm:$0xff]
        %v6453 = vld [vmem:[#allocation2 + $0x980] sm:$0xff]
        %v6454 = vld [vmem:[#allocation2 + $0x988] sm:$0xff]
        %v6455 = vld [vmem:[#allocation2 + $0x990] sm:$0xff]
        %v6456 = vld [vmem:[#allocation2 + $0x998] sm:$0xff]
        %v6457 = vld [vmem:[#allocation2 + $0x9a0] sm:$0xff]
        %v6458 = vld [vmem:[#allocation2 + $0x9a8] sm:$0xff]
        %v6459 = vld [vmem:[#allocation2 + $0x9b0] sm:$0xff]
        %v6460 = vld [vmem:[#allocation2 + $0x9b8] sm:$0xff]
        %v6461 = vld [vmem:[#allocation2 + $0x9c0] sm:$0xff]
        %v6462 = vld [vmem:[#allocation2 + $0x9c8] sm:$0xff]
        %v6463 = vld [vmem:[#allocation2 + $0x9d0] sm:$0xff]
        %v6464 = vld [vmem:[#allocation2 + $0x9d8] sm:$0xff]
        %v6465 = vld [vmem:[#allocation2 + $0x9e0] sm:$0xff]
        %v6466 = vld [vmem:[#allocation2 + $0x9e8] sm:$0xff]
        %v6467 = vld [vmem:[#allocation2 + $0x9f0] sm:$0xff]
        %v6468 = vld [vmem:[#allocation2 + $0x9f8] sm:$0xff]
        %v6469 = vld [vmem:[#allocation2 + $0xa00] sm:$0xff]
        %v6470 = vld [vmem:[#allocation2 + $0xa08] sm:$0xff]
        %v6471 = vld [vmem:[#allocation2 + $0xa10] sm:$0xff]
        %v6472 = vld [vmem:[#allocation2 + $0xa18] sm:$0xff]
        %v6473 = vld [vmem:[#allocation2 + $0xa20] sm:$0xff]
        %v6474 = vld [vmem:[#allocation2 + $0xa28] sm:$0xff]
        %v6475 = vld [vmem:[#allocation2 + $0xa30] sm:$0xff]
        %v6476 = vld [vmem:[#allocation2 + $0xa38] sm:$0xff]
        %v6477 = vld [vmem:[#allocation2 + $0xa40] sm:$0xff]
        %v6478 = vld [vmem:[#allocation2 + $0xa48] sm:$0xff]
        %v6479 = vld [vmem:[#allocation2 + $0xa50] sm:$0xff]
        %v6480 = vld [vmem:[#allocation2 + $0xa58] sm:$0xff]
        %v6481 = vld [vmem:[#allocation2 + $0xa60] sm:$0xff]
        %v6482 = vld [vmem:[#allocation2 + $0xa68] sm:$0xff]
        %v6483 = vld [vmem:[#allocation2 + $0xa70] sm:$0xff]
        %v6484 = vld [vmem:[#allocation2 + $0xa78] sm:$0xff]
        %v6485 = vld [vmem:[#allocation2 + $0xa80] sm:$0xff]
        %v6486 = vld [vmem:[#allocation2 + $0xa88] sm:$0xff]
        %v6487 = vld [vmem:[#allocation2 + $0xa90] sm:$0xff]
        %v6488 = vld [vmem:[#allocation2 + $0xa98] sm:$0xff]
        %v6489 = vld [vmem:[#allocation2 + $0xaa0] sm:$0xff]
        %v6490 = vld [vmem:[#allocation2 + $0xaa8] sm:$0xff]
        %v6491 = vld [vmem:[#allocation2 + $0xab0] sm:$0xff]
        %v6492 = vld [vmem:[#allocation2 + $0xab8] sm:$0xff]
        %v6493 = vld [vmem:[#allocation2 + $0xac0] sm:$0xff]
        %v6494 = vld [vmem:[#allocation2 + $0xac8] sm:$0xff]
        %v6495 = vld [vmem:[#allocation2 + $0xad0] sm:$0xff]
        %v6496 = vld [vmem:[#allocation2 + $0xad8] sm:$0xff]
        %v6497 = vld [vmem:[#allocation2 + $0xae0] sm:$0xff]
        %v6498 = vld [vmem:[#allocation2 + $0xae8] sm:$0xff]
        %v6499 = vld [vmem:[#allocation2 + $0xaf0] sm:$0xff]
        %v6500 = vld [vmem:[#allocation2 + $0xaf8] sm:$0xff]
        %v6501 = vld [vmem:[#allocation2 + $0xb00] sm:$0xff]
        %v6502 = vld [vmem:[#allocation2 + $0xb08] sm:$0xff]
        %v6503 = vld [vmem:[#allocation2 + $0xb10] sm:$0xff]
        %v6504 = vld [vmem:[#allocation2 + $0xb18] sm:$0xff]
        %v6505 = vld [vmem:[#allocation2 + $0xb20] sm:$0xff]
        %v6506 = vld [vmem:[#allocation2 + $0xb28] sm:$0xff]
        %v6507 = vld [vmem:[#allocation2 + $0xb30] sm:$0xff]
        %v6508 = vld [vmem:[#allocation2 + $0xb38] sm:$0xff]
        %v6509 = vld [vmem:[#allocation2 + $0xb40] sm:$0xff]
        %v6510 = vld [vmem:[#allocation2 + $0xb48] sm:$0xff]
        %v6511 = vld [vmem:[#allocation2 + $0xb50] sm:$0xff]
        %v6512 = vld [vmem:[#allocation2 + $0xb58] sm:$0xff]
        %v6513 = vld [vmem:[#allocation2 + $0xb60] sm:$0xff]
        %v6514 = vld [vmem:[#allocation2 + $0xb68] sm:$0xff]
        %v6515 = vld [vmem:[#allocation2 + $0xb70] sm:$0xff]
        %v6516 = vld [vmem:[#allocation2 + $0xb78] sm:$0xff]
        %v6517 = vld [vmem:[#allocation2 + $0xb80] sm:$0xff]
        %v6518 = vld [vmem:[#allocation2 + $0xb88] sm:$0xff]
        %v6519 = vld [vmem:[#allocation2 + $0xb90] sm:$0xff]
        %v6520 = vld [vmem:[#allocation2 + $0xb98] sm:$0xff]
        %v6521 = vld [vmem:[#allocation2 + $0xba0] sm:$0xff]
        %v6522 = vld [vmem:[#allocation2 + $0xba8] sm:$0xff]
        %v6523 = vld [vmem:[#allocation2 + $0xbb0] sm:$0xff]
        %v6524 = vld [vmem:[#allocation2 + $0xbb8] sm:$0xff]
        %v6525 = vld [vmem:[#allocation2 + $0xbc0] sm:$0xff]
        %v6526 = vld [vmem:[#allocation2 + $0xbc8] sm:$0xff]
        %v6527 = vld [vmem:[#allocation2 + $0xbd0] sm:$0xff]
        %v6528 = vld [vmem:[#allocation2 + $0xbd8] sm:$0xff]
        %v6529 = vld [vmem:[#allocation2 + $0xbe0] sm:$0xff]
        %v6530 = vld [vmem:[#allocation2 + $0xbe8] sm:$0xff]
        %v6531 = vld [vmem:[#allocation2 + $0xbf0] sm:$0xff]
        %v6532 = vld [vmem:[#allocation2 + $0xbf8] sm:$0xff]
        %v6533 = vld [vmem:[#allocation2 + $0xc00] sm:$0xff]
        %v6534 = vld [vmem:[#allocation2 + $0xc08] sm:$0xff]
        %v6535 = vld [vmem:[#allocation2 + $0xc10] sm:$0xff]
        %v6536 = vld [vmem:[#allocation2 + $0xc18] sm:$0xff]
        %v6537 = vld [vmem:[#allocation2 + $0xc20] sm:$0xff]
        %v6538 = vld [vmem:[#allocation2 + $0xc28] sm:$0xff]
        %v6539 = vld [vmem:[#allocation2 + $0xc30] sm:$0xff]
        %v6540 = vld [vmem:[#allocation2 + $0xc38] sm:$0xff]
        %v6541 = vld [vmem:[#allocation2 + $0xc40] sm:$0xff]
        %v6542 = vld [vmem:[#allocation2 + $0xc48] sm:$0xff]
        %v6543 = vld [vmem:[#allocation2 + $0xc50] sm:$0xff]
        %v6544 = vld [vmem:[#allocation2 + $0xc58] sm:$0xff]
        %v6545 = vld [vmem:[#allocation2 + $0xc60] sm:$0xff]
        %v6546 = vld [vmem:[#allocation2 + $0xc68] sm:$0xff]
        %v6547 = vld [vmem:[#allocation2 + $0xc70] sm:$0xff]
        %v6548 = vld [vmem:[#allocation2 + $0xc78] sm:$0xff]
        %v6549 = vld [vmem:[#allocation2 + $0xc80] sm:$0xff]
        %v6550 = vld [vmem:[#allocation2 + $0xc88] sm:$0xff]
        %v6551 = vld [vmem:[#allocation2 + $0xc90] sm:$0xff]
        %v6552 = vld [vmem:[#allocation2 + $0xc98] sm:$0xff]
        %v6553 = vld [vmem:[#allocation2 + $0xca0] sm:$0xff]
        %v6554 = vld [vmem:[#allocation2 + $0xca8] sm:$0xff]
        %v6555 = vld [vmem:[#allocation2 + $0xcb0] sm:$0xff]
        %v6556 = vld [vmem:[#allocation2 + $0xcb8] sm:$0xff]
        %v6557 = vld [vmem:[#allocation2 + $0xcc0] sm:$0xff]
        %v6558 = vld [vmem:[#allocation2 + $0xcc8] sm:$0xff]
        %v6559 = vld [vmem:[#allocation2 + $0xcd0] sm:$0xff]
        %v6560 = vld [vmem:[#allocation2 + $0xcd8] sm:$0xff]
        %v6561 = vld [vmem:[#allocation2 + $0xce0] sm:$0xff]
        %v6562 = vld [vmem:[#allocation2 + $0xce8] sm:$0xff]
        %v6563 = vld [vmem:[#allocation2 + $0xcf0] sm:$0xff]
        %v6564 = vld [vmem:[#allocation2 + $0xcf8] sm:$0xff]
        %v6565 = vld [vmem:[#allocation2 + $0xd00] sm:$0xff]
        %v6566 = vld [vmem:[#allocation2 + $0xd08] sm:$0xff]
        %v6567 = vld [vmem:[#allocation2 + $0xd10] sm:$0xff]
        %v6568 = vld [vmem:[#allocation2 + $0xd18] sm:$0xff]
        %v6569 = vld [vmem:[#allocation2 + $0xd20] sm:$0xff]
        %v6570 = vld [vmem:[#allocation2 + $0xd28] sm:$0xff]
        %v6571 = vld [vmem:[#allocation2 + $0xd30] sm:$0xff]
        %v6572 = vld [vmem:[#allocation2 + $0xd38] sm:$0xff]
        %v6573 = vld [vmem:[#allocation2 + $0xd40] sm:$0xff]
        %v6574 = vld [vmem:[#allocation2 + $0xd48] sm:$0xff]
        %v6575 = vld [vmem:[#allocation2 + $0xd50] sm:$0xff]
        %v6576 = vld [vmem:[#allocation2 + $0xd58] sm:$0xff]
        %v6577 = vld [vmem:[#allocation2 + $0xd60] sm:$0xff]
        %v6578 = vld [vmem:[#allocation2 + $0xd68] sm:$0xff]
        %v6579 = vld [vmem:[#allocation2 + $0xd70] sm:$0xff]
        %v6580 = vld [vmem:[#allocation2 + $0xd78] sm:$0xff]
        %v6581 = vld [vmem:[#allocation2 + $0xd80] sm:$0xff]
        %v6582 = vld [vmem:[#allocation2 + $0xd88] sm:$0xff]
        %v6583 = vld [vmem:[#allocation2 + $0xd90] sm:$0xff]
        %v6584 = vld [vmem:[#allocation2 + $0xd98] sm:$0xff]
        %v6585 = vld [vmem:[#allocation2 + $0xda0] sm:$0xff]
        %v6586 = vld [vmem:[#allocation2 + $0xda8] sm:$0xff]
        %v6587 = vld [vmem:[#allocation2 + $0xdb0] sm:$0xff]
        %v6588 = vld [vmem:[#allocation2 + $0xdb8] sm:$0xff]
        %v6589 = vld [vmem:[#allocation2 + $0xdc0] sm:$0xff]
        %v6590 = vld [vmem:[#allocation2 + $0xdc8] sm:$0xff]
        %v6591 = vld [vmem:[#allocation2 + $0xdd0] sm:$0xff]
        %v6592 = vld [vmem:[#allocation2 + $0xdd8] sm:$0xff]
        %v6593 = vld [vmem:[#allocation2 + $0xde0] sm:$0xff]
        %v6594 = vld [vmem:[#allocation2 + $0xde8] sm:$0xff]
        %v6595 = vld [vmem:[#allocation2 + $0xdf0] sm:$0xff]
        %v6596 = vld [vmem:[#allocation2 + $0xdf8] sm:$0xff]
        %v6597 = vld [vmem:[%s249] sm:$0x1]
        %v6599 = vlaneseq
        %v6600 = vshrl.u32 %v6599, 7
        %v6601 = vsub.s32 0, %v6600
        %v6602 = vrot.slane %v6597, %v6601
        %v6604 = vadd.f32 %v6149, %v6602
        %v6605 = vadd.f32 %v6150, %v6602
        %v6606 = vadd.f32 %v6151, %v6602
        %v6607 = vadd.f32 %v6152, %v6602
        %v6608 = vadd.f32 %v6153, %v6602
        %v6609 = vadd.f32 %v6154, %v6602
        %v6610 = vadd.f32 %v6155, %v6602
        %v6611 = vadd.f32 %v6156, %v6602
        %v6612 = vadd.f32 %v6157, %v6602
        %v6613 = vadd.f32 %v6158, %v6602
        %v6614 = vadd.f32 %v6159, %v6602
        %v6615 = vadd.f32 %v6160, %v6602
        %v6616 = vadd.f32 %v6161, %v6602
        %v6617 = vadd.f32 %v6162, %v6602
        %v6618 = vadd.f32 %v6163, %v6602
        %v6619 = vadd.f32 %v6164, %v6602
        %v6620 = vadd.f32 %v6165, %v6602
        %v6621 = vadd.f32 %v6166, %v6602
        %v6622 = vadd.f32 %v6167, %v6602
        %v6623 = vadd.f32 %v6168, %v6602
        %v6624 = vadd.f32 %v6169, %v6602
        %v6625 = vadd.f32 %v6170, %v6602
        %v6626 = vadd.f32 %v6171, %v6602
        %v6627 = vadd.f32 %v6172, %v6602
        %v6628 = vadd.f32 %v6173, %v6602
        %v6629 = vadd.f32 %v6174, %v6602
        %v6630 = vadd.f32 %v6175, %v6602
        %v6631 = vadd.f32 %v6176, %v6602
        %v6632 = vadd.f32 %v6177, %v6602
        %v6633 = vadd.f32 %v6178, %v6602
        %v6634 = vadd.f32 %v6179, %v6602
        %v6635 = vadd.f32 %v6180, %v6602
        %v6636 = vadd.f32 %v6181, %v6602
        %v6637 = vadd.f32 %v6182, %v6602
        %v6638 = vadd.f32 %v6183, %v6602
        %v6639 = vadd.f32 %v6184, %v6602
        %v6640 = vadd.f32 %v6185, %v6602
        %v6641 = vadd.f32 %v6186, %v6602
        %v6642 = vadd.f32 %v6187, %v6602
        %v6643 = vadd.f32 %v6188, %v6602
        %v6644 = vadd.f32 %v6189, %v6602
        %v6645 = vadd.f32 %v6190, %v6602
        %v6646 = vadd.f32 %v6191, %v6602
        %v6647 = vadd.f32 %v6192, %v6602
        %v6648 = vadd.f32 %v6193, %v6602
        %v6649 = vadd.f32 %v6194, %v6602
        %v6650 = vadd.f32 %v6195, %v6602
        %v6651 = vadd.f32 %v6196, %v6602
        %v6652 = vadd.f32 %v6197, %v6602
        %v6653 = vadd.f32 %v6198, %v6602
        %v6654 = vadd.f32 %v6199, %v6602
        %v6655 = vadd.f32 %v6200, %v6602
        %v6656 = vadd.f32 %v6201, %v6602
        %v6657 = vadd.f32 %v6202, %v6602
        %v6658 = vadd.f32 %v6203, %v6602
        %v6659 = vadd.f32 %v6204, %v6602
        %v6660 = vadd.f32 %v6205, %v6602
        %v6661 = vadd.f32 %v6206, %v6602
        %v6662 = vadd.f32 %v6207, %v6602
        %v6663 = vadd.f32 %v6208, %v6602
        %v6664 = vadd.f32 %v6209, %v6602
        %v6665 = vadd.f32 %v6210, %v6602
        %v6666 = vadd.f32 %v6211, %v6602
        %v6667 = vadd.f32 %v6212, %v6602
        %v6668 = vadd.f32 %v6213, %v6602
        %v6669 = vadd.f32 %v6214, %v6602
        %v6670 = vadd.f32 %v6215, %v6602
        %v6671 = vadd.f32 %v6216, %v6602
        %v6672 = vadd.f32 %v6217, %v6602
        %v6673 = vadd.f32 %v6218, %v6602
        %v6674 = vadd.f32 %v6219, %v6602
        %v6675 = vadd.f32 %v6220, %v6602
        %v6676 = vadd.f32 %v6221, %v6602
        %v6677 = vadd.f32 %v6222, %v6602
        %v6678 = vadd.f32 %v6223, %v6602
        %v6679 = vadd.f32 %v6224, %v6602
        %v6680 = vadd.f32 %v6225, %v6602
        %v6681 = vadd.f32 %v6226, %v6602
        %v6682 = vadd.f32 %v6227, %v6602
        %v6683 = vadd.f32 %v6228, %v6602
        %v6684 = vadd.f32 %v6229, %v6602
        %v6685 = vadd.f32 %v6230, %v6602
        %v6686 = vadd.f32 %v6231, %v6602
        %v6687 = vadd.f32 %v6232, %v6602
        %v6688 = vadd.f32 %v6233, %v6602
        %v6689 = vadd.f32 %v6234, %v6602
        %v6690 = vadd.f32 %v6235, %v6602
        %v6691 = vadd.f32 %v6236, %v6602
        %v6692 = vadd.f32 %v6237, %v6602
        %v6693 = vadd.f32 %v6238, %v6602
        %v6694 = vadd.f32 %v6239, %v6602
        %v6695 = vadd.f32 %v6240, %v6602
        %v6696 = vadd.f32 %v6241, %v6602
        %v6697 = vadd.f32 %v6242, %v6602
        %v6698 = vadd.f32 %v6243, %v6602
        %v6699 = vadd.f32 %v6244, %v6602
        %v6700 = vadd.f32 %v6245, %v6602
        %v6701 = vadd.f32 %v6246, %v6602
        %v6702 = vadd.f32 %v6247, %v6602
        %v6703 = vadd.f32 %v6248, %v6602
        %v6704 = vadd.f32 %v6249, %v6602
        %v6705 = vadd.f32 %v6250, %v6602
        %v6706 = vadd.f32 %v6251, %v6602
        %v6707 = vadd.f32 %v6252, %v6602
        %v6708 = vadd.f32 %v6253, %v6602
        %v6709 = vadd.f32 %v6254, %v6602
        %v6710 = vadd.f32 %v6255, %v6602
        %v6711 = vadd.f32 %v6256, %v6602
        %v6712 = vadd.f32 %v6257, %v6602
        %v6713 = vadd.f32 %v6258, %v6602
        %v6714 = vadd.f32 %v6259, %v6602
        %v6715 = vadd.f32 %v6260, %v6602
        %v6716 = vadd.f32 %v6261, %v6602
        %v6717 = vadd.f32 %v6262, %v6602
        %v6718 = vadd.f32 %v6263, %v6602
        %v6719 = vadd.f32 %v6264, %v6602
        %v6720 = vadd.f32 %v6265, %v6602
        %v6721 = vadd.f32 %v6266, %v6602
        %v6722 = vadd.f32 %v6267, %v6602
        %v6723 = vadd.f32 %v6268, %v6602
        %v6724 = vadd.f32 %v6269, %v6602
        %v6725 = vadd.f32 %v6270, %v6602
        %v6726 = vadd.f32 %v6271, %v6602
        %v6727 = vadd.f32 %v6272, %v6602
        %v6728 = vadd.f32 %v6273, %v6602
        %v6729 = vadd.f32 %v6274, %v6602
        %v6730 = vadd.f32 %v6275, %v6602
        %v6731 = vadd.f32 %v6276, %v6602
        %v6732 = vadd.f32 %v6277, %v6602
        %v6733 = vadd.f32 %v6278, %v6602
        %v6734 = vadd.f32 %v6279, %v6602
        %v6735 = vadd.f32 %v6280, %v6602
        %v6736 = vadd.f32 %v6281, %v6602
        %v6737 = vadd.f32 %v6282, %v6602
        %v6738 = vadd.f32 %v6283, %v6602
        %v6739 = vadd.f32 %v6284, %v6602
        %v6740 = vadd.f32 %v6285, %v6602
        %v6741 = vadd.f32 %v6286, %v6602
        %v6742 = vadd.f32 %v6287, %v6602
        %v6743 = vadd.f32 %v6288, %v6602
        %v6744 = vadd.f32 %v6289, %v6602
        %v6745 = vadd.f32 %v6290, %v6602
        %v6746 = vadd.f32 %v6291, %v6602
        %v6747 = vadd.f32 %v6292, %v6602
        %v6748 = vadd.f32 %v6293, %v6602
        %v6749 = vadd.f32 %v6294, %v6602
        %v6750 = vadd.f32 %v6295, %v6602
        %v6751 = vadd.f32 %v6296, %v6602
        %v6752 = vadd.f32 %v6297, %v6602
        %v6753 = vadd.f32 %v6298, %v6602
        %v6754 = vadd.f32 %v6299, %v6602
        %v6755 = vadd.f32 %v6300, %v6602
        %v6756 = vadd.f32 %v6301, %v6602
        %v6757 = vadd.f32 %v6302, %v6602
        %v6758 = vadd.f32 %v6303, %v6602
        %v6759 = vadd.f32 %v6304, %v6602
        %v6760 = vadd.f32 %v6305, %v6602
        %v6761 = vadd.f32 %v6306, %v6602
        %v6762 = vadd.f32 %v6307, %v6602
        %v6763 = vadd.f32 %v6308, %v6602
        %v6764 = vadd.f32 %v6309, %v6602
        %v6765 = vadd.f32 %v6310, %v6602
        %v6766 = vadd.f32 %v6311, %v6602
        %v6767 = vadd.f32 %v6312, %v6602
        %v6768 = vadd.f32 %v6313, %v6602
        %v6769 = vadd.f32 %v6314, %v6602
        %v6770 = vadd.f32 %v6315, %v6602
        %v6771 = vadd.f32 %v6316, %v6602
        %v6772 = vadd.f32 %v6317, %v6602
        %v6773 = vadd.f32 %v6318, %v6602
        %v6774 = vadd.f32 %v6319, %v6602
        %v6775 = vadd.f32 %v6320, %v6602
        %v6776 = vadd.f32 %v6321, %v6602
        %v6777 = vadd.f32 %v6322, %v6602
        %v6778 = vadd.f32 %v6323, %v6602
        %v6779 = vadd.f32 %v6324, %v6602
        %v6780 = vadd.f32 %v6325, %v6602
        %v6781 = vadd.f32 %v6326, %v6602
        %v6782 = vadd.f32 %v6327, %v6602
        %v6783 = vadd.f32 %v6328, %v6602
        %v6784 = vadd.f32 %v6329, %v6602
        %v6785 = vadd.f32 %v6330, %v6602
        %v6786 = vadd.f32 %v6331, %v6602
        %v6787 = vadd.f32 %v6332, %v6602
        %v6788 = vadd.f32 %v6333, %v6602
        %v6789 = vadd.f32 %v6334, %v6602
        %v6790 = vadd.f32 %v6335, %v6602
        %v6791 = vadd.f32 %v6336, %v6602
        %v6792 = vadd.f32 %v6337, %v6602
        %v6793 = vadd.f32 %v6338, %v6602
        %v6794 = vadd.f32 %v6339, %v6602
        %v6795 = vadd.f32 %v6340, %v6602
        %v6796 = vadd.f32 %v6341, %v6602
        %v6797 = vadd.f32 %v6342, %v6602
        %v6798 = vadd.f32 %v6343, %v6602
        %v6799 = vadd.f32 %v6344, %v6602
        %v6800 = vadd.f32 %v6345, %v6602
        %v6801 = vadd.f32 %v6346, %v6602
        %v6802 = vadd.f32 %v6347, %v6602
        %v6803 = vadd.f32 %v6348, %v6602
        %v6804 = vadd.f32 %v6349, %v6602
        %v6805 = vadd.f32 %v6350, %v6602
        %v6806 = vadd.f32 %v6351, %v6602
        %v6807 = vadd.f32 %v6352, %v6602
        %v6808 = vadd.f32 %v6353, %v6602
        %v6809 = vadd.f32 %v6354, %v6602
        %v6810 = vadd.f32 %v6355, %v6602
        %v6811 = vadd.f32 %v6356, %v6602
        %v6812 = vadd.f32 %v6357, %v6602
        %v6813 = vadd.f32 %v6358, %v6602
        %v6814 = vadd.f32 %v6359, %v6602
        %v6815 = vadd.f32 %v6360, %v6602
        %v6816 = vadd.f32 %v6361, %v6602
        %v6817 = vadd.f32 %v6362, %v6602
        %v6818 = vadd.f32 %v6363, %v6602
        %v6819 = vadd.f32 %v6364, %v6602
        %v6820 = vadd.f32 %v6365, %v6602
        %v6821 = vadd.f32 %v6366, %v6602
        %v6822 = vadd.f32 %v6367, %v6602
        %v6823 = vadd.f32 %v6368, %v6602
        %v6824 = vadd.f32 %v6369, %v6602
        %v6825 = vadd.f32 %v6370, %v6602
        %v6826 = vadd.f32 %v6371, %v6602
        %v6827 = vadd.f32 %v6372, %v6602
        %v6828 = vadd.f32 %v6373, %v6602
        %v6829 = vadd.f32 %v6374, %v6602
        %v6830 = vadd.f32 %v6375, %v6602
        %v6831 = vadd.f32 %v6376, %v6602
        %v6832 = vadd.f32 %v6377, %v6602
        %v6833 = vadd.f32 %v6378, %v6602
        %v6834 = vadd.f32 %v6379, %v6602
        %v6835 = vadd.f32 %v6380, %v6602
        %v6836 = vadd.f32 %v6381, %v6602
        %v6837 = vadd.f32 %v6382, %v6602
        %v6838 = vadd.f32 %v6383, %v6602
        %v6839 = vadd.f32 %v6384, %v6602
        %v6840 = vadd.f32 %v6385, %v6602
        %v6841 = vadd.f32 %v6386, %v6602
        %v6842 = vadd.f32 %v6387, %v6602
        %v6843 = vadd.f32 %v6388, %v6602
        %v6844 = vadd.f32 %v6389, %v6602
        %v6845 = vadd.f32 %v6390, %v6602
        %v6846 = vadd.f32 %v6391, %v6602
        %v6847 = vadd.f32 %v6392, %v6602
        %v6848 = vadd.f32 %v6393, %v6602
        %v6849 = vadd.f32 %v6394, %v6602
        %v6850 = vadd.f32 %v6395, %v6602
        %v6851 = vadd.f32 %v6396, %v6602
        %v6852 = vadd.f32 %v6397, %v6602
        %v6853 = vadd.f32 %v6398, %v6602
        %v6854 = vadd.f32 %v6399, %v6602
        %v6855 = vadd.f32 %v6400, %v6602
        %v6856 = vadd.f32 %v6401, %v6602
        %v6857 = vadd.f32 %v6402, %v6602
        %v6858 = vadd.f32 %v6403, %v6602
        %v6859 = vadd.f32 %v6404, %v6602
        %v6860 = vadd.f32 %v6405, %v6602
        %v6861 = vadd.f32 %v6406, %v6602
        %v6862 = vadd.f32 %v6407, %v6602
        %v6863 = vadd.f32 %v6408, %v6602
        %v6864 = vadd.f32 %v6409, %v6602
        %v6865 = vadd.f32 %v6410, %v6602
        %v6866 = vadd.f32 %v6411, %v6602
        %v6867 = vadd.f32 %v6412, %v6602
        %v6868 = vadd.f32 %v6413, %v6602
        %v6869 = vadd.f32 %v6414, %v6602
        %v6870 = vadd.f32 %v6415, %v6602
        %v6871 = vadd.f32 %v6416, %v6602
        %v6872 = vadd.f32 %v6417, %v6602
        %v6873 = vadd.f32 %v6418, %v6602
        %v6874 = vadd.f32 %v6419, %v6602
        %v6875 = vadd.f32 %v6420, %v6602
        %v6876 = vadd.f32 %v6421, %v6602
        %v6877 = vadd.f32 %v6422, %v6602
        %v6878 = vadd.f32 %v6423, %v6602
        %v6879 = vadd.f32 %v6424, %v6602
        %v6880 = vadd.f32 %v6425, %v6602
        %v6881 = vadd.f32 %v6426, %v6602
        %v6882 = vadd.f32 %v6427, %v6602
        %v6883 = vadd.f32 %v6428, %v6602
        %v6884 = vadd.f32 %v6429, %v6602
        %v6885 = vadd.f32 %v6430, %v6602
        %v6886 = vadd.f32 %v6431, %v6602
        %v6887 = vadd.f32 %v6432, %v6602
        %v6888 = vadd.f32 %v6433, %v6602
        %v6889 = vadd.f32 %v6434, %v6602
        %v6890 = vadd.f32 %v6435, %v6602
        %v6891 = vadd.f32 %v6436, %v6602
        %v6892 = vadd.f32 %v6437, %v6602
        %v6893 = vadd.f32 %v6438, %v6602
        %v6894 = vadd.f32 %v6439, %v6602
        %v6895 = vadd.f32 %v6440, %v6602
        %v6896 = vadd.f32 %v6441, %v6602
        %v6897 = vadd.f32 %v6442, %v6602
        %v6898 = vadd.f32 %v6443, %v6602
        %v6899 = vadd.f32 %v6444, %v6602
        %v6900 = vadd.f32 %v6445, %v6602
        %v6901 = vadd.f32 %v6446, %v6602
        %v6902 = vadd.f32 %v6447, %v6602
        %v6903 = vadd.f32 %v6448, %v6602
        %v6904 = vadd.f32 %v6449, %v6602
        %v6905 = vadd.f32 %v6450, %v6602
        %v6906 = vadd.f32 %v6451, %v6602
        %v6907 = vadd.f32 %v6452, %v6602
        %v6908 = vadd.f32 %v6453, %v6602
        %v6909 = vadd.f32 %v6454, %v6602
        %v6910 = vadd.f32 %v6455, %v6602
        %v6911 = vadd.f32 %v6456, %v6602
        %v6912 = vadd.f32 %v6457, %v6602
        %v6913 = vadd.f32 %v6458, %v6602
        %v6914 = vadd.f32 %v6459, %v6602
        %v6915 = vadd.f32 %v6460, %v6602
        %v6916 = vadd.f32 %v6461, %v6602
        %v6917 = vadd.f32 %v6462, %v6602
        %v6918 = vadd.f32 %v6463, %v6602
        %v6919 = vadd.f32 %v6464, %v6602
        %v6920 = vadd.f32 %v6465, %v6602
        %v6921 = vadd.f32 %v6466, %v6602
        %v6922 = vadd.f32 %v6467, %v6602
        %v6923 = vadd.f32 %v6468, %v6602
        %v6924 = vadd.f32 %v6469, %v6602
        %v6925 = vadd.f32 %v6470, %v6602
        %v6926 = vadd.f32 %v6471, %v6602
        %v6927 = vadd.f32 %v6472, %v6602
        %v6928 = vadd.f32 %v6473, %v6602
        %v6929 = vadd.f32 %v6474, %v6602
        %v6930 = vadd.f32 %v6475, %v6602
        %v6931 = vadd.f32 %v6476, %v6602
        %v6932 = vadd.f32 %v6477, %v6602
        %v6933 = vadd.f32 %v6478, %v6602
        %v6934 = vadd.f32 %v6479, %v6602
        %v6935 = vadd.f32 %v6480, %v6602
        %v6936 = vadd.f32 %v6481, %v6602
        %v6937 = vadd.f32 %v6482, %v6602
        %v6938 = vadd.f32 %v6483, %v6602
        %v6939 = vadd.f32 %v6484, %v6602
        %v6940 = vadd.f32 %v6485, %v6602
        %v6941 = vadd.f32 %v6486, %v6602
        %v6942 = vadd.f32 %v6487, %v6602
        %v6943 = vadd.f32 %v6488, %v6602
        %v6944 = vadd.f32 %v6489, %v6602
        %v6945 = vadd.f32 %v6490, %v6602
        %v6946 = vadd.f32 %v6491, %v6602
        %v6947 = vadd.f32 %v6492, %v6602
        %v6948 = vadd.f32 %v6493, %v6602
        %v6949 = vadd.f32 %v6494, %v6602
        %v6950 = vadd.f32 %v6495, %v6602
        %v6951 = vadd.f32 %v6496, %v6602
        %v6952 = vadd.f32 %v6497, %v6602
        %v6953 = vadd.f32 %v6498, %v6602
        %v6954 = vadd.f32 %v6499, %v6602
        %v6955 = vadd.f32 %v6500, %v6602
        %v6956 = vadd.f32 %v6501, %v6602
        %v6957 = vadd.f32 %v6502, %v6602
        %v6958 = vadd.f32 %v6503, %v6602
        %v6959 = vadd.f32 %v6504, %v6602
        %v6960 = vadd.f32 %v6505, %v6602
        %v6961 = vadd.f32 %v6506, %v6602
        %v6962 = vadd.f32 %v6507, %v6602
        %v6963 = vadd.f32 %v6508, %v6602
        %v6964 = vadd.f32 %v6509, %v6602
        %v6965 = vadd.f32 %v6510, %v6602
        %v6966 = vadd.f32 %v6511, %v6602
        %v6967 = vadd.f32 %v6512, %v6602
        %v6968 = vadd.f32 %v6513, %v6602
        %v6969 = vadd.f32 %v6514, %v6602
        %v6970 = vadd.f32 %v6515, %v6602
        %v6971 = vadd.f32 %v6516, %v6602
        %v6972 = vadd.f32 %v6517, %v6602
        %v6973 = vadd.f32 %v6518, %v6602
        %v6974 = vadd.f32 %v6519, %v6602
        %v6975 = vadd.f32 %v6520, %v6602
        %v6976 = vadd.f32 %v6521, %v6602
        %v6977 = vadd.f32 %v6522, %v6602
        %v6978 = vadd.f32 %v6523, %v6602
        %v6979 = vadd.f32 %v6524, %v6602
        %v6980 = vadd.f32 %v6525, %v6602
        %v6981 = vadd.f32 %v6526, %v6602
        %v6982 = vadd.f32 %v6527, %v6602
        %v6983 = vadd.f32 %v6528, %v6602
        %v6984 = vadd.f32 %v6529, %v6602
        %v6985 = vadd.f32 %v6530, %v6602
        %v6986 = vadd.f32 %v6531, %v6602
        %v6987 = vadd.f32 %v6532, %v6602
        %v6988 = vadd.f32 %v6533, %v6602
        %v6989 = vadd.f32 %v6534, %v6602
        %v6990 = vadd.f32 %v6535, %v6602
        %v6991 = vadd.f32 %v6536, %v6602
        %v6992 = vadd.f32 %v6537, %v6602
        %v6993 = vadd.f32 %v6538, %v6602
        %v6994 = vadd.f32 %v6539, %v6602
        %v6995 = vadd.f32 %v6540, %v6602
        %v6996 = vadd.f32 %v6541, %v6602
        %v6997 = vadd.f32 %v6542, %v6602
        %v6998 = vadd.f32 %v6543, %v6602
        %v6999 = vadd.f32 %v6544, %v6602
        %v7000 = vadd.f32 %v6545, %v6602
        %v7001 = vadd.f32 %v6546, %v6602
        %v7002 = vadd.f32 %v6547, %v6602
        %v7003 = vadd.f32 %v6548, %v6602
        %v7004 = vadd.f32 %v6549, %v6602
        %v7005 = vadd.f32 %v6550, %v6602
        %v7006 = vadd.f32 %v6551, %v6602
        %v7007 = vadd.f32 %v6552, %v6602
        %v7008 = vadd.f32 %v6553, %v6602
        %v7009 = vadd.f32 %v6554, %v6602
        %v7010 = vadd.f32 %v6555, %v6602
        %v7011 = vadd.f32 %v6556, %v6602
        %v7012 = vadd.f32 %v6557, %v6602
        %v7013 = vadd.f32 %v6558, %v6602
        %v7014 = vadd.f32 %v6559, %v6602
        %v7015 = vadd.f32 %v6560, %v6602
        %v7016 = vadd.f32 %v6561, %v6602
        %v7017 = vadd.f32 %v6562, %v6602
        %v7018 = vadd.f32 %v6563, %v6602
        %v7019 = vadd.f32 %v6564, %v6602
        %v7020 = vadd.f32 %v6565, %v6602
        %v7021 = vadd.f32 %v6566, %v6602
        %v7022 = vadd.f32 %v6567, %v6602
        %v7023 = vadd.f32 %v6568, %v6602
        %v7024 = vadd.f32 %v6569, %v6602
        %v7025 = vadd.f32 %v6570, %v6602
        %v7026 = vadd.f32 %v6571, %v6602
        %v7027 = vadd.f32 %v6572, %v6602
        %v7028 = vadd.f32 %v6573, %v6602
        %v7029 = vadd.f32 %v6574, %v6602
        %v7030 = vadd.f32 %v6575, %v6602
        %v7031 = vadd.f32 %v6576, %v6602
        %v7032 = vadd.f32 %v6577, %v6602
        %v7033 = vadd.f32 %v6578, %v6602
        %v7034 = vadd.f32 %v6579, %v6602
        %v7035 = vadd.f32 %v6580, %v6602
        %v7036 = vadd.f32 %v6581, %v6602
        %v7037 = vadd.f32 %v6582, %v6602
        %v7038 = vadd.f32 %v6583, %v6602
        %v7039 = vadd.f32 %v6584, %v6602
        %v7040 = vadd.f32 %v6585, %v6602
        %v7041 = vadd.f32 %v6586, %v6602
        %v7042 = vadd.f32 %v6587, %v6602
        %v7043 = vadd.f32 %v6588, %v6602
        %v7044 = vadd.f32 %v6589, %v6602
        %v7045 = vadd.f32 %v6590, %v6602
        %v7046 = vadd.f32 %v6591, %v6602
        %v7047 = vadd.f32 %v6592, %v6602
        %v7048 = vadd.f32 %v6593, %v6602
        %v7049 = vadd.f32 %v6594, %v6602
        %v7050 = vadd.f32 %v6595, %v6602
        %v7051 = vadd.f32 %v6596, %v6602
        %v7052 = vmax.f32 %v6604, 0.0
        %v7053 = vmax.f32 %v6605, 0.0
        %v7054 = vmax.f32 %v6606, 0.0
        %v7055 = vmax.f32 %v6607, 0.0
        %v7056 = vmax.f32 %v6608, 0.0
        %v7057 = vmax.f32 %v6609, 0.0
        %v7058 = vmax.f32 %v6610, 0.0
        %v7059 = vmax.f32 %v6611, 0.0
        %v7060 = vmax.f32 %v6612, 0.0
        %v7061 = vmax.f32 %v6613, 0.0
        %v7062 = vmax.f32 %v6614, 0.0
        %v7063 = vmax.f32 %v6615, 0.0
        %v7064 = vmax.f32 %v6616, 0.0
        %v7065 = vmax.f32 %v6617, 0.0
        %v7066 = vmax.f32 %v6618, 0.0
        %v7067 = vmax.f32 %v6619, 0.0
        %v7068 = vmax.f32 %v6620, 0.0
        %v7069 = vmax.f32 %v6621, 0.0
        %v7070 = vmax.f32 %v6622, 0.0
        %v7071 = vmax.f32 %v6623, 0.0
        %v7072 = vmax.f32 %v6624, 0.0
        %v7073 = vmax.f32 %v6625, 0.0
        %v7074 = vmax.f32 %v6626, 0.0
        %v7075 = vmax.f32 %v6627, 0.0
        %v7076 = vmax.f32 %v6628, 0.0
        %v7077 = vmax.f32 %v6629, 0.0
        %v7078 = vmax.f32 %v6630, 0.0
        %v7079 = vmax.f32 %v6631, 0.0
        %v7080 = vmax.f32 %v6632, 0.0
        %v7081 = vmax.f32 %v6633, 0.0
        %v7082 = vmax.f32 %v6634, 0.0
        %v7083 = vmax.f32 %v6635, 0.0
        %v7084 = vmax.f32 %v6636, 0.0
        %v7085 = vmax.f32 %v6637, 0.0
        %v7086 = vmax.f32 %v6638, 0.0
        %v7087 = vmax.f32 %v6639, 0.0
        %v7088 = vmax.f32 %v6640, 0.0
        %v7089 = vmax.f32 %v6641, 0.0
        %v7090 = vmax.f32 %v6642, 0.0
        %v7091 = vmax.f32 %v6643, 0.0
        %v7092 = vmax.f32 %v6644, 0.0
        %v7093 = vmax.f32 %v6645, 0.0
        %v7094 = vmax.f32 %v6646, 0.0
        %v7095 = vmax.f32 %v6647, 0.0
        %v7096 = vmax.f32 %v6648, 0.0
        %v7097 = vmax.f32 %v6649, 0.0
        %v7098 = vmax.f32 %v6650, 0.0
        %v7099 = vmax.f32 %v6651, 0.0
        %v7100 = vmax.f32 %v6652, 0.0
        %v7101 = vmax.f32 %v6653, 0.0
        %v7102 = vmax.f32 %v6654, 0.0
        %v7103 = vmax.f32 %v6655, 0.0
        %v7104 = vmax.f32 %v6656, 0.0
        %v7105 = vmax.f32 %v6657, 0.0
        %v7106 = vmax.f32 %v6658, 0.0
        %v7107 = vmax.f32 %v6659, 0.0
        %v7108 = vmax.f32 %v6660, 0.0
        %v7109 = vmax.f32 %v6661, 0.0
        %v7110 = vmax.f32 %v6662, 0.0
        %v7111 = vmax.f32 %v6663, 0.0
        %v7112 = vmax.f32 %v6664, 0.0
        %v7113 = vmax.f32 %v6665, 0.0
        %v7114 = vmax.f32 %v6666, 0.0
        %v7115 = vmax.f32 %v6667, 0.0
        %v7116 = vmax.f32 %v6668, 0.0
        %v7117 = vmax.f32 %v6669, 0.0
        %v7118 = vmax.f32 %v6670, 0.0
        %v7119 = vmax.f32 %v6671, 0.0
        %v7120 = vmax.f32 %v6672, 0.0
        %v7121 = vmax.f32 %v6673, 0.0
        %v7122 = vmax.f32 %v6674, 0.0
        %v7123 = vmax.f32 %v6675, 0.0
        %v7124 = vmax.f32 %v6676, 0.0
        %v7125 = vmax.f32 %v6677, 0.0
        %v7126 = vmax.f32 %v6678, 0.0
        %v7127 = vmax.f32 %v6679, 0.0
        %v7128 = vmax.f32 %v6680, 0.0
        %v7129 = vmax.f32 %v6681, 0.0
        %v7130 = vmax.f32 %v6682, 0.0
        %v7131 = vmax.f32 %v6683, 0.0
        %v7132 = vmax.f32 %v6684, 0.0
        %v7133 = vmax.f32 %v6685, 0.0
        %v7134 = vmax.f32 %v6686, 0.0
        %v7135 = vmax.f32 %v6687, 0.0
        %v7136 = vmax.f32 %v6688, 0.0
        %v7137 = vmax.f32 %v6689, 0.0
        %v7138 = vmax.f32 %v6690, 0.0
        %v7139 = vmax.f32 %v6691, 0.0
        %v7140 = vmax.f32 %v6692, 0.0
        %v7141 = vmax.f32 %v6693, 0.0
        %v7142 = vmax.f32 %v6694, 0.0
        %v7143 = vmax.f32 %v6695, 0.0
        %v7144 = vmax.f32 %v6696, 0.0
        %v7145 = vmax.f32 %v6697, 0.0
        %v7146 = vmax.f32 %v6698, 0.0
        %v7147 = vmax.f32 %v6699, 0.0
        %v7148 = vmax.f32 %v6700, 0.0
        %v7149 = vmax.f32 %v6701, 0.0
        %v7150 = vmax.f32 %v6702, 0.0
        %v7151 = vmax.f32 %v6703, 0.0
        %v7152 = vmax.f32 %v6704, 0.0
        %v7153 = vmax.f32 %v6705, 0.0
        %v7154 = vmax.f32 %v6706, 0.0
        %v7155 = vmax.f32 %v6707, 0.0
        %v7156 = vmax.f32 %v6708, 0.0
        %v7157 = vmax.f32 %v6709, 0.0
        %v7158 = vmax.f32 %v6710, 0.0
        %v7159 = vmax.f32 %v6711, 0.0
        %v7160 = vmax.f32 %v6712, 0.0
        %v7161 = vmax.f32 %v6713, 0.0
        %v7162 = vmax.f32 %v6714, 0.0
        %v7163 = vmax.f32 %v6715, 0.0
        %v7164 = vmax.f32 %v6716, 0.0
        %v7165 = vmax.f32 %v6717, 0.0
        %v7166 = vmax.f32 %v6718, 0.0
        %v7167 = vmax.f32 %v6719, 0.0
        %v7168 = vmax.f32 %v6720, 0.0
        %v7169 = vmax.f32 %v6721, 0.0
        %v7170 = vmax.f32 %v6722, 0.0
        %v7171 = vmax.f32 %v6723, 0.0
        %v7172 = vmax.f32 %v6724, 0.0
        %v7173 = vmax.f32 %v6725, 0.0
        %v7174 = vmax.f32 %v6726, 0.0
        %v7175 = vmax.f32 %v6727, 0.0
        %v7176 = vmax.f32 %v6728, 0.0
        %v7177 = vmax.f32 %v6729, 0.0
        %v7178 = vmax.f32 %v6730, 0.0
        %v7179 = vmax.f32 %v6731, 0.0
        %v7180 = vmax.f32 %v6732, 0.0
        %v7181 = vmax.f32 %v6733, 0.0
        %v7182 = vmax.f32 %v6734, 0.0
        %v7183 = vmax.f32 %v6735, 0.0
        %v7184 = vmax.f32 %v6736, 0.0
        %v7185 = vmax.f32 %v6737, 0.0
        %v7186 = vmax.f32 %v6738, 0.0
        %v7187 = vmax.f32 %v6739, 0.0
        %v7188 = vmax.f32 %v6740, 0.0
        %v7189 = vmax.f32 %v6741, 0.0
        %v7190 = vmax.f32 %v6742, 0.0
        %v7191 = vmax.f32 %v6743, 0.0
        %v7192 = vmax.f32 %v6744, 0.0
        %v7193 = vmax.f32 %v6745, 0.0
        %v7194 = vmax.f32 %v6746, 0.0
        %v7195 = vmax.f32 %v6747, 0.0
        %v7196 = vmax.f32 %v6748, 0.0
        %v7197 = vmax.f32 %v6749, 0.0
        %v7198 = vmax.f32 %v6750, 0.0
        %v7199 = vmax.f32 %v6751, 0.0
        %v7200 = vmax.f32 %v6752, 0.0
        %v7201 = vmax.f32 %v6753, 0.0
        %v7202 = vmax.f32 %v6754, 0.0
        %v7203 = vmax.f32 %v6755, 0.0
        %v7204 = vmax.f32 %v6756, 0.0
        %v7205 = vmax.f32 %v6757, 0.0
        %v7206 = vmax.f32 %v6758, 0.0
        %v7207 = vmax.f32 %v6759, 0.0
        %v7208 = vmax.f32 %v6760, 0.0
        %v7209 = vmax.f32 %v6761, 0.0
        %v7210 = vmax.f32 %v6762, 0.0
        %v7211 = vmax.f32 %v6763, 0.0
        %v7212 = vmax.f32 %v6764, 0.0
        %v7213 = vmax.f32 %v6765, 0.0
        %v7214 = vmax.f32 %v6766, 0.0
        %v7215 = vmax.f32 %v6767, 0.0
        %v7216 = vmax.f32 %v6768, 0.0
        %v7217 = vmax.f32 %v6769, 0.0
        %v7218 = vmax.f32 %v6770, 0.0
        %v7219 = vmax.f32 %v6771, 0.0
        %v7220 = vmax.f32 %v6772, 0.0
        %v7221 = vmax.f32 %v6773, 0.0
        %v7222 = vmax.f32 %v6774, 0.0
        %v7223 = vmax.f32 %v6775, 0.0
        %v7224 = vmax.f32 %v6776, 0.0
        %v7225 = vmax.f32 %v6777, 0.0
        %v7226 = vmax.f32 %v6778, 0.0
        %v7227 = vmax.f32 %v6779, 0.0
        %v7228 = vmax.f32 %v6780, 0.0
        %v7229 = vmax.f32 %v6781, 0.0
        %v7230 = vmax.f32 %v6782, 0.0
        %v7231 = vmax.f32 %v6783, 0.0
        %v7232 = vmax.f32 %v6784, 0.0
        %v7233 = vmax.f32 %v6785, 0.0
        %v7234 = vmax.f32 %v6786, 0.0
        %v7235 = vmax.f32 %v6787, 0.0
        %v7236 = vmax.f32 %v6788, 0.0
        %v7237 = vmax.f32 %v6789, 0.0
        %v7238 = vmax.f32 %v6790, 0.0
        %v7239 = vmax.f32 %v6791, 0.0
        %v7240 = vmax.f32 %v6792, 0.0
        %v7241 = vmax.f32 %v6793, 0.0
        %v7242 = vmax.f32 %v6794, 0.0
        %v7243 = vmax.f32 %v6795, 0.0
        %v7244 = vmax.f32 %v6796, 0.0
        %v7245 = vmax.f32 %v6797, 0.0
        %v7246 = vmax.f32 %v6798, 0.0
        %v7247 = vmax.f32 %v6799, 0.0
        %v7248 = vmax.f32 %v6800, 0.0
        %v7249 = vmax.f32 %v6801, 0.0
        %v7250 = vmax.f32 %v6802, 0.0
        %v7251 = vmax.f32 %v6803, 0.0
        %v7252 = vmax.f32 %v6804, 0.0
        %v7253 = vmax.f32 %v6805, 0.0
        %v7254 = vmax.f32 %v6806, 0.0
        %v7255 = vmax.f32 %v6807, 0.0
        %v7256 = vmax.f32 %v6808, 0.0
        %v7257 = vmax.f32 %v6809, 0.0
        %v7258 = vmax.f32 %v6810, 0.0
        %v7259 = vmax.f32 %v6811, 0.0
        %v7260 = vmax.f32 %v6812, 0.0
        %v7261 = vmax.f32 %v6813, 0.0
        %v7262 = vmax.f32 %v6814, 0.0
        %v7263 = vmax.f32 %v6815, 0.0
        %v7264 = vmax.f32 %v6816, 0.0
        %v7265 = vmax.f32 %v6817, 0.0
        %v7266 = vmax.f32 %v6818, 0.0
        %v7267 = vmax.f32 %v6819, 0.0
        %v7268 = vmax.f32 %v6820, 0.0
        %v7269 = vmax.f32 %v6821, 0.0
        %v7270 = vmax.f32 %v6822, 0.0
        %v7271 = vmax.f32 %v6823, 0.0
        %v7272 = vmax.f32 %v6824, 0.0
        %v7273 = vmax.f32 %v6825, 0.0
        %v7274 = vmax.f32 %v6826, 0.0
        %v7275 = vmax.f32 %v6827, 0.0
        %v7276 = vmax.f32 %v6828, 0.0
        %v7277 = vmax.f32 %v6829, 0.0
        %v7278 = vmax.f32 %v6830, 0.0
        %v7279 = vmax.f32 %v6831, 0.0
        %v7280 = vmax.f32 %v6832, 0.0
        %v7281 = vmax.f32 %v6833, 0.0
        %v7282 = vmax.f32 %v6834, 0.0
        %v7283 = vmax.f32 %v6835, 0.0
        %v7284 = vmax.f32 %v6836, 0.0
        %v7285 = vmax.f32 %v6837, 0.0
        %v7286 = vmax.f32 %v6838, 0.0
        %v7287 = vmax.f32 %v6839, 0.0
        %v7288 = vmax.f32 %v6840, 0.0
        %v7289 = vmax.f32 %v6841, 0.0
        %v7290 = vmax.f32 %v6842, 0.0
        %v7291 = vmax.f32 %v6843, 0.0
        %v7292 = vmax.f32 %v6844, 0.0
        %v7293 = vmax.f32 %v6845, 0.0
        %v7294 = vmax.f32 %v6846, 0.0
        %v7295 = vmax.f32 %v6847, 0.0
        %v7296 = vmax.f32 %v6848, 0.0
        %v7297 = vmax.f32 %v6849, 0.0
        %v7298 = vmax.f32 %v6850, 0.0
        %v7299 = vmax.f32 %v6851, 0.0
        %v7300 = vmax.f32 %v6852, 0.0
        %v7301 = vmax.f32 %v6853, 0.0
        %v7302 = vmax.f32 %v6854, 0.0
        %v7303 = vmax.f32 %v6855, 0.0
        %v7304 = vmax.f32 %v6856, 0.0
        %v7305 = vmax.f32 %v6857, 0.0
        %v7306 = vmax.f32 %v6858, 0.0
        %v7307 = vmax.f32 %v6859, 0.0
        %v7308 = vmax.f32 %v6860, 0.0
        %v7309 = vmax.f32 %v6861, 0.0
        %v7310 = vmax.f32 %v6862, 0.0
        %v7311 = vmax.f32 %v6863, 0.0
        %v7312 = vmax.f32 %v6864, 0.0
        %v7313 = vmax.f32 %v6865, 0.0
        %v7314 = vmax.f32 %v6866, 0.0
        %v7315 = vmax.f32 %v6867, 0.0
        %v7316 = vmax.f32 %v6868, 0.0
        %v7317 = vmax.f32 %v6869, 0.0
        %v7318 = vmax.f32 %v6870, 0.0
        %v7319 = vmax.f32 %v6871, 0.0
        %v7320 = vmax.f32 %v6872, 0.0
        %v7321 = vmax.f32 %v6873, 0.0
        %v7322 = vmax.f32 %v6874, 0.0
        %v7323 = vmax.f32 %v6875, 0.0
        %v7324 = vmax.f32 %v6876, 0.0
        %v7325 = vmax.f32 %v6877, 0.0
        %v7326 = vmax.f32 %v6878, 0.0
        %v7327 = vmax.f32 %v6879, 0.0
        %v7328 = vmax.f32 %v6880, 0.0
        %v7329 = vmax.f32 %v6881, 0.0
        %v7330 = vmax.f32 %v6882, 0.0
        %v7331 = vmax.f32 %v6883, 0.0
        %v7332 = vmax.f32 %v6884, 0.0
        %v7333 = vmax.f32 %v6885, 0.0
        %v7334 = vmax.f32 %v6886, 0.0
        %v7335 = vmax.f32 %v6887, 0.0
        %v7336 = vmax.f32 %v6888, 0.0
        %v7337 = vmax.f32 %v6889, 0.0
        %v7338 = vmax.f32 %v6890, 0.0
        %v7339 = vmax.f32 %v6891, 0.0
        %v7340 = vmax.f32 %v6892, 0.0
        %v7341 = vmax.f32 %v6893, 0.0
        %v7342 = vmax.f32 %v6894, 0.0
        %v7343 = vmax.f32 %v6895, 0.0
        %v7344 = vmax.f32 %v6896, 0.0
        %v7345 = vmax.f32 %v6897, 0.0
        %v7346 = vmax.f32 %v6898, 0.0
        %v7347 = vmax.f32 %v6899, 0.0
        %v7348 = vmax.f32 %v6900, 0.0
        %v7349 = vmax.f32 %v6901, 0.0
        %v7350 = vmax.f32 %v6902, 0.0
        %v7351 = vmax.f32 %v6903, 0.0
        %v7352 = vmax.f32 %v6904, 0.0
        %v7353 = vmax.f32 %v6905, 0.0
        %v7354 = vmax.f32 %v6906, 0.0
        %v7355 = vmax.f32 %v6907, 0.0
        %v7356 = vmax.f32 %v6908, 0.0
        %v7357 = vmax.f32 %v6909, 0.0
        %v7358 = vmax.f32 %v6910, 0.0
        %v7359 = vmax.f32 %v6911, 0.0
        %v7360 = vmax.f32 %v6912, 0.0
        %v7361 = vmax.f32 %v6913, 0.0
        %v7362 = vmax.f32 %v6914, 0.0
        %v7363 = vmax.f32 %v6915, 0.0
        %v7364 = vmax.f32 %v6916, 0.0
        %v7365 = vmax.f32 %v6917, 0.0
        %v7366 = vmax.f32 %v6918, 0.0
        %v7367 = vmax.f32 %v6919, 0.0
        %v7368 = vmax.f32 %v6920, 0.0
        %v7369 = vmax.f32 %v6921, 0.0
        %v7370 = vmax.f32 %v6922, 0.0
        %v7371 = vmax.f32 %v6923, 0.0
        %v7372 = vmax.f32 %v6924, 0.0
        %v7373 = vmax.f32 %v6925, 0.0
        %v7374 = vmax.f32 %v6926, 0.0
        %v7375 = vmax.f32 %v6927, 0.0
        %v7376 = vmax.f32 %v6928, 0.0
        %v7377 = vmax.f32 %v6929, 0.0
        %v7378 = vmax.f32 %v6930, 0.0
        %v7379 = vmax.f32 %v6931, 0.0
        %v7380 = vmax.f32 %v6932, 0.0
        %v7381 = vmax.f32 %v6933, 0.0
        %v7382 = vmax.f32 %v6934, 0.0
        %v7383 = vmax.f32 %v6935, 0.0
        %v7384 = vmax.f32 %v6936, 0.0
        %v7385 = vmax.f32 %v6937, 0.0
        %v7386 = vmax.f32 %v6938, 0.0
        %v7387 = vmax.f32 %v6939, 0.0
        %v7388 = vmax.f32 %v6940, 0.0
        %v7389 = vmax.f32 %v6941, 0.0
        %v7390 = vmax.f32 %v6942, 0.0
        %v7391 = vmax.f32 %v6943, 0.0
        %v7392 = vmax.f32 %v6944, 0.0
        %v7393 = vmax.f32 %v6945, 0.0
        %v7394 = vmax.f32 %v6946, 0.0
        %v7395 = vmax.f32 %v6947, 0.0
        %v7396 = vmax.f32 %v6948, 0.0
        %v7397 = vmax.f32 %v6949, 0.0
        %v7398 = vmax.f32 %v6950, 0.0
        %v7399 = vmax.f32 %v6951, 0.0
        %v7400 = vmax.f32 %v6952, 0.0
        %v7401 = vmax.f32 %v6953, 0.0
        %v7402 = vmax.f32 %v6954, 0.0
        %v7403 = vmax.f32 %v6955, 0.0
        %v7404 = vmax.f32 %v6956, 0.0
        %v7405 = vmax.f32 %v6957, 0.0
        %v7406 = vmax.f32 %v6958, 0.0
        %v7407 = vmax.f32 %v6959, 0.0
        %v7408 = vmax.f32 %v6960, 0.0
        %v7409 = vmax.f32 %v6961, 0.0
        %v7410 = vmax.f32 %v6962, 0.0
        %v7411 = vmax.f32 %v6963, 0.0
        %v7412 = vmax.f32 %v6964, 0.0
        %v7413 = vmax.f32 %v6965, 0.0
        %v7414 = vmax.f32 %v6966, 0.0
        %v7415 = vmax.f32 %v6967, 0.0
        %v7416 = vmax.f32 %v6968, 0.0
        %v7417 = vmax.f32 %v6969, 0.0
        %v7418 = vmax.f32 %v6970, 0.0
        %v7419 = vmax.f32 %v6971, 0.0
        %v7420 = vmax.f32 %v6972, 0.0
        %v7421 = vmax.f32 %v6973, 0.0
        %v7422 = vmax.f32 %v6974, 0.0
        %v7423 = vmax.f32 %v6975, 0.0
        %v7424 = vmax.f32 %v6976, 0.0
        %v7425 = vmax.f32 %v6977, 0.0
        %v7426 = vmax.f32 %v6978, 0.0
        %v7427 = vmax.f32 %v6979, 0.0
        %v7428 = vmax.f32 %v6980, 0.0
        %v7429 = vmax.f32 %v6981, 0.0
        %v7430 = vmax.f32 %v6982, 0.0
        %v7431 = vmax.f32 %v6983, 0.0
        %v7432 = vmax.f32 %v6984, 0.0
        %v7433 = vmax.f32 %v6985, 0.0
        %v7434 = vmax.f32 %v6986, 0.0
        %v7435 = vmax.f32 %v6987, 0.0
        %v7436 = vmax.f32 %v6988, 0.0
        %v7437 = vmax.f32 %v6989, 0.0
        %v7438 = vmax.f32 %v6990, 0.0
        %v7439 = vmax.f32 %v6991, 0.0
        %v7440 = vmax.f32 %v6992, 0.0
        %v7441 = vmax.f32 %v6993, 0.0
        %v7442 = vmax.f32 %v6994, 0.0
        %v7443 = vmax.f32 %v6995, 0.0
        %v7444 = vmax.f32 %v6996, 0.0
        %v7445 = vmax.f32 %v6997, 0.0
        %v7446 = vmax.f32 %v6998, 0.0
        %v7447 = vmax.f32 %v6999, 0.0
        %v7448 = vmax.f32 %v7000, 0.0
        %v7449 = vmax.f32 %v7001, 0.0
        %v7450 = vmax.f32 %v7002, 0.0
        %v7451 = vmax.f32 %v7003, 0.0
        %v7452 = vmax.f32 %v7004, 0.0
        %v7453 = vmax.f32 %v7005, 0.0
        %v7454 = vmax.f32 %v7006, 0.0
        %v7455 = vmax.f32 %v7007, 0.0
        %v7456 = vmax.f32 %v7008, 0.0
        %v7457 = vmax.f32 %v7009, 0.0
        %v7458 = vmax.f32 %v7010, 0.0
        %v7459 = vmax.f32 %v7011, 0.0
        %v7460 = vmax.f32 %v7012, 0.0
        %v7461 = vmax.f32 %v7013, 0.0
        %v7462 = vmax.f32 %v7014, 0.0
        %v7463 = vmax.f32 %v7015, 0.0
        %v7464 = vmax.f32 %v7016, 0.0
        %v7465 = vmax.f32 %v7017, 0.0
        %v7466 = vmax.f32 %v7018, 0.0
        %v7467 = vmax.f32 %v7019, 0.0
        %v7468 = vmax.f32 %v7020, 0.0
        %v7469 = vmax.f32 %v7021, 0.0
        %v7470 = vmax.f32 %v7022, 0.0
        %v7471 = vmax.f32 %v7023, 0.0
        %v7472 = vmax.f32 %v7024, 0.0
        %v7473 = vmax.f32 %v7025, 0.0
        %v7474 = vmax.f32 %v7026, 0.0
        %v7475 = vmax.f32 %v7027, 0.0
        %v7476 = vmax.f32 %v7028, 0.0
        %v7477 = vmax.f32 %v7029, 0.0
        %v7478 = vmax.f32 %v7030, 0.0
        %v7479 = vmax.f32 %v7031, 0.0
        %v7480 = vmax.f32 %v7032, 0.0
        %v7481 = vmax.f32 %v7033, 0.0
        %v7482 = vmax.f32 %v7034, 0.0
        %v7483 = vmax.f32 %v7035, 0.0
        %v7484 = vmax.f32 %v7036, 0.0
        %v7485 = vmax.f32 %v7037, 0.0
        %v7486 = vmax.f32 %v7038, 0.0
        %v7487 = vmax.f32 %v7039, 0.0
        %v7488 = vmax.f32 %v7040, 0.0
        %v7489 = vmax.f32 %v7041, 0.0
        %v7490 = vmax.f32 %v7042, 0.0
        %v7491 = vmax.f32 %v7043, 0.0
        %v7492 = vmax.f32 %v7044, 0.0
        %v7493 = vmax.f32 %v7045, 0.0
        %v7494 = vmax.f32 %v7046, 0.0
        %v7495 = vmax.f32 %v7047, 0.0
        %v7496 = vmax.f32 %v7048, 0.0
        %v7497 = vmax.f32 %v7049, 0.0
        %v7498 = vmax.f32 %v7050, 0.0
        %v7499 = vmax.f32 %v7051, 0.0
        %v7500 = vpack.c.bf16 %v7053, %v7052
        %v7501 = vpack.c.bf16 %v7055, %v7054
        %v7502 = vpack.c.bf16 %v7057, %v7056
        %v7503 = vpack.c.bf16 %v7059, %v7058
        %v7504 = vpack.c.bf16 %v7061, %v7060
        %v7505 = vpack.c.bf16 %v7063, %v7062
        %v7506 = vpack.c.bf16 %v7065, %v7064
        %v7507 = vpack.c.bf16 %v7067, %v7066
        %v7508 = vpack.c.bf16 %v7069, %v7068
        %v7509 = vpack.c.bf16 %v7071, %v7070
        %v7510 = vpack.c.bf16 %v7073, %v7072
        %v7511 = vpack.c.bf16 %v7075, %v7074
        %v7512 = vpack.c.bf16 %v7077, %v7076
        %v7513 = vpack.c.bf16 %v7079, %v7078
        %v7514 = vpack.c.bf16 %v7081, %v7080
        %v7515 = vpack.c.bf16 %v7083, %v7082
        %v7516 = vpack.c.bf16 %v7085, %v7084
        %v7517 = vpack.c.bf16 %v7087, %v7086
        %v7518 = vpack.c.bf16 %v7089, %v7088
        %v7519 = vpack.c.bf16 %v7091, %v7090
        %v7520 = vpack.c.bf16 %v7093, %v7092
        %v7521 = vpack.c.bf16 %v7095, %v7094
        %v7522 = vpack.c.bf16 %v7097, %v7096
        %v7523 = vpack.c.bf16 %v7099, %v7098
        %v7524 = vpack.c.bf16 %v7101, %v7100
        %v7525 = vpack.c.bf16 %v7103, %v7102
        %v7526 = vpack.c.bf16 %v7105, %v7104
        %v7527 = vpack.c.bf16 %v7107, %v7106
        %v7528 = vpack.c.bf16 %v7109, %v7108
        %v7529 = vpack.c.bf16 %v7111, %v7110
        %v7530 = vpack.c.bf16 %v7113, %v7112
        %v7531 = vpack.c.bf16 %v7115, %v7114
        %v7532 = vpack.c.bf16 %v7117, %v7116
        %v7533 = vpack.c.bf16 %v7119, %v7118
        %v7534 = vpack.c.bf16 %v7121, %v7120
        %v7535 = vpack.c.bf16 %v7123, %v7122
        %v7536 = vpack.c.bf16 %v7125, %v7124
        %v7537 = vpack.c.bf16 %v7127, %v7126
        %v7538 = vpack.c.bf16 %v7129, %v7128
        %v7539 = vpack.c.bf16 %v7131, %v7130
        %v7540 = vpack.c.bf16 %v7133, %v7132
        %v7541 = vpack.c.bf16 %v7135, %v7134
        %v7542 = vpack.c.bf16 %v7137, %v7136
        %v7543 = vpack.c.bf16 %v7139, %v7138
        %v7544 = vpack.c.bf16 %v7141, %v7140
        %v7545 = vpack.c.bf16 %v7143, %v7142
        %v7546 = vpack.c.bf16 %v7145, %v7144
        %v7547 = vpack.c.bf16 %v7147, %v7146
        %v7548 = vpack.c.bf16 %v7149, %v7148
        %v7549 = vpack.c.bf16 %v7151, %v7150
        %v7550 = vpack.c.bf16 %v7153, %v7152
        %v7551 = vpack.c.bf16 %v7155, %v7154
        %v7552 = vpack.c.bf16 %v7157, %v7156
        %v7553 = vpack.c.bf16 %v7159, %v7158
        %v7554 = vpack.c.bf16 %v7161, %v7160
        %v7555 = vpack.c.bf16 %v7163, %v7162
        %v7556 = vpack.c.bf16 %v7165, %v7164
        %v7557 = vpack.c.bf16 %v7167, %v7166
        %v7558 = vpack.c.bf16 %v7169, %v7168
        %v7559 = vpack.c.bf16 %v7171, %v7170
        %v7560 = vpack.c.bf16 %v7173, %v7172
        %v7561 = vpack.c.bf16 %v7175, %v7174
        %v7562 = vpack.c.bf16 %v7177, %v7176
        %v7563 = vpack.c.bf16 %v7179, %v7178
        %v7564 = vpack.c.bf16 %v7181, %v7180
        %v7565 = vpack.c.bf16 %v7183, %v7182
        %v7566 = vpack.c.bf16 %v7185, %v7184
        %v7567 = vpack.c.bf16 %v7187, %v7186
        %v7568 = vpack.c.bf16 %v7189, %v7188
        %v7569 = vpack.c.bf16 %v7191, %v7190
        %v7570 = vpack.c.bf16 %v7193, %v7192
        %v7571 = vpack.c.bf16 %v7195, %v7194
        %v7572 = vpack.c.bf16 %v7197, %v7196
        %v7573 = vpack.c.bf16 %v7199, %v7198
        %v7574 = vpack.c.bf16 %v7201, %v7200
        %v7575 = vpack.c.bf16 %v7203, %v7202
        %v7576 = vpack.c.bf16 %v7205, %v7204
        %v7577 = vpack.c.bf16 %v7207, %v7206
        %v7578 = vpack.c.bf16 %v7209, %v7208
        %v7579 = vpack.c.bf16 %v7211, %v7210
        %v7580 = vpack.c.bf16 %v7213, %v7212
        %v7581 = vpack.c.bf16 %v7215, %v7214
        %v7582 = vpack.c.bf16 %v7217, %v7216
        %v7583 = vpack.c.bf16 %v7219, %v7218
        %v7584 = vpack.c.bf16 %v7221, %v7220
        %v7585 = vpack.c.bf16 %v7223, %v7222
        %v7586 = vpack.c.bf16 %v7225, %v7224
        %v7587 = vpack.c.bf16 %v7227, %v7226
        %v7588 = vpack.c.bf16 %v7229, %v7228
        %v7589 = vpack.c.bf16 %v7231, %v7230
        %v7590 = vpack.c.bf16 %v7233, %v7232
        %v7591 = vpack.c.bf16 %v7235, %v7234
        %v7592 = vpack.c.bf16 %v7237, %v7236
        %v7593 = vpack.c.bf16 %v7239, %v7238
        %v7594 = vpack.c.bf16 %v7241, %v7240
        %v7595 = vpack.c.bf16 %v7243, %v7242
        %v7596 = vpack.c.bf16 %v7245, %v7244
        %v7597 = vpack.c.bf16 %v7247, %v7246
        %v7598 = vpack.c.bf16 %v7249, %v7248
        %v7599 = vpack.c.bf16 %v7251, %v7250
        %v7600 = vpack.c.bf16 %v7253, %v7252
        %v7601 = vpack.c.bf16 %v7255, %v7254
        %v7602 = vpack.c.bf16 %v7257, %v7256
        %v7603 = vpack.c.bf16 %v7259, %v7258
        %v7604 = vpack.c.bf16 %v7261, %v7260
        %v7605 = vpack.c.bf16 %v7263, %v7262
        %v7606 = vpack.c.bf16 %v7265, %v7264
        %v7607 = vpack.c.bf16 %v7267, %v7266
        %v7608 = vpack.c.bf16 %v7269, %v7268
        %v7609 = vpack.c.bf16 %v7271, %v7270
        %v7610 = vpack.c.bf16 %v7273, %v7272
        %v7611 = vpack.c.bf16 %v7275, %v7274
        %v7612 = vpack.c.bf16 %v7277, %v7276
        %v7613 = vpack.c.bf16 %v7279, %v7278
        %v7614 = vpack.c.bf16 %v7281, %v7280
        %v7615 = vpack.c.bf16 %v7283, %v7282
        %v7616 = vpack.c.bf16 %v7285, %v7284
        %v7617 = vpack.c.bf16 %v7287, %v7286
        %v7618 = vpack.c.bf16 %v7289, %v7288
        %v7619 = vpack.c.bf16 %v7291, %v7290
        %v7620 = vpack.c.bf16 %v7293, %v7292
        %v7621 = vpack.c.bf16 %v7295, %v7294
        %v7622 = vpack.c.bf16 %v7297, %v7296
        %v7623 = vpack.c.bf16 %v7299, %v7298
        %v7624 = vpack.c.bf16 %v7301, %v7300
        %v7625 = vpack.c.bf16 %v7303, %v7302
        %v7626 = vpack.c.bf16 %v7305, %v7304
        %v7627 = vpack.c.bf16 %v7307, %v7306
        %v7628 = vpack.c.bf16 %v7309, %v7308
        %v7629 = vpack.c.bf16 %v7311, %v7310
        %v7630 = vpack.c.bf16 %v7313, %v7312
        %v7631 = vpack.c.bf16 %v7315, %v7314
        %v7632 = vpack.c.bf16 %v7317, %v7316
        %v7633 = vpack.c.bf16 %v7319, %v7318
        %v7634 = vpack.c.bf16 %v7321, %v7320
        %v7635 = vpack.c.bf16 %v7323, %v7322
        %v7636 = vpack.c.bf16 %v7325, %v7324
        %v7637 = vpack.c.bf16 %v7327, %v7326
        %v7638 = vpack.c.bf16 %v7329, %v7328
        %v7639 = vpack.c.bf16 %v7331, %v7330
        %v7640 = vpack.c.bf16 %v7333, %v7332
        %v7641 = vpack.c.bf16 %v7335, %v7334
        %v7642 = vpack.c.bf16 %v7337, %v7336
        %v7643 = vpack.c.bf16 %v7339, %v7338
        %v7644 = vpack.c.bf16 %v7341, %v7340
        %v7645 = vpack.c.bf16 %v7343, %v7342
        %v7646 = vpack.c.bf16 %v7345, %v7344
        %v7647 = vpack.c.bf16 %v7347, %v7346
        %v7648 = vpack.c.bf16 %v7349, %v7348
        %v7649 = vpack.c.bf16 %v7351, %v7350
        %v7650 = vpack.c.bf16 %v7353, %v7352
        %v7651 = vpack.c.bf16 %v7355, %v7354
        %v7652 = vpack.c.bf16 %v7357, %v7356
        %v7653 = vpack.c.bf16 %v7359, %v7358
        %v7654 = vpack.c.bf16 %v7361, %v7360
        %v7655 = vpack.c.bf16 %v7363, %v7362
        %v7656 = vpack.c.bf16 %v7365, %v7364
        %v7657 = vpack.c.bf16 %v7367, %v7366
        %v7658 = vpack.c.bf16 %v7369, %v7368
        %v7659 = vpack.c.bf16 %v7371, %v7370
        %v7660 = vpack.c.bf16 %v7373, %v7372
        %v7661 = vpack.c.bf16 %v7375, %v7374
        %v7662 = vpack.c.bf16 %v7377, %v7376
        %v7663 = vpack.c.bf16 %v7379, %v7378
        %v7664 = vpack.c.bf16 %v7381, %v7380
        %v7665 = vpack.c.bf16 %v7383, %v7382
        %v7666 = vpack.c.bf16 %v7385, %v7384
        %v7667 = vpack.c.bf16 %v7387, %v7386
        %v7668 = vpack.c.bf16 %v7389, %v7388
        %v7669 = vpack.c.bf16 %v7391, %v7390
        %v7670 = vpack.c.bf16 %v7393, %v7392
        %v7671 = vpack.c.bf16 %v7395, %v7394
        %v7672 = vpack.c.bf16 %v7397, %v7396
        %v7673 = vpack.c.bf16 %v7399, %v7398
        %v7674 = vpack.c.bf16 %v7401, %v7400
        %v7675 = vpack.c.bf16 %v7403, %v7402
        %v7676 = vpack.c.bf16 %v7405, %v7404
        %v7677 = vpack.c.bf16 %v7407, %v7406
        %v7678 = vpack.c.bf16 %v7409, %v7408
        %v7679 = vpack.c.bf16 %v7411, %v7410
        %v7680 = vpack.c.bf16 %v7413, %v7412
        %v7681 = vpack.c.bf16 %v7415, %v7414
        %v7682 = vpack.c.bf16 %v7417, %v7416
        %v7683 = vpack.c.bf16 %v7419, %v7418
        %v7684 = vpack.c.bf16 %v7421, %v7420
        %v7685 = vpack.c.bf16 %v7423, %v7422
        %v7686 = vpack.c.bf16 %v7425, %v7424
        %v7687 = vpack.c.bf16 %v7427, %v7426
        %v7688 = vpack.c.bf16 %v7429, %v7428
        %v7689 = vpack.c.bf16 %v7431, %v7430
        %v7690 = vpack.c.bf16 %v7433, %v7432
        %v7691 = vpack.c.bf16 %v7435, %v7434
        %v7692 = vpack.c.bf16 %v7437, %v7436
        %v7693 = vpack.c.bf16 %v7439, %v7438
        %v7694 = vpack.c.bf16 %v7441, %v7440
        %v7695 = vpack.c.bf16 %v7443, %v7442
        %v7696 = vpack.c.bf16 %v7445, %v7444
        %v7697 = vpack.c.bf16 %v7447, %v7446
        %v7698 = vpack.c.bf16 %v7449, %v7448
        %v7699 = vpack.c.bf16 %v7451, %v7450
        %v7700 = vpack.c.bf16 %v7453, %v7452
        %v7701 = vpack.c.bf16 %v7455, %v7454
        %v7702 = vpack.c.bf16 %v7457, %v7456
        %v7703 = vpack.c.bf16 %v7459, %v7458
        %v7704 = vpack.c.bf16 %v7461, %v7460
        %v7705 = vpack.c.bf16 %v7463, %v7462
        %v7706 = vpack.c.bf16 %v7465, %v7464
        %v7707 = vpack.c.bf16 %v7467, %v7466
        %v7708 = vpack.c.bf16 %v7469, %v7468
        %v7709 = vpack.c.bf16 %v7471, %v7470
        %v7710 = vpack.c.bf16 %v7473, %v7472
        %v7711 = vpack.c.bf16 %v7475, %v7474
        %v7712 = vpack.c.bf16 %v7477, %v7476
        %v7713 = vpack.c.bf16 %v7479, %v7478
        %v7714 = vpack.c.bf16 %v7481, %v7480
        %v7715 = vpack.c.bf16 %v7483, %v7482
        %v7716 = vpack.c.bf16 %v7485, %v7484
        %v7717 = vpack.c.bf16 %v7487, %v7486
        %v7718 = vpack.c.bf16 %v7489, %v7488
        %v7719 = vpack.c.bf16 %v7491, %v7490
        %v7720 = vpack.c.bf16 %v7493, %v7492
        %v7721 = vpack.c.bf16 %v7495, %v7494
        %v7722 = vpack.c.bf16 %v7497, %v7496
        %v7723 = vpack.c.bf16 %v7499, %v7498
        %v7948 = vunpack.c.l.b16 %v7500
        %v7949 = vunpack.c.h.b16 %v7500
        %v7950 = vunpack.c.l.b16 %v7501
        %v7951 = vunpack.c.h.b16 %v7501
        %v7952 = vunpack.c.l.b16 %v7502
        %v7953 = vunpack.c.h.b16 %v7502
        %v7954 = vunpack.c.l.b16 %v7503
        %v7955 = vunpack.c.h.b16 %v7503
        %v7956 = vunpack.c.l.b16 %v7504
        %v7957 = vunpack.c.h.b16 %v7504
        %v7958 = vunpack.c.l.b16 %v7505
        %v7959 = vunpack.c.h.b16 %v7505
        %v7960 = vunpack.c.l.b16 %v7506
        %v7961 = vunpack.c.h.b16 %v7506
        %v7962 = vunpack.c.l.b16 %v7507
        %v7963 = vunpack.c.h.b16 %v7507
        %v7964 = vunpack.c.l.b16 %v7508
        %v7965 = vunpack.c.h.b16 %v7508
        %v7966 = vunpack.c.l.b16 %v7509
        %v7967 = vunpack.c.h.b16 %v7509
        %v7968 = vunpack.c.l.b16 %v7510
        %v7969 = vunpack.c.h.b16 %v7510
        %v7970 = vunpack.c.l.b16 %v7511
        %v7971 = vunpack.c.h.b16 %v7511
        %v7972 = vunpack.c.l.b16 %v7512
        %v7973 = vunpack.c.h.b16 %v7512
        %v7974 = vunpack.c.l.b16 %v7513
        %v7975 = vunpack.c.h.b16 %v7513
        %v7976 = vunpack.c.l.b16 %v7514
        %v7977 = vunpack.c.h.b16 %v7514
        %v7978 = vunpack.c.l.b16 %v7515
        %v7979 = vunpack.c.h.b16 %v7515
        %v7980 = vunpack.c.l.b16 %v7516
        %v7981 = vunpack.c.h.b16 %v7516
        %v7982 = vunpack.c.l.b16 %v7517
        %v7983 = vunpack.c.h.b16 %v7517
        %v7984 = vunpack.c.l.b16 %v7518
        %v7985 = vunpack.c.h.b16 %v7518
        %v7986 = vunpack.c.l.b16 %v7519
        %v7987 = vunpack.c.h.b16 %v7519
        %v7988 = vunpack.c.l.b16 %v7520
        %v7989 = vunpack.c.h.b16 %v7520
        %v7990 = vunpack.c.l.b16 %v7521
        %v7991 = vunpack.c.h.b16 %v7521
        %v7992 = vunpack.c.l.b16 %v7522
        %v7993 = vunpack.c.h.b16 %v7522
        %v7994 = vunpack.c.l.b16 %v7523
        %v7995 = vunpack.c.h.b16 %v7523
        %v7996 = vunpack.c.l.b16 %v7524
        %v7997 = vunpack.c.h.b16 %v7524
        %v7998 = vunpack.c.l.b16 %v7525
        %v7999 = vunpack.c.h.b16 %v7525
        %v8000 = vunpack.c.l.b16 %v7526
        %v8001 = vunpack.c.h.b16 %v7526
        %v8002 = vunpack.c.l.b16 %v7527
        %v8003 = vunpack.c.h.b16 %v7527
        %v8004 = vunpack.c.l.b16 %v7528
        %v8005 = vunpack.c.h.b16 %v7528
        %v8006 = vunpack.c.l.b16 %v7529
        %v8007 = vunpack.c.h.b16 %v7529
        %v8008 = vunpack.c.l.b16 %v7530
        %v8009 = vunpack.c.h.b16 %v7530
        %v8010 = vunpack.c.l.b16 %v7531
        %v8011 = vunpack.c.h.b16 %v7531
        %v8012 = vunpack.c.l.b16 %v7532
        %v8013 = vunpack.c.h.b16 %v7532
        %v8014 = vunpack.c.l.b16 %v7533
        %v8015 = vunpack.c.h.b16 %v7533
        %v8016 = vunpack.c.l.b16 %v7534
        %v8017 = vunpack.c.h.b16 %v7534
        %v8018 = vunpack.c.l.b16 %v7535
        %v8019 = vunpack.c.h.b16 %v7535
        %v8020 = vunpack.c.l.b16 %v7536
        %v8021 = vunpack.c.h.b16 %v7536
        %v8022 = vunpack.c.l.b16 %v7537
        %v8023 = vunpack.c.h.b16 %v7537
        %v8024 = vunpack.c.l.b16 %v7538
        %v8025 = vunpack.c.h.b16 %v7538
        %v8026 = vunpack.c.l.b16 %v7539
        %v8027 = vunpack.c.h.b16 %v7539
        %v8028 = vunpack.c.l.b16 %v7540
        %v8029 = vunpack.c.h.b16 %v7540
        %v8030 = vunpack.c.l.b16 %v7541
        %v8031 = vunpack.c.h.b16 %v7541
        %v8032 = vunpack.c.l.b16 %v7542
        %v8033 = vunpack.c.h.b16 %v7542
        %v8034 = vunpack.c.l.b16 %v7543
        %v8035 = vunpack.c.h.b16 %v7543
        %v8036 = vunpack.c.l.b16 %v7544
        %v8037 = vunpack.c.h.b16 %v7544
        %v8038 = vunpack.c.l.b16 %v7545
        %v8039 = vunpack.c.h.b16 %v7545
        %v8040 = vunpack.c.l.b16 %v7546
        %v8041 = vunpack.c.h.b16 %v7546
        %v8042 = vunpack.c.l.b16 %v7547
        %v8043 = vunpack.c.h.b16 %v7547
        %v8044 = vunpack.c.l.b16 %v7548
        %v8045 = vunpack.c.h.b16 %v7548
        %v8046 = vunpack.c.l.b16 %v7549
        %v8047 = vunpack.c.h.b16 %v7549
        %v8048 = vunpack.c.l.b16 %v7550
        %v8049 = vunpack.c.h.b16 %v7550
        %v8050 = vunpack.c.l.b16 %v7551
        %v8051 = vunpack.c.h.b16 %v7551
        %v8052 = vunpack.c.l.b16 %v7552
        %v8053 = vunpack.c.h.b16 %v7552
        %v8054 = vunpack.c.l.b16 %v7553
        %v8055 = vunpack.c.h.b16 %v7553
        %v8056 = vunpack.c.l.b16 %v7554
        %v8057 = vunpack.c.h.b16 %v7554
        %v8058 = vunpack.c.l.b16 %v7555
        %v8059 = vunpack.c.h.b16 %v7555
        %v8060 = vunpack.c.l.b16 %v7556
        %v8061 = vunpack.c.h.b16 %v7556
        %v8062 = vunpack.c.l.b16 %v7557
        %v8063 = vunpack.c.h.b16 %v7557
        %v8064 = vunpack.c.l.b16 %v7558
        %v8065 = vunpack.c.h.b16 %v7558
        %v8066 = vunpack.c.l.b16 %v7559
        %v8067 = vunpack.c.h.b16 %v7559
        %v8068 = vunpack.c.l.b16 %v7560
        %v8069 = vunpack.c.h.b16 %v7560
        %v8070 = vunpack.c.l.b16 %v7561
        %v8071 = vunpack.c.h.b16 %v7561
        %v8072 = vunpack.c.l.b16 %v7562
        %v8073 = vunpack.c.h.b16 %v7562
        %v8074 = vunpack.c.l.b16 %v7563
        %v8075 = vunpack.c.h.b16 %v7563
        %v8076 = vunpack.c.l.b16 %v7564
        %v8077 = vunpack.c.h.b16 %v7564
        %v8078 = vunpack.c.l.b16 %v7565
        %v8079 = vunpack.c.h.b16 %v7565
        %v8080 = vunpack.c.l.b16 %v7566
        %v8081 = vunpack.c.h.b16 %v7566
        %v8082 = vunpack.c.l.b16 %v7567
        %v8083 = vunpack.c.h.b16 %v7567
        %v8084 = vunpack.c.l.b16 %v7568
        %v8085 = vunpack.c.h.b16 %v7568
        %v8086 = vunpack.c.l.b16 %v7569
        %v8087 = vunpack.c.h.b16 %v7569
        %v8088 = vunpack.c.l.b16 %v7570
        %v8089 = vunpack.c.h.b16 %v7570
        %v8090 = vunpack.c.l.b16 %v7571
        %v8091 = vunpack.c.h.b16 %v7571
        %v8092 = vunpack.c.l.b16 %v7572
        %v8093 = vunpack.c.h.b16 %v7572
        %v8094 = vunpack.c.l.b16 %v7573
        %v8095 = vunpack.c.h.b16 %v7573
        %v8096 = vunpack.c.l.b16 %v7574
        %v8097 = vunpack.c.h.b16 %v7574
        %v8098 = vunpack.c.l.b16 %v7575
        %v8099 = vunpack.c.h.b16 %v7575
        %v8100 = vunpack.c.l.b16 %v7576
        %v8101 = vunpack.c.h.b16 %v7576
        %v8102 = vunpack.c.l.b16 %v7577
        %v8103 = vunpack.c.h.b16 %v7577
        %v8104 = vunpack.c.l.b16 %v7578
        %v8105 = vunpack.c.h.b16 %v7578
        %v8106 = vunpack.c.l.b16 %v7579
        %v8107 = vunpack.c.h.b16 %v7579
        %v8108 = vunpack.c.l.b16 %v7580
        %v8109 = vunpack.c.h.b16 %v7580
        %v8110 = vunpack.c.l.b16 %v7581
        %v8111 = vunpack.c.h.b16 %v7581
        %v8112 = vunpack.c.l.b16 %v7582
        %v8113 = vunpack.c.h.b16 %v7582
        %v8114 = vunpack.c.l.b16 %v7583
        %v8115 = vunpack.c.h.b16 %v7583
        %v8116 = vunpack.c.l.b16 %v7584
        %v8117 = vunpack.c.h.b16 %v7584
        %v8118 = vunpack.c.l.b16 %v7585
        %v8119 = vunpack.c.h.b16 %v7585
        %v8120 = vunpack.c.l.b16 %v7586
        %v8121 = vunpack.c.h.b16 %v7586
        %v8122 = vunpack.c.l.b16 %v7587
        %v8123 = vunpack.c.h.b16 %v7587
        %v8124 = vunpack.c.l.b16 %v7588
        %v8125 = vunpack.c.h.b16 %v7588
        %v8126 = vunpack.c.l.b16 %v7589
        %v8127 = vunpack.c.h.b16 %v7589
        %v8128 = vunpack.c.l.b16 %v7590
        %v8129 = vunpack.c.h.b16 %v7590
        %v8130 = vunpack.c.l.b16 %v7591
        %v8131 = vunpack.c.h.b16 %v7591
        %v8132 = vunpack.c.l.b16 %v7592
        %v8133 = vunpack.c.h.b16 %v7592
        %v8134 = vunpack.c.l.b16 %v7593
        %v8135 = vunpack.c.h.b16 %v7593
        %v8136 = vunpack.c.l.b16 %v7594
        %v8137 = vunpack.c.h.b16 %v7594
        %v8138 = vunpack.c.l.b16 %v7595
        %v8139 = vunpack.c.h.b16 %v7595
        %v8140 = vunpack.c.l.b16 %v7596
        %v8141 = vunpack.c.h.b16 %v7596
        %v8142 = vunpack.c.l.b16 %v7597
        %v8143 = vunpack.c.h.b16 %v7597
        %v8144 = vunpack.c.l.b16 %v7598
        %v8145 = vunpack.c.h.b16 %v7598
        %v8146 = vunpack.c.l.b16 %v7599
        %v8147 = vunpack.c.h.b16 %v7599
        %v8148 = vunpack.c.l.b16 %v7600
        %v8149 = vunpack.c.h.b16 %v7600
        %v8150 = vunpack.c.l.b16 %v7601
        %v8151 = vunpack.c.h.b16 %v7601
        %v8152 = vunpack.c.l.b16 %v7602
        %v8153 = vunpack.c.h.b16 %v7602
        %v8154 = vunpack.c.l.b16 %v7603
        %v8155 = vunpack.c.h.b16 %v7603
        %v8156 = vunpack.c.l.b16 %v7604
        %v8157 = vunpack.c.h.b16 %v7604
        %v8158 = vunpack.c.l.b16 %v7605
        %v8159 = vunpack.c.h.b16 %v7605
        %v8160 = vunpack.c.l.b16 %v7606
        %v8161 = vunpack.c.h.b16 %v7606
        %v8162 = vunpack.c.l.b16 %v7607
        %v8163 = vunpack.c.h.b16 %v7607
        %v8164 = vunpack.c.l.b16 %v7608
        %v8165 = vunpack.c.h.b16 %v7608
        %v8166 = vunpack.c.l.b16 %v7609
        %v8167 = vunpack.c.h.b16 %v7609
        %v8168 = vunpack.c.l.b16 %v7610
        %v8169 = vunpack.c.h.b16 %v7610
        %v8170 = vunpack.c.l.b16 %v7611
        %v8171 = vunpack.c.h.b16 %v7611
        %v8172 = vunpack.c.l.b16 %v7612
        %v8173 = vunpack.c.h.b16 %v7612
        %v8174 = vunpack.c.l.b16 %v7613
        %v8175 = vunpack.c.h.b16 %v7613
        %v8176 = vunpack.c.l.b16 %v7614
        %v8177 = vunpack.c.h.b16 %v7614
        %v8178 = vunpack.c.l.b16 %v7615
        %v8179 = vunpack.c.h.b16 %v7615
        %v8180 = vunpack.c.l.b16 %v7616
        %v8181 = vunpack.c.h.b16 %v7616
        %v8182 = vunpack.c.l.b16 %v7617
        %v8183 = vunpack.c.h.b16 %v7617
        %v8184 = vunpack.c.l.b16 %v7618
        %v8185 = vunpack.c.h.b16 %v7618
        %v8186 = vunpack.c.l.b16 %v7619
        %v8187 = vunpack.c.h.b16 %v7619
        %v8188 = vunpack.c.l.b16 %v7620
        %v8189 = vunpack.c.h.b16 %v7620
        %v8190 = vunpack.c.l.b16 %v7621
        %v8191 = vunpack.c.h.b16 %v7621
        %v8192 = vunpack.c.l.b16 %v7622
        %v8193 = vunpack.c.h.b16 %v7622
        %v8194 = vunpack.c.l.b16 %v7623
        %v8195 = vunpack.c.h.b16 %v7623
        %v8196 = vunpack.c.l.b16 %v7624
        %v8197 = vunpack.c.h.b16 %v7624
        %v8198 = vunpack.c.l.b16 %v7625
        %v8199 = vunpack.c.h.b16 %v7625
        %v8200 = vunpack.c.l.b16 %v7626
        %v8201 = vunpack.c.h.b16 %v7626
        %v8202 = vunpack.c.l.b16 %v7627
        %v8203 = vunpack.c.h.b16 %v7627
        %v8204 = vunpack.c.l.b16 %v7628
        %v8205 = vunpack.c.h.b16 %v7628
        %v8206 = vunpack.c.l.b16 %v7629
        %v8207 = vunpack.c.h.b16 %v7629
        %v8208 = vunpack.c.l.b16 %v7630
        %v8209 = vunpack.c.h.b16 %v7630
        %v8210 = vunpack.c.l.b16 %v7631
        %v8211 = vunpack.c.h.b16 %v7631
        %v8212 = vunpack.c.l.b16 %v7632
        %v8213 = vunpack.c.h.b16 %v7632
        %v8214 = vunpack.c.l.b16 %v7633
        %v8215 = vunpack.c.h.b16 %v7633
        %v8216 = vunpack.c.l.b16 %v7634
        %v8217 = vunpack.c.h.b16 %v7634
        %v8218 = vunpack.c.l.b16 %v7635
        %v8219 = vunpack.c.h.b16 %v7635
        %v8220 = vunpack.c.l.b16 %v7636
        %v8221 = vunpack.c.h.b16 %v7636
        %v8222 = vunpack.c.l.b16 %v7637
        %v8223 = vunpack.c.h.b16 %v7637
        %v8224 = vunpack.c.l.b16 %v7638
        %v8225 = vunpack.c.h.b16 %v7638
        %v8226 = vunpack.c.l.b16 %v7639
        %v8227 = vunpack.c.h.b16 %v7639
        %v8228 = vunpack.c.l.b16 %v7640
        %v8229 = vunpack.c.h.b16 %v7640
        %v8230 = vunpack.c.l.b16 %v7641
        %v8231 = vunpack.c.h.b16 %v7641
        %v8232 = vunpack.c.l.b16 %v7642
        %v8233 = vunpack.c.h.b16 %v7642
        %v8234 = vunpack.c.l.b16 %v7643
        %v8235 = vunpack.c.h.b16 %v7643
        %v8236 = vunpack.c.l.b16 %v7644
        %v8237 = vunpack.c.h.b16 %v7644
        %v8238 = vunpack.c.l.b16 %v7645
        %v8239 = vunpack.c.h.b16 %v7645
        %v8240 = vunpack.c.l.b16 %v7646
        %v8241 = vunpack.c.h.b16 %v7646
        %v8242 = vunpack.c.l.b16 %v7647
        %v8243 = vunpack.c.h.b16 %v7647
        %v8244 = vunpack.c.l.b16 %v7648
        %v8245 = vunpack.c.h.b16 %v7648
        %v8246 = vunpack.c.l.b16 %v7649
        %v8247 = vunpack.c.h.b16 %v7649
        %v8248 = vunpack.c.l.b16 %v7650
        %v8249 = vunpack.c.h.b16 %v7650
        %v8250 = vunpack.c.l.b16 %v7651
        %v8251 = vunpack.c.h.b16 %v7651
        %v8252 = vunpack.c.l.b16 %v7652
        %v8253 = vunpack.c.h.b16 %v7652
        %v8254 = vunpack.c.l.b16 %v7653
        %v8255 = vunpack.c.h.b16 %v7653
        %v8256 = vunpack.c.l.b16 %v7654
        %v8257 = vunpack.c.h.b16 %v7654
        %v8258 = vunpack.c.l.b16 %v7655
        %v8259 = vunpack.c.h.b16 %v7655
        %v8260 = vunpack.c.l.b16 %v7656
        %v8261 = vunpack.c.h.b16 %v7656
        %v8262 = vunpack.c.l.b16 %v7657
        %v8263 = vunpack.c.h.b16 %v7657
        %v8264 = vunpack.c.l.b16 %v7658
        %v8265 = vunpack.c.h.b16 %v7658
        %v8266 = vunpack.c.l.b16 %v7659
        %v8267 = vunpack.c.h.b16 %v7659
        %v8268 = vunpack.c.l.b16 %v7660
        %v8269 = vunpack.c.h.b16 %v7660
        %v8270 = vunpack.c.l.b16 %v7661
        %v8271 = vunpack.c.h.b16 %v7661
        %v8272 = vunpack.c.l.b16 %v7662
        %v8273 = vunpack.c.h.b16 %v7662
        %v8274 = vunpack.c.l.b16 %v7663
        %v8275 = vunpack.c.h.b16 %v7663
        %v8276 = vunpack.c.l.b16 %v7664
        %v8277 = vunpack.c.h.b16 %v7664
        %v8278 = vunpack.c.l.b16 %v7665
        %v8279 = vunpack.c.h.b16 %v7665
        %v8280 = vunpack.c.l.b16 %v7666
        %v8281 = vunpack.c.h.b16 %v7666
        %v8282 = vunpack.c.l.b16 %v7667
        %v8283 = vunpack.c.h.b16 %v7667
        %v8284 = vunpack.c.l.b16 %v7668
        %v8285 = vunpack.c.h.b16 %v7668
        %v8286 = vunpack.c.l.b16 %v7669
        %v8287 = vunpack.c.h.b16 %v7669
        %v8288 = vunpack.c.l.b16 %v7670
        %v8289 = vunpack.c.h.b16 %v7670
        %v8290 = vunpack.c.l.b16 %v7671
        %v8291 = vunpack.c.h.b16 %v7671
        %v8292 = vunpack.c.l.b16 %v7672
        %v8293 = vunpack.c.h.b16 %v7672
        %v8294 = vunpack.c.l.b16 %v7673
        %v8295 = vunpack.c.h.b16 %v7673
        %v8296 = vunpack.c.l.b16 %v7674
        %v8297 = vunpack.c.h.b16 %v7674
        %v8298 = vunpack.c.l.b16 %v7675
        %v8299 = vunpack.c.h.b16 %v7675
        %v8300 = vunpack.c.l.b16 %v7676
        %v8301 = vunpack.c.h.b16 %v7676
        %v8302 = vunpack.c.l.b16 %v7677
        %v8303 = vunpack.c.h.b16 %v7677
        %v8304 = vunpack.c.l.b16 %v7678
        %v8305 = vunpack.c.h.b16 %v7678
        %v8306 = vunpack.c.l.b16 %v7679
        %v8307 = vunpack.c.h.b16 %v7679
        %v8308 = vunpack.c.l.b16 %v7680
        %v8309 = vunpack.c.h.b16 %v7680
        %v8310 = vunpack.c.l.b16 %v7681
        %v8311 = vunpack.c.h.b16 %v7681
        %v8312 = vunpack.c.l.b16 %v7682
        %v8313 = vunpack.c.h.b16 %v7682
        %v8314 = vunpack.c.l.b16 %v7683
        %v8315 = vunpack.c.h.b16 %v7683
        %v8316 = vunpack.c.l.b16 %v7684
        %v8317 = vunpack.c.h.b16 %v7684
        %v8318 = vunpack.c.l.b16 %v7685
        %v8319 = vunpack.c.h.b16 %v7685
        %v8320 = vunpack.c.l.b16 %v7686
        %v8321 = vunpack.c.h.b16 %v7686
        %v8322 = vunpack.c.l.b16 %v7687
        %v8323 = vunpack.c.h.b16 %v7687
        %v8324 = vunpack.c.l.b16 %v7688
        %v8325 = vunpack.c.h.b16 %v7688
        %v8326 = vunpack.c.l.b16 %v7689
        %v8327 = vunpack.c.h.b16 %v7689
        %v8328 = vunpack.c.l.b16 %v7690
        %v8329 = vunpack.c.h.b16 %v7690
        %v8330 = vunpack.c.l.b16 %v7691
        %v8331 = vunpack.c.h.b16 %v7691
        %v8332 = vunpack.c.l.b16 %v7692
        %v8333 = vunpack.c.h.b16 %v7692
        %v8334 = vunpack.c.l.b16 %v7693
        %v8335 = vunpack.c.h.b16 %v7693
        %v8336 = vunpack.c.l.b16 %v7694
        %v8337 = vunpack.c.h.b16 %v7694
        %v8338 = vunpack.c.l.b16 %v7695
        %v8339 = vunpack.c.h.b16 %v7695
        %v8340 = vunpack.c.l.b16 %v7696
        %v8341 = vunpack.c.h.b16 %v7696
        %v8342 = vunpack.c.l.b16 %v7697
        %v8343 = vunpack.c.h.b16 %v7697
        %v8344 = vunpack.c.l.b16 %v7698
        %v8345 = vunpack.c.h.b16 %v7698
        %v8346 = vunpack.c.l.b16 %v7699
        %v8347 = vunpack.c.h.b16 %v7699
        %v8348 = vunpack.c.l.b16 %v7700
        %v8349 = vunpack.c.h.b16 %v7700
        %v8350 = vunpack.c.l.b16 %v7701
        %v8351 = vunpack.c.h.b16 %v7701
        %v8352 = vunpack.c.l.b16 %v7702
        %v8353 = vunpack.c.h.b16 %v7702
        %v8354 = vunpack.c.l.b16 %v7703
        %v8355 = vunpack.c.h.b16 %v7703
        %v8356 = vunpack.c.l.b16 %v7704
        %v8357 = vunpack.c.h.b16 %v7704
        %v8358 = vunpack.c.l.b16 %v7705
        %v8359 = vunpack.c.h.b16 %v7705
        %v8360 = vunpack.c.l.b16 %v7706
        %v8361 = vunpack.c.h.b16 %v7706
        %v8362 = vunpack.c.l.b16 %v7707
        %v8363 = vunpack.c.h.b16 %v7707
        %v8364 = vunpack.c.l.b16 %v7708
        %v8365 = vunpack.c.h.b16 %v7708
        %v8366 = vunpack.c.l.b16 %v7709
        %v8367 = vunpack.c.h.b16 %v7709
        %v8368 = vunpack.c.l.b16 %v7710
        %v8369 = vunpack.c.h.b16 %v7710
        %v8370 = vunpack.c.l.b16 %v7711
        %v8371 = vunpack.c.h.b16 %v7711
        %v8372 = vunpack.c.l.b16 %v7712
        %v8373 = vunpack.c.h.b16 %v7712
        %v8374 = vunpack.c.l.b16 %v7713
        %v8375 = vunpack.c.h.b16 %v7713
        %v8376 = vunpack.c.l.b16 %v7714
        %v8377 = vunpack.c.h.b16 %v7714
        %v8378 = vunpack.c.l.b16 %v7715
        %v8379 = vunpack.c.h.b16 %v7715
        %v8380 = vunpack.c.l.b16 %v7716
        %v8381 = vunpack.c.h.b16 %v7716
        %v8382 = vunpack.c.l.b16 %v7717
        %v8383 = vunpack.c.h.b16 %v7717
        %v8384 = vunpack.c.l.b16 %v7718
        %v8385 = vunpack.c.h.b16 %v7718
        %v8386 = vunpack.c.l.b16 %v7719
        %v8387 = vunpack.c.h.b16 %v7719
        %v8388 = vunpack.c.l.b16 %v7720
        %v8389 = vunpack.c.h.b16 %v7720
        %v8390 = vunpack.c.l.b16 %v7721
        %v8391 = vunpack.c.h.b16 %v7721
        %v8392 = vunpack.c.l.b16 %v7722
        %v8393 = vunpack.c.h.b16 %v7722
        %v8394 = vunpack.c.l.b16 %v7723
        %v8395 = vunpack.c.h.b16 %v7723
        %v8396 = vpack.c.b16 %v7948, %v7948
        %v8397 = vpack.c.b16 %v7949, %v7949
        %v8398 = vpack.c.b16 %v7950, %v7950
        %v8399 = vpack.c.b16 %v7951, %v7951
        %v8400 = vpack.c.b16 %v7952, %v7952
        %v8401 = vpack.c.b16 %v7953, %v7953
        %v8402 = vpack.c.b16 %v7954, %v7954
        %v8403 = vpack.c.b16 %v7955, %v7955
        %v8404 = vpack.c.b16 %v7956, %v7956
        %v8405 = vpack.c.b16 %v7957, %v7957
        %v8406 = vpack.c.b16 %v7958, %v7958
        %v8407 = vpack.c.b16 %v7959, %v7959
        %v8408 = vpack.c.b16 %v7960, %v7960
        %v8409 = vpack.c.b16 %v7961, %v7961
        %v8410 = vpack.c.b16 %v7962, %v7962
        %v8411 = vpack.c.b16 %v7963, %v7963
        %v8412 = vpack.c.b16 %v7964, %v7964
        %v8413 = vpack.c.b16 %v7965, %v7965
        %v8414 = vpack.c.b16 %v7966, %v7966
        %v8415 = vpack.c.b16 %v7967, %v7967
        %v8416 = vpack.c.b16 %v7968, %v7968
        %v8417 = vpack.c.b16 %v7969, %v7969
        %v8418 = vpack.c.b16 %v7970, %v7970
        %v8419 = vpack.c.b16 %v7971, %v7971
        %v8420 = vpack.c.b16 %v7972, %v7972
        %v8421 = vpack.c.b16 %v7973, %v7973
        %v8422 = vpack.c.b16 %v7974, %v7974
        %v8423 = vpack.c.b16 %v7975, %v7975
        %v8424 = vpack.c.b16 %v7976, %v7976
        %v8425 = vpack.c.b16 %v7977, %v7977
        %v8426 = vpack.c.b16 %v7978, %v7978
        %v8427 = vpack.c.b16 %v7979, %v7979
        %v8428 = vpack.c.b16 %v7980, %v7980
        %v8429 = vpack.c.b16 %v7981, %v7981
        %v8430 = vpack.c.b16 %v7982, %v7982
        %v8431 = vpack.c.b16 %v7983, %v7983
        %v8432 = vpack.c.b16 %v7984, %v7984
        %v8433 = vpack.c.b16 %v7985, %v7985
        %v8434 = vpack.c.b16 %v7986, %v7986
        %v8435 = vpack.c.b16 %v7987, %v7987
        %v8436 = vpack.c.b16 %v7988, %v7988
        %v8437 = vpack.c.b16 %v7989, %v7989
        %v8438 = vpack.c.b16 %v7990, %v7990
        %v8439 = vpack.c.b16 %v7991, %v7991
        %v8440 = vpack.c.b16 %v7992, %v7992
        %v8441 = vpack.c.b16 %v7993, %v7993
        %v8442 = vpack.c.b16 %v7994, %v7994
        %v8443 = vpack.c.b16 %v7995, %v7995
        %v8444 = vpack.c.b16 %v7996, %v7996
        %v8445 = vpack.c.b16 %v7997, %v7997
        %v8446 = vpack.c.b16 %v7998, %v7998
        %v8447 = vpack.c.b16 %v7999, %v7999
        %v8448 = vpack.c.b16 %v8000, %v8000
        %v8449 = vpack.c.b16 %v8001, %v8001
        %v8450 = vpack.c.b16 %v8002, %v8002
        %v8451 = vpack.c.b16 %v8003, %v8003
        %v8452 = vpack.c.b16 %v8004, %v8004
        %v8453 = vpack.c.b16 %v8005, %v8005
        %v8454 = vpack.c.b16 %v8006, %v8006
        %v8455 = vpack.c.b16 %v8007, %v8007
        %v8456 = vpack.c.b16 %v8008, %v8008
        %v8457 = vpack.c.b16 %v8009, %v8009
        %v8458 = vpack.c.b16 %v8010, %v8010
        %v8459 = vpack.c.b16 %v8011, %v8011
        %v8460 = vpack.c.b16 %v8012, %v8012
        %v8461 = vpack.c.b16 %v8013, %v8013
        %v8462 = vpack.c.b16 %v8014, %v8014
        %v8463 = vpack.c.b16 %v8015, %v8015
        %v8464 = vpack.c.b16 %v8016, %v8016
        %v8465 = vpack.c.b16 %v8017, %v8017
        %v8466 = vpack.c.b16 %v8018, %v8018
        %v8467 = vpack.c.b16 %v8019, %v8019
        %v8468 = vpack.c.b16 %v8020, %v8020
        %v8469 = vpack.c.b16 %v8021, %v8021
        %v8470 = vpack.c.b16 %v8022, %v8022
        %v8471 = vpack.c.b16 %v8023, %v8023
        %v8472 = vpack.c.b16 %v8024, %v8024
        %v8473 = vpack.c.b16 %v8025, %v8025
        %v8474 = vpack.c.b16 %v8026, %v8026
        %v8475 = vpack.c.b16 %v8027, %v8027
        %v8476 = vpack.c.b16 %v8028, %v8028
        %v8477 = vpack.c.b16 %v8029, %v8029
        %v8478 = vpack.c.b16 %v8030, %v8030
        %v8479 = vpack.c.b16 %v8031, %v8031
        %v8480 = vpack.c.b16 %v8032, %v8032
        %v8481 = vpack.c.b16 %v8033, %v8033
        %v8482 = vpack.c.b16 %v8034, %v8034
        %v8483 = vpack.c.b16 %v8035, %v8035
        %v8484 = vpack.c.b16 %v8036, %v8036
        %v8485 = vpack.c.b16 %v8037, %v8037
        %v8486 = vpack.c.b16 %v8038, %v8038
        %v8487 = vpack.c.b16 %v8039, %v8039
        %v8488 = vpack.c.b16 %v8040, %v8040
        %v8489 = vpack.c.b16 %v8041, %v8041
        %v8490 = vpack.c.b16 %v8042, %v8042
        %v8491 = vpack.c.b16 %v8043, %v8043
        %v8492 = vpack.c.b16 %v8044, %v8044
        %v8493 = vpack.c.b16 %v8045, %v8045
        %v8494 = vpack.c.b16 %v8046, %v8046
        %v8495 = vpack.c.b16 %v8047, %v8047
        %v8496 = vpack.c.b16 %v8048, %v8048
        %v8497 = vpack.c.b16 %v8049, %v8049
        %v8498 = vpack.c.b16 %v8050, %v8050
        %v8499 = vpack.c.b16 %v8051, %v8051
        %v8500 = vpack.c.b16 %v8052, %v8052
        %v8501 = vpack.c.b16 %v8053, %v8053
        %v8502 = vpack.c.b16 %v8054, %v8054
        %v8503 = vpack.c.b16 %v8055, %v8055
        %v8504 = vpack.c.b16 %v8056, %v8056
        %v8505 = vpack.c.b16 %v8057, %v8057
        %v8506 = vpack.c.b16 %v8058, %v8058
        %v8507 = vpack.c.b16 %v8059, %v8059
        %v8508 = vpack.c.b16 %v8060, %v8060
        %v8509 = vpack.c.b16 %v8061, %v8061
        %v8510 = vpack.c.b16 %v8062, %v8062
        %v8511 = vpack.c.b16 %v8063, %v8063
        %v8512 = vpack.c.b16 %v8064, %v8064
        %v8513 = vpack.c.b16 %v8065, %v8065
        %v8514 = vpack.c.b16 %v8066, %v8066
        %v8515 = vpack.c.b16 %v8067, %v8067
        %v8516 = vpack.c.b16 %v8068, %v8068
        %v8517 = vpack.c.b16 %v8069, %v8069
        %v8518 = vpack.c.b16 %v8070, %v8070
        %v8519 = vpack.c.b16 %v8071, %v8071
        %v8520 = vpack.c.b16 %v8072, %v8072
        %v8521 = vpack.c.b16 %v8073, %v8073
        %v8522 = vpack.c.b16 %v8074, %v8074
        %v8523 = vpack.c.b16 %v8075, %v8075
        %v8524 = vpack.c.b16 %v8076, %v8076
        %v8525 = vpack.c.b16 %v8077, %v8077
        %v8526 = vpack.c.b16 %v8078, %v8078
        %v8527 = vpack.c.b16 %v8079, %v8079
        %v8528 = vpack.c.b16 %v8080, %v8080
        %v8529 = vpack.c.b16 %v8081, %v8081
        %v8530 = vpack.c.b16 %v8082, %v8082
        %v8531 = vpack.c.b16 %v8083, %v8083
        %v8532 = vpack.c.b16 %v8084, %v8084
        %v8533 = vpack.c.b16 %v8085, %v8085
        %v8534 = vpack.c.b16 %v8086, %v8086
        %v8535 = vpack.c.b16 %v8087, %v8087
        %v8536 = vpack.c.b16 %v8088, %v8088
        %v8537 = vpack.c.b16 %v8089, %v8089
        %v8538 = vpack.c.b16 %v8090, %v8090
        %v8539 = vpack.c.b16 %v8091, %v8091
        %v8540 = vpack.c.b16 %v8092, %v8092
        %v8541 = vpack.c.b16 %v8093, %v8093
        %v8542 = vpack.c.b16 %v8094, %v8094
        %v8543 = vpack.c.b16 %v8095, %v8095
        %v8544 = vpack.c.b16 %v8096, %v8096
        %v8545 = vpack.c.b16 %v8097, %v8097
        %v8546 = vpack.c.b16 %v8098, %v8098
        %v8547 = vpack.c.b16 %v8099, %v8099
        %v8548 = vpack.c.b16 %v8100, %v8100
        %v8549 = vpack.c.b16 %v8101, %v8101
        %v8550 = vpack.c.b16 %v8102, %v8102
        %v8551 = vpack.c.b16 %v8103, %v8103
        %v8552 = vpack.c.b16 %v8104, %v8104
        %v8553 = vpack.c.b16 %v8105, %v8105
        %v8554 = vpack.c.b16 %v8106, %v8106
        %v8555 = vpack.c.b16 %v8107, %v8107
        %v8556 = vpack.c.b16 %v8108, %v8108
        %v8557 = vpack.c.b16 %v8109, %v8109
        %v8558 = vpack.c.b16 %v8110, %v8110
        %v8559 = vpack.c.b16 %v8111, %v8111
        %v8560 = vpack.c.b16 %v8112, %v8112
        %v8561 = vpack.c.b16 %v8113, %v8113
        %v8562 = vpack.c.b16 %v8114, %v8114
        %v8563 = vpack.c.b16 %v8115, %v8115
        %v8564 = vpack.c.b16 %v8116, %v8116
        %v8565 = vpack.c.b16 %v8117, %v8117
        %v8566 = vpack.c.b16 %v8118, %v8118
        %v8567 = vpack.c.b16 %v8119, %v8119
        %v8568 = vpack.c.b16 %v8120, %v8120
        %v8569 = vpack.c.b16 %v8121, %v8121
        %v8570 = vpack.c.b16 %v8122, %v8122
        %v8571 = vpack.c.b16 %v8123, %v8123
        %v8572 = vpack.c.b16 %v8124, %v8124
        %v8573 = vpack.c.b16 %v8125, %v8125
        %v8574 = vpack.c.b16 %v8126, %v8126
        %v8575 = vpack.c.b16 %v8127, %v8127
        %v8576 = vpack.c.b16 %v8128, %v8128
        %v8577 = vpack.c.b16 %v8129, %v8129
        %v8578 = vpack.c.b16 %v8130, %v8130
        %v8579 = vpack.c.b16 %v8131, %v8131
        %v8580 = vpack.c.b16 %v8132, %v8132
        %v8581 = vpack.c.b16 %v8133, %v8133
        %v8582 = vpack.c.b16 %v8134, %v8134
        %v8583 = vpack.c.b16 %v8135, %v8135
        %v8584 = vpack.c.b16 %v8136, %v8136
        %v8585 = vpack.c.b16 %v8137, %v8137
        %v8586 = vpack.c.b16 %v8138, %v8138
        %v8587 = vpack.c.b16 %v8139, %v8139
        %v8588 = vpack.c.b16 %v8140, %v8140
        %v8589 = vpack.c.b16 %v8141, %v8141
        %v8590 = vpack.c.b16 %v8142, %v8142
        %v8591 = vpack.c.b16 %v8143, %v8143
        %v8592 = vpack.c.b16 %v8144, %v8144
        %v8593 = vpack.c.b16 %v8145, %v8145
        %v8594 = vpack.c.b16 %v8146, %v8146
        %v8595 = vpack.c.b16 %v8147, %v8147
        %v8596 = vpack.c.b16 %v8148, %v8148
        %v8597 = vpack.c.b16 %v8149, %v8149
        %v8598 = vpack.c.b16 %v8150, %v8150
        %v8599 = vpack.c.b16 %v8151, %v8151
        %v8600 = vpack.c.b16 %v8152, %v8152
        %v8601 = vpack.c.b16 %v8153, %v8153
        %v8602 = vpack.c.b16 %v8154, %v8154
        %v8603 = vpack.c.b16 %v8155, %v8155
        %v8604 = vpack.c.b16 %v8156, %v8156
        %v8605 = vpack.c.b16 %v8157, %v8157
        %v8606 = vpack.c.b16 %v8158, %v8158
        %v8607 = vpack.c.b16 %v8159, %v8159
        %v8608 = vpack.c.b16 %v8160, %v8160
        %v8609 = vpack.c.b16 %v8161, %v8161
        %v8610 = vpack.c.b16 %v8162, %v8162
        %v8611 = vpack.c.b16 %v8163, %v8163
        %v8612 = vpack.c.b16 %v8164, %v8164
        %v8613 = vpack.c.b16 %v8165, %v8165
        %v8614 = vpack.c.b16 %v8166, %v8166
        %v8615 = vpack.c.b16 %v8167, %v8167
        %v8616 = vpack.c.b16 %v8168, %v8168
        %v8617 = vpack.c.b16 %v8169, %v8169
        %v8618 = vpack.c.b16 %v8170, %v8170
        %v8619 = vpack.c.b16 %v8171, %v8171
        %v8620 = vpack.c.b16 %v8172, %v8172
        %v8621 = vpack.c.b16 %v8173, %v8173
        %v8622 = vpack.c.b16 %v8174, %v8174
        %v8623 = vpack.c.b16 %v8175, %v8175
        %v8624 = vpack.c.b16 %v8176, %v8176
        %v8625 = vpack.c.b16 %v8177, %v8177
        %v8626 = vpack.c.b16 %v8178, %v8178
        %v8627 = vpack.c.b16 %v8179, %v8179
        %v8628 = vpack.c.b16 %v8180, %v8180
        %v8629 = vpack.c.b16 %v8181, %v8181
        %v8630 = vpack.c.b16 %v8182, %v8182
        %v8631 = vpack.c.b16 %v8183, %v8183
        %v8632 = vpack.c.b16 %v8184, %v8184
        %v8633 = vpack.c.b16 %v8185, %v8185
        %v8634 = vpack.c.b16 %v8186, %v8186
        %v8635 = vpack.c.b16 %v8187, %v8187
        %v8636 = vpack.c.b16 %v8188, %v8188
        %v8637 = vpack.c.b16 %v8189, %v8189
        %v8638 = vpack.c.b16 %v8190, %v8190
        %v8639 = vpack.c.b16 %v8191, %v8191
        %v8640 = vpack.c.b16 %v8192, %v8192
        %v8641 = vpack.c.b16 %v8193, %v8193
        %v8642 = vpack.c.b16 %v8194, %v8194
        %v8643 = vpack.c.b16 %v8195, %v8195
        %v8644 = vpack.c.b16 %v8196, %v8196
        %v8645 = vpack.c.b16 %v8197, %v8197
        %v8646 = vpack.c.b16 %v8198, %v8198
        %v8647 = vpack.c.b16 %v8199, %v8199
        %v8648 = vpack.c.b16 %v8200, %v8200
        %v8649 = vpack.c.b16 %v8201, %v8201
        %v8650 = vpack.c.b16 %v8202, %v8202
        %v8651 = vpack.c.b16 %v8203, %v8203
        %v8652 = vpack.c.b16 %v8204, %v8204
        %v8653 = vpack.c.b16 %v8205, %v8205
        %v8654 = vpack.c.b16 %v8206, %v8206
        %v8655 = vpack.c.b16 %v8207, %v8207
        %v8656 = vpack.c.b16 %v8208, %v8208
        %v8657 = vpack.c.b16 %v8209, %v8209
        %v8658 = vpack.c.b16 %v8210, %v8210
        %v8659 = vpack.c.b16 %v8211, %v8211
        %v8660 = vpack.c.b16 %v8212, %v8212
        %v8661 = vpack.c.b16 %v8213, %v8213
        %v8662 = vpack.c.b16 %v8214, %v8214
        %v8663 = vpack.c.b16 %v8215, %v8215
        %v8664 = vpack.c.b16 %v8216, %v8216
        %v8665 = vpack.c.b16 %v8217, %v8217
        %v8666 = vpack.c.b16 %v8218, %v8218
        %v8667 = vpack.c.b16 %v8219, %v8219
        %v8668 = vpack.c.b16 %v8220, %v8220
        %v8669 = vpack.c.b16 %v8221, %v8221
        %v8670 = vpack.c.b16 %v8222, %v8222
        %v8671 = vpack.c.b16 %v8223, %v8223
        %v8672 = vpack.c.b16 %v8224, %v8224
        %v8673 = vpack.c.b16 %v8225, %v8225
        %v8674 = vpack.c.b16 %v8226, %v8226
        %v8675 = vpack.c.b16 %v8227, %v8227
        %v8676 = vpack.c.b16 %v8228, %v8228
        %v8677 = vpack.c.b16 %v8229, %v8229
        %v8678 = vpack.c.b16 %v8230, %v8230
        %v8679 = vpack.c.b16 %v8231, %v8231
        %v8680 = vpack.c.b16 %v8232, %v8232
        %v8681 = vpack.c.b16 %v8233, %v8233
        %v8682 = vpack.c.b16 %v8234, %v8234
        %v8683 = vpack.c.b16 %v8235, %v8235
        %v8684 = vpack.c.b16 %v8236, %v8236
        %v8685 = vpack.c.b16 %v8237, %v8237
        %v8686 = vpack.c.b16 %v8238, %v8238
        %v8687 = vpack.c.b16 %v8239, %v8239
        %v8688 = vpack.c.b16 %v8240, %v8240
        %v8689 = vpack.c.b16 %v8241, %v8241
        %v8690 = vpack.c.b16 %v8242, %v8242
        %v8691 = vpack.c.b16 %v8243, %v8243
        %v8692 = vpack.c.b16 %v8244, %v8244
        %v8693 = vpack.c.b16 %v8245, %v8245
        %v8694 = vpack.c.b16 %v8246, %v8246
        %v8695 = vpack.c.b16 %v8247, %v8247
        %v8696 = vpack.c.b16 %v8248, %v8248
        %v8697 = vpack.c.b16 %v8249, %v8249
        %v8698 = vpack.c.b16 %v8250, %v8250
        %v8699 = vpack.c.b16 %v8251, %v8251
        %v8700 = vpack.c.b16 %v8252, %v8252
        %v8701 = vpack.c.b16 %v8253, %v8253
        %v8702 = vpack.c.b16 %v8254, %v8254
        %v8703 = vpack.c.b16 %v8255, %v8255
        %v8704 = vpack.c.b16 %v8256, %v8256
        %v8705 = vpack.c.b16 %v8257, %v8257
        %v8706 = vpack.c.b16 %v8258, %v8258
        %v8707 = vpack.c.b16 %v8259, %v8259
        %v8708 = vpack.c.b16 %v8260, %v8260
        %v8709 = vpack.c.b16 %v8261, %v8261
        %v8710 = vpack.c.b16 %v8262, %v8262
        %v8711 = vpack.c.b16 %v8263, %v8263
        %v8712 = vpack.c.b16 %v8264, %v8264
        %v8713 = vpack.c.b16 %v8265, %v8265
        %v8714 = vpack.c.b16 %v8266, %v8266
        %v8715 = vpack.c.b16 %v8267, %v8267
        %v8716 = vpack.c.b16 %v8268, %v8268
        %v8717 = vpack.c.b16 %v8269, %v8269
        %v8718 = vpack.c.b16 %v8270, %v8270
        %v8719 = vpack.c.b16 %v8271, %v8271
        %v8720 = vpack.c.b16 %v8272, %v8272
        %v8721 = vpack.c.b16 %v8273, %v8273
        %v8722 = vpack.c.b16 %v8274, %v8274
        %v8723 = vpack.c.b16 %v8275, %v8275
        %v8724 = vpack.c.b16 %v8276, %v8276
        %v8725 = vpack.c.b16 %v8277, %v8277
        %v8726 = vpack.c.b16 %v8278, %v8278
        %v8727 = vpack.c.b16 %v8279, %v8279
        %v8728 = vpack.c.b16 %v8280, %v8280
        %v8729 = vpack.c.b16 %v8281, %v8281
        %v8730 = vpack.c.b16 %v8282, %v8282
        %v8731 = vpack.c.b16 %v8283, %v8283
        %v8732 = vpack.c.b16 %v8284, %v8284
        %v8733 = vpack.c.b16 %v8285, %v8285
        %v8734 = vpack.c.b16 %v8286, %v8286
        %v8735 = vpack.c.b16 %v8287, %v8287
        %v8736 = vpack.c.b16 %v8288, %v8288
        %v8737 = vpack.c.b16 %v8289, %v8289
        %v8738 = vpack.c.b16 %v8290, %v8290
        %v8739 = vpack.c.b16 %v8291, %v8291
        %v8740 = vpack.c.b16 %v8292, %v8292
        %v8741 = vpack.c.b16 %v8293, %v8293
        %v8742 = vpack.c.b16 %v8294, %v8294
        %v8743 = vpack.c.b16 %v8295, %v8295
        %v8744 = vpack.c.b16 %v8296, %v8296
        %v8745 = vpack.c.b16 %v8297, %v8297
        %v8746 = vpack.c.b16 %v8298, %v8298
        %v8747 = vpack.c.b16 %v8299, %v8299
        %v8748 = vpack.c.b16 %v8300, %v8300
        %v8749 = vpack.c.b16 %v8301, %v8301
        %v8750 = vpack.c.b16 %v8302, %v8302
        %v8751 = vpack.c.b16 %v8303, %v8303
        %v8752 = vpack.c.b16 %v8304, %v8304
        %v8753 = vpack.c.b16 %v8305, %v8305
        %v8754 = vpack.c.b16 %v8306, %v8306
        %v8755 = vpack.c.b16 %v8307, %v8307
        %v8756 = vpack.c.b16 %v8308, %v8308
        %v8757 = vpack.c.b16 %v8309, %v8309
        %v8758 = vpack.c.b16 %v8310, %v8310
        %v8759 = vpack.c.b16 %v8311, %v8311
        %v8760 = vpack.c.b16 %v8312, %v8312
        %v8761 = vpack.c.b16 %v8313, %v8313
        %v8762 = vpack.c.b16 %v8314, %v8314
        %v8763 = vpack.c.b16 %v8315, %v8315
        %v8764 = vpack.c.b16 %v8316, %v8316
        %v8765 = vpack.c.b16 %v8317, %v8317
        %v8766 = vpack.c.b16 %v8318, %v8318
        %v8767 = vpack.c.b16 %v8319, %v8319
        %v8768 = vpack.c.b16 %v8320, %v8320
        %v8769 = vpack.c.b16 %v8321, %v8321
        %v8770 = vpack.c.b16 %v8322, %v8322
        %v8771 = vpack.c.b16 %v8323, %v8323
        %v8772 = vpack.c.b16 %v8324, %v8324
        %v8773 = vpack.c.b16 %v8325, %v8325
        %v8774 = vpack.c.b16 %v8326, %v8326
        %v8775 = vpack.c.b16 %v8327, %v8327
        %v8776 = vpack.c.b16 %v8328, %v8328
        %v8777 = vpack.c.b16 %v8329, %v8329
        %v8778 = vpack.c.b16 %v8330, %v8330
        %v8779 = vpack.c.b16 %v8331, %v8331
        %v8780 = vpack.c.b16 %v8332, %v8332
        %v8781 = vpack.c.b16 %v8333, %v8333
        %v8782 = vpack.c.b16 %v8334, %v8334
        %v8783 = vpack.c.b16 %v8335, %v8335
        %v8784 = vpack.c.b16 %v8336, %v8336
        %v8785 = vpack.c.b16 %v8337, %v8337
        %v8786 = vpack.c.b16 %v8338, %v8338
        %v8787 = vpack.c.b16 %v8339, %v8339
        %v8788 = vpack.c.b16 %v8340, %v8340
        %v8789 = vpack.c.b16 %v8341, %v8341
        %v8790 = vpack.c.b16 %v8342, %v8342
        %v8791 = vpack.c.b16 %v8343, %v8343
        %v8792 = vpack.c.b16 %v8344, %v8344
        %v8793 = vpack.c.b16 %v8345, %v8345
        %v8794 = vpack.c.b16 %v8346, %v8346
        %v8795 = vpack.c.b16 %v8347, %v8347
        %v8796 = vpack.c.b16 %v8348, %v8348
        %v8797 = vpack.c.b16 %v8349, %v8349
        %v8798 = vpack.c.b16 %v8350, %v8350
        %v8799 = vpack.c.b16 %v8351, %v8351
        %v8800 = vpack.c.b16 %v8352, %v8352
        %v8801 = vpack.c.b16 %v8353, %v8353
        %v8802 = vpack.c.b16 %v8354, %v8354
        %v8803 = vpack.c.b16 %v8355, %v8355
        %v8804 = vpack.c.b16 %v8356, %v8356
        %v8805 = vpack.c.b16 %v8357, %v8357
        %v8806 = vpack.c.b16 %v8358, %v8358
        %v8807 = vpack.c.b16 %v8359, %v8359
        %v8808 = vpack.c.b16 %v8360, %v8360
        %v8809 = vpack.c.b16 %v8361, %v8361
        %v8810 = vpack.c.b16 %v8362, %v8362
        %v8811 = vpack.c.b16 %v8363, %v8363
        %v8812 = vpack.c.b16 %v8364, %v8364
        %v8813 = vpack.c.b16 %v8365, %v8365
        %v8814 = vpack.c.b16 %v8366, %v8366
        %v8815 = vpack.c.b16 %v8367, %v8367
        %v8816 = vpack.c.b16 %v8368, %v8368
        %v8817 = vpack.c.b16 %v8369, %v8369
        %v8818 = vpack.c.b16 %v8370, %v8370
        %v8819 = vpack.c.b16 %v8371, %v8371
        %v8820 = vpack.c.b16 %v8372, %v8372
        %v8821 = vpack.c.b16 %v8373, %v8373
        %v8822 = vpack.c.b16 %v8374, %v8374
        %v8823 = vpack.c.b16 %v8375, %v8375
        %v8824 = vpack.c.b16 %v8376, %v8376
        %v8825 = vpack.c.b16 %v8377, %v8377
        %v8826 = vpack.c.b16 %v8378, %v8378
        %v8827 = vpack.c.b16 %v8379, %v8379
        %v8828 = vpack.c.b16 %v8380, %v8380
        %v8829 = vpack.c.b16 %v8381, %v8381
        %v8830 = vpack.c.b16 %v8382, %v8382
        %v8831 = vpack.c.b16 %v8383, %v8383
        %v8832 = vpack.c.b16 %v8384, %v8384
        %v8833 = vpack.c.b16 %v8385, %v8385
        %v8834 = vpack.c.b16 %v8386, %v8386
        %v8835 = vpack.c.b16 %v8387, %v8387
        %v8836 = vpack.c.b16 %v8388, %v8388
        %v8837 = vpack.c.b16 %v8389, %v8389
        %v8838 = vpack.c.b16 %v8390, %v8390
        %v8839 = vpack.c.b16 %v8391, %v8391
        %v8840 = vpack.c.b16 %v8392, %v8392
        %v8841 = vpack.c.b16 %v8393, %v8393
        %v8842 = vpack.c.b16 %v8394, %v8394
        %v8843 = vpack.c.b16 %v8395, %v8395
        %vm9292 = vcmask 519168
        %9293 = vst.msk [vmem:[%s257] sm:$0xf] %vm9292, %v8396
        %9294 = vst.msk [vmem:[%s257 + $0x4] sm:$0xf] %vm9292, %v8397
        %9295 = vst.msk [vmem:[%s257 + $0x8] sm:$0xf] %vm9292, %v8398
        %9296 = vst.msk [vmem:[%s257 + $0xc] sm:$0xf] %vm9292, %v8399
        %9297 = vst.msk [vmem:[%s257 + $0x10] sm:$0xf] %vm9292, %v8400
        %9298 = vst.msk [vmem:[%s257 + $0x14] sm:$0xf] %vm9292, %v8401
        %9299 = vst.msk [vmem:[%s257 + $0x18] sm:$0xf] %vm9292, %v8402
        %9300 = vst.msk [vmem:[%s257 + $0x1c] sm:$0xf] %vm9292, %v8403
        %9301 = vst.msk [vmem:[%s257 + $0x20] sm:$0xf] %vm9292, %v8404
        %9302 = vst.msk [vmem:[%s257 + $0x24] sm:$0xf] %vm9292, %v8405
        %9303 = vst.msk [vmem:[%s257 + $0x28] sm:$0xf] %vm9292, %v8406
        %9304 = vst.msk [vmem:[%s257 + $0x2c] sm:$0xf] %vm9292, %v8407
        %9305 = vst.msk [vmem:[%s257 + $0x30] sm:$0xf] %vm9292, %v8408
        %9306 = vst.msk [vmem:[%s257 + $0x34] sm:$0xf] %vm9292, %v8409
        %9307 = vst.msk [vmem:[%s257 + $0x38] sm:$0xf] %vm9292, %v8410
        %9308 = vst.msk [vmem:[%s257 + $0x3c] sm:$0xf] %vm9292, %v8411
        %9309 = vst.msk [vmem:[%s257 + $0x40] sm:$0xf] %vm9292, %v8412
        %9310 = vst.msk [vmem:[%s257 + $0x44] sm:$0xf] %vm9292, %v8413
        %9311 = vst.msk [vmem:[%s257 + $0x48] sm:$0xf] %vm9292, %v8414
        %9312 = vst.msk [vmem:[%s257 + $0x4c] sm:$0xf] %vm9292, %v8415
        %9313 = vst.msk [vmem:[%s257 + $0x50] sm:$0xf] %vm9292, %v8416
        %9314 = vst.msk [vmem:[%s257 + $0x54] sm:$0xf] %vm9292, %v8417
        %9315 = vst.msk [vmem:[%s257 + $0x58] sm:$0xf] %vm9292, %v8418
        %9316 = vst.msk [vmem:[%s257 + $0x5c] sm:$0xf] %vm9292, %v8419
        %9317 = vst.msk [vmem:[%s257 + $0x60] sm:$0xf] %vm9292, %v8420
        %9318 = vst.msk [vmem:[%s257 + $0x64] sm:$0xf] %vm9292, %v8421
        %9319 = vst.msk [vmem:[%s257 + $0x68] sm:$0xf] %vm9292, %v8422
        %9320 = vst.msk [vmem:[%s257 + $0x6c] sm:$0xf] %vm9292, %v8423
        %9321 = vst.msk [vmem:[%s257 + $0x70] sm:$0xf] %vm9292, %v8424
        %9322 = vst.msk [vmem:[%s257 + $0x74] sm:$0xf] %vm9292, %v8425
        %9323 = vst.msk [vmem:[%s257 + $0x78] sm:$0xf] %vm9292, %v8426
        %9324 = vst.msk [vmem:[%s257 + $0x7c] sm:$0xf] %vm9292, %v8427
        %9325 = vst.msk [vmem:[%s257 + $0x80] sm:$0xf] %vm9292, %v8428
        %9326 = vst.msk [vmem:[%s257 + $0x84] sm:$0xf] %vm9292, %v8429
        %9327 = vst.msk [vmem:[%s257 + $0x88] sm:$0xf] %vm9292, %v8430
        %9328 = vst.msk [vmem:[%s257 + $0x8c] sm:$0xf] %vm9292, %v8431
        %9329 = vst.msk [vmem:[%s257 + $0x90] sm:$0xf] %vm9292, %v8432
        %9330 = vst.msk [vmem:[%s257 + $0x94] sm:$0xf] %vm9292, %v8433
        %9331 = vst.msk [vmem:[%s257 + $0x98] sm:$0xf] %vm9292, %v8434
        %9332 = vst.msk [vmem:[%s257 + $0x9c] sm:$0xf] %vm9292, %v8435
        %9333 = vst.msk [vmem:[%s257 + $0xa0] sm:$0xf] %vm9292, %v8436
        %9334 = vst.msk [vmem:[%s257 + $0xa4] sm:$0xf] %vm9292, %v8437
        %9335 = vst.msk [vmem:[%s257 + $0xa8] sm:$0xf] %vm9292, %v8438
        %9336 = vst.msk [vmem:[%s257 + $0xac] sm:$0xf] %vm9292, %v8439
        %9337 = vst.msk [vmem:[%s257 + $0xb0] sm:$0xf] %vm9292, %v8440
        %9338 = vst.msk [vmem:[%s257 + $0xb4] sm:$0xf] %vm9292, %v8441
        %9339 = vst.msk [vmem:[%s257 + $0xb8] sm:$0xf] %vm9292, %v8442
        %9340 = vst.msk [vmem:[%s257 + $0xbc] sm:$0xf] %vm9292, %v8443
        %9341 = vst.msk [vmem:[%s257 + $0xc0] sm:$0xf] %vm9292, %v8444
        %9342 = vst.msk [vmem:[%s257 + $0xc4] sm:$0xf] %vm9292, %v8445
        %9343 = vst.msk [vmem:[%s257 + $0xc8] sm:$0xf] %vm9292, %v8446
        %9344 = vst.msk [vmem:[%s257 + $0xcc] sm:$0xf] %vm9292, %v8447
        %9345 = vst.msk [vmem:[%s257 + $0xd0] sm:$0xf] %vm9292, %v8448
        %9346 = vst.msk [vmem:[%s257 + $0xd4] sm:$0xf] %vm9292, %v8449
        %9347 = vst.msk [vmem:[%s257 + $0xd8] sm:$0xf] %vm9292, %v8450
        %9348 = vst.msk [vmem:[%s257 + $0xdc] sm:$0xf] %vm9292, %v8451
        %9349 = vst.msk [vmem:[%s257 + $0xe0] sm:$0xf] %vm9292, %v8452
        %9350 = vst.msk [vmem:[%s257 + $0xe4] sm:$0xf] %vm9292, %v8453
        %9351 = vst.msk [vmem:[%s257 + $0xe8] sm:$0xf] %vm9292, %v8454
        %9352 = vst.msk [vmem:[%s257 + $0xec] sm:$0xf] %vm9292, %v8455
        %9353 = vst.msk [vmem:[%s257 + $0xf0] sm:$0xf] %vm9292, %v8456
        %9354 = vst.msk [vmem:[%s257 + $0xf4] sm:$0xf] %vm9292, %v8457
        %9355 = vst.msk [vmem:[%s257 + $0xf8] sm:$0xf] %vm9292, %v8458
        %9356 = vst.msk [vmem:[%s257 + $0xfc] sm:$0xf] %vm9292, %v8459
        %9357 = vst.msk [vmem:[%s257 + $0x100] sm:$0xf] %vm9292, %v8460
        %9358 = vst.msk [vmem:[%s257 + $0x104] sm:$0xf] %vm9292, %v8461
        %9359 = vst.msk [vmem:[%s257 + $0x108] sm:$0xf] %vm9292, %v8462
        %9360 = vst.msk [vmem:[%s257 + $0x10c] sm:$0xf] %vm9292, %v8463
        %9361 = vst.msk [vmem:[%s257 + $0x110] sm:$0xf] %vm9292, %v8464
        %9362 = vst.msk [vmem:[%s257 + $0x114] sm:$0xf] %vm9292, %v8465
        %9363 = vst.msk [vmem:[%s257 + $0x118] sm:$0xf] %vm9292, %v8466
        %9364 = vst.msk [vmem:[%s257 + $0x11c] sm:$0xf] %vm9292, %v8467
        %9365 = vst.msk [vmem:[%s257 + $0x120] sm:$0xf] %vm9292, %v8468
        %9366 = vst.msk [vmem:[%s257 + $0x124] sm:$0xf] %vm9292, %v8469
        %9367 = vst.msk [vmem:[%s257 + $0x128] sm:$0xf] %vm9292, %v8470
        %9368 = vst.msk [vmem:[%s257 + $0x12c] sm:$0xf] %vm9292, %v8471
        %9369 = vst.msk [vmem:[%s257 + $0x130] sm:$0xf] %vm9292, %v8472
        %9370 = vst.msk [vmem:[%s257 + $0x134] sm:$0xf] %vm9292, %v8473
        %9371 = vst.msk [vmem:[%s257 + $0x138] sm:$0xf] %vm9292, %v8474
        %9372 = vst.msk [vmem:[%s257 + $0x13c] sm:$0xf] %vm9292, %v8475
        %9373 = vst.msk [vmem:[%s257 + $0x140] sm:$0xf] %vm9292, %v8476
        %9374 = vst.msk [vmem:[%s257 + $0x144] sm:$0xf] %vm9292, %v8477
        %9375 = vst.msk [vmem:[%s257 + $0x148] sm:$0xf] %vm9292, %v8478
        %9376 = vst.msk [vmem:[%s257 + $0x14c] sm:$0xf] %vm9292, %v8479
        %9377 = vst.msk [vmem:[%s257 + $0x150] sm:$0xf] %vm9292, %v8480
        %9378 = vst.msk [vmem:[%s257 + $0x154] sm:$0xf] %vm9292, %v8481
        %9379 = vst.msk [vmem:[%s257 + $0x158] sm:$0xf] %vm9292, %v8482
        %9380 = vst.msk [vmem:[%s257 + $0x15c] sm:$0xf] %vm9292, %v8483
        %9381 = vst.msk [vmem:[%s257 + $0x160] sm:$0xf] %vm9292, %v8484
        %9382 = vst.msk [vmem:[%s257 + $0x164] sm:$0xf] %vm9292, %v8485
        %9383 = vst.msk [vmem:[%s257 + $0x168] sm:$0xf] %vm9292, %v8486
        %9384 = vst.msk [vmem:[%s257 + $0x16c] sm:$0xf] %vm9292, %v8487
        %9385 = vst.msk [vmem:[%s257 + $0x170] sm:$0xf] %vm9292, %v8488
        %9386 = vst.msk [vmem:[%s257 + $0x174] sm:$0xf] %vm9292, %v8489
        %9387 = vst.msk [vmem:[%s257 + $0x178] sm:$0xf] %vm9292, %v8490
        %9388 = vst.msk [vmem:[%s257 + $0x17c] sm:$0xf] %vm9292, %v8491
        %9389 = vst.msk [vmem:[%s257 + $0x180] sm:$0xf] %vm9292, %v8492
        %9390 = vst.msk [vmem:[%s257 + $0x184] sm:$0xf] %vm9292, %v8493
        %9391 = vst.msk [vmem:[%s257 + $0x188] sm:$0xf] %vm9292, %v8494
        %9392 = vst.msk [vmem:[%s257 + $0x18c] sm:$0xf] %vm9292, %v8495
        %9393 = vst.msk [vmem:[%s257 + $0x190] sm:$0xf] %vm9292, %v8496
        %9394 = vst.msk [vmem:[%s257 + $0x194] sm:$0xf] %vm9292, %v8497
        %9395 = vst.msk [vmem:[%s257 + $0x198] sm:$0xf] %vm9292, %v8498
        %9396 = vst.msk [vmem:[%s257 + $0x19c] sm:$0xf] %vm9292, %v8499
        %9397 = vst.msk [vmem:[%s257 + $0x1a0] sm:$0xf] %vm9292, %v8500
        %9398 = vst.msk [vmem:[%s257 + $0x1a4] sm:$0xf] %vm9292, %v8501
        %9399 = vst.msk [vmem:[%s257 + $0x1a8] sm:$0xf] %vm9292, %v8502
        %9400 = vst.msk [vmem:[%s257 + $0x1ac] sm:$0xf] %vm9292, %v8503
        %9401 = vst.msk [vmem:[%s257 + $0x1b0] sm:$0xf] %vm9292, %v8504
        %9402 = vst.msk [vmem:[%s257 + $0x1b4] sm:$0xf] %vm9292, %v8505
        %9403 = vst.msk [vmem:[%s257 + $0x1b8] sm:$0xf] %vm9292, %v8506
        %9404 = vst.msk [vmem:[%s257 + $0x1bc] sm:$0xf] %vm9292, %v8507
        %9405 = vst.msk [vmem:[%s257 + $0x1c0] sm:$0xf] %vm9292, %v8508
        %9406 = vst.msk [vmem:[%s257 + $0x1c4] sm:$0xf] %vm9292, %v8509
        %9407 = vst.msk [vmem:[%s257 + $0x1c8] sm:$0xf] %vm9292, %v8510
        %9408 = vst.msk [vmem:[%s257 + $0x1cc] sm:$0xf] %vm9292, %v8511
        %9409 = vst.msk [vmem:[%s257 + $0x1d0] sm:$0xf] %vm9292, %v8512
        %9410 = vst.msk [vmem:[%s257 + $0x1d4] sm:$0xf] %vm9292, %v8513
        %9411 = vst.msk [vmem:[%s257 + $0x1d8] sm:$0xf] %vm9292, %v8514
        %9412 = vst.msk [vmem:[%s257 + $0x1dc] sm:$0xf] %vm9292, %v8515
        %9413 = vst.msk [vmem:[%s257 + $0x1e0] sm:$0xf] %vm9292, %v8516
        %9414 = vst.msk [vmem:[%s257 + $0x1e4] sm:$0xf] %vm9292, %v8517
        %9415 = vst.msk [vmem:[%s257 + $0x1e8] sm:$0xf] %vm9292, %v8518
        %9416 = vst.msk [vmem:[%s257 + $0x1ec] sm:$0xf] %vm9292, %v8519
        %9417 = vst.msk [vmem:[%s257 + $0x1f0] sm:$0xf] %vm9292, %v8520
        %9418 = vst.msk [vmem:[%s257 + $0x1f4] sm:$0xf] %vm9292, %v8521
        %9419 = vst.msk [vmem:[%s257 + $0x1f8] sm:$0xf] %vm9292, %v8522
        %9420 = vst.msk [vmem:[%s257 + $0x1fc] sm:$0xf] %vm9292, %v8523
        %9421 = vst.msk [vmem:[%s257 + $0x200] sm:$0xf] %vm9292, %v8524
        %9422 = vst.msk [vmem:[%s257 + $0x204] sm:$0xf] %vm9292, %v8525
        %9423 = vst.msk [vmem:[%s257 + $0x208] sm:$0xf] %vm9292, %v8526
        %9424 = vst.msk [vmem:[%s257 + $0x20c] sm:$0xf] %vm9292, %v8527
        %9425 = vst.msk [vmem:[%s257 + $0x210] sm:$0xf] %vm9292, %v8528
        %9426 = vst.msk [vmem:[%s257 + $0x214] sm:$0xf] %vm9292, %v8529
        %9427 = vst.msk [vmem:[%s257 + $0x218] sm:$0xf] %vm9292, %v8530
        %9428 = vst.msk [vmem:[%s257 + $0x21c] sm:$0xf] %vm9292, %v8531
        %9429 = vst.msk [vmem:[%s257 + $0x220] sm:$0xf] %vm9292, %v8532
        %9430 = vst.msk [vmem:[%s257 + $0x224] sm:$0xf] %vm9292, %v8533
        %9431 = vst.msk [vmem:[%s257 + $0x228] sm:$0xf] %vm9292, %v8534
        %9432 = vst.msk [vmem:[%s257 + $0x22c] sm:$0xf] %vm9292, %v8535
        %9433 = vst.msk [vmem:[%s257 + $0x230] sm:$0xf] %vm9292, %v8536
        %9434 = vst.msk [vmem:[%s257 + $0x234] sm:$0xf] %vm9292, %v8537
        %9435 = vst.msk [vmem:[%s257 + $0x238] sm:$0xf] %vm9292, %v8538
        %9436 = vst.msk [vmem:[%s257 + $0x23c] sm:$0xf] %vm9292, %v8539
        %9437 = vst.msk [vmem:[%s257 + $0x240] sm:$0xf] %vm9292, %v8540
        %9438 = vst.msk [vmem:[%s257 + $0x244] sm:$0xf] %vm9292, %v8541
        %9439 = vst.msk [vmem:[%s257 + $0x248] sm:$0xf] %vm9292, %v8542
        %9440 = vst.msk [vmem:[%s257 + $0x24c] sm:$0xf] %vm9292, %v8543
        %9441 = vst.msk [vmem:[%s257 + $0x250] sm:$0xf] %vm9292, %v8544
        %9442 = vst.msk [vmem:[%s257 + $0x254] sm:$0xf] %vm9292, %v8545
        %9443 = vst.msk [vmem:[%s257 + $0x258] sm:$0xf] %vm9292, %v8546
        %9444 = vst.msk [vmem:[%s257 + $0x25c] sm:$0xf] %vm9292, %v8547
        %9445 = vst.msk [vmem:[%s257 + $0x260] sm:$0xf] %vm9292, %v8548
        %9446 = vst.msk [vmem:[%s257 + $0x264] sm:$0xf] %vm9292, %v8549
        %9447 = vst.msk [vmem:[%s257 + $0x268] sm:$0xf] %vm9292, %v8550
        %9448 = vst.msk [vmem:[%s257 + $0x26c] sm:$0xf] %vm9292, %v8551
        %9449 = vst.msk [vmem:[%s257 + $0x270] sm:$0xf] %vm9292, %v8552
        %9450 = vst.msk [vmem:[%s257 + $0x274] sm:$0xf] %vm9292, %v8553
        %9451 = vst.msk [vmem:[%s257 + $0x278] sm:$0xf] %vm9292, %v8554
        %9452 = vst.msk [vmem:[%s257 + $0x27c] sm:$0xf] %vm9292, %v8555
        %9453 = vst.msk [vmem:[%s257 + $0x280] sm:$0xf] %vm9292, %v8556
        %9454 = vst.msk [vmem:[%s257 + $0x284] sm:$0xf] %vm9292, %v8557
        %9455 = vst.msk [vmem:[%s257 + $0x288] sm:$0xf] %vm9292, %v8558
        %9456 = vst.msk [vmem:[%s257 + $0x28c] sm:$0xf] %vm9292, %v8559
        %9457 = vst.msk [vmem:[%s257 + $0x290] sm:$0xf] %vm9292, %v8560
        %9458 = vst.msk [vmem:[%s257 + $0x294] sm:$0xf] %vm9292, %v8561
        %9459 = vst.msk [vmem:[%s257 + $0x298] sm:$0xf] %vm9292, %v8562
        %9460 = vst.msk [vmem:[%s257 + $0x29c] sm:$0xf] %vm9292, %v8563
        %9461 = vst.msk [vmem:[%s257 + $0x2a0] sm:$0xf] %vm9292, %v8564
        %9462 = vst.msk [vmem:[%s257 + $0x2a4] sm:$0xf] %vm9292, %v8565
        %9463 = vst.msk [vmem:[%s257 + $0x2a8] sm:$0xf] %vm9292, %v8566
        %9464 = vst.msk [vmem:[%s257 + $0x2ac] sm:$0xf] %vm9292, %v8567
        %9465 = vst.msk [vmem:[%s257 + $0x2b0] sm:$0xf] %vm9292, %v8568
        %9466 = vst.msk [vmem:[%s257 + $0x2b4] sm:$0xf] %vm9292, %v8569
        %9467 = vst.msk [vmem:[%s257 + $0x2b8] sm:$0xf] %vm9292, %v8570
        %9468 = vst.msk [vmem:[%s257 + $0x2bc] sm:$0xf] %vm9292, %v8571
        %9469 = vst.msk [vmem:[%s257 + $0x2c0] sm:$0xf] %vm9292, %v8572
        %9470 = vst.msk [vmem:[%s257 + $0x2c4] sm:$0xf] %vm9292, %v8573
        %9471 = vst.msk [vmem:[%s257 + $0x2c8] sm:$0xf] %vm9292, %v8574
        %9472 = vst.msk [vmem:[%s257 + $0x2cc] sm:$0xf] %vm9292, %v8575
        %9473 = vst.msk [vmem:[%s257 + $0x2d0] sm:$0xf] %vm9292, %v8576
        %9474 = vst.msk [vmem:[%s257 + $0x2d4] sm:$0xf] %vm9292, %v8577
        %9475 = vst.msk [vmem:[%s257 + $0x2d8] sm:$0xf] %vm9292, %v8578
        %9476 = vst.msk [vmem:[%s257 + $0x2dc] sm:$0xf] %vm9292, %v8579
        %9477 = vst.msk [vmem:[%s257 + $0x2e0] sm:$0xf] %vm9292, %v8580
        %9478 = vst.msk [vmem:[%s257 + $0x2e4] sm:$0xf] %vm9292, %v8581
        %9479 = vst.msk [vmem:[%s257 + $0x2e8] sm:$0xf] %vm9292, %v8582
        %9480 = vst.msk [vmem:[%s257 + $0x2ec] sm:$0xf] %vm9292, %v8583
        %9481 = vst.msk [vmem:[%s257 + $0x2f0] sm:$0xf] %vm9292, %v8584
        %9482 = vst.msk [vmem:[%s257 + $0x2f4] sm:$0xf] %vm9292, %v8585
        %9483 = vst.msk [vmem:[%s257 + $0x2f8] sm:$0xf] %vm9292, %v8586
        %9484 = vst.msk [vmem:[%s257 + $0x2fc] sm:$0xf] %vm9292, %v8587
        %9485 = vst.msk [vmem:[%s257 + $0x300] sm:$0xf] %vm9292, %v8588
        %9486 = vst.msk [vmem:[%s257 + $0x304] sm:$0xf] %vm9292, %v8589
        %9487 = vst.msk [vmem:[%s257 + $0x308] sm:$0xf] %vm9292, %v8590
        %9488 = vst.msk [vmem:[%s257 + $0x30c] sm:$0xf] %vm9292, %v8591
        %9489 = vst.msk [vmem:[%s257 + $0x310] sm:$0xf] %vm9292, %v8592
        %9490 = vst.msk [vmem:[%s257 + $0x314] sm:$0xf] %vm9292, %v8593
        %9491 = vst.msk [vmem:[%s257 + $0x318] sm:$0xf] %vm9292, %v8594
        %9492 = vst.msk [vmem:[%s257 + $0x31c] sm:$0xf] %vm9292, %v8595
        %9493 = vst.msk [vmem:[%s257 + $0x320] sm:$0xf] %vm9292, %v8596
        %9494 = vst.msk [vmem:[%s257 + $0x324] sm:$0xf] %vm9292, %v8597
        %9495 = vst.msk [vmem:[%s257 + $0x328] sm:$0xf] %vm9292, %v8598
        %9496 = vst.msk [vmem:[%s257 + $0x32c] sm:$0xf] %vm9292, %v8599
        %9497 = vst.msk [vmem:[%s257 + $0x330] sm:$0xf] %vm9292, %v8600
        %9498 = vst.msk [vmem:[%s257 + $0x334] sm:$0xf] %vm9292, %v8601
        %9499 = vst.msk [vmem:[%s257 + $0x338] sm:$0xf] %vm9292, %v8602
        %9500 = vst.msk [vmem:[%s257 + $0x33c] sm:$0xf] %vm9292, %v8603
        %9501 = vst.msk [vmem:[%s257 + $0x340] sm:$0xf] %vm9292, %v8604
        %9502 = vst.msk [vmem:[%s257 + $0x344] sm:$0xf] %vm9292, %v8605
        %9503 = vst.msk [vmem:[%s257 + $0x348] sm:$0xf] %vm9292, %v8606
        %9504 = vst.msk [vmem:[%s257 + $0x34c] sm:$0xf] %vm9292, %v8607
        %9505 = vst.msk [vmem:[%s257 + $0x350] sm:$0xf] %vm9292, %v8608
        %9506 = vst.msk [vmem:[%s257 + $0x354] sm:$0xf] %vm9292, %v8609
        %9507 = vst.msk [vmem:[%s257 + $0x358] sm:$0xf] %vm9292, %v8610
        %9508 = vst.msk [vmem:[%s257 + $0x35c] sm:$0xf] %vm9292, %v8611
        %9509 = vst.msk [vmem:[%s257 + $0x360] sm:$0xf] %vm9292, %v8612
        %9510 = vst.msk [vmem:[%s257 + $0x364] sm:$0xf] %vm9292, %v8613
        %9511 = vst.msk [vmem:[%s257 + $0x368] sm:$0xf] %vm9292, %v8614
        %9512 = vst.msk [vmem:[%s257 + $0x36c] sm:$0xf] %vm9292, %v8615
        %9513 = vst.msk [vmem:[%s257 + $0x370] sm:$0xf] %vm9292, %v8616
        %9514 = vst.msk [vmem:[%s257 + $0x374] sm:$0xf] %vm9292, %v8617
        %9515 = vst.msk [vmem:[%s257 + $0x378] sm:$0xf] %vm9292, %v8618
        %9516 = vst.msk [vmem:[%s257 + $0x37c] sm:$0xf] %vm9292, %v8619
        %9517 = vst.msk [vmem:[%s257 + $0x380] sm:$0xf] %vm9292, %v8620
        %9518 = vst.msk [vmem:[%s257 + $0x384] sm:$0xf] %vm9292, %v8621
        %9519 = vst.msk [vmem:[%s257 + $0x388] sm:$0xf] %vm9292, %v8622
        %9520 = vst.msk [vmem:[%s257 + $0x38c] sm:$0xf] %vm9292, %v8623
        %9521 = vst.msk [vmem:[%s257 + $0x390] sm:$0xf] %vm9292, %v8624
        %9522 = vst.msk [vmem:[%s257 + $0x394] sm:$0xf] %vm9292, %v8625
        %9523 = vst.msk [vmem:[%s257 + $0x398] sm:$0xf] %vm9292, %v8626
        %9524 = vst.msk [vmem:[%s257 + $0x39c] sm:$0xf] %vm9292, %v8627
        %9525 = vst.msk [vmem:[%s257 + $0x3a0] sm:$0xf] %vm9292, %v8628
        %9526 = vst.msk [vmem:[%s257 + $0x3a4] sm:$0xf] %vm9292, %v8629
        %9527 = vst.msk [vmem:[%s257 + $0x3a8] sm:$0xf] %vm9292, %v8630
        %9528 = vst.msk [vmem:[%s257 + $0x3ac] sm:$0xf] %vm9292, %v8631
        %9529 = vst.msk [vmem:[%s257 + $0x3b0] sm:$0xf] %vm9292, %v8632
        %9530 = vst.msk [vmem:[%s257 + $0x3b4] sm:$0xf] %vm9292, %v8633
        %9531 = vst.msk [vmem:[%s257 + $0x3b8] sm:$0xf] %vm9292, %v8634
        %9532 = vst.msk [vmem:[%s257 + $0x3bc] sm:$0xf] %vm9292, %v8635
        %9533 = vst.msk [vmem:[%s257 + $0x3c0] sm:$0xf] %vm9292, %v8636
        %9534 = vst.msk [vmem:[%s257 + $0x3c4] sm:$0xf] %vm9292, %v8637
        %9535 = vst.msk [vmem:[%s257 + $0x3c8] sm:$0xf] %vm9292, %v8638
        %9536 = vst.msk [vmem:[%s257 + $0x3cc] sm:$0xf] %vm9292, %v8639
        %9537 = vst.msk [vmem:[%s257 + $0x3d0] sm:$0xf] %vm9292, %v8640
        %9538 = vst.msk [vmem:[%s257 + $0x3d4] sm:$0xf] %vm9292, %v8641
        %9539 = vst.msk [vmem:[%s257 + $0x3d8] sm:$0xf] %vm9292, %v8642
        %9540 = vst.msk [vmem:[%s257 + $0x3dc] sm:$0xf] %vm9292, %v8643
        %9541 = vst.msk [vmem:[%s257 + $0x3e0] sm:$0xf] %vm9292, %v8644
        %9542 = vst.msk [vmem:[%s257 + $0x3e4] sm:$0xf] %vm9292, %v8645
        %9543 = vst.msk [vmem:[%s257 + $0x3e8] sm:$0xf] %vm9292, %v8646
        %9544 = vst.msk [vmem:[%s257 + $0x3ec] sm:$0xf] %vm9292, %v8647
        %9545 = vst.msk [vmem:[%s257 + $0x3f0] sm:$0xf] %vm9292, %v8648
        %9546 = vst.msk [vmem:[%s257 + $0x3f4] sm:$0xf] %vm9292, %v8649
        %9547 = vst.msk [vmem:[%s257 + $0x3f8] sm:$0xf] %vm9292, %v8650
        %9548 = vst.msk [vmem:[%s257 + $0x3fc] sm:$0xf] %vm9292, %v8651
        %9549 = vst.msk [vmem:[%s257 + $0x400] sm:$0xf] %vm9292, %v8652
        %9550 = vst.msk [vmem:[%s257 + $0x404] sm:$0xf] %vm9292, %v8653
        %9551 = vst.msk [vmem:[%s257 + $0x408] sm:$0xf] %vm9292, %v8654
        %9552 = vst.msk [vmem:[%s257 + $0x40c] sm:$0xf] %vm9292, %v8655
        %9553 = vst.msk [vmem:[%s257 + $0x410] sm:$0xf] %vm9292, %v8656
        %9554 = vst.msk [vmem:[%s257 + $0x414] sm:$0xf] %vm9292, %v8657
        %9555 = vst.msk [vmem:[%s257 + $0x418] sm:$0xf] %vm9292, %v8658
        %9556 = vst.msk [vmem:[%s257 + $0x41c] sm:$0xf] %vm9292, %v8659
        %9557 = vst.msk [vmem:[%s257 + $0x420] sm:$0xf] %vm9292, %v8660
        %9558 = vst.msk [vmem:[%s257 + $0x424] sm:$0xf] %vm9292, %v8661
        %9559 = vst.msk [vmem:[%s257 + $0x428] sm:$0xf] %vm9292, %v8662
        %9560 = vst.msk [vmem:[%s257 + $0x42c] sm:$0xf] %vm9292, %v8663
        %9561 = vst.msk [vmem:[%s257 + $0x430] sm:$0xf] %vm9292, %v8664
        %9562 = vst.msk [vmem:[%s257 + $0x434] sm:$0xf] %vm9292, %v8665
        %9563 = vst.msk [vmem:[%s257 + $0x438] sm:$0xf] %vm9292, %v8666
        %9564 = vst.msk [vmem:[%s257 + $0x43c] sm:$0xf] %vm9292, %v8667
        %9565 = vst.msk [vmem:[%s257 + $0x440] sm:$0xf] %vm9292, %v8668
        %9566 = vst.msk [vmem:[%s257 + $0x444] sm:$0xf] %vm9292, %v8669
        %9567 = vst.msk [vmem:[%s257 + $0x448] sm:$0xf] %vm9292, %v8670
        %9568 = vst.msk [vmem:[%s257 + $0x44c] sm:$0xf] %vm9292, %v8671
        %9569 = vst.msk [vmem:[%s257 + $0x450] sm:$0xf] %vm9292, %v8672
        %9570 = vst.msk [vmem:[%s257 + $0x454] sm:$0xf] %vm9292, %v8673
        %9571 = vst.msk [vmem:[%s257 + $0x458] sm:$0xf] %vm9292, %v8674
        %9572 = vst.msk [vmem:[%s257 + $0x45c] sm:$0xf] %vm9292, %v8675
        %9573 = vst.msk [vmem:[%s257 + $0x460] sm:$0xf] %vm9292, %v8676
        %9574 = vst.msk [vmem:[%s257 + $0x464] sm:$0xf] %vm9292, %v8677
        %9575 = vst.msk [vmem:[%s257 + $0x468] sm:$0xf] %vm9292, %v8678
        %9576 = vst.msk [vmem:[%s257 + $0x46c] sm:$0xf] %vm9292, %v8679
        %9577 = vst.msk [vmem:[%s257 + $0x470] sm:$0xf] %vm9292, %v8680
        %9578 = vst.msk [vmem:[%s257 + $0x474] sm:$0xf] %vm9292, %v8681
        %9579 = vst.msk [vmem:[%s257 + $0x478] sm:$0xf] %vm9292, %v8682
        %9580 = vst.msk [vmem:[%s257 + $0x47c] sm:$0xf] %vm9292, %v8683
        %9581 = vst.msk [vmem:[%s257 + $0x480] sm:$0xf] %vm9292, %v8684
        %9582 = vst.msk [vmem:[%s257 + $0x484] sm:$0xf] %vm9292, %v8685
        %9583 = vst.msk [vmem:[%s257 + $0x488] sm:$0xf] %vm9292, %v8686
        %9584 = vst.msk [vmem:[%s257 + $0x48c] sm:$0xf] %vm9292, %v8687
        %9585 = vst.msk [vmem:[%s257 + $0x490] sm:$0xf] %vm9292, %v8688
        %9586 = vst.msk [vmem:[%s257 + $0x494] sm:$0xf] %vm9292, %v8689
        %9587 = vst.msk [vmem:[%s257 + $0x498] sm:$0xf] %vm9292, %v8690
        %9588 = vst.msk [vmem:[%s257 + $0x49c] sm:$0xf] %vm9292, %v8691
        %9589 = vst.msk [vmem:[%s257 + $0x4a0] sm:$0xf] %vm9292, %v8692
        %9590 = vst.msk [vmem:[%s257 + $0x4a4] sm:$0xf] %vm9292, %v8693
        %9591 = vst.msk [vmem:[%s257 + $0x4a8] sm:$0xf] %vm9292, %v8694
        %9592 = vst.msk [vmem:[%s257 + $0x4ac] sm:$0xf] %vm9292, %v8695
        %9593 = vst.msk [vmem:[%s257 + $0x4b0] sm:$0xf] %vm9292, %v8696
        %9594 = vst.msk [vmem:[%s257 + $0x4b4] sm:$0xf] %vm9292, %v8697
        %9595 = vst.msk [vmem:[%s257 + $0x4b8] sm:$0xf] %vm9292, %v8698
        %9596 = vst.msk [vmem:[%s257 + $0x4bc] sm:$0xf] %vm9292, %v8699
        %9597 = vst.msk [vmem:[%s257 + $0x4c0] sm:$0xf] %vm9292, %v8700
        %9598 = vst.msk [vmem:[%s257 + $0x4c4] sm:$0xf] %vm9292, %v8701
        %9599 = vst.msk [vmem:[%s257 + $0x4c8] sm:$0xf] %vm9292, %v8702
        %9600 = vst.msk [vmem:[%s257 + $0x4cc] sm:$0xf] %vm9292, %v8703
        %9601 = vst.msk [vmem:[%s257 + $0x4d0] sm:$0xf] %vm9292, %v8704
        %9602 = vst.msk [vmem:[%s257 + $0x4d4] sm:$0xf] %vm9292, %v8705
        %9603 = vst.msk [vmem:[%s257 + $0x4d8] sm:$0xf] %vm9292, %v8706
        %9604 = vst.msk [vmem:[%s257 + $0x4dc] sm:$0xf] %vm9292, %v8707
        %9605 = vst.msk [vmem:[%s257 + $0x4e0] sm:$0xf] %vm9292, %v8708
        %9606 = vst.msk [vmem:[%s257 + $0x4e4] sm:$0xf] %vm9292, %v8709
        %9607 = vst.msk [vmem:[%s257 + $0x4e8] sm:$0xf] %vm9292, %v8710
        %9608 = vst.msk [vmem:[%s257 + $0x4ec] sm:$0xf] %vm9292, %v8711
        %9609 = vst.msk [vmem:[%s257 + $0x4f0] sm:$0xf] %vm9292, %v8712
        %9610 = vst.msk [vmem:[%s257 + $0x4f4] sm:$0xf] %vm9292, %v8713
        %9611 = vst.msk [vmem:[%s257 + $0x4f8] sm:$0xf] %vm9292, %v8714
        %9612 = vst.msk [vmem:[%s257 + $0x4fc] sm:$0xf] %vm9292, %v8715
        %9613 = vst.msk [vmem:[%s257 + $0x500] sm:$0xf] %vm9292, %v8716
        %9614 = vst.msk [vmem:[%s257 + $0x504] sm:$0xf] %vm9292, %v8717
        %9615 = vst.msk [vmem:[%s257 + $0x508] sm:$0xf] %vm9292, %v8718
        %9616 = vst.msk [vmem:[%s257 + $0x50c] sm:$0xf] %vm9292, %v8719
        %9617 = vst.msk [vmem:[%s257 + $0x510] sm:$0xf] %vm9292, %v8720
        %9618 = vst.msk [vmem:[%s257 + $0x514] sm:$0xf] %vm9292, %v8721
        %9619 = vst.msk [vmem:[%s257 + $0x518] sm:$0xf] %vm9292, %v8722
        %9620 = vst.msk [vmem:[%s257 + $0x51c] sm:$0xf] %vm9292, %v8723
        %9621 = vst.msk [vmem:[%s257 + $0x520] sm:$0xf] %vm9292, %v8724
        %9622 = vst.msk [vmem:[%s257 + $0x524] sm:$0xf] %vm9292, %v8725
        %9623 = vst.msk [vmem:[%s257 + $0x528] sm:$0xf] %vm9292, %v8726
        %9624 = vst.msk [vmem:[%s257 + $0x52c] sm:$0xf] %vm9292, %v8727
        %9625 = vst.msk [vmem:[%s257 + $0x530] sm:$0xf] %vm9292, %v8728
        %9626 = vst.msk [vmem:[%s257 + $0x534] sm:$0xf] %vm9292, %v8729
        %9627 = vst.msk [vmem:[%s257 + $0x538] sm:$0xf] %vm9292, %v8730
        %9628 = vst.msk [vmem:[%s257 + $0x53c] sm:$0xf] %vm9292, %v8731
        %9629 = vst.msk [vmem:[%s257 + $0x540] sm:$0xf] %vm9292, %v8732
        %9630 = vst.msk [vmem:[%s257 + $0x544] sm:$0xf] %vm9292, %v8733
        %9631 = vst.msk [vmem:[%s257 + $0x548] sm:$0xf] %vm9292, %v8734
        %9632 = vst.msk [vmem:[%s257 + $0x54c] sm:$0xf] %vm9292, %v8735
        %9633 = vst.msk [vmem:[%s257 + $0x550] sm:$0xf] %vm9292, %v8736
        %9634 = vst.msk [vmem:[%s257 + $0x554] sm:$0xf] %vm9292, %v8737
        %9635 = vst.msk [vmem:[%s257 + $0x558] sm:$0xf] %vm9292, %v8738
        %9636 = vst.msk [vmem:[%s257 + $0x55c] sm:$0xf] %vm9292, %v8739
        %9637 = vst.msk [vmem:[%s257 + $0x560] sm:$0xf] %vm9292, %v8740
        %9638 = vst.msk [vmem:[%s257 + $0x564] sm:$0xf] %vm9292, %v8741
        %9639 = vst.msk [vmem:[%s257 + $0x568] sm:$0xf] %vm9292, %v8742
        %9640 = vst.msk [vmem:[%s257 + $0x56c] sm:$0xf] %vm9292, %v8743
        %9641 = vst.msk [vmem:[%s257 + $0x570] sm:$0xf] %vm9292, %v8744
        %9642 = vst.msk [vmem:[%s257 + $0x574] sm:$0xf] %vm9292, %v8745
        %9643 = vst.msk [vmem:[%s257 + $0x578] sm:$0xf] %vm9292, %v8746
        %9644 = vst.msk [vmem:[%s257 + $0x57c] sm:$0xf] %vm9292, %v8747
        %9645 = vst.msk [vmem:[%s257 + $0x580] sm:$0xf] %vm9292, %v8748
        %9646 = vst.msk [vmem:[%s257 + $0x584] sm:$0xf] %vm9292, %v8749
        %9647 = vst.msk [vmem:[%s257 + $0x588] sm:$0xf] %vm9292, %v8750
        %9648 = vst.msk [vmem:[%s257 + $0x58c] sm:$0xf] %vm9292, %v8751
        %9649 = vst.msk [vmem:[%s257 + $0x590] sm:$0xf] %vm9292, %v8752
        %9650 = vst.msk [vmem:[%s257 + $0x594] sm:$0xf] %vm9292, %v8753
        %9651 = vst.msk [vmem:[%s257 + $0x598] sm:$0xf] %vm9292, %v8754
        %9652 = vst.msk [vmem:[%s257 + $0x59c] sm:$0xf] %vm9292, %v8755
        %9653 = vst.msk [vmem:[%s257 + $0x5a0] sm:$0xf] %vm9292, %v8756
        %9654 = vst.msk [vmem:[%s257 + $0x5a4] sm:$0xf] %vm9292, %v8757
        %9655 = vst.msk [vmem:[%s257 + $0x5a8] sm:$0xf] %vm9292, %v8758
        %9656 = vst.msk [vmem:[%s257 + $0x5ac] sm:$0xf] %vm9292, %v8759
        %9657 = vst.msk [vmem:[%s257 + $0x5b0] sm:$0xf] %vm9292, %v8760
        %9658 = vst.msk [vmem:[%s257 + $0x5b4] sm:$0xf] %vm9292, %v8761
        %9659 = vst.msk [vmem:[%s257 + $0x5b8] sm:$0xf] %vm9292, %v8762
        %9660 = vst.msk [vmem:[%s257 + $0x5bc] sm:$0xf] %vm9292, %v8763
        %9661 = vst.msk [vmem:[%s257 + $0x5c0] sm:$0xf] %vm9292, %v8764
        %9662 = vst.msk [vmem:[%s257 + $0x5c4] sm:$0xf] %vm9292, %v8765
        %9663 = vst.msk [vmem:[%s257 + $0x5c8] sm:$0xf] %vm9292, %v8766
        %9664 = vst.msk [vmem:[%s257 + $0x5cc] sm:$0xf] %vm9292, %v8767
        %9665 = vst.msk [vmem:[%s257 + $0x5d0] sm:$0xf] %vm9292, %v8768
        %9666 = vst.msk [vmem:[%s257 + $0x5d4] sm:$0xf] %vm9292, %v8769
        %9667 = vst.msk [vmem:[%s257 + $0x5d8] sm:$0xf] %vm9292, %v8770
        %9668 = vst.msk [vmem:[%s257 + $0x5dc] sm:$0xf] %vm9292, %v8771
        %9669 = vst.msk [vmem:[%s257 + $0x5e0] sm:$0xf] %vm9292, %v8772
        %9670 = vst.msk [vmem:[%s257 + $0x5e4] sm:$0xf] %vm9292, %v8773
        %9671 = vst.msk [vmem:[%s257 + $0x5e8] sm:$0xf] %vm9292, %v8774
        %9672 = vst.msk [vmem:[%s257 + $0x5ec] sm:$0xf] %vm9292, %v8775
        %9673 = vst.msk [vmem:[%s257 + $0x5f0] sm:$0xf] %vm9292, %v8776
        %9674 = vst.msk [vmem:[%s257 + $0x5f4] sm:$0xf] %vm9292, %v8777
        %9675 = vst.msk [vmem:[%s257 + $0x5f8] sm:$0xf] %vm9292, %v8778
        %9676 = vst.msk [vmem:[%s257 + $0x5fc] sm:$0xf] %vm9292, %v8779
        %9677 = vst.msk [vmem:[%s257 + $0x600] sm:$0xf] %vm9292, %v8780
        %9678 = vst.msk [vmem:[%s257 + $0x604] sm:$0xf] %vm9292, %v8781
        %9679 = vst.msk [vmem:[%s257 + $0x608] sm:$0xf] %vm9292, %v8782
        %9680 = vst.msk [vmem:[%s257 + $0x60c] sm:$0xf] %vm9292, %v8783
        %9681 = vst.msk [vmem:[%s257 + $0x610] sm:$0xf] %vm9292, %v8784
        %9682 = vst.msk [vmem:[%s257 + $0x614] sm:$0xf] %vm9292, %v8785
        %9683 = vst.msk [vmem:[%s257 + $0x618] sm:$0xf] %vm9292, %v8786
        %9684 = vst.msk [vmem:[%s257 + $0x61c] sm:$0xf] %vm9292, %v8787
        %9685 = vst.msk [vmem:[%s257 + $0x620] sm:$0xf] %vm9292, %v8788
        %9686 = vst.msk [vmem:[%s257 + $0x624] sm:$0xf] %vm9292, %v8789
        %9687 = vst.msk [vmem:[%s257 + $0x628] sm:$0xf] %vm9292, %v8790
        %9688 = vst.msk [vmem:[%s257 + $0x62c] sm:$0xf] %vm9292, %v8791
        %9689 = vst.msk [vmem:[%s257 + $0x630] sm:$0xf] %vm9292, %v8792
        %9690 = vst.msk [vmem:[%s257 + $0x634] sm:$0xf] %vm9292, %v8793
        %9691 = vst.msk [vmem:[%s257 + $0x638] sm:$0xf] %vm9292, %v8794
        %9692 = vst.msk [vmem:[%s257 + $0x63c] sm:$0xf] %vm9292, %v8795
        %9693 = vst.msk [vmem:[%s257 + $0x640] sm:$0xf] %vm9292, %v8796
        %9694 = vst.msk [vmem:[%s257 + $0x644] sm:$0xf] %vm9292, %v8797
        %9695 = vst.msk [vmem:[%s257 + $0x648] sm:$0xf] %vm9292, %v8798
        %9696 = vst.msk [vmem:[%s257 + $0x64c] sm:$0xf] %vm9292, %v8799
        %9697 = vst.msk [vmem:[%s257 + $0x650] sm:$0xf] %vm9292, %v8800
        %9698 = vst.msk [vmem:[%s257 + $0x654] sm:$0xf] %vm9292, %v8801
        %9699 = vst.msk [vmem:[%s257 + $0x658] sm:$0xf] %vm9292, %v8802
        %9700 = vst.msk [vmem:[%s257 + $0x65c] sm:$0xf] %vm9292, %v8803
        %9701 = vst.msk [vmem:[%s257 + $0x660] sm:$0xf] %vm9292, %v8804
        %9702 = vst.msk [vmem:[%s257 + $0x664] sm:$0xf] %vm9292, %v8805
        %9703 = vst.msk [vmem:[%s257 + $0x668] sm:$0xf] %vm9292, %v8806
        %9704 = vst.msk [vmem:[%s257 + $0x66c] sm:$0xf] %vm9292, %v8807
        %9705 = vst.msk [vmem:[%s257 + $0x670] sm:$0xf] %vm9292, %v8808
        %9706 = vst.msk [vmem:[%s257 + $0x674] sm:$0xf] %vm9292, %v8809
        %9707 = vst.msk [vmem:[%s257 + $0x678] sm:$0xf] %vm9292, %v8810
        %9708 = vst.msk [vmem:[%s257 + $0x67c] sm:$0xf] %vm9292, %v8811
        %9709 = vst.msk [vmem:[%s257 + $0x680] sm:$0xf] %vm9292, %v8812
        %9710 = vst.msk [vmem:[%s257 + $0x684] sm:$0xf] %vm9292, %v8813
        %9711 = vst.msk [vmem:[%s257 + $0x688] sm:$0xf] %vm9292, %v8814
        %9712 = vst.msk [vmem:[%s257 + $0x68c] sm:$0xf] %vm9292, %v8815
        %9713 = vst.msk [vmem:[%s257 + $0x690] sm:$0xf] %vm9292, %v8816
        %9714 = vst.msk [vmem:[%s257 + $0x694] sm:$0xf] %vm9292, %v8817
        %9715 = vst.msk [vmem:[%s257 + $0x698] sm:$0xf] %vm9292, %v8818
        %9716 = vst.msk [vmem:[%s257 + $0x69c] sm:$0xf] %vm9292, %v8819
        %9717 = vst.msk [vmem:[%s257 + $0x6a0] sm:$0xf] %vm9292, %v8820
        %9718 = vst.msk [vmem:[%s257 + $0x6a4] sm:$0xf] %vm9292, %v8821
        %9719 = vst.msk [vmem:[%s257 + $0x6a8] sm:$0xf] %vm9292, %v8822
        %9720 = vst.msk [vmem:[%s257 + $0x6ac] sm:$0xf] %vm9292, %v8823
        %9721 = vst.msk [vmem:[%s257 + $0x6b0] sm:$0xf] %vm9292, %v8824
        %9722 = vst.msk [vmem:[%s257 + $0x6b4] sm:$0xf] %vm9292, %v8825
        %9723 = vst.msk [vmem:[%s257 + $0x6b8] sm:$0xf] %vm9292, %v8826
        %9724 = vst.msk [vmem:[%s257 + $0x6bc] sm:$0xf] %vm9292, %v8827
        %9725 = vst.msk [vmem:[%s257 + $0x6c0] sm:$0xf] %vm9292, %v8828
        %9726 = vst.msk [vmem:[%s257 + $0x6c4] sm:$0xf] %vm9292, %v8829
        %9727 = vst.msk [vmem:[%s257 + $0x6c8] sm:$0xf] %vm9292, %v8830
        %9728 = vst.msk [vmem:[%s257 + $0x6cc] sm:$0xf] %vm9292, %v8831
        %9729 = vst.msk [vmem:[%s257 + $0x6d0] sm:$0xf] %vm9292, %v8832
        %9730 = vst.msk [vmem:[%s257 + $0x6d4] sm:$0xf] %vm9292, %v8833
        %9731 = vst.msk [vmem:[%s257 + $0x6d8] sm:$0xf] %vm9292, %v8834
        %9732 = vst.msk [vmem:[%s257 + $0x6dc] sm:$0xf] %vm9292, %v8835
        %9733 = vst.msk [vmem:[%s257 + $0x6e0] sm:$0xf] %vm9292, %v8836
        %9734 = vst.msk [vmem:[%s257 + $0x6e4] sm:$0xf] %vm9292, %v8837
        %9735 = vst.msk [vmem:[%s257 + $0x6e8] sm:$0xf] %vm9292, %v8838
        %9736 = vst.msk [vmem:[%s257 + $0x6ec] sm:$0xf] %vm9292, %v8839
        %9737 = vst.msk [vmem:[%s257 + $0x6f0] sm:$0xf] %vm9292, %v8840
        %9738 = vst.msk [vmem:[%s257 + $0x6f4] sm:$0xf] %vm9292, %v8841
        %9739 = vst.msk [vmem:[%s257 + $0x6f8] sm:$0xf] %vm9292, %v8842
        %9740 = vst.msk [vmem:[%s257 + $0x6fc] sm:$0xf] %vm9292, %v8843
      $region40: #{tpu_custom_call.1} parent=31 // pred_fallthru
        _
      %s9741 = smul.u32 448, %s19
      %p9742 = scmp.lt.s32.totalorder %s9741, 12543
      %s9743 = scalar_select %p9742, %s9741, 12543
      %p9744 = scmp.lt.s32.totalorder %s20, 0
      %s9745 = scalar_select %p9744, %s20, 0
      %s9746 = sadd.s32 %s9745, %s9743
      %s9747 = smul.addr %s9746, 4
      %s9748 = scalar_lea.vmem %s3, %s9747
      // Predicated region
      $region41: #{tpu_custom_call.1} parent=31 // pred_check
        %p9749 = pneg %p135
      $region42: #{tpu_custom_call.1} parent=31 // pred_check_branch
        %9751 = sbr.rel (%p9749) target = $region44
      $region43: #{tpu_custom_call.1} parent=31 // pred_region
        %s9752 = smul.u32 448, %s19
      $region44: #{tpu_custom_call.1} parent=31 // pred_fallthru
        _
    $region32: #{tpu_custom_call.1} parent=5 // pred_fallthru
      _
    %p9753 = scmp.le.s32.totalorder 2, %s9
    // Predicated region
    $region45: #{tpu_custom_call.1} parent=5 // pred_check
      %p9754 = pneg %p9753
    $region46: #{tpu_custom_call.1} parent=5 // pred_check_branch
      %9756 = sbr.rel (%p9754) target = $region48
    $region47: #{tpu_custom_call.1} parent=5 // pred_region
      %s9757 = ssub.s32 %s9, 2
      // Predicated region
      $region49: #{tpu_custom_call.1} parent=47 // pred_check
        %p9758 = pneg %p141
      $region50: #{tpu_custom_call.1} parent=47 // pred_check_branch
        %9760 = sbr.rel (%p9758) target = $region52
      $region51: #{tpu_custom_call.1} parent=47 // pred_region
        %s9761 = smul.u32 448, %s22
        %p9762 = scmp.lt.s32.totalorder %s9761, 12543
        %s9763 = scalar_select %p9762, %s9761, 12543
        %p9764 = scmp.lt.s32.totalorder %s23, 0
        %s9765 = scalar_select %p9764, %s23, 0
        %s9766 = sadd.s32 %s9765, %s9763
        %s9767 = smul.addr %s9766, 4
        %s9768 = scalar_lea.vmem %s3, %s9767
      $region52: #{tpu_custom_call.1} parent=47 // pred_fallthru
        _
    $region48: #{tpu_custom_call.1} parent=5 // pred_fallthru
      _
  $region6: #{tpu_custom_call.1} parent=0 // loop_footer
    %s13 = sadd.s32 1, %s9
  $region7: #{tpu_custom_call.1} parent=0 // loop_footer_branch
    %8 = sbr.rel target = $region3
  $region8: #{tpu_custom_call.1} parent=0 // loop_exit
    _

</llo_original>
